<compile_context>
chip_gen: v7x
topology: tpu7x:2x2x1
jax: 0.10.0
libtpu: 0.0.40
codegen_flags: <defaults>
</compile_context>

<pallas_src>
import jax
import jax.numpy as jnp
from jax.experimental import pallas as pl
from jax.experimental.pallas import tpu as pltpu


def _block_diag(mat, n):
    """kron(I_n, mat): n copies of `mat` along the diagonal."""
    return jnp.kron(jnp.eye(n, dtype=mat.dtype), mat)


# ------------------------------ fused kernel -------------------------------

def make_fused_kernel(num_layers, N, S, Wn, C, bB):
    SN = S * N
    WC = Wn * C

    def kernel(x_ref, emb_ref, adj_ref, wconv_ref, bconv_ref, *rest):
        o_ref = rest[-1]
        wrefs = rest[:-1]
        TC = x_ref.shape[1]
        bf16 = jnp.bfloat16

        # 1) temporal + spatial positional embedding (f32 elementwise)
        xe = (x_ref[...].reshape(bB, N, TC) + emb_ref[...][None]).reshape(bB * N, TC)

        # 2) gated dilated "Conv1d" (kernel (1,2), dilation 3): every batch row and
        #    every output time step in ONE matmul against the block weight.
        xab = jnp.concatenate([xe[:, :WC], xe[:, 3 * C:3 * C + WC]], axis=1)
        z = jnp.dot(xab.astype(bf16), wconv_ref[...],
                    preferred_element_type=jnp.float32) + bconv_ref[...]
        x_res = jnp.tanh(z[:, :WC]) * jax.nn.sigmoid(z[:, WC:])     # (bB*N, WC) f32

        adj_bf = adj_ref[...]            # (SN, SN) bf16, read once

        acc = None                       # running max of the layers' middle step
        h_bf = None                      # (bB*SN, Wn*cout) bf16 after each layer
        cin = C
        for l in range(num_layers):
            w_bd = wrefs[2 * l][...]     # (Wn*cin, 2*Wn*cout) bf16, [lhs_all|rhs_all]
            b_bd = wrefs[2 * l + 1][...]  # (1, 2*Wn*cout) f32
            cout = w_bd.shape[1] // (2 * Wn)

            # adjacency multiply, per batch element (result rows = graph vertices)
            ax_parts = []
            for b in range(bB):
                if l == 0:
                    # adj @ [lane-concat windows of xe_b] decomposed over the S
                    # in-window time offsets: S dots on views, nothing materialized.
                    xe_b = xe[b * N:(b + 1) * N, :]
                    a = jnp.dot(adj_bf[:, :N],
                                xe_b[:, :Wn * cin].astype(bf16),
                                preferred_element_type=jnp.float32)
                    for s in range(1, S):
                        a = a + jnp.dot(
                            adj_bf[:, s * N:(s + 1) * N],
                            xe_b[:, s * C:s * C + Wn * cin].astype(bf16),
                            preferred_element_type=jnp.float32)
                else:
                    a = jnp.dot(adj_bf, h_bf[b * SN:(b + 1) * SN, :],
                                preferred_element_type=jnp.float32)
                ax_parts.append(a)
            ax = jnp.concatenate(ax_parts, axis=0)           # (bB*SN, Wn*cin) f32

            # GLU Linear for all windows x all batch rows: one wide dot against the
            # block-diagonal weight, then a single lane-slice split.
            zz = jnp.dot(ax.astype(bf16), w_bd,
                         preferred_element_type=jnp.float32) + b_bd
            h = zz[:, :Wn * cout] * jax.nn.sigmoid(zz[:, Wn * cout:])   # f32
            h_bf = h.astype(bf16)

            # middle time-step vertices of every batch element
            mid = jnp.concatenate(
                [h[b * SN + N:b * SN + 2 * N, :] for b in range(bB)], axis=0)
            acc = mid if acc is None else jnp.maximum(acc, mid)
            cin = cout

        # 3) residual add with the gated-conv branch; one lane-dense store.
        o_ref[...] = (acc + x_res).astype(o_ref.dtype)

    return kernel


# ------------------------------ forward pass -------------------------------

def stsgcl_forward(x, adj, p, S, out_dims, bB=None):
    B, T, N, C = x.shape
    Tout = T - 3                       # dilated conv: kernel 2, dilation 3
    Wn = T - S + 1                     # number of sliding windows
    SN = S * N
    WC = Wn * C
    Co = out_dims[-1]
    assert Wn == Tout and Co == C
    assert all(d == out_dims[0] for d in out_dims)
    if bB is None:                     # batch elements per grid step
        bB = B // 2 if (B % 2 == 0 and B >= 2) else B
    assert B % bB == 0

    # node-major layout: rows (b, n), lanes (t, c) -> every window becomes a
    # contiguous lane slice in-kernel and the output store is lane-dense.
    x2 = x.transpose(0, 2, 1, 3).reshape(B * N, T * C)
    emb2 = p['emb'].transpose(1, 0, 2).reshape(N, T * C)

    # bf16 MXU operands (f32 accumulation happens in-kernel)
    adj_bf = adj.astype(jnp.bfloat16)

    # gated dilated conv as one block weight:
    #   input cols [xa windows | xb windows], output cols [z1 windows | z2 windows]
    w_conv_bd = jnp.concatenate(
        [jnp.concatenate([_block_diag(p['w10'], Wn),
                          _block_diag(p['w20'], Wn)], axis=1),
         jnp.concatenate([_block_diag(p['w11'], Wn),
                          _block_diag(p['w21'], Wn)], axis=1)],
        axis=0).astype(jnp.bfloat16)                                  # (2*WC, 2*WC)
    b_conv_bd = jnp.concatenate([jnp.tile(p['b1'], (1, Wn)),
                                 jnp.tile(p['b2'], (1, Wn))], axis=1)  # (1, 2*WC) f32

    # per-layer GLU Linear: block-diagonal over the Wn lane-concatenated windows,
    # output columns ordered [lhs_all | rhs_all]
    flat_wb = []
    cin = C
    for (w_cat, b_cat) in p['gcn']:
        out_d = w_cat.shape[1] // 2
        w_bd = jnp.concatenate([_block_diag(w_cat[:, :out_d], Wn),
                                _block_diag(w_cat[:, out_d:], Wn)],
                               axis=1).astype(jnp.bfloat16)   # (Wn*cin, 2*Wn*out_d)
        b_bd = jnp.concatenate([jnp.tile(b_cat[:, :out_d], (1, Wn)),
                                jnp.tile(b_cat[:, out_d:], (1, Wn))], axis=1)
        flat_wb += [w_bd, b_bd]
        cin = out_d

    def nb(a):
        return int(a.size) * a.dtype.itemsize

    # advisory cost estimate + explicit VMEM budget (perf-review item 5)
    flops = 2 * (B * N) * (2 * WC) * (2 * WC)
    trans = 2 * B * N * WC
    ci = C
    for out_d in out_dims:
        flops += 2 * B * SN * SN * (Wn * ci)                 # adjacency dots
        flops += 2 * B * SN * (Wn * ci) * (2 * Wn * out_d)   # block-diag GLU dot
        trans += B * SN * Wn * out_d
        ci = out_d
    const_bytes = (nb(emb2) + nb(adj_bf) + nb(w_conv_bd) + nb(b_conv_bd)
                   + sum(nb(a) for a in flat_wb))
    out_bytes = B * N * Wn * Co * 4
    cost = pl.CostEstimate(flops=int(flops), transcendentals=int(trans),
                           bytes_accessed=int(nb(x2) + const_bytes + out_bytes))
    blk_bytes = (2 * (bB * N) * (T * C) * 4          # x block (double buffered)
                 + 2 * (bB * N) * (Wn * Co) * 4      # out block (double buffered)
                 + const_bytes)
    vmem_limit = int(min(64 << 20, max(24 << 20, 4 * blk_bytes)))

    kernel = make_fused_kernel(len(out_dims), N, S, Wn, C, bB)
    args = (x2, emb2, adj_bf, w_conv_bd, b_conv_bd, *flat_wb)

    def run(single_buffer_consts):
        pm = ({"pipeline_mode": pl.Buffered(1)} if single_buffer_consts else {})

        def const2d(arr):
            return pl.BlockSpec(arr.shape, lambda i: (0, 0), **pm)

        in_specs = [pl.BlockSpec((bB * N, T * C), lambda i: (i, 0)),
                    const2d(emb2), const2d(adj_bf),
                    const2d(w_conv_bd), const2d(b_conv_bd)]
        in_specs += [const2d(a) for a in flat_wb]
        return pl.pallas_call(
            kernel,
            out_shape=jax.ShapeDtypeStruct((B * N, Wn * Co), jnp.float32),
            grid=(B // bB,),
            in_specs=in_specs,
            out_specs=pl.BlockSpec((bB * N, Wn * Co), lambda i: (i, 0)),
            compiler_params=pltpu.CompilerParams(
                dimension_semantics=("parallel",),
                vmem_limit_bytes=vmem_limit),
            cost_estimate=cost,
        )(*args)

    try:
        out2 = jax.block_until_ready(run(True))
    except Exception:   # pipeline_mode=Buffered(1) unsupported -> default specs
        out2 = jax.block_until_ready(run(False))

    # undo the node-major layout: (B*N, Wn*Co) -> (B, Wn, N, Co)
    return out2.reshape(B, N, Wn, Co).transpose(0, 2, 1, 3)


# -------------------------- pure-JAX reference -----------------------------

def stsgcl_reference(x, adj, p, S, out_dims):
    B, T, N, C = x.shape
    Tout = T - 3
    Wn = T - S + 1
    x = x + p['emb'][None]
    xa, xb = x[:, :Tout], x[:, 3:]
    z1 = (jnp.einsum('btnc,cd->btnd', xa, p['w10'])
          + jnp.einsum('btnc,cd->btnd', xb, p['w11']) + p['b1'][0])
    z2 = (jnp.einsum('btnc,cd->btnd', xa, p['w20'])
          + jnp.einsum('btnc,cd->btnd', xb, p['w21']) + p['b2'][0])
    x_res = jnp.tanh(z1) * jax.nn.sigmoid(z2)
    outs = []
    for i in range(Wn):
        h = x[:, i:i + S].reshape(B, S * N, C)
        mids = []
        for l, out_d in enumerate(out_dims):
            w_cat, b_cat = p['gcn'][l]
            ax = jnp.einsum('nm,bmc->bnc', adj, h)
            z = jnp.einsum('bnc,cd->bnd', ax, w_cat) + b_cat[0]
            h = z[..., :out_d] * jax.nn.sigmoid(z[..., out_d:])   # GLU
            mids.append(h[:, N:2 * N])
        outs.append(jnp.max(jnp.stack(mids, 0), axis=0))
    return jnp.stack(outs, axis=1) + x_res


# ------------------------------ param setup --------------------------------

def init_params(key, T, N, C, out_dims):
    ks = list(jax.random.split(key, 8 + 2 * len(out_dims)))
    ki = iter(ks)
    p = {}
    temb = 3e-4 * jax.random.normal(next(ki), (T, 1, C), dtype=jnp.float32)
    semb = 3e-4 * jax.random.normal(next(ki), (1, N, C), dtype=jnp.float32)
    p['emb'] = temb + semb                               # (T, N, C)

    def lin(k, i, o):
        return (jax.random.normal(k, (i, o), dtype=jnp.float32)
                / jnp.sqrt(jnp.float32(i)))

    # dilated conv 1 / 2 weights: tap-0 (t) and tap-1 (t+3) of the (1,2) kernel
    p['w10'] = lin(next(ki), C, C)
    p['w11'] = lin(next(ki), C, C)
    p['b1'] = 0.1 * jax.random.normal(next(ki), (1, C), dtype=jnp.float32)
    p['w20'] = lin(next(ki), C, C)
    p['w21'] = lin(next(ki), C, C)
    p['b2'] = 0.1 * jax.random.normal(next(ki), (1, C), dtype=jnp.float32)

    # GCN layers (GLU): the module's single Linear(in, 2*out), split at use
    p['gcn'] = []
    in_d = C
    for out_d in out_dims:
        w_cat = lin(next(ki), in_d, 2 * out_d)
        b_cat = 0.1 * jax.random.normal(next(ki), (1, 2 * out_d),
                                        dtype=jnp.float32)
        p['gcn'].append((w_cat, b_cat))
        in_d = out_d
    return p


# ---------------------------------- main ------------------------------------

if __name__ == "__main__":
    B, T, N, C = 8, 8, 8, 32      # batch, history, num_vertices, in_dim
    S = 4                         # strides (see shape note at top of file)
    out_dims = [C, C]

    key = jax.random.PRNGKey(0)
    k_adj, k_par, k_x = jax.random.split(key, 3)

    # deterministic normalized adjacency over the local S*N spatio-temporal graph
    a = jax.random.uniform(k_adj, (S * N, S * N))
    adj = (a > 0.7).astype(jnp.float32) + jnp.eye(S * N, dtype=jnp.float32)
    adj = adj / jnp.sum(adj, axis=1, keepdims=True)

    params = init_params(k_par, T, N, C, out_dims)
    x = jax.random.normal(k_x, (B, T, N, C), dtype=jnp.float32)

    out = stsgcl_forward(x, adj, params, S, out_dims)
    out = jax.block_until_ready(out)

    ref = stsgcl_reference(x, adj, params, S, out_dims)
    assert out.shape == (B, T - S + 1, N, out_dims[-1]), out.shape
    err = float(jnp.max(jnp.abs(out - ref)))
    assert jnp.allclose(out, ref, rtol=1e-2, atol=1e-2), err
    print("KERNEL_OK")
</pallas_src>

<mosaic_0001>
module attributes {stable_mosaic.version = 11 : i64} {
  func.func @kernel(%arg0: i32, %arg1: memref<32x256xf32, #tpu.memory_space<vmem>>, %arg2: memref<8x256xf32, #tpu.memory_space<vmem>>, %arg3: memref<32x32xbf16, #tpu.memory_space<vmem>>, %arg4: memref<320x320xbf16, #tpu.memory_space<vmem>>, %arg5: memref<1x320xf32, #tpu.memory_space<vmem>>, %arg6: memref<160x320xbf16, #tpu.memory_space<vmem>>, %arg7: memref<1x320xf32, #tpu.memory_space<vmem>>, %arg8: memref<160x320xbf16, #tpu.memory_space<vmem>>, %arg9: memref<1x320xf32, #tpu.memory_space<vmem>>, %arg10: memref<32x160xf32, #tpu.memory_space<vmem>>) attributes {dimension_semantics = [#tpu.dimension_semantics<parallel>], iteration_bounds = array<i64: 2>, scalar_prefetch = 0 : i64, scratch_operands = 0 : i64, tpu.core_type = #tpu.core_type<tc>, window_params = [{transform_indices = @transform_0, window_bounds = array<i64: 32, 256>}, {pipeline_mode = #tpu.pipeline_mode<synchronous>, transform_indices = @transform_1, window_bounds = array<i64: 8, 256>}, {pipeline_mode = #tpu.pipeline_mode<synchronous>, transform_indices = @transform_2, window_bounds = array<i64: 32, 32>}, {pipeline_mode = #tpu.pipeline_mode<synchronous>, transform_indices = @transform_3, window_bounds = array<i64: 320, 320>}, {pipeline_mode = #tpu.pipeline_mode<synchronous>, transform_indices = @transform_4, window_bounds = array<i64: 1, 320>}, {pipeline_mode = #tpu.pipeline_mode<synchronous>, transform_indices = @transform_5, window_bounds = array<i64: 160, 320>}, {pipeline_mode = #tpu.pipeline_mode<synchronous>, transform_indices = @transform_6, window_bounds = array<i64: 1, 320>}, {pipeline_mode = #tpu.pipeline_mode<synchronous>, transform_indices = @transform_7, window_bounds = array<i64: 160, 320>}, {pipeline_mode = #tpu.pipeline_mode<synchronous>, transform_indices = @transform_8, window_bounds = array<i64: 1, 320>}, {transform_indices = @transform_9, window_bounds = array<i64: 32, 160>}]} {
    %c0 = arith.constant 0 : index
    %c0_0 = arith.constant 0 : index
    %0 = vector.load %arg1[%c0, %c0_0] : memref<32x256xf32, #tpu.memory_space<vmem>>, vector<32x256xf32>
    %1 = vector.shape_cast %0 : vector<32x256xf32> to vector<4x8x256xf32>
    %c0_1 = arith.constant 0 : index
    %c0_2 = arith.constant 0 : index
    %2 = vector.load %arg2[%c0_1, %c0_2] : memref<8x256xf32, #tpu.memory_space<vmem>>, vector<8x256xf32>
    %3 = vector.shape_cast %2 : vector<8x256xf32> to vector<1x8x256xf32>
    %4 = vector.broadcast %3 : vector<1x8x256xf32> to vector<4x8x256xf32>
    %5 = arith.addf %1, %4 : vector<4x8x256xf32>
    %6 = vector.shape_cast %5 : vector<4x8x256xf32> to vector<32x256xf32>
    %7 = vector.extract_strided_slice %6 {offsets = [0, 0], sizes = [32, 160], strides = [1, 1]} : vector<32x256xf32> to vector<32x160xf32>
    %8 = vector.extract_strided_slice %6 {offsets = [0, 96], sizes = [32, 160], strides = [1, 1]} : vector<32x256xf32> to vector<32x160xf32>
    %9 = tpu.concatenate %7, %8 in 1 : vector<32x160xf32>, vector<32x160xf32> -> vector<32x320xf32>
    %10 = arith.truncf %9 : vector<32x320xf32> to vector<32x320xbf16>
    %c0_3 = arith.constant 0 : index
    %c0_4 = arith.constant 0 : index
    %11 = vector.load %arg4[%c0_3, %c0_4] : memref<320x320xbf16, #tpu.memory_space<vmem>>, vector<320x320xbf16>
    %cst = arith.constant dense<0.000000e+00> : vector<32x320xf32>
    %12 = tpu.matmul %10, %11, %cst {dimension_numbers = #tpu.dot_dimension_numbers<[1], [0], [0], [1], [0, 0, 1, 1], [], []>} : vector<32x320xbf16>, vector<320x320xbf16>, vector<32x320xf32> -> vector<32x320xf32>
    %c0_5 = arith.constant 0 : index
    %c0_6 = arith.constant 0 : index
    %13 = vector.load %arg5[%c0_5, %c0_6] : memref<1x320xf32, #tpu.memory_space<vmem>>, vector<1x320xf32>
    %14 = vector.broadcast %13 : vector<1x320xf32> to vector<32x320xf32>
    %15 = arith.addf %12, %14 : vector<32x320xf32>
    %16 = vector.extract_strided_slice %15 {offsets = [0, 0], sizes = [32, 160], strides = [1, 1]} : vector<32x320xf32> to vector<32x160xf32>
    %17 = math.tanh %16 : vector<32x160xf32>
    %18 = vector.extract_strided_slice %15 {offsets = [0, 160], sizes = [32, 160], strides = [1, 1]} : vector<32x320xf32> to vector<32x160xf32>
    %19 = arith.negf %18 : vector<32x160xf32>
    %20 = math.exp %19 : vector<32x160xf32>
    %cst_7 = arith.constant 1.000000e+00 : f32
    %21 = vector.broadcast %cst_7 : f32 to vector<32x160xf32>
    %22 = arith.addf %21, %20 : vector<32x160xf32>
    %23 = arith.divf %21, %22 : vector<32x160xf32>
    %24 = arith.mulf %17, %23 : vector<32x160xf32>
    %c0_8 = arith.constant 0 : index
    %c0_9 = arith.constant 0 : index
    %25 = vector.load %arg3[%c0_8, %c0_9] : memref<32x32xbf16, #tpu.memory_space<vmem>>, vector<32x32xbf16>
    %c0_10 = arith.constant 0 : index
    %c0_11 = arith.constant 0 : index
    %26 = vector.load %arg6[%c0_10, %c0_11] : memref<160x320xbf16, #tpu.memory_space<vmem>>, vector<160x320xbf16>
    %c0_12 = arith.constant 0 : index
    %c0_13 = arith.constant 0 : index
    %27 = vector.load %arg7[%c0_12, %c0_13] : memref<1x320xf32, #tpu.memory_space<vmem>>, vector<1x320xf32>
    %28 = vector.extract_strided_slice %6 {offsets = [0, 0], sizes = [8, 256], strides = [1, 1]} : vector<32x256xf32> to vector<8x256xf32>
    %29 = vector.extract_strided_slice %25 {offsets = [0, 0], sizes = [32, 8], strides = [1, 1]} : vector<32x32xbf16> to vector<32x8xbf16>
    %30 = vector.extract_strided_slice %28 {offsets = [0, 0], sizes = [8, 160], strides = [1, 1]} : vector<8x256xf32> to vector<8x160xf32>
    %31 = arith.truncf %30 : vector<8x160xf32> to vector<8x160xbf16>
    %cst_14 = arith.constant dense<0.000000e+00> : vector<32x160xf32>
    %32 = tpu.matmul %29, %31, %cst_14 {dimension_numbers = #tpu.dot_dimension_numbers<[1], [0], [0], [1], [0, 0, 1, 1], [], []>} : vector<32x8xbf16>, vector<8x160xbf16>, vector<32x160xf32> -> vector<32x160xf32>
    %33 = vector.extract_strided_slice %25 {offsets = [0, 8], sizes = [32, 8], strides = [1, 1]} : vector<32x32xbf16> to vector<32x8xbf16>
    %34 = vector.extract_strided_slice %28 {offsets = [0, 32], sizes = [8, 160], strides = [1, 1]} : vector<8x256xf32> to vector<8x160xf32>
    %35 = arith.truncf %34 : vector<8x160xf32> to vector<8x160xbf16>
    %cst_15 = arith.constant dense<0.000000e+00> : vector<32x160xf32>
    %36 = tpu.matmul %33, %35, %cst_15 {dimension_numbers = #tpu.dot_dimension_numbers<[1], [0], [0], [1], [0, 0, 1, 1], [], []>} : vector<32x8xbf16>, vector<8x160xbf16>, vector<32x160xf32> -> vector<32x160xf32>
    %37 = arith.addf %32, %36 : vector<32x160xf32>
    %38 = vector.extract_strided_slice %25 {offsets = [0, 16], sizes = [32, 8], strides = [1, 1]} : vector<32x32xbf16> to vector<32x8xbf16>
    %39 = vector.extract_strided_slice %28 {offsets = [0, 64], sizes = [8, 160], strides = [1, 1]} : vector<8x256xf32> to vector<8x160xf32>
    %40 = arith.truncf %39 : vector<8x160xf32> to vector<8x160xbf16>
    %cst_16 = arith.constant dense<0.000000e+00> : vector<32x160xf32>
    %41 = tpu.matmul %38, %40, %cst_16 {dimension_numbers = #tpu.dot_dimension_numbers<[1], [0], [0], [1], [0, 0, 1, 1], [], []>} : vector<32x8xbf16>, vector<8x160xbf16>, vector<32x160xf32> -> vector<32x160xf32>
    %42 = arith.addf %37, %41 : vector<32x160xf32>
    %43 = vector.extract_strided_slice %25 {offsets = [0, 24], sizes = [32, 8], strides = [1, 1]} : vector<32x32xbf16> to vector<32x8xbf16>
    %44 = vector.extract_strided_slice %28 {offsets = [0, 96], sizes = [8, 160], strides = [1, 1]} : vector<8x256xf32> to vector<8x160xf32>
    %45 = arith.truncf %44 : vector<8x160xf32> to vector<8x160xbf16>
    %cst_17 = arith.constant dense<0.000000e+00> : vector<32x160xf32>
    %46 = tpu.matmul %43, %45, %cst_17 {dimension_numbers = #tpu.dot_dimension_numbers<[1], [0], [0], [1], [0, 0, 1, 1], [], []>} : vector<32x8xbf16>, vector<8x160xbf16>, vector<32x160xf32> -> vector<32x160xf32>
    %47 = arith.addf %42, %46 : vector<32x160xf32>
    %48 = vector.extract_strided_slice %6 {offsets = [8, 0], sizes = [8, 256], strides = [1, 1]} : vector<32x256xf32> to vector<8x256xf32>
    %49 = vector.extract_strided_slice %25 {offsets = [0, 0], sizes = [32, 8], strides = [1, 1]} : vector<32x32xbf16> to vector<32x8xbf16>
    %50 = vector.extract_strided_slice %48 {offsets = [0, 0], sizes = [8, 160], strides = [1, 1]} : vector<8x256xf32> to vector<8x160xf32>
    %51 = arith.truncf %50 : vector<8x160xf32> to vector<8x160xbf16>
    %cst_18 = arith.constant dense<0.000000e+00> : vector<32x160xf32>
    %52 = tpu.matmul %49, %51, %cst_18 {dimension_numbers = #tpu.dot_dimension_numbers<[1], [0], [0], [1], [0, 0, 1, 1], [], []>} : vector<32x8xbf16>, vector<8x160xbf16>, vector<32x160xf32> -> vector<32x160xf32>
    %53 = vector.extract_strided_slice %25 {offsets = [0, 8], sizes = [32, 8], strides = [1, 1]} : vector<32x32xbf16> to vector<32x8xbf16>
    %54 = vector.extract_strided_slice %48 {offsets = [0, 32], sizes = [8, 160], strides = [1, 1]} : vector<8x256xf32> to vector<8x160xf32>
    %55 = arith.truncf %54 : vector<8x160xf32> to vector<8x160xbf16>
    %cst_19 = arith.constant dense<0.000000e+00> : vector<32x160xf32>
    %56 = tpu.matmul %53, %55, %cst_19 {dimension_numbers = #tpu.dot_dimension_numbers<[1], [0], [0], [1], [0, 0, 1, 1], [], []>} : vector<32x8xbf16>, vector<8x160xbf16>, vector<32x160xf32> -> vector<32x160xf32>
    %57 = arith.addf %52, %56 : vector<32x160xf32>
    %58 = vector.extract_strided_slice %25 {offsets = [0, 16], sizes = [32, 8], strides = [1, 1]} : vector<32x32xbf16> to vector<32x8xbf16>
    %59 = vector.extract_strided_slice %48 {offsets = [0, 64], sizes = [8, 160], strides = [1, 1]} : vector<8x256xf32> to vector<8x160xf32>
    %60 = arith.truncf %59 : vector<8x160xf32> to vector<8x160xbf16>
    %cst_20 = arith.constant dense<0.000000e+00> : vector<32x160xf32>
    %61 = tpu.matmul %58, %60, %cst_20 {dimension_numbers = #tpu.dot_dimension_numbers<[1], [0], [0], [1], [0, 0, 1, 1], [], []>} : vector<32x8xbf16>, vector<8x160xbf16>, vector<32x160xf32> -> vector<32x160xf32>
    %62 = arith.addf %57, %61 : vector<32x160xf32>
    %63 = vector.extract_strided_slice %25 {offsets = [0, 24], sizes = [32, 8], strides = [1, 1]} : vector<32x32xbf16> to vector<32x8xbf16>
    %64 = vector.extract_strided_slice %48 {offsets = [0, 96], sizes = [8, 160], strides = [1, 1]} : vector<8x256xf32> to vector<8x160xf32>
    %65 = arith.truncf %64 : vector<8x160xf32> to vector<8x160xbf16>
    %cst_21 = arith.constant dense<0.000000e+00> : vector<32x160xf32>
    %66 = tpu.matmul %63, %65, %cst_21 {dimension_numbers = #tpu.dot_dimension_numbers<[1], [0], [0], [1], [0, 0, 1, 1], [], []>} : vector<32x8xbf16>, vector<8x160xbf16>, vector<32x160xf32> -> vector<32x160xf32>
    %67 = arith.addf %62, %66 : vector<32x160xf32>
    %68 = vector.extract_strided_slice %6 {offsets = [16, 0], sizes = [8, 256], strides = [1, 1]} : vector<32x256xf32> to vector<8x256xf32>
    %69 = vector.extract_strided_slice %25 {offsets = [0, 0], sizes = [32, 8], strides = [1, 1]} : vector<32x32xbf16> to vector<32x8xbf16>
    %70 = vector.extract_strided_slice %68 {offsets = [0, 0], sizes = [8, 160], strides = [1, 1]} : vector<8x256xf32> to vector<8x160xf32>
    %71 = arith.truncf %70 : vector<8x160xf32> to vector<8x160xbf16>
    %cst_22 = arith.constant dense<0.000000e+00> : vector<32x160xf32>
    %72 = tpu.matmul %69, %71, %cst_22 {dimension_numbers = #tpu.dot_dimension_numbers<[1], [0], [0], [1], [0, 0, 1, 1], [], []>} : vector<32x8xbf16>, vector<8x160xbf16>, vector<32x160xf32> -> vector<32x160xf32>
    %73 = vector.extract_strided_slice %25 {offsets = [0, 8], sizes = [32, 8], strides = [1, 1]} : vector<32x32xbf16> to vector<32x8xbf16>
    %74 = vector.extract_strided_slice %68 {offsets = [0, 32], sizes = [8, 160], strides = [1, 1]} : vector<8x256xf32> to vector<8x160xf32>
    %75 = arith.truncf %74 : vector<8x160xf32> to vector<8x160xbf16>
    %cst_23 = arith.constant dense<0.000000e+00> : vector<32x160xf32>
    %76 = tpu.matmul %73, %75, %cst_23 {dimension_numbers = #tpu.dot_dimension_numbers<[1], [0], [0], [1], [0, 0, 1, 1], [], []>} : vector<32x8xbf16>, vector<8x160xbf16>, vector<32x160xf32> -> vector<32x160xf32>
    %77 = arith.addf %72, %76 : vector<32x160xf32>
    %78 = vector.extract_strided_slice %25 {offsets = [0, 16], sizes = [32, 8], strides = [1, 1]} : vector<32x32xbf16> to vector<32x8xbf16>
    %79 = vector.extract_strided_slice %68 {offsets = [0, 64], sizes = [8, 160], strides = [1, 1]} : vector<8x256xf32> to vector<8x160xf32>
    %80 = arith.truncf %79 : vector<8x160xf32> to vector<8x160xbf16>
    %cst_24 = arith.constant dense<0.000000e+00> : vector<32x160xf32>
    %81 = tpu.matmul %78, %80, %cst_24 {dimension_numbers = #tpu.dot_dimension_numbers<[1], [0], [0], [1], [0, 0, 1, 1], [], []>} : vector<32x8xbf16>, vector<8x160xbf16>, vector<32x160xf32> -> vector<32x160xf32>
    %82 = arith.addf %77, %81 : vector<32x160xf32>
    %83 = vector.extract_strided_slice %25 {offsets = [0, 24], sizes = [32, 8], strides = [1, 1]} : vector<32x32xbf16> to vector<32x8xbf16>
    %84 = vector.extract_strided_slice %68 {offsets = [0, 96], sizes = [8, 160], strides = [1, 1]} : vector<8x256xf32> to vector<8x160xf32>
    %85 = arith.truncf %84 : vector<8x160xf32> to vector<8x160xbf16>
    %cst_25 = arith.constant dense<0.000000e+00> : vector<32x160xf32>
    %86 = tpu.matmul %83, %85, %cst_25 {dimension_numbers = #tpu.dot_dimension_numbers<[1], [0], [0], [1], [0, 0, 1, 1], [], []>} : vector<32x8xbf16>, vector<8x160xbf16>, vector<32x160xf32> -> vector<32x160xf32>
    %87 = arith.addf %82, %86 : vector<32x160xf32>
    %88 = vector.extract_strided_slice %6 {offsets = [24, 0], sizes = [8, 256], strides = [1, 1]} : vector<32x256xf32> to vector<8x256xf32>
    %89 = vector.extract_strided_slice %25 {offsets = [0, 0], sizes = [32, 8], strides = [1, 1]} : vector<32x32xbf16> to vector<32x8xbf16>
    %90 = vector.extract_strided_slice %88 {offsets = [0, 0], sizes = [8, 160], strides = [1, 1]} : vector<8x256xf32> to vector<8x160xf32>
    %91 = arith.truncf %90 : vector<8x160xf32> to vector<8x160xbf16>
    %cst_26 = arith.constant dense<0.000000e+00> : vector<32x160xf32>
    %92 = tpu.matmul %89, %91, %cst_26 {dimension_numbers = #tpu.dot_dimension_numbers<[1], [0], [0], [1], [0, 0, 1, 1], [], []>} : vector<32x8xbf16>, vector<8x160xbf16>, vector<32x160xf32> -> vector<32x160xf32>
    %93 = vector.extract_strided_slice %25 {offsets = [0, 8], sizes = [32, 8], strides = [1, 1]} : vector<32x32xbf16> to vector<32x8xbf16>
    %94 = vector.extract_strided_slice %88 {offsets = [0, 32], sizes = [8, 160], strides = [1, 1]} : vector<8x256xf32> to vector<8x160xf32>
    %95 = arith.truncf %94 : vector<8x160xf32> to vector<8x160xbf16>
    %cst_27 = arith.constant dense<0.000000e+00> : vector<32x160xf32>
    %96 = tpu.matmul %93, %95, %cst_27 {dimension_numbers = #tpu.dot_dimension_numbers<[1], [0], [0], [1], [0, 0, 1, 1], [], []>} : vector<32x8xbf16>, vector<8x160xbf16>, vector<32x160xf32> -> vector<32x160xf32>
    %97 = arith.addf %92, %96 : vector<32x160xf32>
    %98 = vector.extract_strided_slice %25 {offsets = [0, 16], sizes = [32, 8], strides = [1, 1]} : vector<32x32xbf16> to vector<32x8xbf16>
    %99 = vector.extract_strided_slice %88 {offsets = [0, 64], sizes = [8, 160], strides = [1, 1]} : vector<8x256xf32> to vector<8x160xf32>
    %100 = arith.truncf %99 : vector<8x160xf32> to vector<8x160xbf16>
    %cst_28 = arith.constant dense<0.000000e+00> : vector<32x160xf32>
    %101 = tpu.matmul %98, %100, %cst_28 {dimension_numbers = #tpu.dot_dimension_numbers<[1], [0], [0], [1], [0, 0, 1, 1], [], []>} : vector<32x8xbf16>, vector<8x160xbf16>, vector<32x160xf32> -> vector<32x160xf32>
    %102 = arith.addf %97, %101 : vector<32x160xf32>
    %103 = vector.extract_strided_slice %25 {offsets = [0, 24], sizes = [32, 8], strides = [1, 1]} : vector<32x32xbf16> to vector<32x8xbf16>
    %104 = vector.extract_strided_slice %88 {offsets = [0, 96], sizes = [8, 160], strides = [1, 1]} : vector<8x256xf32> to vector<8x160xf32>
    %105 = arith.truncf %104 : vector<8x160xf32> to vector<8x160xbf16>
    %cst_29 = arith.constant dense<0.000000e+00> : vector<32x160xf32>
    %106 = tpu.matmul %103, %105, %cst_29 {dimension_numbers = #tpu.dot_dimension_numbers<[1], [0], [0], [1], [0, 0, 1, 1], [], []>} : vector<32x8xbf16>, vector<8x160xbf16>, vector<32x160xf32> -> vector<32x160xf32>
    %107 = arith.addf %102, %106 : vector<32x160xf32>
    %108 = tpu.concatenate %47, %67, %87, %107 in 0 : vector<32x160xf32>, vector<32x160xf32>, vector<32x160xf32>, vector<32x160xf32> -> vector<128x160xf32>
    %109 = arith.truncf %108 : vector<128x160xf32> to vector<128x160xbf16>
    %cst_30 = arith.constant dense<0.000000e+00> : vector<128x320xf32>
    %110 = tpu.matmul %109, %26, %cst_30 {dimension_numbers = #tpu.dot_dimension_numbers<[1], [0], [0], [1], [0, 0, 1, 1], [], []>} : vector<128x160xbf16>, vector<160x320xbf16>, vector<128x320xf32> -> vector<128x320xf32>
    %111 = vector.broadcast %27 : vector<1x320xf32> to vector<128x320xf32>
    %112 = arith.addf %110, %111 : vector<128x320xf32>
    %113 = vector.extract_strided_slice %112 {offsets = [0, 0], sizes = [128, 160], strides = [1, 1]} : vector<128x320xf32> to vector<128x160xf32>
    %114 = vector.extract_strided_slice %112 {offsets = [0, 160], sizes = [128, 160], strides = [1, 1]} : vector<128x320xf32> to vector<128x160xf32>
    %115 = arith.negf %114 : vector<128x160xf32>
    %116 = math.exp %115 : vector<128x160xf32>
    %cst_31 = arith.constant 1.000000e+00 : f32
    %117 = vector.broadcast %cst_31 : f32 to vector<128x160xf32>
    %118 = arith.addf %117, %116 : vector<128x160xf32>
    %119 = arith.divf %117, %118 : vector<128x160xf32>
    %120 = arith.mulf %113, %119 : vector<128x160xf32>
    %121 = arith.truncf %120 : vector<128x160xf32> to vector<128x160xbf16>
    %122 = vector.extract_strided_slice %120 {offsets = [8, 0], sizes = [8, 160], strides = [1, 1]} : vector<128x160xf32> to vector<8x160xf32>
    %123 = vector.extract_strided_slice %120 {offsets = [40, 0], sizes = [8, 160], strides = [1, 1]} : vector<128x160xf32> to vector<8x160xf32>
    %124 = vector.extract_strided_slice %120 {offsets = [72, 0], sizes = [8, 160], strides = [1, 1]} : vector<128x160xf32> to vector<8x160xf32>
    %125 = vector.extract_strided_slice %120 {offsets = [104, 0], sizes = [8, 160], strides = [1, 1]} : vector<128x160xf32> to vector<8x160xf32>
    %126 = tpu.concatenate %122, %123, %124, %125 in 0 : vector<8x160xf32>, vector<8x160xf32>, vector<8x160xf32>, vector<8x160xf32> -> vector<32x160xf32>
    %c0_32 = arith.constant 0 : index
    %c0_33 = arith.constant 0 : index
    %127 = vector.load %arg8[%c0_32, %c0_33] : memref<160x320xbf16, #tpu.memory_space<vmem>>, vector<160x320xbf16>
    %c0_34 = arith.constant 0 : index
    %c0_35 = arith.constant 0 : index
    %128 = vector.load %arg9[%c0_34, %c0_35] : memref<1x320xf32, #tpu.memory_space<vmem>>, vector<1x320xf32>
    %129 = vector.extract_strided_slice %121 {offsets = [0, 0], sizes = [32, 160], strides = [1, 1]} : vector<128x160xbf16> to vector<32x160xbf16>
    %cst_36 = arith.constant dense<0.000000e+00> : vector<32x160xf32>
    %130 = tpu.matmul %25, %129, %cst_36 {dimension_numbers = #tpu.dot_dimension_numbers<[1], [0], [0], [1], [0, 0, 1, 1], [], []>} : vector<32x32xbf16>, vector<32x160xbf16>, vector<32x160xf32> -> vector<32x160xf32>
    %131 = vector.extract_strided_slice %121 {offsets = [32, 0], sizes = [32, 160], strides = [1, 1]} : vector<128x160xbf16> to vector<32x160xbf16>
    %cst_37 = arith.constant dense<0.000000e+00> : vector<32x160xf32>
    %132 = tpu.matmul %25, %131, %cst_37 {dimension_numbers = #tpu.dot_dimension_numbers<[1], [0], [0], [1], [0, 0, 1, 1], [], []>} : vector<32x32xbf16>, vector<32x160xbf16>, vector<32x160xf32> -> vector<32x160xf32>
    %133 = vector.extract_strided_slice %121 {offsets = [64, 0], sizes = [32, 160], strides = [1, 1]} : vector<128x160xbf16> to vector<32x160xbf16>
    %cst_38 = arith.constant dense<0.000000e+00> : vector<32x160xf32>
    %134 = tpu.matmul %25, %133, %cst_38 {dimension_numbers = #tpu.dot_dimension_numbers<[1], [0], [0], [1], [0, 0, 1, 1], [], []>} : vector<32x32xbf16>, vector<32x160xbf16>, vector<32x160xf32> -> vector<32x160xf32>
    %135 = vector.extract_strided_slice %121 {offsets = [96, 0], sizes = [32, 160], strides = [1, 1]} : vector<128x160xbf16> to vector<32x160xbf16>
    %cst_39 = arith.constant dense<0.000000e+00> : vector<32x160xf32>
    %136 = tpu.matmul %25, %135, %cst_39 {dimension_numbers = #tpu.dot_dimension_numbers<[1], [0], [0], [1], [0, 0, 1, 1], [], []>} : vector<32x32xbf16>, vector<32x160xbf16>, vector<32x160xf32> -> vector<32x160xf32>
    %137 = tpu.concatenate %130, %132, %134, %136 in 0 : vector<32x160xf32>, vector<32x160xf32>, vector<32x160xf32>, vector<32x160xf32> -> vector<128x160xf32>
    %138 = arith.truncf %137 : vector<128x160xf32> to vector<128x160xbf16>
    %cst_40 = arith.constant dense<0.000000e+00> : vector<128x320xf32>
    %139 = tpu.matmul %138, %127, %cst_40 {dimension_numbers = #tpu.dot_dimension_numbers<[1], [0], [0], [1], [0, 0, 1, 1], [], []>} : vector<128x160xbf16>, vector<160x320xbf16>, vector<128x320xf32> -> vector<128x320xf32>
    %140 = vector.broadcast %128 : vector<1x320xf32> to vector<128x320xf32>
    %141 = arith.addf %139, %140 : vector<128x320xf32>
    %142 = vector.extract_strided_slice %141 {offsets = [0, 0], sizes = [128, 160], strides = [1, 1]} : vector<128x320xf32> to vector<128x160xf32>
    %143 = vector.extract_strided_slice %141 {offsets = [0, 160], sizes = [128, 160], strides = [1, 1]} : vector<128x320xf32> to vector<128x160xf32>
    %144 = arith.negf %143 : vector<128x160xf32>
    %145 = math.exp %144 : vector<128x160xf32>
    %cst_41 = arith.constant 1.000000e+00 : f32
    %146 = vector.broadcast %cst_41 : f32 to vector<128x160xf32>
    %147 = arith.addf %146, %145 : vector<128x160xf32>
    %148 = arith.divf %146, %147 : vector<128x160xf32>
    %149 = arith.mulf %142, %148 : vector<128x160xf32>
    %150 = vector.extract_strided_slice %149 {offsets = [8, 0], sizes = [8, 160], strides = [1, 1]} : vector<128x160xf32> to vector<8x160xf32>
    %151 = vector.extract_strided_slice %149 {offsets = [40, 0], sizes = [8, 160], strides = [1, 1]} : vector<128x160xf32> to vector<8x160xf32>
    %152 = vector.extract_strided_slice %149 {offsets = [72, 0], sizes = [8, 160], strides = [1, 1]} : vector<128x160xf32> to vector<8x160xf32>
    %153 = vector.extract_strided_slice %149 {offsets = [104, 0], sizes = [8, 160], strides = [1, 1]} : vector<128x160xf32> to vector<8x160xf32>
    %154 = tpu.concatenate %150, %151, %152, %153 in 0 : vector<8x160xf32>, vector<8x160xf32>, vector<8x160xf32>, vector<8x160xf32> -> vector<32x160xf32>
    %155 = arith.maximumf %126, %154 : vector<32x160xf32>
    %156 = arith.addf %155, %24 : vector<32x160xf32>
    %c0_42 = arith.constant 0 : index
    %c0_43 = arith.constant 0 : index
    %157 = vector.load %arg10[%c0_42, %c0_43] : memref<32x160xf32, #tpu.memory_space<vmem>>, vector<32x160xf32>
    tpu.vector_store %arg10[%c0_42, %c0_43], %156 {strides = array<i32>} : memref<32x160xf32, #tpu.memory_space<vmem>>, vector<32x160xf32>,
    return
  }
  func.func @transform_0(%arg0: i32) -> (i32, i32) {
    %c0_i32 = arith.constant 0 : i32
    %c0_i32_0 = arith.constant 0 : i32
    return %arg0, %c0_i32 : i32, i32
  }
  func.func @transform_1(%arg0: i32) -> (i32, i32) {
    %c0_i32 = arith.constant 0 : i32
    %c0_i32_0 = arith.constant 0 : i32
    %c0_i32_1 = arith.constant 0 : i32
    return %c0_i32, %c0_i32_0 : i32, i32
  }
  func.func @transform_2(%arg0: i32) -> (i32, i32) {
    %c0_i32 = arith.constant 0 : i32
    %c0_i32_0 = arith.constant 0 : i32
    %c0_i32_1 = arith.constant 0 : i32
    return %c0_i32, %c0_i32_0 : i32, i32
  }
  func.func @transform_3(%arg0: i32) -> (i32, i32) {
    %c0_i32 = arith.constant 0 : i32
    %c0_i32_0 = arith.constant 0 : i32
    %c0_i32_1 = arith.constant 0 : i32
    return %c0_i32, %c0_i32_0 : i32, i32
  }
  func.func @transform_4(%arg0: i32) -> (i32, i32) {
    %c0_i32 = arith.constant 0 : i32
    %c0_i32_0 = arith.constant 0 : i32
    %c0_i32_1 = arith.constant 0 : i32
    return %c0_i32, %c0_i32_0 : i32, i32
  }
  func.func @transform_5(%arg0: i32) -> (i32, i32) {
    %c0_i32 = arith.constant 0 : i32
    %c0_i32_0 = arith.constant 0 : i32
    %c0_i32_1 = arith.constant 0 : i32
    return %c0_i32, %c0_i32_0 : i32, i32
  }
  func.func @transform_6(%arg0: i32) -> (i32, i32) {
    %c0_i32 = arith.constant 0 : i32
    %c0_i32_0 = arith.constant 0 : i32
    %c0_i32_1 = arith.constant 0 : i32
    return %c0_i32, %c0_i32_0 : i32, i32
  }
  func.func @transform_7(%arg0: i32) -> (i32, i32) {
    %c0_i32 = arith.constant 0 : i32
    %c0_i32_0 = arith.constant 0 : i32
    %c0_i32_1 = arith.constant 0 : i32
    return %c0_i32, %c0_i32_0 : i32, i32
  }
  func.func @transform_8(%arg0: i32) -> (i32, i32) {
    %c0_i32 = arith.constant 0 : i32
    %c0_i32_0 = arith.constant 0 : i32
    %c0_i32_1 = arith.constant 0 : i32
    return %c0_i32, %c0_i32_0 : i32, i32
  }
  func.func @transform_9(%arg0: i32) -> (i32, i32) {
    %c0_i32 = arith.constant 0 : i32
    %c0_i32_0 = arith.constant 0 : i32
    return %arg0, %c0_i32 : i32, i32
  }
}

module attributes {stable_mosaic.version = 11 : i64} {
  func.func @kernel(%arg0: i32, %arg1: memref<32x256xf32, #tpu.memory_space<vmem>>, %arg2: memref<8x256xf32, #tpu.memory_space<vmem>>, %arg3: memref<32x32xbf16, #tpu.memory_space<vmem>>, %arg4: memref<320x320xbf16, #tpu.memory_space<vmem>>, %arg5: memref<1x320xf32, #tpu.memory_space<vmem>>, %arg6: memref<160x320xbf16, #tpu.memory_space<vmem>>, %arg7: memref<1x320xf32, #tpu.memory_space<vmem>>, %arg8: memref<160x320xbf16, #tpu.memory_space<vmem>>, %arg9: memref<1x320xf32, #tpu.memory_space<vmem>>, %arg10: memref<32x160xf32, #tpu.memory_space<vmem>>) attributes {dimension_semantics = [#tpu.dimension_semantics<parallel>], iteration_bounds = array<i64: 2>, scalar_prefetch = 0 : i64, scratch_operands = 0 : i64, tpu.core_type = #tpu.core_type<tc>, window_params = [{transform_indices = @transform_0, window_bounds = array<i64: 32, 256>}, {pipeline_mode = #tpu.pipeline_mode<synchronous>, transform_indices = @transform_1, window_bounds = array<i64: 8, 256>}, {pipeline_mode = #tpu.pipeline_mode<synchronous>, transform_indices = @transform_2, window_bounds = array<i64: 32, 32>}, {pipeline_mode = #tpu.pipeline_mode<synchronous>, transform_indices = @transform_3, window_bounds = array<i64: 320, 320>}, {pipeline_mode = #tpu.pipeline_mode<synchronous>, transform_indices = @transform_4, window_bounds = array<i64: 1, 320>}, {pipeline_mode = #tpu.pipeline_mode<synchronous>, transform_indices = @transform_5, window_bounds = array<i64: 160, 320>}, {pipeline_mode = #tpu.pipeline_mode<synchronous>, transform_indices = @transform_6, window_bounds = array<i64: 1, 320>}, {pipeline_mode = #tpu.pipeline_mode<synchronous>, transform_indices = @transform_7, window_bounds = array<i64: 160, 320>}, {pipeline_mode = #tpu.pipeline_mode<synchronous>, transform_indices = @transform_8, window_bounds = array<i64: 1, 320>}, {transform_indices = @transform_9, window_bounds = array<i64: 32, 160>}]} {
    %c0 = arith.constant 0 : index
    %c0_0 = arith.constant 0 : index
    %0 = vector.load %arg1[%c0, %c0_0] : memref<32x256xf32, #tpu.memory_space<vmem>>, vector<32x256xf32>
    %1 = vector.shape_cast %0 : vector<32x256xf32> to vector<4x8x256xf32>
    %c0_1 = arith.constant 0 : index
    %c0_2 = arith.constant 0 : index
    %2 = vector.load %arg2[%c0_1, %c0_2] : memref<8x256xf32, #tpu.memory_space<vmem>>, vector<8x256xf32>
    %3 = vector.shape_cast %2 : vector<8x256xf32> to vector<1x8x256xf32>
    %4 = vector.broadcast %3 : vector<1x8x256xf32> to vector<4x8x256xf32>
    %5 = arith.addf %1, %4 : vector<4x8x256xf32>
    %6 = vector.shape_cast %5 : vector<4x8x256xf32> to vector<32x256xf32>
    %7 = vector.extract_strided_slice %6 {offsets = [0, 0], sizes = [32, 160], strides = [1, 1]} : vector<32x256xf32> to vector<32x160xf32>
    %8 = vector.extract_strided_slice %6 {offsets = [0, 96], sizes = [32, 160], strides = [1, 1]} : vector<32x256xf32> to vector<32x160xf32>
    %9 = tpu.concatenate %7, %8 in 1 : vector<32x160xf32>, vector<32x160xf32> -> vector<32x320xf32>
    %10 = arith.truncf %9 : vector<32x320xf32> to vector<32x320xbf16>
    %c0_3 = arith.constant 0 : index
    %c0_4 = arith.constant 0 : index
    %11 = vector.load %arg4[%c0_3, %c0_4] : memref<320x320xbf16, #tpu.memory_space<vmem>>, vector<320x320xbf16>
    %cst = arith.constant dense<0.000000e+00> : vector<32x320xf32>
    %12 = tpu.matmul %10, %11, %cst {dimension_numbers = #tpu.dot_dimension_numbers<[1], [0], [0], [1], [0, 0, 1, 1], [], []>} : vector<32x320xbf16>, vector<320x320xbf16>, vector<32x320xf32> -> vector<32x320xf32>
    %c0_5 = arith.constant 0 : index
    %c0_6 = arith.constant 0 : index
    %13 = vector.load %arg5[%c0_5, %c0_6] : memref<1x320xf32, #tpu.memory_space<vmem>>, vector<1x320xf32>
    %14 = vector.broadcast %13 : vector<1x320xf32> to vector<32x320xf32>
    %15 = arith.addf %12, %14 : vector<32x320xf32>
    %16 = vector.extract_strided_slice %15 {offsets = [0, 0], sizes = [32, 160], strides = [1, 1]} : vector<32x320xf32> to vector<32x160xf32>
    %17 = math.tanh %16 : vector<32x160xf32>
    %18 = vector.extract_strided_slice %15 {offsets = [0, 160], sizes = [32, 160], strides = [1, 1]} : vector<32x320xf32> to vector<32x160xf32>
    %19 = arith.negf %18 : vector<32x160xf32>
    %20 = math.exp %19 : vector<32x160xf32>
    %cst_7 = arith.constant 1.000000e+00 : f32
    %21 = vector.broadcast %cst_7 : f32 to vector<32x160xf32>
    %22 = arith.addf %21, %20 : vector<32x160xf32>
    %23 = arith.divf %21, %22 : vector<32x160xf32>
    %24 = arith.mulf %17, %23 : vector<32x160xf32>
    %c0_8 = arith.constant 0 : index
    %c0_9 = arith.constant 0 : index
    %25 = vector.load %arg3[%c0_8, %c0_9] : memref<32x32xbf16, #tpu.memory_space<vmem>>, vector<32x32xbf16>
    %c0_10 = arith.constant 0 : index
    %c0_11 = arith.constant 0 : index
    %26 = vector.load %arg6[%c0_10, %c0_11] : memref<160x320xbf16, #tpu.memory_space<vmem>>, vector<160x320xbf16>
    %c0_12 = arith.constant 0 : index
    %c0_13 = arith.constant 0 : index
    %27 = vector.load %arg7[%c0_12, %c0_13] : memref<1x320xf32, #tpu.memory_space<vmem>>, vector<1x320xf32>
    %28 = vector.extract_strided_slice %6 {offsets = [0, 0], sizes = [8, 256], strides = [1, 1]} : vector<32x256xf32> to vector<8x256xf32>
    %29 = vector.extract_strided_slice %25 {offsets = [0, 0], sizes = [32, 8], strides = [1, 1]} : vector<32x32xbf16> to vector<32x8xbf16>
    %30 = vector.extract_strided_slice %28 {offsets = [0, 0], sizes = [8, 160], strides = [1, 1]} : vector<8x256xf32> to vector<8x160xf32>
    %31 = arith.truncf %30 : vector<8x160xf32> to vector<8x160xbf16>
    %cst_14 = arith.constant dense<0.000000e+00> : vector<32x160xf32>
    %32 = tpu.matmul %29, %31, %cst_14 {dimension_numbers = #tpu.dot_dimension_numbers<[1], [0], [0], [1], [0, 0, 1, 1], [], []>} : vector<32x8xbf16>, vector<8x160xbf16>, vector<32x160xf32> -> vector<32x160xf32>
    %33 = vector.extract_strided_slice %25 {offsets = [0, 8], sizes = [32, 8], strides = [1, 1]} : vector<32x32xbf16> to vector<32x8xbf16>
    %34 = vector.extract_strided_slice %28 {offsets = [0, 32], sizes = [8, 160], strides = [1, 1]} : vector<8x256xf32> to vector<8x160xf32>
    %35 = arith.truncf %34 : vector<8x160xf32> to vector<8x160xbf16>
    %cst_15 = arith.constant dense<0.000000e+00> : vector<32x160xf32>
    %36 = tpu.matmul %33, %35, %cst_15 {dimension_numbers = #tpu.dot_dimension_numbers<[1], [0], [0], [1], [0, 0, 1, 1], [], []>} : vector<32x8xbf16>, vector<8x160xbf16>, vector<32x160xf32> -> vector<32x160xf32>
    %37 = arith.addf %32, %36 : vector<32x160xf32>
    %38 = vector.extract_strided_slice %25 {offsets = [0, 16], sizes = [32, 8], strides = [1, 1]} : vector<32x32xbf16> to vector<32x8xbf16>
    %39 = vector.extract_strided_slice %28 {offsets = [0, 64], sizes = [8, 160], strides = [1, 1]} : vector<8x256xf32> to vector<8x160xf32>
    %40 = arith.truncf %39 : vector<8x160xf32> to vector<8x160xbf16>
    %cst_16 = arith.constant dense<0.000000e+00> : vector<32x160xf32>
    %41 = tpu.matmul %38, %40, %cst_16 {dimension_numbers = #tpu.dot_dimension_numbers<[1], [0], [0], [1], [0, 0, 1, 1], [], []>} : vector<32x8xbf16>, vector<8x160xbf16>, vector<32x160xf32> -> vector<32x160xf32>
    %42 = arith.addf %37, %41 : vector<32x160xf32>
    %43 = vector.extract_strided_slice %25 {offsets = [0, 24], sizes = [32, 8], strides = [1, 1]} : vector<32x32xbf16> to vector<32x8xbf16>
    %44 = vector.extract_strided_slice %28 {offsets = [0, 96], sizes = [8, 160], strides = [1, 1]} : vector<8x256xf32> to vector<8x160xf32>
    %45 = arith.truncf %44 : vector<8x160xf32> to vector<8x160xbf16>
    %cst_17 = arith.constant dense<0.000000e+00> : vector<32x160xf32>
    %46 = tpu.matmul %43, %45, %cst_17 {dimension_numbers = #tpu.dot_dimension_numbers<[1], [0], [0], [1], [0, 0, 1, 1], [], []>} : vector<32x8xbf16>, vector<8x160xbf16>, vector<32x160xf32> -> vector<32x160xf32>
    %47 = arith.addf %42, %46 : vector<32x160xf32>
    %48 = vector.extract_strided_slice %6 {offsets = [8, 0], sizes = [8, 256], strides = [1, 1]} : vector<32x256xf32> to vector<8x256xf32>
    %49 = vector.extract_strided_slice %25 {offsets = [0, 0], sizes = [32, 8], strides = [1, 1]} : vector<32x32xbf16> to vector<32x8xbf16>
    %50 = vector.extract_strided_slice %48 {offsets = [0, 0], sizes = [8, 160], strides = [1, 1]} : vector<8x256xf32> to vector<8x160xf32>
    %51 = arith.truncf %50 : vector<8x160xf32> to vector<8x160xbf16>
    %cst_18 = arith.constant dense<0.000000e+00> : vector<32x160xf32>
    %52 = tpu.matmul %49, %51, %cst_18 {dimension_numbers = #tpu.dot_dimension_numbers<[1], [0], [0], [1], [0, 0, 1, 1], [], []>} : vector<32x8xbf16>, vector<8x160xbf16>, vector<32x160xf32> -> vector<32x160xf32>
    %53 = vector.extract_strided_slice %25 {offsets = [0, 8], sizes = [32, 8], strides = [1, 1]} : vector<32x32xbf16> to vector<32x8xbf16>
    %54 = vector.extract_strided_slice %48 {offsets = [0, 32], sizes = [8, 160], strides = [1, 1]} : vector<8x256xf32> to vector<8x160xf32>
    %55 = arith.truncf %54 : vector<8x160xf32> to vector<8x160xbf16>
    %cst_19 = arith.constant dense<0.000000e+00> : vector<32x160xf32>
    %56 = tpu.matmul %53, %55, %cst_19 {dimension_numbers = #tpu.dot_dimension_numbers<[1], [0], [0], [1], [0, 0, 1, 1], [], []>} : vector<32x8xbf16>, vector<8x160xbf16>, vector<32x160xf32> -> vector<32x160xf32>
    %57 = arith.addf %52, %56 : vector<32x160xf32>
    %58 = vector.extract_strided_slice %25 {offsets = [0, 16], sizes = [32, 8], strides = [1, 1]} : vector<32x32xbf16> to vector<32x8xbf16>
    %59 = vector.extract_strided_slice %48 {offsets = [0, 64], sizes = [8, 160], strides = [1, 1]} : vector<8x256xf32> to vector<8x160xf32>
    %60 = arith.truncf %59 : vector<8x160xf32> to vector<8x160xbf16>
    %cst_20 = arith.constant dense<0.000000e+00> : vector<32x160xf32>
    %61 = tpu.matmul %58, %60, %cst_20 {dimension_numbers = #tpu.dot_dimension_numbers<[1], [0], [0], [1], [0, 0, 1, 1], [], []>} : vector<32x8xbf16>, vector<8x160xbf16>, vector<32x160xf32> -> vector<32x160xf32>
    %62 = arith.addf %57, %61 : vector<32x160xf32>
    %63 = vector.extract_strided_slice %25 {offsets = [0, 24], sizes = [32, 8], strides = [1, 1]} : vector<32x32xbf16> to vector<32x8xbf16>
    %64 = vector.extract_strided_slice %48 {offsets = [0, 96], sizes = [8, 160], strides = [1, 1]} : vector<8x256xf32> to vector<8x160xf32>
    %65 = arith.truncf %64 : vector<8x160xf32> to vector<8x160xbf16>
    %cst_21 = arith.constant dense<0.000000e+00> : vector<32x160xf32>
    %66 = tpu.matmul %63, %65, %cst_21 {dimension_numbers = #tpu.dot_dimension_numbers<[1], [0], [0], [1], [0, 0, 1, 1], [], []>} : vector<32x8xbf16>, vector<8x160xbf16>, vector<32x160xf32> -> vector<32x160xf32>
    %67 = arith.addf %62, %66 : vector<32x160xf32>
    %68 = vector.extract_strided_slice %6 {offsets = [16, 0], sizes = [8, 256], strides = [1, 1]} : vector<32x256xf32> to vector<8x256xf32>
    %69 = vector.extract_strided_slice %25 {offsets = [0, 0], sizes = [32, 8], strides = [1, 1]} : vector<32x32xbf16> to vector<32x8xbf16>
    %70 = vector.extract_strided_slice %68 {offsets = [0, 0], sizes = [8, 160], strides = [1, 1]} : vector<8x256xf32> to vector<8x160xf32>
    %71 = arith.truncf %70 : vector<8x160xf32> to vector<8x160xbf16>
    %cst_22 = arith.constant dense<0.000000e+00> : vector<32x160xf32>
    %72 = tpu.matmul %69, %71, %cst_22 {dimension_numbers = #tpu.dot_dimension_numbers<[1], [0], [0], [1], [0, 0, 1, 1], [], []>} : vector<32x8xbf16>, vector<8x160xbf16>, vector<32x160xf32> -> vector<32x160xf32>
    %73 = vector.extract_strided_slice %25 {offsets = [0, 8], sizes = [32, 8], strides = [1, 1]} : vector<32x32xbf16> to vector<32x8xbf16>
    %74 = vector.extract_strided_slice %68 {offsets = [0, 32], sizes = [8, 160], strides = [1, 1]} : vector<8x256xf32> to vector<8x160xf32>
    %75 = arith.truncf %74 : vector<8x160xf32> to vector<8x160xbf16>
    %cst_23 = arith.constant dense<0.000000e+00> : vector<32x160xf32>
    %76 = tpu.matmul %73, %75, %cst_23 {dimension_numbers = #tpu.dot_dimension_numbers<[1], [0], [0], [1], [0, 0, 1, 1], [], []>} : vector<32x8xbf16>, vector<8x160xbf16>, vector<32x160xf32> -> vector<32x160xf32>
    %77 = arith.addf %72, %76 : vector<32x160xf32>
    %78 = vector.extract_strided_slice %25 {offsets = [0, 16], sizes = [32, 8], strides = [1, 1]} : vector<32x32xbf16> to vector<32x8xbf16>
    %79 = vector.extract_strided_slice %68 {offsets = [0, 64], sizes = [8, 160], strides = [1, 1]} : vector<8x256xf32> to vector<8x160xf32>
    %80 = arith.truncf %79 : vector<8x160xf32> to vector<8x160xbf16>
    %cst_24 = arith.constant dense<0.000000e+00> : vector<32x160xf32>
    %81 = tpu.matmul %78, %80, %cst_24 {dimension_numbers = #tpu.dot_dimension_numbers<[1], [0], [0], [1], [0, 0, 1, 1], [], []>} : vector<32x8xbf16>, vector<8x160xbf16>, vector<32x160xf32> -> vector<32x160xf32>
    %82 = arith.addf %77, %81 : vector<32x160xf32>
    %83 = vector.extract_strided_slice %25 {offsets = [0, 24], sizes = [32, 8], strides = [1, 1]} : vector<32x32xbf16> to vector<32x8xbf16>
    %84 = vector.extract_strided_slice %68 {offsets = [0, 96], sizes = [8, 160], strides = [1, 1]} : vector<8x256xf32> to vector<8x160xf32>
    %85 = arith.truncf %84 : vector<8x160xf32> to vector<8x160xbf16>
    %cst_25 = arith.constant dense<0.000000e+00> : vector<32x160xf32>
    %86 = tpu.matmul %83, %85, %cst_25 {dimension_numbers = #tpu.dot_dimension_numbers<[1], [0], [0], [1], [0, 0, 1, 1], [], []>} : vector<32x8xbf16>, vector<8x160xbf16>, vector<32x160xf32> -> vector<32x160xf32>
    %87 = arith.addf %82, %86 : vector<32x160xf32>
    %88 = vector.extract_strided_slice %6 {offsets = [24, 0], sizes = [8, 256], strides = [1, 1]} : vector<32x256xf32> to vector<8x256xf32>
    %89 = vector.extract_strided_slice %25 {offsets = [0, 0], sizes = [32, 8], strides = [1, 1]} : vector<32x32xbf16> to vector<32x8xbf16>
    %90 = vector.extract_strided_slice %88 {offsets = [0, 0], sizes = [8, 160], strides = [1, 1]} : vector<8x256xf32> to vector<8x160xf32>
    %91 = arith.truncf %90 : vector<8x160xf32> to vector<8x160xbf16>
    %cst_26 = arith.constant dense<0.000000e+00> : vector<32x160xf32>
    %92 = tpu.matmul %89, %91, %cst_26 {dimension_numbers = #tpu.dot_dimension_numbers<[1], [0], [0], [1], [0, 0, 1, 1], [], []>} : vector<32x8xbf16>, vector<8x160xbf16>, vector<32x160xf32> -> vector<32x160xf32>
    %93 = vector.extract_strided_slice %25 {offsets = [0, 8], sizes = [32, 8], strides = [1, 1]} : vector<32x32xbf16> to vector<32x8xbf16>
    %94 = vector.extract_strided_slice %88 {offsets = [0, 32], sizes = [8, 160], strides = [1, 1]} : vector<8x256xf32> to vector<8x160xf32>
    %95 = arith.truncf %94 : vector<8x160xf32> to vector<8x160xbf16>
    %cst_27 = arith.constant dense<0.000000e+00> : vector<32x160xf32>
    %96 = tpu.matmul %93, %95, %cst_27 {dimension_numbers = #tpu.dot_dimension_numbers<[1], [0], [0], [1], [0, 0, 1, 1], [], []>} : vector<32x8xbf16>, vector<8x160xbf16>, vector<32x160xf32> -> vector<32x160xf32>
    %97 = arith.addf %92, %96 : vector<32x160xf32>
    %98 = vector.extract_strided_slice %25 {offsets = [0, 16], sizes = [32, 8], strides = [1, 1]} : vector<32x32xbf16> to vector<32x8xbf16>
    %99 = vector.extract_strided_slice %88 {offsets = [0, 64], sizes = [8, 160], strides = [1, 1]} : vector<8x256xf32> to vector<8x160xf32>
    %100 = arith.truncf %99 : vector<8x160xf32> to vector<8x160xbf16>
    %cst_28 = arith.constant dense<0.000000e+00> : vector<32x160xf32>
    %101 = tpu.matmul %98, %100, %cst_28 {dimension_numbers = #tpu.dot_dimension_numbers<[1], [0], [0], [1], [0, 0, 1, 1], [], []>} : vector<32x8xbf16>, vector<8x160xbf16>, vector<32x160xf32> -> vector<32x160xf32>
    %102 = arith.addf %97, %101 : vector<32x160xf32>
    %103 = vector.extract_strided_slice %25 {offsets = [0, 24], sizes = [32, 8], strides = [1, 1]} : vector<32x32xbf16> to vector<32x8xbf16>
    %104 = vector.extract_strided_slice %88 {offsets = [0, 96], sizes = [8, 160], strides = [1, 1]} : vector<8x256xf32> to vector<8x160xf32>
    %105 = arith.truncf %104 : vector<8x160xf32> to vector<8x160xbf16>
    %cst_29 = arith.constant dense<0.000000e+00> : vector<32x160xf32>
    %106 = tpu.matmul %103, %105, %cst_29 {dimension_numbers = #tpu.dot_dimension_numbers<[1], [0], [0], [1], [0, 0, 1, 1], [], []>} : vector<32x8xbf16>, vector<8x160xbf16>, vector<32x160xf32> -> vector<32x160xf32>
    %107 = arith.addf %102, %106 : vector<32x160xf32>
    %108 = tpu.concatenate %47, %67, %87, %107 in 0 : vector<32x160xf32>, vector<32x160xf32>, vector<32x160xf32>, vector<32x160xf32> -> vector<128x160xf32>
    %109 = arith.truncf %108 : vector<128x160xf32> to vector<128x160xbf16>
    %cst_30 = arith.constant dense<0.000000e+00> : vector<128x320xf32>
    %110 = tpu.matmul %109, %26, %cst_30 {dimension_numbers = #tpu.dot_dimension_numbers<[1], [0], [0], [1], [0, 0, 1, 1], [], []>} : vector<128x160xbf16>, vector<160x320xbf16>, vector<128x320xf32> -> vector<128x320xf32>
    %111 = vector.broadcast %27 : vector<1x320xf32> to vector<128x320xf32>
    %112 = arith.addf %110, %111 : vector<128x320xf32>
    %113 = vector.extract_strided_slice %112 {offsets = [0, 0], sizes = [128, 160], strides = [1, 1]} : vector<128x320xf32> to vector<128x160xf32>
    %114 = vector.extract_strided_slice %112 {offsets = [0, 160], sizes = [128, 160], strides = [1, 1]} : vector<128x320xf32> to vector<128x160xf32>
    %115 = arith.negf %114 : vector<128x160xf32>
    %116 = math.exp %115 : vector<128x160xf32>
    %cst_31 = arith.constant 1.000000e+00 : f32
    %117 = vector.broadcast %cst_31 : f32 to vector<128x160xf32>
    %118 = arith.addf %117, %116 : vector<128x160xf32>
    %119 = arith.divf %117, %118 : vector<128x160xf32>
    %120 = arith.mulf %113, %119 : vector<128x160xf32>
    %121 = arith.truncf %120 : vector<128x160xf32> to vector<128x160xbf16>
    %122 = vector.extract_strided_slice %120 {offsets = [8, 0], sizes = [8, 160], strides = [1, 1]} : vector<128x160xf32> to vector<8x160xf32>
    %123 = vector.extract_strided_slice %120 {offsets = [40, 0], sizes = [8, 160], strides = [1, 1]} : vector<128x160xf32> to vector<8x160xf32>
    %124 = vector.extract_strided_slice %120 {offsets = [72, 0], sizes = [8, 160], strides = [1, 1]} : vector<128x160xf32> to vector<8x160xf32>
    %125 = vector.extract_strided_slice %120 {offsets = [104, 0], sizes = [8, 160], strides = [1, 1]} : vector<128x160xf32> to vector<8x160xf32>
    %126 = tpu.concatenate %122, %123, %124, %125 in 0 : vector<8x160xf32>, vector<8x160xf32>, vector<8x160xf32>, vector<8x160xf32> -> vector<32x160xf32>
    %c0_32 = arith.constant 0 : index
    %c0_33 = arith.constant 0 : index
    %127 = vector.load %arg8[%c0_32, %c0_33] : memref<160x320xbf16, #tpu.memory_space<vmem>>, vector<160x320xbf16>
    %c0_34 = arith.constant 0 : index
    %c0_35 = arith.constant 0 : index
    %128 = vector.load %arg9[%c0_34, %c0_35] : memref<1x320xf32, #tpu.memory_space<vmem>>, vector<1x320xf32>
    %129 = vector.extract_strided_slice %121 {offsets = [0, 0], sizes = [32, 160], strides = [1, 1]} : vector<128x160xbf16> to vector<32x160xbf16>
    %cst_36 = arith.constant dense<0.000000e+00> : vector<32x160xf32>
    %130 = tpu.matmul %25, %129, %cst_36 {dimension_numbers = #tpu.dot_dimension_numbers<[1], [0], [0], [1], [0, 0, 1, 1], [], []>} : vector<32x32xbf16>, vector<32x160xbf16>, vector<32x160xf32> -> vector<32x160xf32>
    %131 = vector.extract_strided_slice %121 {offsets = [32, 0], sizes = [32, 160], strides = [1, 1]} : vector<128x160xbf16> to vector<32x160xbf16>
    %cst_37 = arith.constant dense<0.000000e+00> : vector<32x160xf32>
    %132 = tpu.matmul %25, %131, %cst_37 {dimension_numbers = #tpu.dot_dimension_numbers<[1], [0], [0], [1], [0, 0, 1, 1], [], []>} : vector<32x32xbf16>, vector<32x160xbf16>, vector<32x160xf32> -> vector<32x160xf32>
    %133 = vector.extract_strided_slice %121 {offsets = [64, 0], sizes = [32, 160], strides = [1, 1]} : vector<128x160xbf16> to vector<32x160xbf16>
    %cst_38 = arith.constant dense<0.000000e+00> : vector<32x160xf32>
    %134 = tpu.matmul %25, %133, %cst_38 {dimension_numbers = #tpu.dot_dimension_numbers<[1], [0], [0], [1], [0, 0, 1, 1], [], []>} : vector<32x32xbf16>, vector<32x160xbf16>, vector<32x160xf32> -> vector<32x160xf32>
    %135 = vector.extract_strided_slice %121 {offsets = [96, 0], sizes = [32, 160], strides = [1, 1]} : vector<128x160xbf16> to vector<32x160xbf16>
    %cst_39 = arith.constant dense<0.000000e+00> : vector<32x160xf32>
    %136 = tpu.matmul %25, %135, %cst_39 {dimension_numbers = #tpu.dot_dimension_numbers<[1], [0], [0], [1], [0, 0, 1, 1], [], []>} : vector<32x32xbf16>, vector<32x160xbf16>, vector<32x160xf32> -> vector<32x160xf32>
    %137 = tpu.concatenate %130, %132, %134, %136 in 0 : vector<32x160xf32>, vector<32x160xf32>, vector<32x160xf32>, vector<32x160xf32> -> vector<128x160xf32>
    %138 = arith.truncf %137 : vector<128x160xf32> to vector<128x160xbf16>
    %cst_40 = arith.constant dense<0.000000e+00> : vector<128x320xf32>
    %139 = tpu.matmul %138, %127, %cst_40 {dimension_numbers = #tpu.dot_dimension_numbers<[1], [0], [0], [1], [0, 0, 1, 1], [], []>} : vector<128x160xbf16>, vector<160x320xbf16>, vector<128x320xf32> -> vector<128x320xf32>
    %140 = vector.broadcast %128 : vector<1x320xf32> to vector<128x320xf32>
    %141 = arith.addf %139, %140 : vector<128x320xf32>
    %142 = vector.extract_strided_slice %141 {offsets = [0, 0], sizes = [128, 160], strides = [1, 1]} : vector<128x320xf32> to vector<128x160xf32>
    %143 = vector.extract_strided_slice %141 {offsets = [0, 160], sizes = [128, 160], strides = [1, 1]} : vector<128x320xf32> to vector<128x160xf32>
    %144 = arith.negf %143 : vector<128x160xf32>
    %145 = math.exp %144 : vector<128x160xf32>
    %cst_41 = arith.constant 1.000000e+00 : f32
    %146 = vector.broadcast %cst_41 : f32 to vector<128x160xf32>
    %147 = arith.addf %146, %145 : vector<128x160xf32>
    %148 = arith.divf %146, %147 : vector<128x160xf32>
    %149 = arith.mulf %142, %148 : vector<128x160xf32>
    %150 = vector.extract_strided_slice %149 {offsets = [8, 0], sizes = [8, 160], strides = [1, 1]} : vector<128x160xf32> to vector<8x160xf32>
    %151 = vector.extract_strided_slice %149 {offsets = [40, 0], sizes = [8, 160], strides = [1, 1]} : vector<128x160xf32> to vector<8x160xf32>
    %152 = vector.extract_strided_slice %149 {offsets = [72, 0], sizes = [8, 160], strides = [1, 1]} : vector<128x160xf32> to vector<8x160xf32>
    %153 = vector.extract_strided_slice %149 {offsets = [104, 0], sizes = [8, 160], strides = [1, 1]} : vector<128x160xf32> to vector<8x160xf32>
    %154 = tpu.concatenate %150, %151, %152, %153 in 0 : vector<8x160xf32>, vector<8x160xf32>, vector<8x160xf32>, vector<8x160xf32> -> vector<32x160xf32>
    %155 = arith.maximumf %126, %154 : vector<32x160xf32>
    %156 = arith.addf %155, %24 : vector<32x160xf32>
    %c0_42 = arith.constant 0 : index
    %c0_43 = arith.constant 0 : index
    %157 = vector.load %arg10[%c0_42, %c0_43] : memref<32x160xf32, #tpu.memory_space<vmem>>, vector<32x160xf32>
    tpu.vector_store %arg10[%c0_42, %c0_43], %156 {strides = array<i32>} : memref<32x160xf32, #tpu.memory_space<vmem>>, vector<32x160xf32>,
    return
  }
  func.func @transform_0(%arg0: i32) -> (i32, i32) {
    %c0_i32 = arith.constant 0 : i32
    %c0_i32_0 = arith.constant 0 : i32
    return %arg0, %c0_i32 : i32, i32
  }
  func.func @transform_1(%arg0: i32) -> (i32, i32) {
    %c0_i32 = arith.constant 0 : i32
    %c0_i32_0 = arith.constant 0 : i32
    %c0_i32_1 = arith.constant 0 : i32
    return %c0_i32, %c0_i32_0 : i32, i32
  }
  func.func @transform_2(%arg0: i32) -> (i32, i32) {
    %c0_i32 = arith.constant 0 : i32
    %c0_i32_0 = arith.constant 0 : i32
    %c0_i32_1 = arith.constant 0 : i32
    return %c0_i32, %c0_i32_0 : i32, i32
  }
  func.func @transform_3(%arg0: i32) -> (i32, i32) {
    %c0_i32 = arith.constant 0 : i32
    %c0_i32_0 = arith.constant 0 : i32
    %c0_i32_1 = arith.constant 0 : i32
    return %c0_i32, %c0_i32_0 : i32, i32
  }
  func.func @transform_4(%arg0: i32) -> (i32, i32) {
    %c0_i32 = arith.constant 0 : i32
    %c0_i32_0 = arith.constant 0 : i32
    %c0_i32_1 = arith.constant 0 : i32
    return %c0_i32, %c0_i32_0 : i32, i32
  }
  func.func @transform_5(%arg0: i32) -> (i32, i32) {
    %c0_i32 = arith.constant 0 : i32
    %c0_i32_0 = arith.constant 0 : i32
    %c0_i32_1 = arith.constant 0 : i32
    return %c0_i32, %c0_i32_0 : i32, i32
  }
  func.func @transform_6(%arg0: i32) -> (i32, i32) {
    %c0_i32 = arith.constant 0 : i32
    %c0_i32_0 = arith.constant 0 : i32
    %c0_i32_1 = arith.constant 0 : i32
    return %c0_i32, %c0_i32_0 : i32, i32
  }
  func.func @transform_7(%arg0: i32) -> (i32, i32) {
    %c0_i32 = arith.constant 0 : i32
    %c0_i32_0 = arith.constant 0 : i32
    %c0_i32_1 = arith.constant 0 : i32
    return %c0_i32, %c0_i32_0 : i32, i32
  }
  func.func @transform_8(%arg0: i32) -> (i32, i32) {
    %c0_i32 = arith.constant 0 : i32
    %c0_i32_0 = arith.constant 0 : i32
    %c0_i32_1 = arith.constant 0 : i32
    return %c0_i32, %c0_i32_0 : i32, i32
  }
  func.func @transform_9(%arg0: i32) -> (i32, i32) {
    %c0_i32 = arith.constant 0 : i32
    %c0_i32_0 = arith.constant 0 : i32
    return %arg0, %c0_i32 : i32, i32
  }
}

</mosaic_0001>

<llo_original>
// kernel: tpu_custom_call.1
$region0: #{tpu_custom_call.1}
  #allocation0 [shape = 'u32[]', space=smem, size = 0x4, offset = 0x4, fixed_abs, tag = 'smem constant byte address 0x4 - core index']
  #allocation1 [shape = 'u32[144,128]{1,0:T(1,128)}', space=vmem, size = 0x12000, scoped, tag = 'internal scratch']
  %s0 = inlined_call_operand.hbm [shape: f32[64,256], index: 0, kind: input, shape index: {}]
  %s1 = inlined_call_operand.hbm [shape: f32[8,256], index: 1, kind: input, shape index: {}]
  %s2 = inlined_call_operand.hbm [shape: bf16[32,32], index: 2, kind: input, shape index: {}]
  %s3 = inlined_call_operand.hbm [shape: bf16[320,320], index: 3, kind: input, shape index: {}]
  %s4 = inlined_call_operand.vmem [shape: f32[1,320], index: 4, kind: input, shape index: {}]
  %s5 = inlined_call_operand.hbm [shape: bf16[160,320], index: 5, kind: input, shape index: {}]
  %s6 = inlined_call_operand.vmem [shape: f32[1,320], index: 6, kind: input, shape index: {}]
  %s7 = inlined_call_operand.hbm [shape: bf16[160,320], index: 7, kind: input, shape index: {}]
  %s8 = inlined_call_operand.vmem [shape: f32[1,320], index: 8, kind: input, shape index: {}]
  %s9 = inlined_call_operand.hbm [shape: f32[64,160], index: 9, kind: output, shape index: {}]
  %s10 = sld [smem:[#allocation0]]
  $region93: #{tpu_custom_call.1} parent=0
    _
  %s12 = ssub.s32 1, %s10
  %s13 = scalar_select 0, %s12, %s10
  $region1: #{tpu_custom_call.1} parent=0
    #allocation2 [shape = 'u8[65536]{0}', space=vmem, size = 0x10000, scoped, tag = 'input window, operand 0']
    #allocation3 [shape = 's32[2]{0}', space=sflag, size = 0x8, scoped, tag = 'scoped memory for tpu_custom_call.1']
    #allocation4 [shape = 's32[2]{0}', space=sflag, size = 0x8, scoped, tag = 'scoped memory for tpu_custom_call.1']
    #allocation5 [shape = 'u8[8192]{0}', space=vmem, size = 0x2000, scoped, tag = 'input window, operand 1, single buffered']
    #allocation6 [shape = 's32[1]{0}', space=sflag, size = 0x4, scoped, tag = 'scoped memory for tpu_custom_call.1']
    #allocation7 [shape = 'u8[8192]{0}', space=vmem, size = 0x2000, scoped, tag = 'input window, operand 2, single buffered']
    #allocation8 [shape = 'u8[245760]{0}', space=vmem, size = 0x3c000, scoped, tag = 'input window, operand 3, single buffered']
    #allocation9 [shape = 's32[1]{0}', space=sflag, size = 0x4, scoped, tag = 'scoped memory for tpu_custom_call.1']
    #allocation10 [shape = 'u8[122880]{0}', space=vmem, size = 0x1e000, scoped, tag = 'input window, operand 5, single buffered']
    #allocation11 [shape = 'u8[122880]{0}', space=vmem, size = 0x1e000, scoped, tag = 'input window, operand 7, single buffered']
    #allocation12 [shape = 's32[1]{0}', space=sflag, size = 0x4, scoped, tag = 'scoped memory for tpu_custom_call.1']
    #allocation13 [shape = 'u8[65536]{0}', space=vmem, size = 0x10000, scoped, tag = 'output window, operand 0']
    %14 = vsyncpa [#allocation3], 0
    %s15 = scalar_lea.sflag [#allocation3], 1
    %16 = vsyncpa %s15, 0
    %17 = vsyncpa [#allocation6], 0
    %18 = vsyncpa [#allocation9], 0
    %19 = vsyncpa [#allocation12], 0
    %20 = vsyncpa [#allocation4], 0
    %s21 = scalar_lea.sflag [#allocation4], 1
    %22 = vsyncpa %s21, 0
    loop: start=0, step=1, limit=4
    $region2: #{tpu_custom_call.1} parent=1 // loop_pre_header
      _
    $region3: #{tpu_custom_call.1} parent=1 // loop_header
      %s24 = sphi 0, %s28
      %p25 = scmp.ge.s32.totalorder %s24, 4
      %s34 = sphi 0, %s36
      %s37 = sphi 0, %s34
      %s38 = sphi 0, %s37
      %s54 = sphi 0, %s38
      %s58 = sphi 0, %s58
      %s60 = sphi 0, %s58
      %s61 = sphi 0, %s60
      %s75 = sphi 0, %s61
      %s79 = sphi 0, %s79
      %s81 = sphi 0, %s79
      %s82 = sphi 0, %s81
      %s96 = sphi 0, %s82
      %s100 = sphi 0, %s100
      %s102 = sphi 0, %s100
      %s103 = sphi 0, %s102
      %s117 = sphi 0, %s103
      %s121 = sphi 0, %s121
      %s123 = sphi 0, %s121
      %s124 = sphi 0, %s123
      %s138 = sphi 0, %s124
      %s142 = sphi 0, %s142
      %s144 = sphi 0, %s142
      %s145 = sphi 0, %s144
      %s159 = sphi 0, %s145
      %s163 = sphi 0, %s163
      %s165 = sphi 0, %s163
      %s166 = sphi 0, %s165
      %s180 = sphi 0, %s166
      %s184 = sphi 0, %s184
      %s186 = sphi 0, %s184
      %s187 = sphi 0, %s186
      %s201 = sphi 0, %s187
      %s205 = sphi 0, %s205
      %s207 = sphi 0, %s205
      %s208 = sphi 0, %s207
      %s222 = sphi 0, %s208
      %s228 = sphi 0, %s230
      %s231 = sphi 0, %s228
      %s232 = sphi 0, %s231
      %s248 = sphi 0, %s232
    $region4: #{tpu_custom_call.1} parent=1 // loop_header_branch
      %27 = sbr.rel (%p25) target = $region8
    $region5: #{tpu_custom_call.1} parent=1 // loop_body
      %s29 = ssub.s32 %s24, 1
      %s30 = ssub.s32 %s24, 2
      %s31 = sadd.s32 %s24, 1
      %s32 = ssub.s32 %s24, %s31
      %p33 = scmp.eq.s32.totalorder %s32, 0
      %s35 = sadd.s32 %s34, 1
      %s36 = scalar_select %p33, %s34, %s35
      %p39 = pneg %p33
      %p40 = scmp.eq.s32.totalorder %s24, 1
      %p41 = por %p39, %p40
      %p42 = scmp.ne.s32.totalorder %s34, %s37
      %p43 = scmp.eq.s32.totalorder %s24, 0
      %p44 = por %p42, %p43
      %p45 = scmp.ne.s32.totalorder %s34, %s37
      %p46 = scmp.eq.s32.totalorder %s29, 1
      %p47 = por %p45, %p46
      %p48 = scmp.ne.s32.totalorder %s37, %s38
      %p49 = scmp.eq.s32.totalorder %s29, 0
      %p50 = por %p48, %p49
      %p51 = scmp.ne.s32.totalorder %s37, %s38
      %p52 = scmp.eq.s32.totalorder %s30, 1
      %p53 = por %p51, %p52
      %p55 = scmp.ne.s32.totalorder %s38, %s54
      %p56 = scmp.eq.s32.totalorder %s30, 0
      %p57 = por %p55, %p56
      %s59 = sadd.s32 %s58, 1
      %p62 = scmp.eq.s32.totalorder %s24, 1
      %p63 = scmp.ne.s32.totalorder %s58, %s60
      %p64 = scmp.eq.s32.totalorder %s24, 0
      %p65 = por %p63, %p64
      %p66 = scmp.ne.s32.totalorder %s58, %s60
      %p67 = scmp.eq.s32.totalorder %s29, 1
      %p68 = por %p66, %p67
      %p69 = scmp.ne.s32.totalorder %s60, %s61
      %p70 = scmp.eq.s32.totalorder %s29, 0
      %p71 = por %p69, %p70
      %p72 = scmp.ne.s32.totalorder %s60, %s61
      %p73 = scmp.eq.s32.totalorder %s30, 1
      %p74 = por %p72, %p73
      %p76 = scmp.ne.s32.totalorder %s61, %s75
      %p77 = scmp.eq.s32.totalorder %s30, 0
      %p78 = por %p76, %p77
      %s80 = sadd.s32 %s79, 1
      %p83 = scmp.eq.s32.totalorder %s24, 1
      %p84 = scmp.ne.s32.totalorder %s79, %s81
      %p85 = scmp.eq.s32.totalorder %s24, 0
      %p86 = por %p84, %p85
      %p87 = scmp.ne.s32.totalorder %s79, %s81
      %p88 = scmp.eq.s32.totalorder %s29, 1
      %p89 = por %p87, %p88
      %p90 = scmp.ne.s32.totalorder %s81, %s82
      %p91 = scmp.eq.s32.totalorder %s29, 0
      %p92 = por %p90, %p91
      %p93 = scmp.ne.s32.totalorder %s81, %s82
      %p94 = scmp.eq.s32.totalorder %s30, 1
      %p95 = por %p93, %p94
      %p97 = scmp.ne.s32.totalorder %s82, %s96
      %p98 = scmp.eq.s32.totalorder %s30, 0
      %p99 = por %p97, %p98
      %s101 = sadd.s32 %s100, 1
      %p104 = scmp.eq.s32.totalorder %s24, 1
      %p105 = scmp.ne.s32.totalorder %s100, %s102
      %p106 = scmp.eq.s32.totalorder %s24, 0
      %p107 = por %p105, %p106
      %p108 = scmp.ne.s32.totalorder %s100, %s102
      %p109 = scmp.eq.s32.totalorder %s29, 1
      %p110 = por %p108, %p109
      %p111 = scmp.ne.s32.totalorder %s102, %s103
      %p112 = scmp.eq.s32.totalorder %s29, 0
      %p113 = por %p111, %p112
      %p114 = scmp.ne.s32.totalorder %s102, %s103
      %p115 = scmp.eq.s32.totalorder %s30, 1
      %p116 = por %p114, %p115
      %p118 = scmp.ne.s32.totalorder %s103, %s117
      %p119 = scmp.eq.s32.totalorder %s30, 0
      %p120 = por %p118, %p119
      %s122 = sadd.s32 %s121, 1
      %p125 = scmp.eq.s32.totalorder %s24, 1
      %p126 = scmp.ne.s32.totalorder %s121, %s123
      %p127 = scmp.eq.s32.totalorder %s24, 0
      %p128 = por %p126, %p127
      %p129 = scmp.ne.s32.totalorder %s121, %s123
      %p130 = scmp.eq.s32.totalorder %s29, 1
      %p131 = por %p129, %p130
      %p132 = scmp.ne.s32.totalorder %s123, %s124
      %p133 = scmp.eq.s32.totalorder %s29, 0
      %p134 = por %p132, %p133
      %p135 = scmp.ne.s32.totalorder %s123, %s124
      %p136 = scmp.eq.s32.totalorder %s30, 1
      %p137 = por %p135, %p136
      %p139 = scmp.ne.s32.totalorder %s124, %s138
      %p140 = scmp.eq.s32.totalorder %s30, 0
      %p141 = por %p139, %p140
      %s143 = sadd.s32 %s142, 1
      %p146 = scmp.eq.s32.totalorder %s24, 1
      %p147 = scmp.ne.s32.totalorder %s142, %s144
      %p148 = scmp.eq.s32.totalorder %s24, 0
      %p149 = por %p147, %p148
      %p150 = scmp.ne.s32.totalorder %s142, %s144
      %p151 = scmp.eq.s32.totalorder %s29, 1
      %p152 = por %p150, %p151
      %p153 = scmp.ne.s32.totalorder %s144, %s145
      %p154 = scmp.eq.s32.totalorder %s29, 0
      %p155 = por %p153, %p154
      %p156 = scmp.ne.s32.totalorder %s144, %s145
      %p157 = scmp.eq.s32.totalorder %s30, 1
      %p158 = por %p156, %p157
      %p160 = scmp.ne.s32.totalorder %s145, %s159
      %p161 = scmp.eq.s32.totalorder %s30, 0
      %p162 = por %p160, %p161
      %s164 = sadd.s32 %s163, 1
      %p167 = scmp.eq.s32.totalorder %s24, 1
      %p168 = scmp.ne.s32.totalorder %s163, %s165
      %p169 = scmp.eq.s32.totalorder %s24, 0
      %p170 = por %p168, %p169
      %p171 = scmp.ne.s32.totalorder %s163, %s165
      %p172 = scmp.eq.s32.totalorder %s29, 1
      %p173 = por %p171, %p172
      %p174 = scmp.ne.s32.totalorder %s165, %s166
      %p175 = scmp.eq.s32.totalorder %s29, 0
      %p176 = por %p174, %p175
      %p177 = scmp.ne.s32.totalorder %s165, %s166
      %p178 = scmp.eq.s32.totalorder %s30, 1
      %p179 = por %p177, %p178
      %p181 = scmp.ne.s32.totalorder %s166, %s180
      %p182 = scmp.eq.s32.totalorder %s30, 0
      %p183 = por %p181, %p182
      %s185 = sadd.s32 %s184, 1
      %p188 = scmp.eq.s32.totalorder %s24, 1
      %p189 = scmp.ne.s32.totalorder %s184, %s186
      %p190 = scmp.eq.s32.totalorder %s24, 0
      %p191 = por %p189, %p190
      %p192 = scmp.ne.s32.totalorder %s184, %s186
      %p193 = scmp.eq.s32.totalorder %s29, 1
      %p194 = por %p192, %p193
      %p195 = scmp.ne.s32.totalorder %s186, %s187
      %p196 = scmp.eq.s32.totalorder %s29, 0
      %p197 = por %p195, %p196
      %p198 = scmp.ne.s32.totalorder %s186, %s187
      %p199 = scmp.eq.s32.totalorder %s30, 1
      %p200 = por %p198, %p199
      %p202 = scmp.ne.s32.totalorder %s187, %s201
      %p203 = scmp.eq.s32.totalorder %s30, 0
      %p204 = por %p202, %p203
      %s206 = sadd.s32 %s205, 1
      %p209 = scmp.eq.s32.totalorder %s24, 1
      %p210 = scmp.ne.s32.totalorder %s205, %s207
      %p211 = scmp.eq.s32.totalorder %s24, 0
      %p212 = por %p210, %p211
      %p213 = scmp.ne.s32.totalorder %s205, %s207
      %p214 = scmp.eq.s32.totalorder %s29, 1
      %p215 = por %p213, %p214
      %p216 = scmp.ne.s32.totalorder %s207, %s208
      %p217 = scmp.eq.s32.totalorder %s29, 0
      %p218 = por %p216, %p217
      %p219 = scmp.ne.s32.totalorder %s207, %s208
      %p220 = scmp.eq.s32.totalorder %s30, 1
      %p221 = por %p219, %p220
      %p223 = scmp.ne.s32.totalorder %s208, %s222
      %p224 = scmp.eq.s32.totalorder %s30, 0
      %p225 = por %p223, %p224
      %s226 = ssub.s32 %s24, %s31
      %p227 = scmp.eq.s32.totalorder %s226, 0
      %s229 = sadd.s32 %s228, 1
      %s230 = scalar_select %p227, %s228, %s229
      %p233 = pneg %p227
      %p234 = scmp.eq.s32.totalorder %s24, 1
      %p235 = por %p233, %p234
      %p236 = scmp.ne.s32.totalorder %s228, %s231
      %p237 = scmp.eq.s32.totalorder %s24, 0
      %p238 = por %p236, %p237
      %p239 = scmp.ne.s32.totalorder %s228, %s231
      %p240 = scmp.eq.s32.totalorder %s29, 1
      %p241 = por %p239, %p240
      %p242 = scmp.ne.s32.totalorder %s231, %s232
      %p243 = scmp.eq.s32.totalorder %s29, 0
      %p244 = por %p242, %p243
      %p245 = scmp.ne.s32.totalorder %s231, %s232
      %p246 = scmp.eq.s32.totalorder %s30, 1
      %p247 = por %p245, %p246
      %p249 = scmp.ne.s32.totalorder %s232, %s248
      %p250 = scmp.eq.s32.totalorder %s30, 0
      %p251 = por %p249, %p250
      %p252 = scmp.le.s32.totalorder 1, %s24
      %p253 = scmp.lt.s32.totalorder %s24, 3
      %p254 = pnand %p252, %p253
      %p255 = pneg %p254
      // Predicated region
      $region9: #{tpu_custom_call.1} parent=5 // pred_check
        _
      $region10: #{tpu_custom_call.1} parent=5 // pred_check_branch
        %257 = sbr.rel (%p254) target = $region12
      $region11: #{tpu_custom_call.1} parent=5 // pred_region
        %s258 = ssub.s32 %s24, 1
        // Predicated region
        $region13: #{tpu_custom_call.1} parent=11 // pred_check
          %p259 = pneg %p71
        $region14: #{tpu_custom_call.1} parent=11 // pred_check_branch
          %261 = sbr.rel (%p259) target = $region16
        $region15: #{tpu_custom_call.1} parent=11 // pred_region
          %s263 = ssub.s32 256, 256
          %264 = vsyncadd [#allocation6], %s263
          %s266 = sshll.u32 [#allocation5], 4
          %s267 = int_to_ptr.vmem [resolvable:$true] %s266
          %269 = dma.hbm_to_vmem [thread:$0]  %s1, 256, %s267, [#allocation6]
        $region16: #{tpu_custom_call.1} parent=11 // pred_fallthru
          _
        // Predicated region
        $region17: #{tpu_custom_call.1} parent=11 // pred_check
          %p270 = pneg %p92
        $region18: #{tpu_custom_call.1} parent=11 // pred_check_branch
          %272 = sbr.rel (%p270) target = $region20
        $region19: #{tpu_custom_call.1} parent=11 // pred_region
          %s274 = ssub.s32 256, 256
          %275 = vsyncadd [#allocation6], %s274
          %s276 = sshll.u32 [#allocation7], 4
          %s277 = int_to_ptr.vmem [resolvable:$true] %s276
          %282 = dma.hbm_to_vmem [thread:$0]  %s2, 256, %s277, [#allocation6], 64, 64, 4
        $region20: #{tpu_custom_call.1} parent=11 // pred_fallthru
          _
        // Predicated region
        $region21: #{tpu_custom_call.1} parent=11 // pred_check
          %p283 = pneg %p113
        $region22: #{tpu_custom_call.1} parent=11 // pred_check_branch
          %285 = sbr.rel (%p283) target = $region24
        $region23: #{tpu_custom_call.1} parent=11 // pred_region
          %s287 = ssub.s32 7680, 7680
          %288 = vsyncadd [#allocation9], %s287
          %s289 = sshll.u32 [#allocation8], 4
          %s290 = int_to_ptr.vmem [resolvable:$true] %s289
          %295 = dma.hbm_to_vmem [thread:$0]  %s3, 7680, %s290, [#allocation9], 192, 192, 12
        $region24: #{tpu_custom_call.1} parent=11 // pred_fallthru
          _
        // Predicated region
        $region25: #{tpu_custom_call.1} parent=11 // pred_check
          %p296 = pneg %p134
        $region26: #{tpu_custom_call.1} parent=11 // pred_check_branch
          %298 = sbr.rel (%p296) target = $region28
        $region27: #{tpu_custom_call.1} parent=11 // pred_region
          _
        $region28: #{tpu_custom_call.1} parent=11 // pred_fallthru
          _
        // Predicated region
        $region29: #{tpu_custom_call.1} parent=11 // pred_check
          %p299 = pneg %p155
        $region30: #{tpu_custom_call.1} parent=11 // pred_check_branch
          %301 = sbr.rel (%p299) target = $region32
        $region31: #{tpu_custom_call.1} parent=11 // pred_region
          %s303 = ssub.s32 3840, 3840
          %304 = vsyncadd [#allocation9], %s303
          %s305 = sshll.u32 [#allocation10], 4
          %s306 = int_to_ptr.vmem [resolvable:$true] %s305
          %311 = dma.hbm_to_vmem [thread:$0]  %s5, 3840, %s306, [#allocation9], 192, 192, 12
        $region32: #{tpu_custom_call.1} parent=11 // pred_fallthru
          _
        // Predicated region
        $region33: #{tpu_custom_call.1} parent=11 // pred_check
          %p312 = pneg %p176
        $region34: #{tpu_custom_call.1} parent=11 // pred_check_branch
          %314 = sbr.rel (%p312) target = $region36
        $region35: #{tpu_custom_call.1} parent=11 // pred_region
          _
        $region36: #{tpu_custom_call.1} parent=11 // pred_fallthru
          _
        // Predicated region
        $region37: #{tpu_custom_call.1} parent=11 // pred_check
          %p315 = pneg %p197
        $region38: #{tpu_custom_call.1} parent=11 // pred_check_branch
          %317 = sbr.rel (%p315) target = $region40
        $region39: #{tpu_custom_call.1} parent=11 // pred_region
          %s319 = ssub.s32 3840, 3840
          %320 = vsyncadd [#allocation12], %s319
          %s321 = sshll.u32 [#allocation11], 4
          %s322 = int_to_ptr.vmem [resolvable:$true] %s321
          %327 = dma.hbm_to_vmem [thread:$0]  %s7, 3840, %s322, [#allocation12], 192, 192, 12
        $region40: #{tpu_custom_call.1} parent=11 // pred_fallthru
          _
        // Predicated region
        $region41: #{tpu_custom_call.1} parent=11 // pred_check
          %p328 = pneg %p218
        $region42: #{tpu_custom_call.1} parent=11 // pred_check_branch
          %330 = sbr.rel (%p328) target = $region44
        $region43: #{tpu_custom_call.1} parent=11 // pred_region
          _
        $region44: #{tpu_custom_call.1} parent=11 // pred_fallthru
          _
      $region12: #{tpu_custom_call.1} parent=5 // pred_fallthru
        _
      %p331 = scmp.lt.s32.totalorder %s24, 2
      // Predicated region
      $region45: #{tpu_custom_call.1} parent=5 // pred_check
        %p332 = pneg %p331
      $region46: #{tpu_custom_call.1} parent=5 // pred_check_branch
        %334 = sbr.rel (%p332) target = $region48
      $region47: #{tpu_custom_call.1} parent=5 // pred_region
        // Predicated region
        $region49: #{tpu_custom_call.1} parent=47 // pred_check
          %p335 = pneg %p44
        $region50: #{tpu_custom_call.1} parent=47 // pred_check_branch
          %337 = sbr.rel (%p335) target = $region52
        $region51: #{tpu_custom_call.1} parent=47 // pred_region
          %s338 = sand.u32 %s34, 1
          %s339 = scalar_lea.sflag [#allocation3], %s338
          %s340 = sand.u32 %s34, 1
          %s341 = smul.addr %s340, 64
          %s342 = scalar_lea.vmem [#allocation2], %s341
          %s343 = smul.u32 4, %s24
          %s345 = ssub.s32 1024, 1024
          %346 = vsyncadd %s339, %s345
          %s347 = smul.addr %s343, 2
          %s348 = smul.addr %s347, 128
          %s349 = scalar_lea.hbm %s0, %s348
          %s350 = sshll.u32 %s342, 4
          %s351 = int_to_ptr.vmem [resolvable:$true] %s350
          %356 = dma.hbm_to_vmem [thread:$0]  %s349, 1024, %s351, %s339, 256, 256, 16
        $region52: #{tpu_custom_call.1} parent=47 // pred_fallthru
          _
      $region48: #{tpu_custom_call.1} parent=5 // pred_fallthru
        _
      %p357 = scmp.le.s32.totalorder 1, %s24
      %p358 = scmp.lt.s32.totalorder %s24, 3
      %p359 = pnand %p357, %p358
      %p360 = pneg %p359
      // Predicated region
      $region53: #{tpu_custom_call.1} parent=5 // pred_check
        _
      $region54: #{tpu_custom_call.1} parent=5 // pred_check_branch
        %362 = sbr.rel (%p359) target = $region56
      $region55: #{tpu_custom_call.1} parent=5 // pred_region
        %s363 = ssub.s32 %s24, 1
        %s364 = sand.u32 %s37, 1
        %s365 = scalar_lea.sflag [#allocation3], %s364
        %s366 = sand.u32 %s37, 1
        %s367 = smul.addr %s366, 64
        %s368 = scalar_lea.vmem [#allocation2], %s367
        // Predicated region
        $region57: #{tpu_custom_call.1} parent=55 // pred_check
          %p369 = pneg %p50
        $region58: #{tpu_custom_call.1} parent=55 // pred_check_branch
          %371 = sbr.rel (%p369) target = $region60
        $region59: #{tpu_custom_call.1} parent=55 // pred_region
          %372 = dma.done %s365, 1024
        $region60: #{tpu_custom_call.1} parent=55 // pred_fallthru
          _
        // Predicated region
        $region61: #{tpu_custom_call.1} parent=55 // pred_check
          %p373 = pneg %p71
        $region62: #{tpu_custom_call.1} parent=55 // pred_check_branch
          %375 = sbr.rel (%p373) target = $region64
        $region63: #{tpu_custom_call.1} parent=55 // pred_region
          %376 = dma.done [#allocation6], 256
        $region64: #{tpu_custom_call.1} parent=55 // pred_fallthru
          _
        // Predicated region
        $region65: #{tpu_custom_call.1} parent=55 // pred_check
          %p377 = pneg %p92
        $region66: #{tpu_custom_call.1} parent=55 // pred_check_branch
          %379 = sbr.rel (%p377) target = $region68
        $region67: #{tpu_custom_call.1} parent=55 // pred_region
          %380 = dma.done [#allocation6], 256
        $region68: #{tpu_custom_call.1} parent=55 // pred_fallthru
          _
        // Predicated region
        $region69: #{tpu_custom_call.1} parent=55 // pred_check
          %p381 = pneg %p113
        $region70: #{tpu_custom_call.1} parent=55 // pred_check_branch
          %383 = sbr.rel (%p381) target = $region72
        $region71: #{tpu_custom_call.1} parent=55 // pred_region
          %384 = dma.done [#allocation9], 7680
        $region72: #{tpu_custom_call.1} parent=55 // pred_fallthru
          _
        // Predicated region
        $region73: #{tpu_custom_call.1} parent=55 // pred_check
          %p385 = pneg %p155
        $region74: #{tpu_custom_call.1} parent=55 // pred_check_branch
          %387 = sbr.rel (%p385) target = $region76
        $region75: #{tpu_custom_call.1} parent=55 // pred_region
          %388 = dma.done [#allocation9], 3840
        $region76: #{tpu_custom_call.1} parent=55 // pred_fallthru
          _
        // Predicated region
        $region77: #{tpu_custom_call.1} parent=55 // pred_check
          %p389 = pneg %p197
        $region78: #{tpu_custom_call.1} parent=55 // pred_check_branch
          %391 = sbr.rel (%p389) target = $region80
        $region79: #{tpu_custom_call.1} parent=55 // pred_region
          %392 = dma.done [#allocation12], 3840
        $region80: #{tpu_custom_call.1} parent=55 // pred_fallthru
          _
        %s393 = sand.u32 %s37, 1
        %s394 = scalar_lea.sflag [#allocation3], %s393
        %s395 = sand.u32 %s37, 1
        %s396 = smul.addr %s395, 64
        %s397 = scalar_lea.vmem [#allocation2], %s396
        %p398 = pneg %p50
        %p399 = pneg %p47
        %p400 = pneg %p71
        %p401 = pneg %p68
        %p402 = pneg %p92
        %p403 = pneg %p89
        %p404 = pneg %p113
        %p405 = pneg %p110
        %p406 = pneg %p134
        %p407 = pneg %p131
        %p408 = pneg %p155
        %p409 = pneg %p152
        %p410 = pneg %p176
        %p411 = pneg %p173
        %p412 = pneg %p197
        %p413 = pneg %p194
        %p414 = pneg %p218
        %p415 = pneg %p215
        %p416 = pneg %p244
        %p417 = pneg %p241
        %s418 = sand.u32 %s231, 1
        %s419 = scalar_lea.sflag [#allocation4], %s418
        %s420 = sand.u32 %s231, 1
        %s421 = smul.addr %s420, 64
        %s422 = scalar_lea.vmem [#allocation13], %s421
        %s423 = smul.u32 4, %s29
        %s424 = smul.u32 4, %s29
        %v426 = vld [vmem:[%s368] sm:$0xff]
        %v427 = vld [vmem:[%s368 + $0x8] sm:$0xff]
        %v428 = vld [vmem:[%s368 + $0x10] sm:$0xff]
        %v429 = vld [vmem:[%s368 + $0x18] sm:$0xff]
        %v430 = vld [vmem:[%s368 + $0x20] sm:$0xff]
        %v431 = vld [vmem:[%s368 + $0x28] sm:$0xff]
        %v432 = vld [vmem:[%s368 + $0x30] sm:$0xff]
        %v433 = vld [vmem:[%s368 + $0x38] sm:$0xff]
        %v434 = vld [vmem:[#allocation5] sm:$0xff]
        %v435 = vld [vmem:[#allocation5 + $0x8] sm:$0xff]
        %v436 = vadd.f32 %v426, %v434
        %v437 = vadd.f32 %v427, %v435
        %v438 = vadd.f32 %v428, %v434
        %v439 = vadd.f32 %v429, %v435
        %v440 = vadd.f32 %v430, %v434
        %v441 = vadd.f32 %v431, %v435
        %v442 = vadd.f32 %v432, %v434
        %v443 = vadd.f32 %v433, %v435
        %452 = vrot.lane.b32.xlu0 %v436, 64
        %v453 = vpop.permute.xlu0 %452
        %454 = vrot.lane.b32.xlu0 %v437, 64
        %v455 = vpop.permute.xlu0 %454
        %456 = vrot.lane.b32.xlu0 %v438, 64
        %v457 = vpop.permute.xlu0 %456
        %458 = vrot.lane.b32.xlu0 %v439, 64
        %v459 = vpop.permute.xlu0 %458
        %460 = vrot.lane.b32.xlu0 %v440, 64
        %v461 = vpop.permute.xlu0 %460
        %462 = vrot.lane.b32.xlu0 %v441, 64
        %v463 = vpop.permute.xlu0 %462
        %464 = vrot.lane.b32.xlu0 %v442, 64
        %v465 = vpop.permute.xlu0 %464
        %466 = vrot.lane.b32.xlu0 %v443, 64
        %v467 = vpop.permute.xlu0 %466
        %vm468 = vcmask 523264
        %v469 = vsel %vm468, %v453, %v455
        %v470 = vsel %vm468, %v457, %v459
        %v471 = vsel %vm468, %v461, %v463
        %v472 = vsel %vm468, %v465, %v467
        %vm481 = vcmask 261120
        %v482 = vsel %vm481, %v437, %v469
        %v483 = vsel %vm481, %v439, %v470
        %v484 = vsel %vm481, %v441, %v471
        %v485 = vsel %vm481, %v443, %v472
        %v486 = vpack.c.bf16 %v438, %v436
        %v487 = vpack.c.bf16 %v483, %v482
        %v488 = vpack.c.bf16 %v459, %v455
        %v489 = vpack.c.bf16 %v442, %v440
        %v490 = vpack.c.bf16 %v485, %v484
        %v491 = vpack.c.bf16 %v467, %v463
        %v492 = vld [vmem:[#allocation8] sm:$0xff]
        %v493 = vld [vmem:[#allocation8 + $0x8] sm:$0xf]
        %v494 = vld [vmem:[#allocation8 + $0xc] sm:$0xff]
        %v495 = vld [vmem:[#allocation8 + $0x14] sm:$0xf]
        %v496 = vld [vmem:[#allocation8 + $0x18] sm:$0xff]
        %v497 = vld [vmem:[#allocation8 + $0x20] sm:$0xf]
        %v498 = vld [vmem:[#allocation8 + $0x24] sm:$0xff]
        %v499 = vld [vmem:[#allocation8 + $0x2c] sm:$0xf]
        %v500 = vld [vmem:[#allocation8 + $0x30] sm:$0xff]
        %v501 = vld [vmem:[#allocation8 + $0x38] sm:$0xf]
        %v502 = vld [vmem:[#allocation8 + $0x3c] sm:$0xff]
        %v503 = vld [vmem:[#allocation8 + $0x44] sm:$0xf]
        %v504 = vld [vmem:[#allocation8 + $0x48] sm:$0xff]
        %v505 = vld [vmem:[#allocation8 + $0x50] sm:$0xf]
        %v506 = vld [vmem:[#allocation8 + $0x54] sm:$0xff]
        %v507 = vld [vmem:[#allocation8 + $0x5c] sm:$0xf]
        %v508 = vld [vmem:[#allocation8 + $0x60] sm:$0xff]
        %v509 = vld [vmem:[#allocation8 + $0x68] sm:$0xf]
        %v510 = vld [vmem:[#allocation8 + $0x6c] sm:$0xff]
        %v511 = vld [vmem:[#allocation8 + $0x74] sm:$0xf]
        %v512 = vld [vmem:[#allocation8 + $0x78] sm:$0xff]
        %v513 = vld [vmem:[#allocation8 + $0x80] sm:$0xf]
        %v514 = vld [vmem:[#allocation8 + $0x84] sm:$0xff]
        %v515 = vld [vmem:[#allocation8 + $0x8c] sm:$0xf]
        %v516 = vld [vmem:[#allocation8 + $0x90] sm:$0xff]
        %v517 = vld [vmem:[#allocation8 + $0x98] sm:$0xf]
        %v518 = vld [vmem:[#allocation8 + $0x9c] sm:$0xff]
        %v519 = vld [vmem:[#allocation8 + $0xa4] sm:$0xf]
        %v520 = vld [vmem:[#allocation8 + $0xa8] sm:$0xff]
        %v521 = vld [vmem:[#allocation8 + $0xb0] sm:$0xf]
        %v522 = vld [vmem:[#allocation8 + $0xb4] sm:$0xff]
        %v523 = vld [vmem:[#allocation8 + $0xbc] sm:$0xf]
        %v524 = vld [vmem:[#allocation8 + $0xc0] sm:$0xff]
        %v525 = vld [vmem:[#allocation8 + $0xc8] sm:$0xf]
        %v526 = vld [vmem:[#allocation8 + $0xcc] sm:$0xff]
        %v527 = vld [vmem:[#allocation8 + $0xd4] sm:$0xf]
        %v528 = vld [vmem:[#allocation8 + $0xd8] sm:$0xff]
        %v529 = vld [vmem:[#allocation8 + $0xe0] sm:$0xf]
        %v530 = vld [vmem:[#allocation8 + $0xe4] sm:$0xff]
        %v531 = vld [vmem:[#allocation8 + $0xec] sm:$0xf]
        %v532 = vld [vmem:[#allocation8 + $0xf0] sm:$0xff]
        %v533 = vld [vmem:[#allocation8 + $0xf8] sm:$0xf]
        %v534 = vld [vmem:[#allocation8 + $0xfc] sm:$0xff]
        %v535 = vld [vmem:[#allocation8 + $0x104] sm:$0xf]
        %v536 = vld [vmem:[#allocation8 + $0x108] sm:$0xff]
        %v537 = vld [vmem:[#allocation8 + $0x110] sm:$0xf]
        %v538 = vld [vmem:[#allocation8 + $0x114] sm:$0xff]
        %v539 = vld [vmem:[#allocation8 + $0x11c] sm:$0xf]
        %v540 = vld [vmem:[#allocation8 + $0x120] sm:$0xff]
        %v541 = vld [vmem:[#allocation8 + $0x128] sm:$0xf]
        %v542 = vld [vmem:[#allocation8 + $0x12c] sm:$0xff]
        %v543 = vld [vmem:[#allocation8 + $0x134] sm:$0xf]
        %v544 = vld [vmem:[#allocation8 + $0x138] sm:$0xff]
        %v545 = vld [vmem:[#allocation8 + $0x140] sm:$0xf]
        %v546 = vld [vmem:[#allocation8 + $0x144] sm:$0xff]
        %v547 = vld [vmem:[#allocation8 + $0x14c] sm:$0xf]
        %v548 = vld [vmem:[#allocation8 + $0x150] sm:$0xff]
        %v549 = vld [vmem:[#allocation8 + $0x158] sm:$0xf]
        %v550 = vld [vmem:[#allocation8 + $0x15c] sm:$0xff]
        %v551 = vld [vmem:[#allocation8 + $0x164] sm:$0xf]
        %v552 = vld [vmem:[#allocation8 + $0x168] sm:$0xff]
        %v553 = vld [vmem:[#allocation8 + $0x170] sm:$0xf]
        %v554 = vld [vmem:[#allocation8 + $0x174] sm:$0xff]
        %v555 = vld [vmem:[#allocation8 + $0x17c] sm:$0xf]
        %v556 = vld [vmem:[#allocation8 + $0x180] sm:$0xff]
        %v557 = vld [vmem:[#allocation8 + $0x188] sm:$0xf]
        %v558 = vld [vmem:[#allocation8 + $0x18c] sm:$0xff]
        %v559 = vld [vmem:[#allocation8 + $0x194] sm:$0xf]
        %v560 = vld [vmem:[#allocation8 + $0x198] sm:$0xff]
        %v561 = vld [vmem:[#allocation8 + $0x1a0] sm:$0xf]
        %v562 = vld [vmem:[#allocation8 + $0x1a4] sm:$0xff]
        %v563 = vld [vmem:[#allocation8 + $0x1ac] sm:$0xf]
        %v564 = vld [vmem:[#allocation8 + $0x1b0] sm:$0xff]
        %v565 = vld [vmem:[#allocation8 + $0x1b8] sm:$0xf]
        %v566 = vld [vmem:[#allocation8 + $0x1bc] sm:$0xff]
        %v567 = vld [vmem:[#allocation8 + $0x1c4] sm:$0xf]
        %v568 = vld [vmem:[#allocation8 + $0x1c8] sm:$0xff]
        %v569 = vld [vmem:[#allocation8 + $0x1d0] sm:$0xf]
        %v570 = vld [vmem:[#allocation8 + $0x1d4] sm:$0xff]
        %v571 = vld [vmem:[#allocation8 + $0x1dc] sm:$0xf]
        %v572 = vld [vmem:[%s4] sm:$0x7]
        %v574 = vlaneseq
        %v575 = vshrl.u32 %v574, 7
        %v576 = vsub.s32 0, %v575
        %v577 = vrot.slane %v572, %v576
        %v578 = vlaneseq
        %v579 = vshrl.u32 %v578, 7
        %v580 = vsub.s32 1, %v579
        %v581 = vrot.slane %v572, %v580
        %v582 = vlaneseq
        %v583 = vshrl.u32 %v582, 7
        %v584 = vsub.s32 2, %v583
        %v585 = vrot.slane %v572, %v584
        %v669 = vunpack.c.l.b16 %v492
        %v670 = vunpack.c.h.b16 %v492
        %v671 = vunpack.c.l.b16 %v493
        %v672 = vunpack.c.l.b16 %v494
        %v673 = vunpack.c.h.b16 %v494
        %v674 = vunpack.c.l.b16 %v495
        %v675 = vunpack.c.l.b16 %v496
        %v676 = vunpack.c.h.b16 %v496
        %v677 = vunpack.c.l.b16 %v497
        %v678 = vunpack.c.l.b16 %v498
        %v679 = vunpack.c.h.b16 %v498
        %v680 = vunpack.c.l.b16 %v499
        %v681 = vunpack.c.l.b16 %v500
        %v682 = vunpack.c.h.b16 %v500
        %v683 = vunpack.c.l.b16 %v501
        %v684 = vunpack.c.l.b16 %v502
        %v685 = vunpack.c.h.b16 %v502
        %v686 = vunpack.c.l.b16 %v503
        %v687 = vunpack.c.l.b16 %v504
        %v688 = vunpack.c.h.b16 %v504
        %v689 = vunpack.c.l.b16 %v505
        %v690 = vunpack.c.l.b16 %v506
        %v691 = vunpack.c.h.b16 %v506
        %v692 = vunpack.c.l.b16 %v507
        %v693 = vunpack.c.l.b16 %v508
        %v694 = vunpack.c.h.b16 %v508
        %v695 = vunpack.c.l.b16 %v509
        %v696 = vunpack.c.l.b16 %v510
        %v697 = vunpack.c.h.b16 %v510
        %v698 = vunpack.c.l.b16 %v511
        %v699 = vunpack.c.l.b16 %v512
        %v700 = vunpack.c.h.b16 %v512
        %v701 = vunpack.c.l.b16 %v513
        %v702 = vunpack.c.l.b16 %v514
        %v703 = vunpack.c.h.b16 %v514
        %v704 = vunpack.c.l.b16 %v515
        %v705 = vunpack.c.l.b16 %v516
        %v706 = vunpack.c.h.b16 %v516
        %v707 = vunpack.c.l.b16 %v517
        %v708 = vunpack.c.l.b16 %v518
        %v709 = vunpack.c.h.b16 %v518
        %v710 = vunpack.c.l.b16 %v519
        %v711 = vunpack.c.l.b16 %v520
        %v712 = vunpack.c.h.b16 %v520
        %v713 = vunpack.c.l.b16 %v521
        %v714 = vunpack.c.l.b16 %v522
        %v715 = vunpack.c.h.b16 %v522
        %v716 = vunpack.c.l.b16 %v523
        %v717 = vunpack.c.l.b16 %v524
        %v718 = vunpack.c.h.b16 %v524
        %v719 = vunpack.c.l.b16 %v525
        %v720 = vunpack.c.l.b16 %v526
        %v721 = vunpack.c.h.b16 %v526
        %v722 = vunpack.c.l.b16 %v527
        %v723 = vunpack.c.l.b16 %v528
        %v724 = vunpack.c.h.b16 %v528
        %v725 = vunpack.c.l.b16 %v529
        %v726 = vunpack.c.l.b16 %v530
        %v727 = vunpack.c.h.b16 %v530
        %v728 = vunpack.c.l.b16 %v531
        %v729 = vunpack.c.l.b16 %v532
        %v730 = vunpack.c.h.b16 %v532
        %v731 = vunpack.c.l.b16 %v533
        %v732 = vunpack.c.l.b16 %v534
        %v733 = vunpack.c.h.b16 %v534
        %v734 = vunpack.c.l.b16 %v535
        %v735 = vunpack.c.l.b16 %v536
        %v736 = vunpack.c.h.b16 %v536
        %v737 = vunpack.c.l.b16 %v537
        %v738 = vunpack.c.l.b16 %v538
        %v739 = vunpack.c.h.b16 %v538
        %v740 = vunpack.c.l.b16 %v539
        %v741 = vunpack.c.l.b16 %v540
        %v742 = vunpack.c.h.b16 %v540
        %v743 = vunpack.c.l.b16 %v541
        %v744 = vunpack.c.l.b16 %v542
        %v745 = vunpack.c.h.b16 %v542
        %v746 = vunpack.c.l.b16 %v543
        %v747 = vunpack.c.l.b16 %v544
        %v748 = vunpack.c.h.b16 %v544
        %v749 = vunpack.c.l.b16 %v545
        %v750 = vunpack.c.l.b16 %v546
        %v751 = vunpack.c.h.b16 %v546
        %v752 = vunpack.c.l.b16 %v547
        %v753 = vunpack.c.l.b16 %v548
        %v754 = vunpack.c.h.b16 %v548
        %v755 = vunpack.c.l.b16 %v549
        %v756 = vunpack.c.l.b16 %v550
        %v757 = vunpack.c.h.b16 %v550
        %v758 = vunpack.c.l.b16 %v551
        %v759 = vunpack.c.l.b16 %v552
        %v760 = vunpack.c.h.b16 %v552
        %v761 = vunpack.c.l.b16 %v553
        %v762 = vunpack.c.l.b16 %v554
        %v763 = vunpack.c.h.b16 %v554
        %v764 = vunpack.c.l.b16 %v555
        %v765 = vunpack.c.l.b16 %v556
        %v766 = vunpack.c.h.b16 %v556
        %v767 = vunpack.c.l.b16 %v557
        %v768 = vunpack.c.l.b16 %v558
        %v769 = vunpack.c.h.b16 %v558
        %v770 = vunpack.c.l.b16 %v559
        %v771 = vunpack.c.l.b16 %v560
        %v772 = vunpack.c.h.b16 %v560
        %v773 = vunpack.c.l.b16 %v561
        %v774 = vunpack.c.l.b16 %v562
        %v775 = vunpack.c.h.b16 %v562
        %v776 = vunpack.c.l.b16 %v563
        %v777 = vunpack.c.l.b16 %v564
        %v778 = vunpack.c.h.b16 %v564
        %v779 = vunpack.c.l.b16 %v565
        %v780 = vunpack.c.l.b16 %v566
        %v781 = vunpack.c.h.b16 %v566
        %v782 = vunpack.c.l.b16 %v567
        %v783 = vunpack.c.l.b16 %v568
        %v784 = vunpack.c.h.b16 %v568
        %v785 = vunpack.c.l.b16 %v569
        %v786 = vunpack.c.l.b16 %v570
        %v787 = vunpack.c.h.b16 %v570
        %v788 = vunpack.c.l.b16 %v571
        %v789 = vpack.c.b16 %v672, %v669
        %v790 = vpack.c.b16 %v673, %v670
        %v791 = vpack.c.b16 %v674, %v671
        %v792 = vpack.c.b16 %v678, %v675
        %v793 = vpack.c.b16 %v679, %v676
        %v794 = vpack.c.b16 %v680, %v677
        %v795 = vpack.c.b16 %v684, %v681
        %v796 = vpack.c.b16 %v685, %v682
        %v797 = vpack.c.b16 %v686, %v683
        %v798 = vpack.c.b16 %v690, %v687
        %v799 = vpack.c.b16 %v691, %v688
        %v800 = vpack.c.b16 %v692, %v689
        %v801 = vpack.c.b16 %v696, %v693
        %v802 = vpack.c.b16 %v697, %v694
        %v803 = vpack.c.b16 %v698, %v695
        %v804 = vpack.c.b16 %v702, %v699
        %v805 = vpack.c.b16 %v703, %v700
        %v806 = vpack.c.b16 %v704, %v701
        %v807 = vpack.c.b16 %v708, %v705
        %v808 = vpack.c.b16 %v709, %v706
        %v809 = vpack.c.b16 %v710, %v707
        %v810 = vpack.c.b16 %v714, %v711
        %v811 = vpack.c.b16 %v715, %v712
        %v812 = vpack.c.b16 %v716, %v713
        %v813 = vpack.c.b16 %v720, %v717
        %v814 = vpack.c.b16 %v721, %v718
        %v815 = vpack.c.b16 %v722, %v719
        %v816 = vpack.c.b16 %v726, %v723
        %v817 = vpack.c.b16 %v727, %v724
        %v818 = vpack.c.b16 %v728, %v725
        %v819 = vpack.c.b16 %v732, %v729
        %v820 = vpack.c.b16 %v733, %v730
        %v821 = vpack.c.b16 %v734, %v731
        %v822 = vpack.c.b16 %v738, %v735
        %v823 = vpack.c.b16 %v739, %v736
        %v824 = vpack.c.b16 %v740, %v737
        %v825 = vpack.c.b16 %v744, %v741
        %v826 = vpack.c.b16 %v745, %v742
        %v827 = vpack.c.b16 %v746, %v743
        %v828 = vpack.c.b16 %v750, %v747
        %v829 = vpack.c.b16 %v751, %v748
        %v830 = vpack.c.b16 %v752, %v749
        %v831 = vpack.c.b16 %v756, %v753
        %v832 = vpack.c.b16 %v757, %v754
        %v833 = vpack.c.b16 %v758, %v755
        %v834 = vpack.c.b16 %v762, %v759
        %v835 = vpack.c.b16 %v763, %v760
        %v836 = vpack.c.b16 %v764, %v761
        %v837 = vpack.c.b16 %v768, %v765
        %v838 = vpack.c.b16 %v769, %v766
        %v839 = vpack.c.b16 %v770, %v767
        %v840 = vpack.c.b16 %v774, %v771
        %v841 = vpack.c.b16 %v775, %v772
        %v842 = vpack.c.b16 %v776, %v773
        %v843 = vpack.c.b16 %v780, %v777
        %v844 = vpack.c.b16 %v781, %v778
        %v845 = vpack.c.b16 %v782, %v779
        %v846 = vpack.c.b16 %v786, %v783
        %v847 = vpack.c.b16 %v787, %v784
        %v848 = vpack.c.b16 %v788, %v785
        %v910 = vsel %vm468, %v488, 0
        %v913 = vsel %vm468, %v491, 0
        %915 = vmatprep.subr.bf16.mxu0 %v790
        %916 = vmatpush1.bf16.msra.mxu0 %v789
        %917 = vmatprep.subr.bf16.mxu0 %v793
        %918 = vmatpush1.bf16.msra.mxu0 %v792
        %919 = vmatprep.subr.bf16.mxu0 %v796
        %920 = vmatpush1.bf16.msra.mxu0 %v795
        %921 = vmatprep.subr.bf16.mxu0 %v799
        %922 = vmatpush1.bf16.msra.mxu0 %v798
        %923 = vmatprep.subr.bf16.mxu0 %v802
        %924 = vmatpush1.bf16.msra.mxu0 %v801
        %925 = vmatprep.subr.bf16.mxu0 %v805
        %926 = vmatpush1.bf16.msra.mxu0 %v804
        %927 = vmatprep.subr.bf16.mxu0 %v808
        %928 = vmatpush1.bf16.msra.mxu0 %v807
        %929 = vmatprep.subr.bf16.mxu0 %v811
        %930 = vmatpush1.bf16.msra.mxu0 %v810
        %931 = vmatprep.subr.bf16.mxu0 %v814
        %932 = vmatpush1.bf16.msra.mxu0 %v813
        %933 = vmatprep.subr.bf16.mxu0 %v817
        %934 = vmatpush1.bf16.msra.mxu0 %v816
        %935 = vmatprep.subr.bf16.mxu0 %v820
        %936 = vmatpush1.bf16.msra.mxu0 %v819
        %937 = vmatprep.subr.bf16.mxu0 %v823
        %938 = vmatpush1.bf16.msra.mxu0 %v822
        %939 = vmatprep.subr.bf16.mxu0 %v826
        %940 = vmatpush1.bf16.msra.mxu0 %v825
        %941 = vmatprep.subr.bf16.mxu0 %v829
        %942 = vmatpush1.bf16.msra.mxu0 %v828
        %943 = vmatprep.subr.bf16.mxu0 %v832
        %944 = vmatpush1.bf16.msra.mxu0 %v831
        %945 = vmatprep.subr.bf16.mxu0 %v835
        %946 = vmatpush1.bf16.msra.mxu0 %v834
        %947 = vmatprep.mubr.bf16.mxu0 %v487
        %948 = vmatmul.mubr.bf16.gmra.mrb[0].mxu0 %v486
        %v949 = vpop.f32.mrb[0].mxu0
        %v950 = vadd.f32 %v577, %v949
        %v951 = vpop.f32.mrb[0].mxu0
        %v952 = vadd.f32 %v581, %v951
        %v953 = vpop.f32.mrb[0].mxu0
        %v954 = vadd.f32 %v577, %v953
        %v955 = vpop.f32.mrb[0].mxu0
        %v956 = vadd.f32 %v581, %v955
        %957 = vmatprep.mubr.bf16.mxu0 %v490
        %958 = vmatmul.mubr.bf16.gmra.mrb[0].mxu0 %v489
        %v959 = vpop.f32.mrb[0].mxu0
        %v960 = vadd.f32 %v577, %v959
        %v961 = vpop.f32.mrb[0].mxu0
        %v962 = vadd.f32 %v581, %v961
        %v963 = vpop.f32.mrb[0].mxu0
        %v964 = vadd.f32 %v577, %v963
        %v965 = vpop.f32.mrb[0].mxu0
        %v966 = vadd.f32 %v581, %v965
        %967 = vdwg.mxu0
        %968 = vmatprep.subr.bf16.mxu0 %v838
        %969 = vmatpush1.bf16.msra.mxu0 %v837
        %970 = vmatprep.subr.bf16.mxu0 %v841
        %971 = vmatpush1.bf16.msra.mxu0 %v840
        %972 = vmatprep.subr.bf16.mxu0 %v844
        %973 = vmatpush1.bf16.msra.mxu0 %v843
        %974 = vmatprep.subr.bf16.mxu0 %v847
        %975 = vmatpush1.bf16.msra.mxu0 %v846
        %976 = vmatprep.subr.bf16.mxu0 0
        %977 = vmatpush1.bf16.msra.mxu0 0
        %978 = vmatprep.subr.bf16.mxu0 0
        %979 = vmatpush1.bf16.msra.mxu0 0
        %980 = vmatprep.subr.bf16.mxu0 0
        %981 = vmatpush1.bf16.msra.mxu0 0
        %982 = vmatprep.subr.bf16.mxu0 0
        %983 = vmatpush1.bf16.msra.mxu0 0
        %984 = vmatprep.subr.bf16.mxu0 0
        %985 = vmatpush1.bf16.msra.mxu0 0
        %986 = vmatprep.subr.bf16.mxu0 0
        %987 = vmatpush1.bf16.msra.mxu0 0
        %988 = vmatprep.subr.bf16.mxu0 0
        %989 = vmatpush1.bf16.msra.mxu0 0
        %990 = vmatprep.subr.bf16.mxu0 0
        %991 = vmatpush1.bf16.msra.mxu0 0
        %992 = vmatprep.subr.bf16.mxu0 0
        %993 = vmatpush1.bf16.msra.mxu0 0
        %994 = vmatprep.subr.bf16.mxu0 0
        %995 = vmatpush1.bf16.msra.mxu0 0
        %996 = vmatprep.subr.bf16.mxu0 0
        %997 = vmatpush1.bf16.msra.mxu0 0
        %998 = vmatprep.subr.bf16.mxu0 0
        %999 = vmatpush1.bf16.msra.mxu0 0
        %1000 = vmatprep.mubr.bf16.mxu0 0
        %1001 = vmatmul.mubr.bf16.gmra.mrb[0].mxu0 %v910
        %v1002 = vpop.f32.mrb[0].mxu0
        %v1003 = vadd.f32 %v950, %v1002
        %v1004 = vpop.f32.mrb[0].mxu0
        %v1005 = vadd.f32 %v952, %v1004
        %v1006 = vpop.f32.mrb[0].mxu0
        %v1007 = vadd.f32 %v954, %v1006
        %v1008 = vpop.f32.mrb[0].mxu0
        %v1009 = vadd.f32 %v956, %v1008
        %1010 = vmatprep.mubr.bf16.mxu0 0
        %1011 = vmatmul.mubr.bf16.gmra.mrb[0].mxu0 %v913
        %v1012 = vpop.f32.mrb[0].mxu0
        %v1013 = vadd.f32 %v960, %v1012
        %v1014 = vpop.f32.mrb[0].mxu0
        %v1015 = vadd.f32 %v962, %v1014
        %v1016 = vpop.f32.mrb[0].mxu0
        %v1017 = vadd.f32 %v964, %v1016
        %v1018 = vpop.f32.mrb[0].mxu0
        %v1019 = vadd.f32 %v966, %v1018
        %1020 = vdwg.mxu0
        %1021 = vmatprep.subr.bf16.mxu0 0
        %1022 = vmatpush1.bf16.msra.mxu0 %v791
        %1023 = vmatprep.subr.bf16.mxu0 0
        %1024 = vmatpush1.bf16.msra.mxu0 %v794
        %1025 = vmatprep.subr.bf16.mxu0 0
        %1026 = vmatpush1.bf16.msra.mxu0 %v797
        %1027 = vmatprep.subr.bf16.mxu0 0
        %1028 = vmatpush1.bf16.msra.mxu0 %v800
        %1029 = vmatprep.subr.bf16.mxu0 0
        %1030 = vmatpush1.bf16.msra.mxu0 %v803
        %1031 = vmatprep.subr.bf16.mxu0 0
        %1032 = vmatpush1.bf16.msra.mxu0 %v806
        %1033 = vmatprep.subr.bf16.mxu0 0
        %1034 = vmatpush1.bf16.msra.mxu0 %v809
        %1035 = vmatprep.subr.bf16.mxu0 0
        %1036 = vmatpush1.bf16.msra.mxu0 %v812
        %1037 = vmatprep.subr.bf16.mxu0 0
        %1038 = vmatpush1.bf16.msra.mxu0 %v815
        %1039 = vmatprep.subr.bf16.mxu0 0
        %1040 = vmatpush1.bf16.msra.mxu0 %v818
        %1041 = vmatprep.subr.bf16.mxu0 0
        %1042 = vmatpush1.bf16.msra.mxu0 %v821
        %1043 = vmatprep.subr.bf16.mxu0 0
        %1044 = vmatpush1.bf16.msra.mxu0 %v824
        %1045 = vmatprep.subr.bf16.mxu0 0
        %1046 = vmatpush1.bf16.msra.mxu0 %v827
        %1047 = vmatprep.subr.bf16.mxu0 0
        %1048 = vmatpush1.bf16.msra.mxu0 %v830
        %1049 = vmatprep.subr.bf16.mxu0 0
        %1050 = vmatpush1.bf16.msra.mxu0 %v833
        %1051 = vmatprep.subr.bf16.mxu0 0
        %1052 = vmatpush1.bf16.msra.mxu0 %v836
        %1053 = vmatprep.mubr.bf16.mxu0 %v487
        %1054 = vmatmul.mubr.bf16.gmra.mrb[0].mxu0 %v486
        %v1055 = vpop.f32.mrb[0].mxu0
        %v1056 = vadd.f32 %v585, %v1055
        %v1057 = vpop.f32.mrb[0].mxu0
        %v1058 = vpop.f32.mrb[0].mxu0
        %v1059 = vadd.f32 %v585, %v1058
        %v1060 = vpop.f32.mrb[0].mxu0
        %1061 = vmatprep.mubr.bf16.mxu0 %v490
        %1062 = vmatmul.mubr.bf16.gmra.mrb[0].mxu0 %v489
        %v1063 = vpop.f32.mrb[0].mxu0
        %v1064 = vadd.f32 %v585, %v1063
        %v1065 = vpop.f32.mrb[0].mxu0
        %v1066 = vpop.f32.mrb[0].mxu0
        %v1067 = vadd.f32 %v585, %v1066
        %v1068 = vpop.f32.mrb[0].mxu0
        %1069 = vdwg.mxu0
        %1070 = vmatprep.subr.bf16.mxu0 0
        %1071 = vmatpush1.bf16.msra.mxu0 %v839
        %1072 = vmatprep.subr.bf16.mxu0 0
        %1073 = vmatpush1.bf16.msra.mxu0 %v842
        %1074 = vmatprep.subr.bf16.mxu0 0
        %1075 = vmatpush1.bf16.msra.mxu0 %v845
        %1076 = vmatprep.subr.bf16.mxu0 0
        %1077 = vmatpush1.bf16.msra.mxu0 %v848
        %1078 = vmatprep.subr.bf16.mxu0 0
        %1079 = vmatpush1.bf16.msra.mxu0 0
        %1080 = vmatprep.subr.bf16.mxu0 0
        %1081 = vmatpush1.bf16.msra.mxu0 0
        %1082 = vmatprep.subr.bf16.mxu0 0
        %1083 = vmatpush1.bf16.msra.mxu0 0
        %1084 = vmatprep.subr.bf16.mxu0 0
        %1085 = vmatpush1.bf16.msra.mxu0 0
        %1086 = vmatprep.subr.bf16.mxu0 0
        %1087 = vmatpush1.bf16.msra.mxu0 0
        %1088 = vmatprep.subr.bf16.mxu0 0
        %1089 = vmatpush1.bf16.msra.mxu0 0
        %1090 = vmatprep.subr.bf16.mxu0 0
        %1091 = vmatpush1.bf16.msra.mxu0 0
        %1092 = vmatprep.subr.bf16.mxu0 0
        %1093 = vmatpush1.bf16.msra.mxu0 0
        %1094 = vmatprep.subr.bf16.mxu0 0
        %1095 = vmatpush1.bf16.msra.mxu0 0
        %1096 = vmatprep.subr.bf16.mxu0 0
        %1097 = vmatpush1.bf16.msra.mxu0 0
        %1098 = vmatprep.subr.bf16.mxu0 0
        %1099 = vmatpush1.bf16.msra.mxu0 0
        %1100 = vmatprep.subr.bf16.mxu0 0
        %1101 = vmatpush1.bf16.msra.mxu0 0
        %1102 = vmatprep.mubr.bf16.mxu0 0
        %1103 = vmatmul.mubr.bf16.gmra.mrb[0].mxu0 %v910
        %v1104 = vpop.f32.mrb[0].mxu0
        %v1105 = vadd.f32 %v1056, %v1104
        %v1106 = vpop.f32.mrb[0].mxu0
        %v1107 = vpop.f32.mrb[0].mxu0
        %v1108 = vadd.f32 %v1059, %v1107
        %v1109 = vpop.f32.mrb[0].mxu0
        %1110 = vmatprep.mubr.bf16.mxu0 0
        %1111 = vmatmul.mubr.bf16.gmra.mrb[0].mxu0 %v913
        %v1112 = vpop.f32.mrb[0].mxu0
        %v1113 = vadd.f32 %v1064, %v1112
        %v1114 = vpop.f32.mrb[0].mxu0
        %v1115 = vpop.f32.mrb[0].mxu0
        %v1116 = vadd.f32 %v1067, %v1115
        %v1117 = vpop.f32.mrb[0].mxu0
        %1118 = vdwg.mxu0
        %v1119 = vtanh.pop %v1003
        %v1120 = vtanh.pop %v1005
        %v1121 = vtanh.pop %v1007
        %v1122 = vtanh.pop %v1009
        %v1123 = vtanh.pop %v1013
        %v1124 = vtanh.pop %v1015
        %v1125 = vtanh.pop %v1017
        %v1126 = vtanh.pop %v1019
        %v1127 = vxor.u32 %v1005, 2147483648
        %v1128 = vxor.u32 %v1105, 2147483648
        %v1129 = vxor.u32 %v1009, 2147483648
        %v1130 = vxor.u32 %v1108, 2147483648
        %v1131 = vxor.u32 %v1015, 2147483648
        %v1132 = vxor.u32 %v1113, 2147483648
        %v1133 = vxor.u32 %v1019, 2147483648
        %v1134 = vxor.u32 %v1116, 2147483648
        %v1135 = vmul.f32 %v1127, 1.442695
        %v1136 = vpow.pop %v1135
        %v1137 = vmul.f32 %v1128, 1.442695
        %v1138 = vpow.pop %v1137
        %v1139 = vmul.f32 %v1129, 1.442695
        %v1140 = vpow.pop %v1139
        %v1141 = vmul.f32 %v1130, 1.442695
        %v1142 = vpow.pop %v1141
        %v1143 = vmul.f32 %v1131, 1.442695
        %v1144 = vpow.pop %v1143
        %v1145 = vmul.f32 %v1132, 1.442695
        %v1146 = vpow.pop %v1145
        %v1147 = vmul.f32 %v1133, 1.442695
        %v1148 = vpow.pop %v1147
        %v1149 = vmul.f32 %v1134, 1.442695
        %v1150 = vpow.pop %v1149
        %v1151 = vadd.f32 %v1136, 1.0
        %v1152 = vadd.f32 %v1138, 1.0
        %v1153 = vadd.f32 %v1140, 1.0
        %v1154 = vadd.f32 %v1142, 1.0
        %v1155 = vadd.f32 %v1144, 1.0
        %v1156 = vadd.f32 %v1146, 1.0
        %v1157 = vadd.f32 %v1148, 1.0
        %v1158 = vadd.f32 %v1150, 1.0
        %v1159 = vrcp.pop %v1151
        %v1160 = vmul.f32 1.0, %v1159
        %v1161 = vrcp.pop %v1152
        %v1162 = vmul.f32 1.0, %v1161
        %v1163 = vrcp.pop %v1153
        %v1164 = vmul.f32 1.0, %v1163
        %v1165 = vrcp.pop %v1154
        %v1166 = vmul.f32 1.0, %v1165
        %v1167 = vrcp.pop %v1155
        %v1168 = vmul.f32 1.0, %v1167
        %v1169 = vrcp.pop %v1156
        %v1170 = vmul.f32 1.0, %v1169
        %v1171 = vrcp.pop %v1157
        %v1172 = vmul.f32 1.0, %v1171
        %v1173 = vrcp.pop %v1158
        %v1174 = vmul.f32 1.0, %v1173
        %1183 = vrot.lane.b32.xlu0 %v1160, 96
        %v1184 = vpop.permute.xlu0 %1183
        %1185 = vrot.lane.b32.xlu0 %v1162, 96
        %v1186 = vpop.permute.xlu0 %1185
        %1187 = vrot.lane.b32.xlu0 %v1164, 96
        %v1188 = vpop.permute.xlu0 %1187
        %1189 = vrot.lane.b32.xlu0 %v1166, 96
        %v1190 = vpop.permute.xlu0 %1189
        %1191 = vrot.lane.b32.xlu0 %v1168, 96
        %v1192 = vpop.permute.xlu0 %1191
        %1193 = vrot.lane.b32.xlu0 %v1170, 96
        %v1194 = vpop.permute.xlu0 %1193
        %1195 = vrot.lane.b32.xlu0 %v1172, 96
        %v1196 = vpop.permute.xlu0 %1195
        %1197 = vrot.lane.b32.xlu0 %v1174, 96
        %v1198 = vpop.permute.xlu0 %1197
        %vm1199 = vcmask 785408
        %v1200 = vsel %vm1199, %v1184, %v1186
        %v1201 = vsel %vm1199, %v1188, %v1190
        %v1202 = vsel %vm1199, %v1192, %v1194
        %v1203 = vsel %vm1199, %v1196, %v1198
        %v1212 = vmul.f32 %v1119, %v1200
        %v1213 = vmul.f32 %v1120, %v1186
        %v1214 = vmul.f32 %v1121, %v1201
        %v1215 = vmul.f32 %v1122, %v1190
        %v1216 = vmul.f32 %v1123, %v1202
        %v1217 = vmul.f32 %v1124, %v1194
        %v1218 = vmul.f32 %v1125, %v1203
        %v1219 = vmul.f32 %v1126, %v1198
        %v1220 = vld [vmem:[#allocation7] sm:$0xf]
        %v1221 = vld [vmem:[#allocation7 + $0x4] sm:$0xf]
        %v1222 = vld [vmem:[#allocation7 + $0x8] sm:$0xf]
        %v1223 = vld [vmem:[#allocation7 + $0xc] sm:$0xf]
        %v1224 = vld [vmem:[#allocation10] sm:$0xff]
        %v1225 = vld [vmem:[#allocation10 + $0x8] sm:$0xf]
        %v1226 = vld [vmem:[#allocation10 + $0xc] sm:$0xff]
        %v1227 = vld [vmem:[#allocation10 + $0x14] sm:$0xf]
        %v1228 = vld [vmem:[#allocation10 + $0x18] sm:$0xff]
        %v1229 = vld [vmem:[#allocation10 + $0x20] sm:$0xf]
        %v1230 = vld [vmem:[#allocation10 + $0x24] sm:$0xff]
        %v1231 = vld [vmem:[#allocation10 + $0x2c] sm:$0xf]
        %v1232 = vld [vmem:[#allocation10 + $0x30] sm:$0xff]
        %v1233 = vld [vmem:[#allocation10 + $0x38] sm:$0xf]
        %v1234 = vld [vmem:[#allocation10 + $0x3c] sm:$0xff]
        %v1235 = vld [vmem:[#allocation10 + $0x44] sm:$0xf]
        %v1236 = vld [vmem:[#allocation10 + $0x48] sm:$0xff]
        %v1237 = vld [vmem:[#allocation10 + $0x50] sm:$0xf]
        %v1238 = vld [vmem:[#allocation10 + $0x54] sm:$0xff]
        %v1239 = vld [vmem:[#allocation10 + $0x5c] sm:$0xf]
        %v1240 = vld [vmem:[#allocation10 + $0x60] sm:$0xff]
        %v1241 = vld [vmem:[#allocation10 + $0x68] sm:$0xf]
        %v1242 = vld [vmem:[#allocation10 + $0x6c] sm:$0xff]
        %v1243 = vld [vmem:[#allocation10 + $0x74] sm:$0xf]
        %v1244 = vld [vmem:[#allocation10 + $0x78] sm:$0xff]
        %v1245 = vld [vmem:[#allocation10 + $0x80] sm:$0xf]
        %v1246 = vld [vmem:[#allocation10 + $0x84] sm:$0xff]
        %v1247 = vld [vmem:[#allocation10 + $0x8c] sm:$0xf]
        %v1248 = vld [vmem:[#allocation10 + $0x90] sm:$0xff]
        %v1249 = vld [vmem:[#allocation10 + $0x98] sm:$0xf]
        %v1250 = vld [vmem:[#allocation10 + $0x9c] sm:$0xff]
        %v1251 = vld [vmem:[#allocation10 + $0xa4] sm:$0xf]
        %v1252 = vld [vmem:[#allocation10 + $0xa8] sm:$0xff]
        %v1253 = vld [vmem:[#allocation10 + $0xb0] sm:$0xf]
        %v1254 = vld [vmem:[#allocation10 + $0xb4] sm:$0xff]
        %v1255 = vld [vmem:[#allocation10 + $0xbc] sm:$0xf]
        %v1256 = vld [vmem:[#allocation10 + $0xc0] sm:$0xff]
        %v1257 = vld [vmem:[#allocation10 + $0xc8] sm:$0xf]
        %v1258 = vld [vmem:[#allocation10 + $0xcc] sm:$0xff]
        %v1259 = vld [vmem:[#allocation10 + $0xd4] sm:$0xf]
        %v1260 = vld [vmem:[#allocation10 + $0xd8] sm:$0xff]
        %v1261 = vld [vmem:[#allocation10 + $0xe0] sm:$0xf]
        %v1262 = vld [vmem:[#allocation10 + $0xe4] sm:$0xff]
        %v1263 = vld [vmem:[#allocation10 + $0xec] sm:$0xf]
        %v1264 = vld [vmem:[%s6] sm:$0x7]
        %v1265 = vpack.c.bf16 %v436, %v436
        %v1266 = vpack.c.bf16 %v437, %v437
        %v1271 = vunpack.c.l.b16 %v1220
        %v1272 = vunpack.c.l.b16 %v1221
        %v1273 = vunpack.c.l.b16 %v1222
        %v1274 = vunpack.c.l.b16 %v1223
        %v1275 = vpack.c.b16 %v1272, %v1271
        %v1276 = vpack.c.b16 %v1274, %v1273
        %1277 = vrot.lane.b32.xlu0 %v1275, 120
        %v1278 = vpop.permute.xlu0 %1277
        %1279 = vrot.lane.b32.xlu0 %v1276, 120
        %v1280 = vpop.permute.xlu0 %1279
        %1283 = vrot.lane.b32.xlu0 %v1265, 96
        %v1284 = vpop.permute.xlu0 %1283
        %1285 = vrot.lane.b32.xlu0 %v1266, 96
        %v1286 = vpop.permute.xlu0 %1285
        %vm1287 = vcmask 785408
        %v1288 = vsel %vm1287, %v1284, %v1286
        %vm1289 = vcmask 64512
        %v1291 = vsel %vm1289, %v1278, 0
        %v1294 = vsel %vm1289, %v1280, 0
        %vm1296 = vcmask 1043456
        %v1298 = vsel %vm1296, %v1288, 0
        %v1301 = vsel %vm1296, %v1286, 0
        %1303 = vmatprep.subr.bf16.mxu0 %v1301
        %1304 = vmatpush1.bf16.msra.mxu0 %v1298
        %1305 = vmatprep.subr.bf16.mxu0 0
        %1306 = vmatpush1.bf16.msra.mxu0 0
        %1307 = vmatprep.subr.bf16.mxu0 0
        %1308 = vmatpush1.bf16.msra.mxu0 0
        %1309 = vmatprep.subr.bf16.mxu0 0
        %1310 = vmatpush1.bf16.msra.mxu0 0
        %1311 = vmatprep.subr.bf16.mxu0 0
        %1312 = vmatpush1.bf16.msra.mxu0 0
        %1313 = vmatprep.subr.bf16.mxu0 0
        %1314 = vmatpush1.bf16.msra.mxu0 0
        %1315 = vmatprep.subr.bf16.mxu0 0
        %1316 = vmatpush1.bf16.msra.mxu0 0
        %1317 = vmatprep.subr.bf16.mxu0 0
        %1318 = vmatpush1.bf16.msra.mxu0 0
        %1319 = vmatprep.subr.bf16.mxu0 0
        %1320 = vmatpush1.bf16.msra.mxu0 0
        %1321 = vmatprep.subr.bf16.mxu0 0
        %1322 = vmatpush1.bf16.msra.mxu0 0
        %1323 = vmatprep.subr.bf16.mxu0 0
        %1324 = vmatpush1.bf16.msra.mxu0 0
        %1325 = vmatprep.subr.bf16.mxu0 0
        %1326 = vmatpush1.bf16.msra.mxu0 0
        %1327 = vmatprep.subr.bf16.mxu0 0
        %1328 = vmatpush1.bf16.msra.mxu0 0
        %1329 = vmatprep.subr.bf16.mxu0 0
        %1330 = vmatpush1.bf16.msra.mxu0 0
        %1331 = vmatprep.subr.bf16.mxu0 0
        %1332 = vmatpush1.bf16.msra.mxu0 0
        %1333 = vmatprep.subr.bf16.mxu0 0
        %1334 = vmatpush1.bf16.msra.mxu0 0
        %1335 = vmatprep.mubr.bf16.mxu0 0
        %1336 = vmatmul.mubr.bf16.gmra.mrb[0].mxu0 %v1291
        %v1337 = vpop.f32.mrb[0].mxu0
        %v1338 = vadd.f32 0.0, %v1337
        %v1339 = vpop.f32.mrb[0].mxu0
        %v1340 = vadd.f32 0.0, %v1339
        %v1341 = vpop.f32.mrb[0].mxu0
        %v1342 = vadd.f32 0.0, %v1341
        %v1343 = vpop.f32.mrb[0].mxu0
        %v1344 = vadd.f32 0.0, %v1343
        %1345 = vmatprep.mubr.bf16.mxu0 0
        %1346 = vmatmul.mubr.bf16.gmra.mrb[0].mxu0 %v1294
        %v1347 = vpop.f32.mrb[0].mxu0
        %v1348 = vadd.f32 0.0, %v1347
        %v1349 = vpop.f32.mrb[0].mxu0
        %v1350 = vadd.f32 0.0, %v1349
        %v1351 = vpop.f32.mrb[0].mxu0
        %v1352 = vadd.f32 0.0, %v1351
        %v1353 = vpop.f32.mrb[0].mxu0
        %v1354 = vadd.f32 0.0, %v1353
        %1355 = vdwg.mxu0
        %v1357 = vsel %vm1289, %v1275, 0
        %v1360 = vsel %vm1289, %v1276, 0
        %v1363 = vsel %vm1296, %v1265, 0
        %v1366 = vsel %vm1296, %v1266, 0
        %1368 = vmatprep.subr.bf16.mxu0 %v1366
        %1369 = vmatpush1.bf16.msra.mxu0 %v1363
        %1370 = vmatprep.subr.bf16.mxu0 0
        %1371 = vmatpush1.bf16.msra.mxu0 0
        %1372 = vmatprep.subr.bf16.mxu0 0
        %1373 = vmatpush1.bf16.msra.mxu0 0
        %1374 = vmatprep.subr.bf16.mxu0 0
        %1375 = vmatpush1.bf16.msra.mxu0 0
        %1376 = vmatprep.subr.bf16.mxu0 0
        %1377 = vmatpush1.bf16.msra.mxu0 0
        %1378 = vmatprep.subr.bf16.mxu0 0
        %1379 = vmatpush1.bf16.msra.mxu0 0
        %1380 = vmatprep.subr.bf16.mxu0 0
        %1381 = vmatpush1.bf16.msra.mxu0 0
        %1382 = vmatprep.subr.bf16.mxu0 0
        %1383 = vmatpush1.bf16.msra.mxu0 0
        %1384 = vmatprep.subr.bf16.mxu0 0
        %1385 = vmatpush1.bf16.msra.mxu0 0
        %1386 = vmatprep.subr.bf16.mxu0 0
        %1387 = vmatpush1.bf16.msra.mxu0 0
        %1388 = vmatprep.subr.bf16.mxu0 0
        %1389 = vmatpush1.bf16.msra.mxu0 0
        %1390 = vmatprep.subr.bf16.mxu0 0
        %1391 = vmatpush1.bf16.msra.mxu0 0
        %1392 = vmatprep.subr.bf16.mxu0 0
        %1393 = vmatpush1.bf16.msra.mxu0 0
        %1394 = vmatprep.subr.bf16.mxu0 0
        %1395 = vmatpush1.bf16.msra.mxu0 0
        %1396 = vmatprep.subr.bf16.mxu0 0
        %1397 = vmatpush1.bf16.msra.mxu0 0
        %1398 = vmatprep.subr.bf16.mxu0 0
        %1399 = vmatpush1.bf16.msra.mxu0 0
        %1400 = vmatprep.mubr.bf16.mxu0 0
        %1401 = vmatmul.mubr.bf16.gmra.mrb[0].mxu0 %v1357
        %v1402 = vpop.f32.mrb[0].mxu0
        %v1403 = vadd.f32 %v1338, %v1402
        %v1404 = vpop.f32.mrb[0].mxu0
        %v1405 = vadd.f32 %v1340, %v1404
        %v1406 = vpop.f32.mrb[0].mxu0
        %v1407 = vadd.f32 %v1342, %v1406
        %v1408 = vpop.f32.mrb[0].mxu0
        %v1409 = vadd.f32 %v1344, %v1408
        %1410 = vmatprep.mubr.bf16.mxu0 0
        %1411 = vmatmul.mubr.bf16.gmra.mrb[0].mxu0 %v1360
        %v1412 = vpop.f32.mrb[0].mxu0
        %v1413 = vadd.f32 %v1348, %v1412
        %v1414 = vpop.f32.mrb[0].mxu0
        %v1415 = vadd.f32 %v1350, %v1414
        %v1416 = vpop.f32.mrb[0].mxu0
        %v1417 = vadd.f32 %v1352, %v1416
        %v1418 = vpop.f32.mrb[0].mxu0
        %v1419 = vadd.f32 %v1354, %v1418
        %1420 = vdwg.mxu0
        %1421 = vrot.lane.b32.xlu0 %v1275, 112
        %v1422 = vpop.permute.xlu0 %1421
        %1423 = vrot.lane.b32.xlu0 %v1276, 112
        %v1424 = vpop.permute.xlu0 %1423
        %1425 = vrot.lane.b32.xlu0 %v1265, 64
        %v1426 = vpop.permute.xlu0 %1425
        %1427 = vrot.lane.b32.xlu0 %v1266, 64
        %v1428 = vpop.permute.xlu0 %1427
        %vm1429 = vcmask 523264
        %v1430 = vsel %vm1429, %v1426, %v1428
        %v1432 = vsel %vm1289, %v1422, 0
        %v1435 = vsel %vm1289, %v1424, 0
        %v1438 = vsel %vm1296, %v1430, 0
        %v1441 = vsel %vm1296, %v1428, 0
        %1443 = vmatprep.subr.bf16.mxu0 %v1441
        %1444 = vmatpush1.bf16.msra.mxu0 %v1438
        %1445 = vmatprep.subr.bf16.mxu0 0
        %1446 = vmatpush1.bf16.msra.mxu0 0
        %1447 = vmatprep.subr.bf16.mxu0 0
        %1448 = vmatpush1.bf16.msra.mxu0 0
        %1449 = vmatprep.subr.bf16.mxu0 0
        %1450 = vmatpush1.bf16.msra.mxu0 0
        %1451 = vmatprep.subr.bf16.mxu0 0
        %1452 = vmatpush1.bf16.msra.mxu0 0
        %1453 = vmatprep.subr.bf16.mxu0 0
        %1454 = vmatpush1.bf16.msra.mxu0 0
        %1455 = vmatprep.subr.bf16.mxu0 0
        %1456 = vmatpush1.bf16.msra.mxu0 0
        %1457 = vmatprep.subr.bf16.mxu0 0
        %1458 = vmatpush1.bf16.msra.mxu0 0
        %1459 = vmatprep.subr.bf16.mxu0 0
        %1460 = vmatpush1.bf16.msra.mxu0 0
        %1461 = vmatprep.subr.bf16.mxu0 0
        %1462 = vmatpush1.bf16.msra.mxu0 0
        %1463 = vmatprep.subr.bf16.mxu0 0
        %1464 = vmatpush1.bf16.msra.mxu0 0
        %1465 = vmatprep.subr.bf16.mxu0 0
        %1466 = vmatpush1.bf16.msra.mxu0 0
        %1467 = vmatprep.subr.bf16.mxu0 0
        %1468 = vmatpush1.bf16.msra.mxu0 0
        %1469 = vmatprep.subr.bf16.mxu0 0
        %1470 = vmatpush1.bf16.msra.mxu0 0
        %1471 = vmatprep.subr.bf16.mxu0 0
        %1472 = vmatpush1.bf16.msra.mxu0 0
        %1473 = vmatprep.subr.bf16.mxu0 0
        %1474 = vmatpush1.bf16.msra.mxu0 0
        %1475 = vmatprep.mubr.bf16.mxu0 0
        %1476 = vmatmul.mubr.bf16.gmra.mrb[0].mxu0 %v1432
        %v1477 = vpop.f32.mrb[0].mxu0
        %v1478 = vadd.f32 0.0, %v1477
        %v1479 = vpop.f32.mrb[0].mxu0
        %v1480 = vadd.f32 0.0, %v1479
        %v1481 = vpop.f32.mrb[0].mxu0
        %v1482 = vadd.f32 0.0, %v1481
        %v1483 = vpop.f32.mrb[0].mxu0
        %v1484 = vadd.f32 0.0, %v1483
        %1485 = vmatprep.mubr.bf16.mxu0 0
        %1486 = vmatmul.mubr.bf16.gmra.mrb[0].mxu0 %v1435
        %v1487 = vpop.f32.mrb[0].mxu0
        %v1488 = vadd.f32 0.0, %v1487
        %v1489 = vpop.f32.mrb[0].mxu0
        %v1490 = vadd.f32 0.0, %v1489
        %v1491 = vpop.f32.mrb[0].mxu0
        %v1492 = vadd.f32 0.0, %v1491
        %v1493 = vpop.f32.mrb[0].mxu0
        %v1494 = vadd.f32 0.0, %v1493
        %1495 = vdwg.mxu0
        %v1496 = vadd.f32 %v1403, %v1478
        %v1497 = vadd.f32 %v1405, %v1480
        %v1498 = vadd.f32 %v1407, %v1482
        %v1499 = vadd.f32 %v1409, %v1484
        %v1500 = vadd.f32 %v1413, %v1488
        %v1501 = vadd.f32 %v1415, %v1490
        %v1502 = vadd.f32 %v1417, %v1492
        %v1503 = vadd.f32 %v1419, %v1494
        %1504 = vrot.lane.b32.xlu0 %v1275, 104
        %v1505 = vpop.permute.xlu0 %1504
        %1506 = vrot.lane.b32.xlu0 %v1276, 104
        %v1507 = vpop.permute.xlu0 %1506
        %1508 = vrot.lane.b32.xlu0 %v1265, 32
        %v1509 = vpop.permute.xlu0 %1508
        %1510 = vrot.lane.b32.xlu0 %v1266, 32
        %v1511 = vpop.permute.xlu0 %1510
        %vm1512 = vcmask 261120
        %v1513 = vsel %vm1512, %v1509, %v1511
        %v1515 = vsel %vm1289, %v1505, 0
        %v1518 = vsel %vm1289, %v1507, 0
        %v1521 = vsel %vm1296, %v1513, 0
        %v1524 = vsel %vm1296, %v1511, 0
        %1526 = vmatprep.subr.bf16.mxu0 %v1524
        %1527 = vmatpush1.bf16.msra.mxu0 %v1521
        %1528 = vmatprep.subr.bf16.mxu0 0
        %1529 = vmatpush1.bf16.msra.mxu0 0
        %1530 = vmatprep.subr.bf16.mxu0 0
        %1531 = vmatpush1.bf16.msra.mxu0 0
        %1532 = vmatprep.subr.bf16.mxu0 0
        %1533 = vmatpush1.bf16.msra.mxu0 0
        %1534 = vmatprep.subr.bf16.mxu0 0
        %1535 = vmatpush1.bf16.msra.mxu0 0
        %1536 = vmatprep.subr.bf16.mxu0 0
        %1537 = vmatpush1.bf16.msra.mxu0 0
        %1538 = vmatprep.subr.bf16.mxu0 0
        %1539 = vmatpush1.bf16.msra.mxu0 0
        %1540 = vmatprep.subr.bf16.mxu0 0
        %1541 = vmatpush1.bf16.msra.mxu0 0
        %1542 = vmatprep.subr.bf16.mxu0 0
        %1543 = vmatpush1.bf16.msra.mxu0 0
        %1544 = vmatprep.subr.bf16.mxu0 0
        %1545 = vmatpush1.bf16.msra.mxu0 0
        %1546 = vmatprep.subr.bf16.mxu0 0
        %1547 = vmatpush1.bf16.msra.mxu0 0
        %1548 = vmatprep.subr.bf16.mxu0 0
        %1549 = vmatpush1.bf16.msra.mxu0 0
        %1550 = vmatprep.subr.bf16.mxu0 0
        %1551 = vmatpush1.bf16.msra.mxu0 0
        %1552 = vmatprep.subr.bf16.mxu0 0
        %1553 = vmatpush1.bf16.msra.mxu0 0
        %1554 = vmatprep.subr.bf16.mxu0 0
        %1555 = vmatpush1.bf16.msra.mxu0 0
        %1556 = vmatprep.subr.bf16.mxu0 0
        %1557 = vmatpush1.bf16.msra.mxu0 0
        %1558 = vmatprep.mubr.bf16.mxu0 0
        %1559 = vmatmul.mubr.bf16.gmra.mrb[0].mxu0 %v1515
        %v1560 = vpop.f32.mrb[0].mxu0
        %v1561 = vadd.f32 0.0, %v1560
        %v1562 = vpop.f32.mrb[0].mxu0
        %v1563 = vadd.f32 0.0, %v1562
        %v1564 = vpop.f32.mrb[0].mxu0
        %v1565 = vadd.f32 0.0, %v1564
        %v1566 = vpop.f32.mrb[0].mxu0
        %v1567 = vadd.f32 0.0, %v1566
        %1568 = vmatprep.mubr.bf16.mxu0 0
        %1569 = vmatmul.mubr.bf16.gmra.mrb[0].mxu0 %v1518
        %v1570 = vpop.f32.mrb[0].mxu0
        %v1571 = vadd.f32 0.0, %v1570
        %v1572 = vpop.f32.mrb[0].mxu0
        %v1573 = vadd.f32 0.0, %v1572
        %v1574 = vpop.f32.mrb[0].mxu0
        %v1575 = vadd.f32 0.0, %v1574
        %v1576 = vpop.f32.mrb[0].mxu0
        %v1577 = vadd.f32 0.0, %v1576
        %1578 = vdwg.mxu0
        %v1579 = vadd.f32 %v1496, %v1561
        %v1580 = vadd.f32 %v1497, %v1563
        %v1581 = vadd.f32 %v1498, %v1565
        %v1582 = vadd.f32 %v1499, %v1567
        %v1583 = vadd.f32 %v1500, %v1571
        %v1584 = vadd.f32 %v1501, %v1573
        %v1585 = vadd.f32 %v1502, %v1575
        %v1586 = vadd.f32 %v1503, %v1577
        %v1587 = vpack.c.bf16 %v438, %v438
        %v1588 = vpack.c.bf16 %v439, %v439
        %1591 = vrot.lane.b32.xlu0 %v1587, 96
        %v1592 = vpop.permute.xlu0 %1591
        %1593 = vrot.lane.b32.xlu0 %v1588, 96
        %v1594 = vpop.permute.xlu0 %1593
        %v1595 = vsel %vm1287, %v1592, %v1594
        %v1597 = vsel %vm1296, %v1595, 0
        %v1600 = vsel %vm1296, %v1594, 0
        %1602 = vmatprep.subr.bf16.mxu0 %v1600
        %1603 = vmatpush1.bf16.msra.mxu0 %v1597
        %1604 = vmatprep.subr.bf16.mxu0 0
        %1605 = vmatpush1.bf16.msra.mxu0 0
        %1606 = vmatprep.subr.bf16.mxu0 0
        %1607 = vmatpush1.bf16.msra.mxu0 0
        %1608 = vmatprep.subr.bf16.mxu0 0
        %1609 = vmatpush1.bf16.msra.mxu0 0
        %1610 = vmatprep.subr.bf16.mxu0 0
        %1611 = vmatpush1.bf16.msra.mxu0 0
        %1612 = vmatprep.subr.bf16.mxu0 0
        %1613 = vmatpush1.bf16.msra.mxu0 0
        %1614 = vmatprep.subr.bf16.mxu0 0
        %1615 = vmatpush1.bf16.msra.mxu0 0
        %1616 = vmatprep.subr.bf16.mxu0 0
        %1617 = vmatpush1.bf16.msra.mxu0 0
        %1618 = vmatprep.subr.bf16.mxu0 0
        %1619 = vmatpush1.bf16.msra.mxu0 0
        %1620 = vmatprep.subr.bf16.mxu0 0
        %1621 = vmatpush1.bf16.msra.mxu0 0
        %1622 = vmatprep.subr.bf16.mxu0 0
        %1623 = vmatpush1.bf16.msra.mxu0 0
        %1624 = vmatprep.subr.bf16.mxu0 0
        %1625 = vmatpush1.bf16.msra.mxu0 0
        %1626 = vmatprep.subr.bf16.mxu0 0
        %1627 = vmatpush1.bf16.msra.mxu0 0
        %1628 = vmatprep.subr.bf16.mxu0 0
        %1629 = vmatpush1.bf16.msra.mxu0 0
        %1630 = vmatprep.subr.bf16.mxu0 0
        %1631 = vmatpush1.bf16.msra.mxu0 0
        %1632 = vmatprep.subr.bf16.mxu0 0
        %1633 = vmatpush1.bf16.msra.mxu0 0
        %1634 = vmatprep.mubr.bf16.mxu0 0
        %1635 = vmatmul.mubr.bf16.gmra.mrb[0].mxu0 %v1291
        %v1636 = vpop.f32.mrb[0].mxu0
        %v1637 = vadd.f32 0.0, %v1636
        %v1638 = vpop.f32.mrb[0].mxu0
        %v1639 = vadd.f32 0.0, %v1638
        %v1640 = vpop.f32.mrb[0].mxu0
        %v1641 = vadd.f32 0.0, %v1640
        %v1642 = vpop.f32.mrb[0].mxu0
        %v1643 = vadd.f32 0.0, %v1642
        %1644 = vmatprep.mubr.bf16.mxu0 0
        %1645 = vmatmul.mubr.bf16.gmra.mrb[0].mxu0 %v1294
        %v1646 = vpop.f32.mrb[0].mxu0
        %v1647 = vadd.f32 0.0, %v1646
        %v1648 = vpop.f32.mrb[0].mxu0
        %v1649 = vadd.f32 0.0, %v1648
        %v1650 = vpop.f32.mrb[0].mxu0
        %v1651 = vadd.f32 0.0, %v1650
        %v1652 = vpop.f32.mrb[0].mxu0
        %v1653 = vadd.f32 0.0, %v1652
        %1654 = vdwg.mxu0
        %v1656 = vsel %vm1296, %v1587, 0
        %v1659 = vsel %vm1296, %v1588, 0
        %1661 = vmatprep.subr.bf16.mxu0 %v1659
        %1662 = vmatpush1.bf16.msra.mxu0 %v1656
        %1663 = vmatprep.subr.bf16.mxu0 0
        %1664 = vmatpush1.bf16.msra.mxu0 0
        %1665 = vmatprep.subr.bf16.mxu0 0
        %1666 = vmatpush1.bf16.msra.mxu0 0
        %1667 = vmatprep.subr.bf16.mxu0 0
        %1668 = vmatpush1.bf16.msra.mxu0 0
        %1669 = vmatprep.subr.bf16.mxu0 0
        %1670 = vmatpush1.bf16.msra.mxu0 0
        %1671 = vmatprep.subr.bf16.mxu0 0
        %1672 = vmatpush1.bf16.msra.mxu0 0
        %1673 = vmatprep.subr.bf16.mxu0 0
        %1674 = vmatpush1.bf16.msra.mxu0 0
        %1675 = vmatprep.subr.bf16.mxu0 0
        %1676 = vmatpush1.bf16.msra.mxu0 0
        %1677 = vmatprep.subr.bf16.mxu0 0
        %1678 = vmatpush1.bf16.msra.mxu0 0
        %1679 = vmatprep.subr.bf16.mxu0 0
        %1680 = vmatpush1.bf16.msra.mxu0 0
        %1681 = vmatprep.subr.bf16.mxu0 0
        %1682 = vmatpush1.bf16.msra.mxu0 0
        %1683 = vmatprep.subr.bf16.mxu0 0
        %1684 = vmatpush1.bf16.msra.mxu0 0
        %1685 = vmatprep.subr.bf16.mxu0 0
        %1686 = vmatpush1.bf16.msra.mxu0 0
        %1687 = vmatprep.subr.bf16.mxu0 0
        %1688 = vmatpush1.bf16.msra.mxu0 0
        %1689 = vmatprep.subr.bf16.mxu0 0
        %1690 = vmatpush1.bf16.msra.mxu0 0
        %1691 = vmatprep.subr.bf16.mxu0 0
        %1692 = vmatpush1.bf16.msra.mxu0 0
        %1693 = vmatprep.mubr.bf16.mxu0 0
        %1694 = vmatmul.mubr.bf16.gmra.mrb[0].mxu0 %v1357
        %v1695 = vpop.f32.mrb[0].mxu0
        %v1696 = vadd.f32 %v1637, %v1695
        %v1697 = vpop.f32.mrb[0].mxu0
        %v1698 = vadd.f32 %v1639, %v1697
        %v1699 = vpop.f32.mrb[0].mxu0
        %v1700 = vadd.f32 %v1641, %v1699
        %v1701 = vpop.f32.mrb[0].mxu0
        %v1702 = vadd.f32 %v1643, %v1701
        %1703 = vmatprep.mubr.bf16.mxu0 0
        %1704 = vmatmul.mubr.bf16.gmra.mrb[0].mxu0 %v1360
        %v1705 = vpop.f32.mrb[0].mxu0
        %v1706 = vadd.f32 %v1647, %v1705
        %v1707 = vpop.f32.mrb[0].mxu0
        %v1708 = vadd.f32 %v1649, %v1707
        %v1709 = vpop.f32.mrb[0].mxu0
        %v1710 = vadd.f32 %v1651, %v1709
        %v1711 = vpop.f32.mrb[0].mxu0
        %v1712 = vadd.f32 %v1653, %v1711
        %1713 = vdwg.mxu0
        %1714 = vrot.lane.b32.xlu0 %v1587, 64
        %v1715 = vpop.permute.xlu0 %1714
        %1716 = vrot.lane.b32.xlu0 %v1588, 64
        %v1717 = vpop.permute.xlu0 %1716
        %v1718 = vsel %vm1429, %v1715, %v1717
        %v1720 = vsel %vm1296, %v1718, 0
        %v1723 = vsel %vm1296, %v1717, 0
        %1725 = vmatprep.subr.bf16.mxu0 %v1723
        %1726 = vmatpush1.bf16.msra.mxu0 %v1720
        %1727 = vmatprep.subr.bf16.mxu0 0
        %1728 = vmatpush1.bf16.msra.mxu0 0
        %1729 = vmatprep.subr.bf16.mxu0 0
        %1730 = vmatpush1.bf16.msra.mxu0 0
        %1731 = vmatprep.subr.bf16.mxu0 0
        %1732 = vmatpush1.bf16.msra.mxu0 0
        %1733 = vmatprep.subr.bf16.mxu0 0
        %1734 = vmatpush1.bf16.msra.mxu0 0
        %1735 = vmatprep.subr.bf16.mxu0 0
        %1736 = vmatpush1.bf16.msra.mxu0 0
        %1737 = vmatprep.subr.bf16.mxu0 0
        %1738 = vmatpush1.bf16.msra.mxu0 0
        %1739 = vmatprep.subr.bf16.mxu0 0
        %1740 = vmatpush1.bf16.msra.mxu0 0
        %1741 = vmatprep.subr.bf16.mxu0 0
        %1742 = vmatpush1.bf16.msra.mxu0 0
        %1743 = vmatprep.subr.bf16.mxu0 0
        %1744 = vmatpush1.bf16.msra.mxu0 0
        %1745 = vmatprep.subr.bf16.mxu0 0
        %1746 = vmatpush1.bf16.msra.mxu0 0
        %1747 = vmatprep.subr.bf16.mxu0 0
        %1748 = vmatpush1.bf16.msra.mxu0 0
        %1749 = vmatprep.subr.bf16.mxu0 0
        %1750 = vmatpush1.bf16.msra.mxu0 0
        %1751 = vmatprep.subr.bf16.mxu0 0
        %1752 = vmatpush1.bf16.msra.mxu0 0
        %1753 = vmatprep.subr.bf16.mxu0 0
        %1754 = vmatpush1.bf16.msra.mxu0 0
        %1755 = vmatprep.subr.bf16.mxu0 0
        %1756 = vmatpush1.bf16.msra.mxu0 0
        %1757 = vmatprep.mubr.bf16.mxu0 0
        %1758 = vmatmul.mubr.bf16.gmra.mrb[0].mxu0 %v1432
        %v1759 = vpop.f32.mrb[0].mxu0
        %v1760 = vadd.f32 0.0, %v1759
        %v1761 = vpop.f32.mrb[0].mxu0
        %v1762 = vadd.f32 0.0, %v1761
        %v1763 = vpop.f32.mrb[0].mxu0
        %v1764 = vadd.f32 0.0, %v1763
        %v1765 = vpop.f32.mrb[0].mxu0
        %v1766 = vadd.f32 0.0, %v1765
        %1767 = vmatprep.mubr.bf16.mxu0 0
        %1768 = vmatmul.mubr.bf16.gmra.mrb[0].mxu0 %v1435
        %v1769 = vpop.f32.mrb[0].mxu0
        %v1770 = vadd.f32 0.0, %v1769
        %v1771 = vpop.f32.mrb[0].mxu0
        %v1772 = vadd.f32 0.0, %v1771
        %v1773 = vpop.f32.mrb[0].mxu0
        %v1774 = vadd.f32 0.0, %v1773
        %v1775 = vpop.f32.mrb[0].mxu0
        %v1776 = vadd.f32 0.0, %v1775
        %1777 = vdwg.mxu0
        %v1778 = vadd.f32 %v1696, %v1760
        %v1779 = vadd.f32 %v1698, %v1762
        %v1780 = vadd.f32 %v1700, %v1764
        %v1781 = vadd.f32 %v1702, %v1766
        %v1782 = vadd.f32 %v1706, %v1770
        %v1783 = vadd.f32 %v1708, %v1772
        %v1784 = vadd.f32 %v1710, %v1774
        %v1785 = vadd.f32 %v1712, %v1776
        %1786 = vrot.lane.b32.xlu0 %v1587, 32
        %v1787 = vpop.permute.xlu0 %1786
        %1788 = vrot.lane.b32.xlu0 %v1588, 32
        %v1789 = vpop.permute.xlu0 %1788
        %v1790 = vsel %vm1512, %v1787, %v1789
        %v1792 = vsel %vm1296, %v1790, 0
        %v1795 = vsel %vm1296, %v1789, 0
        %1797 = vmatprep.subr.bf16.mxu0 %v1795
        %1798 = vmatpush1.bf16.msra.mxu0 %v1792
        %1799 = vmatprep.subr.bf16.mxu0 0
        %1800 = vmatpush1.bf16.msra.mxu0 0
        %1801 = vmatprep.subr.bf16.mxu0 0
        %1802 = vmatpush1.bf16.msra.mxu0 0
        %1803 = vmatprep.subr.bf16.mxu0 0
        %1804 = vmatpush1.bf16.msra.mxu0 0
        %1805 = vmatprep.subr.bf16.mxu0 0
        %1806 = vmatpush1.bf16.msra.mxu0 0
        %1807 = vmatprep.subr.bf16.mxu0 0
        %1808 = vmatpush1.bf16.msra.mxu0 0
        %1809 = vmatprep.subr.bf16.mxu0 0
        %1810 = vmatpush1.bf16.msra.mxu0 0
        %1811 = vmatprep.subr.bf16.mxu0 0
        %1812 = vmatpush1.bf16.msra.mxu0 0
        %1813 = vmatprep.subr.bf16.mxu0 0
        %1814 = vmatpush1.bf16.msra.mxu0 0
        %1815 = vmatprep.subr.bf16.mxu0 0
        %1816 = vmatpush1.bf16.msra.mxu0 0
        %1817 = vmatprep.subr.bf16.mxu0 0
        %1818 = vmatpush1.bf16.msra.mxu0 0
        %1819 = vmatprep.subr.bf16.mxu0 0
        %1820 = vmatpush1.bf16.msra.mxu0 0
        %1821 = vmatprep.subr.bf16.mxu0 0
        %1822 = vmatpush1.bf16.msra.mxu0 0
        %1823 = vmatprep.subr.bf16.mxu0 0
        %1824 = vmatpush1.bf16.msra.mxu0 0
        %1825 = vmatprep.subr.bf16.mxu0 0
        %1826 = vmatpush1.bf16.msra.mxu0 0
        %1827 = vmatprep.subr.bf16.mxu0 0
        %1828 = vmatpush1.bf16.msra.mxu0 0
        %1829 = vmatprep.mubr.bf16.mxu0 0
        %1830 = vmatmul.mubr.bf16.gmra.mrb[0].mxu0 %v1515
        %v1831 = vpop.f32.mrb[0].mxu0
        %v1832 = vadd.f32 0.0, %v1831
        %v1833 = vpop.f32.mrb[0].mxu0
        %v1834 = vadd.f32 0.0, %v1833
        %v1835 = vpop.f32.mrb[0].mxu0
        %v1836 = vadd.f32 0.0, %v1835
        %v1837 = vpop.f32.mrb[0].mxu0
        %v1838 = vadd.f32 0.0, %v1837
        %1839 = vmatprep.mubr.bf16.mxu0 0
        %1840 = vmatmul.mubr.bf16.gmra.mrb[0].mxu0 %v1518
        %v1841 = vpop.f32.mrb[0].mxu0
        %v1842 = vadd.f32 0.0, %v1841
        %v1843 = vpop.f32.mrb[0].mxu0
        %v1844 = vadd.f32 0.0, %v1843
        %v1845 = vpop.f32.mrb[0].mxu0
        %v1846 = vadd.f32 0.0, %v1845
        %v1847 = vpop.f32.mrb[0].mxu0
        %v1848 = vadd.f32 0.0, %v1847
        %1849 = vdwg.mxu0
        %v1850 = vadd.f32 %v1778, %v1832
        %v1851 = vadd.f32 %v1779, %v1834
        %v1852 = vadd.f32 %v1780, %v1836
        %v1853 = vadd.f32 %v1781, %v1838
        %v1854 = vadd.f32 %v1782, %v1842
        %v1855 = vadd.f32 %v1783, %v1844
        %v1856 = vadd.f32 %v1784, %v1846
        %v1857 = vadd.f32 %v1785, %v1848
        %v1858 = vpack.c.bf16 %v440, %v440
        %v1859 = vpack.c.bf16 %v441, %v441
        %1862 = vrot.lane.b32.xlu0 %v1858, 96
        %v1863 = vpop.permute.xlu0 %1862
        %1864 = vrot.lane.b32.xlu0 %v1859, 96
        %v1865 = vpop.permute.xlu0 %1864
        %v1866 = vsel %vm1287, %v1863, %v1865
        %v1868 = vsel %vm1296, %v1866, 0
        %v1871 = vsel %vm1296, %v1865, 0
        %1873 = vmatprep.subr.bf16.mxu0 %v1871
        %1874 = vmatpush1.bf16.msra.mxu0 %v1868
        %1875 = vmatprep.subr.bf16.mxu0 0
        %1876 = vmatpush1.bf16.msra.mxu0 0
        %1877 = vmatprep.subr.bf16.mxu0 0
        %1878 = vmatpush1.bf16.msra.mxu0 0
        %1879 = vmatprep.subr.bf16.mxu0 0
        %1880 = vmatpush1.bf16.msra.mxu0 0
        %1881 = vmatprep.subr.bf16.mxu0 0
        %1882 = vmatpush1.bf16.msra.mxu0 0
        %1883 = vmatprep.subr.bf16.mxu0 0
        %1884 = vmatpush1.bf16.msra.mxu0 0
        %1885 = vmatprep.subr.bf16.mxu0 0
        %1886 = vmatpush1.bf16.msra.mxu0 0
        %1887 = vmatprep.subr.bf16.mxu0 0
        %1888 = vmatpush1.bf16.msra.mxu0 0
        %1889 = vmatprep.subr.bf16.mxu0 0
        %1890 = vmatpush1.bf16.msra.mxu0 0
        %1891 = vmatprep.subr.bf16.mxu0 0
        %1892 = vmatpush1.bf16.msra.mxu0 0
        %1893 = vmatprep.subr.bf16.mxu0 0
        %1894 = vmatpush1.bf16.msra.mxu0 0
        %1895 = vmatprep.subr.bf16.mxu0 0
        %1896 = vmatpush1.bf16.msra.mxu0 0
        %1897 = vmatprep.subr.bf16.mxu0 0
        %1898 = vmatpush1.bf16.msra.mxu0 0
        %1899 = vmatprep.subr.bf16.mxu0 0
        %1900 = vmatpush1.bf16.msra.mxu0 0
        %1901 = vmatprep.subr.bf16.mxu0 0
        %1902 = vmatpush1.bf16.msra.mxu0 0
        %1903 = vmatprep.subr.bf16.mxu0 0
        %1904 = vmatpush1.bf16.msra.mxu0 0
        %1905 = vmatprep.mubr.bf16.mxu0 0
        %1906 = vmatmul.mubr.bf16.gmra.mrb[0].mxu0 %v1291
        %v1907 = vpop.f32.mrb[0].mxu0
        %v1908 = vadd.f32 0.0, %v1907
        %v1909 = vpop.f32.mrb[0].mxu0
        %v1910 = vadd.f32 0.0, %v1909
        %v1911 = vpop.f32.mrb[0].mxu0
        %v1912 = vadd.f32 0.0, %v1911
        %v1913 = vpop.f32.mrb[0].mxu0
        %v1914 = vadd.f32 0.0, %v1913
        %1915 = vmatprep.mubr.bf16.mxu0 0
        %1916 = vmatmul.mubr.bf16.gmra.mrb[0].mxu0 %v1294
        %v1917 = vpop.f32.mrb[0].mxu0
        %v1918 = vadd.f32 0.0, %v1917
        %v1919 = vpop.f32.mrb[0].mxu0
        %v1920 = vadd.f32 0.0, %v1919
        %v1921 = vpop.f32.mrb[0].mxu0
        %v1922 = vadd.f32 0.0, %v1921
        %v1923 = vpop.f32.mrb[0].mxu0
        %v1924 = vadd.f32 0.0, %v1923
        %1925 = vdwg.mxu0
        %v1927 = vsel %vm1296, %v1858, 0
        %v1930 = vsel %vm1296, %v1859, 0
        %1932 = vmatprep.subr.bf16.mxu0 %v1930
        %1933 = vmatpush1.bf16.msra.mxu0 %v1927
        %1934 = vmatprep.subr.bf16.mxu0 0
        %1935 = vmatpush1.bf16.msra.mxu0 0
        %1936 = vmatprep.subr.bf16.mxu0 0
        %1937 = vmatpush1.bf16.msra.mxu0 0
        %1938 = vmatprep.subr.bf16.mxu0 0
        %1939 = vmatpush1.bf16.msra.mxu0 0
        %1940 = vmatprep.subr.bf16.mxu0 0
        %1941 = vmatpush1.bf16.msra.mxu0 0
        %1942 = vmatprep.subr.bf16.mxu0 0
        %1943 = vmatpush1.bf16.msra.mxu0 0
        %1944 = vmatprep.subr.bf16.mxu0 0
        %1945 = vmatpush1.bf16.msra.mxu0 0
        %1946 = vmatprep.subr.bf16.mxu0 0
        %1947 = vmatpush1.bf16.msra.mxu0 0
        %1948 = vmatprep.subr.bf16.mxu0 0
        %1949 = vmatpush1.bf16.msra.mxu0 0
        %1950 = vmatprep.subr.bf16.mxu0 0
        %1951 = vmatpush1.bf16.msra.mxu0 0
        %1952 = vmatprep.subr.bf16.mxu0 0
        %1953 = vmatpush1.bf16.msra.mxu0 0
        %1954 = vmatprep.subr.bf16.mxu0 0
        %1955 = vmatpush1.bf16.msra.mxu0 0
        %1956 = vmatprep.subr.bf16.mxu0 0
        %1957 = vmatpush1.bf16.msra.mxu0 0
        %1958 = vmatprep.subr.bf16.mxu0 0
        %1959 = vmatpush1.bf16.msra.mxu0 0
        %1960 = vmatprep.subr.bf16.mxu0 0
        %1961 = vmatpush1.bf16.msra.mxu0 0
        %1962 = vmatprep.subr.bf16.mxu0 0
        %1963 = vmatpush1.bf16.msra.mxu0 0
        %1964 = vmatprep.mubr.bf16.mxu0 0
        %1965 = vmatmul.mubr.bf16.gmra.mrb[0].mxu0 %v1357
        %v1966 = vpop.f32.mrb[0].mxu0
        %v1967 = vadd.f32 %v1908, %v1966
        %v1968 = vpop.f32.mrb[0].mxu0
        %v1969 = vadd.f32 %v1910, %v1968
        %v1970 = vpop.f32.mrb[0].mxu0
        %v1971 = vadd.f32 %v1912, %v1970
        %v1972 = vpop.f32.mrb[0].mxu0
        %v1973 = vadd.f32 %v1914, %v1972
        %1974 = vmatprep.mubr.bf16.mxu0 0
        %1975 = vmatmul.mubr.bf16.gmra.mrb[0].mxu0 %v1360
        %v1976 = vpop.f32.mrb[0].mxu0
        %v1977 = vadd.f32 %v1918, %v1976
        %v1978 = vpop.f32.mrb[0].mxu0
        %v1979 = vadd.f32 %v1920, %v1978
        %v1980 = vpop.f32.mrb[0].mxu0
        %v1981 = vadd.f32 %v1922, %v1980
        %v1982 = vpop.f32.mrb[0].mxu0
        %v1983 = vadd.f32 %v1924, %v1982
        %1984 = vdwg.mxu0
        %1985 = vrot.lane.b32.xlu0 %v1858, 64
        %v1986 = vpop.permute.xlu0 %1985
        %1987 = vrot.lane.b32.xlu0 %v1859, 64
        %v1988 = vpop.permute.xlu0 %1987
        %v1989 = vsel %vm1429, %v1986, %v1988
        %v1991 = vsel %vm1296, %v1989, 0
        %v1994 = vsel %vm1296, %v1988, 0
        %1996 = vmatprep.subr.bf16.mxu0 %v1994
        %1997 = vmatpush1.bf16.msra.mxu0 %v1991
        %1998 = vmatprep.subr.bf16.mxu0 0
        %1999 = vmatpush1.bf16.msra.mxu0 0
        %2000 = vmatprep.subr.bf16.mxu0 0
        %2001 = vmatpush1.bf16.msra.mxu0 0
        %2002 = vmatprep.subr.bf16.mxu0 0
        %2003 = vmatpush1.bf16.msra.mxu0 0
        %2004 = vmatprep.subr.bf16.mxu0 0
        %2005 = vmatpush1.bf16.msra.mxu0 0
        %2006 = vmatprep.subr.bf16.mxu0 0
        %2007 = vmatpush1.bf16.msra.mxu0 0
        %2008 = vmatprep.subr.bf16.mxu0 0
        %2009 = vmatpush1.bf16.msra.mxu0 0
        %2010 = vmatprep.subr.bf16.mxu0 0
        %2011 = vmatpush1.bf16.msra.mxu0 0
        %2012 = vmatprep.subr.bf16.mxu0 0
        %2013 = vmatpush1.bf16.msra.mxu0 0
        %2014 = vmatprep.subr.bf16.mxu0 0
        %2015 = vmatpush1.bf16.msra.mxu0 0
        %2016 = vmatprep.subr.bf16.mxu0 0
        %2017 = vmatpush1.bf16.msra.mxu0 0
        %2018 = vmatprep.subr.bf16.mxu0 0
        %2019 = vmatpush1.bf16.msra.mxu0 0
        %2020 = vmatprep.subr.bf16.mxu0 0
        %2021 = vmatpush1.bf16.msra.mxu0 0
        %2022 = vmatprep.subr.bf16.mxu0 0
        %2023 = vmatpush1.bf16.msra.mxu0 0
        %2024 = vmatprep.subr.bf16.mxu0 0
        %2025 = vmatpush1.bf16.msra.mxu0 0
        %2026 = vmatprep.subr.bf16.mxu0 0
        %2027 = vmatpush1.bf16.msra.mxu0 0
        %2028 = vmatprep.mubr.bf16.mxu0 0
        %2029 = vmatmul.mubr.bf16.gmra.mrb[0].mxu0 %v1432
        %v2030 = vpop.f32.mrb[0].mxu0
        %v2031 = vadd.f32 0.0, %v2030
        %v2032 = vpop.f32.mrb[0].mxu0
        %v2033 = vadd.f32 0.0, %v2032
        %v2034 = vpop.f32.mrb[0].mxu0
        %v2035 = vadd.f32 0.0, %v2034
        %v2036 = vpop.f32.mrb[0].mxu0
        %v2037 = vadd.f32 0.0, %v2036
        %2038 = vmatprep.mubr.bf16.mxu0 0
        %2039 = vmatmul.mubr.bf16.gmra.mrb[0].mxu0 %v1435
        %v2040 = vpop.f32.mrb[0].mxu0
        %v2041 = vadd.f32 0.0, %v2040
        %v2042 = vpop.f32.mrb[0].mxu0
        %v2043 = vadd.f32 0.0, %v2042
        %v2044 = vpop.f32.mrb[0].mxu0
        %v2045 = vadd.f32 0.0, %v2044
        %v2046 = vpop.f32.mrb[0].mxu0
        %v2047 = vadd.f32 0.0, %v2046
        %2048 = vdwg.mxu0
        %v2049 = vadd.f32 %v1967, %v2031
        %v2050 = vadd.f32 %v1969, %v2033
        %v2051 = vadd.f32 %v1971, %v2035
        %v2052 = vadd.f32 %v1973, %v2037
        %v2053 = vadd.f32 %v1977, %v2041
        %v2054 = vadd.f32 %v1979, %v2043
        %v2055 = vadd.f32 %v1981, %v2045
        %v2056 = vadd.f32 %v1983, %v2047
        %2057 = vrot.lane.b32.xlu0 %v1858, 32
        %v2058 = vpop.permute.xlu0 %2057
        %2059 = vrot.lane.b32.xlu0 %v1859, 32
        %v2060 = vpop.permute.xlu0 %2059
        %v2061 = vsel %vm1512, %v2058, %v2060
        %v2063 = vsel %vm1296, %v2061, 0
        %v2066 = vsel %vm1296, %v2060, 0
        %2068 = vmatprep.subr.bf16.mxu0 %v2066
        %2069 = vmatpush1.bf16.msra.mxu0 %v2063
        %2070 = vmatprep.subr.bf16.mxu0 0
        %2071 = vmatpush1.bf16.msra.mxu0 0
        %2072 = vmatprep.subr.bf16.mxu0 0
        %2073 = vmatpush1.bf16.msra.mxu0 0
        %2074 = vmatprep.subr.bf16.mxu0 0
        %2075 = vmatpush1.bf16.msra.mxu0 0
        %2076 = vmatprep.subr.bf16.mxu0 0
        %2077 = vmatpush1.bf16.msra.mxu0 0
        %2078 = vmatprep.subr.bf16.mxu0 0
        %2079 = vmatpush1.bf16.msra.mxu0 0
        %2080 = vmatprep.subr.bf16.mxu0 0
        %2081 = vmatpush1.bf16.msra.mxu0 0
        %2082 = vmatprep.subr.bf16.mxu0 0
        %2083 = vmatpush1.bf16.msra.mxu0 0
        %2084 = vmatprep.subr.bf16.mxu0 0
        %2085 = vmatpush1.bf16.msra.mxu0 0
        %2086 = vmatprep.subr.bf16.mxu0 0
        %2087 = vmatpush1.bf16.msra.mxu0 0
        %2088 = vmatprep.subr.bf16.mxu0 0
        %2089 = vmatpush1.bf16.msra.mxu0 0
        %2090 = vmatprep.subr.bf16.mxu0 0
        %2091 = vmatpush1.bf16.msra.mxu0 0
        %2092 = vmatprep.subr.bf16.mxu0 0
        %2093 = vmatpush1.bf16.msra.mxu0 0
        %2094 = vmatprep.subr.bf16.mxu0 0
        %2095 = vmatpush1.bf16.msra.mxu0 0
        %2096 = vmatprep.subr.bf16.mxu0 0
        %2097 = vmatpush1.bf16.msra.mxu0 0
        %2098 = vmatprep.subr.bf16.mxu0 0
        %2099 = vmatpush1.bf16.msra.mxu0 0
        %2100 = vmatprep.mubr.bf16.mxu0 0
        %2101 = vmatmul.mubr.bf16.gmra.mrb[0].mxu0 %v1515
        %v2102 = vpop.f32.mrb[0].mxu0
        %v2103 = vadd.f32 0.0, %v2102
        %v2104 = vpop.f32.mrb[0].mxu0
        %v2105 = vadd.f32 0.0, %v2104
        %v2106 = vpop.f32.mrb[0].mxu0
        %v2107 = vadd.f32 0.0, %v2106
        %v2108 = vpop.f32.mrb[0].mxu0
        %v2109 = vadd.f32 0.0, %v2108
        %2110 = vmatprep.mubr.bf16.mxu0 0
        %2111 = vmatmul.mubr.bf16.gmra.mrb[0].mxu0 %v1518
        %v2112 = vpop.f32.mrb[0].mxu0
        %v2113 = vadd.f32 0.0, %v2112
        %v2114 = vpop.f32.mrb[0].mxu0
        %v2115 = vadd.f32 0.0, %v2114
        %v2116 = vpop.f32.mrb[0].mxu0
        %v2117 = vadd.f32 0.0, %v2116
        %v2118 = vpop.f32.mrb[0].mxu0
        %v2119 = vadd.f32 0.0, %v2118
        %2120 = vdwg.mxu0
        %v2121 = vadd.f32 %v2049, %v2103
        %v2122 = vadd.f32 %v2050, %v2105
        %v2123 = vadd.f32 %v2051, %v2107
        %v2124 = vadd.f32 %v2052, %v2109
        %v2125 = vadd.f32 %v2053, %v2113
        %v2126 = vadd.f32 %v2054, %v2115
        %v2127 = vadd.f32 %v2055, %v2117
        %v2128 = vadd.f32 %v2056, %v2119
        %v2129 = vpack.c.bf16 %v442, %v442
        %v2130 = vpack.c.bf16 %v443, %v443
        %2133 = vrot.lane.b32.xlu0 %v2129, 96
        %v2134 = vpop.permute.xlu0 %2133
        %2135 = vrot.lane.b32.xlu0 %v2130, 96
        %v2136 = vpop.permute.xlu0 %2135
        %v2137 = vsel %vm1287, %v2134, %v2136
        %v2139 = vsel %vm1296, %v2137, 0
        %v2142 = vsel %vm1296, %v2136, 0
        %2144 = vmatprep.subr.bf16.mxu0 %v2142
        %2145 = vmatpush1.bf16.msra.mxu0 %v2139
        %2146 = vmatprep.subr.bf16.mxu0 0
        %2147 = vmatpush1.bf16.msra.mxu0 0
        %2148 = vmatprep.subr.bf16.mxu0 0
        %2149 = vmatpush1.bf16.msra.mxu0 0
        %2150 = vmatprep.subr.bf16.mxu0 0
        %2151 = vmatpush1.bf16.msra.mxu0 0
        %2152 = vmatprep.subr.bf16.mxu0 0
        %2153 = vmatpush1.bf16.msra.mxu0 0
        %2154 = vmatprep.subr.bf16.mxu0 0
        %2155 = vmatpush1.bf16.msra.mxu0 0
        %2156 = vmatprep.subr.bf16.mxu0 0
        %2157 = vmatpush1.bf16.msra.mxu0 0
        %2158 = vmatprep.subr.bf16.mxu0 0
        %2159 = vmatpush1.bf16.msra.mxu0 0
        %2160 = vmatprep.subr.bf16.mxu0 0
        %2161 = vmatpush1.bf16.msra.mxu0 0
        %2162 = vmatprep.subr.bf16.mxu0 0
        %2163 = vmatpush1.bf16.msra.mxu0 0
        %2164 = vmatprep.subr.bf16.mxu0 0
        %2165 = vmatpush1.bf16.msra.mxu0 0
        %2166 = vmatprep.subr.bf16.mxu0 0
        %2167 = vmatpush1.bf16.msra.mxu0 0
        %2168 = vmatprep.subr.bf16.mxu0 0
        %2169 = vmatpush1.bf16.msra.mxu0 0
        %2170 = vmatprep.subr.bf16.mxu0 0
        %2171 = vmatpush1.bf16.msra.mxu0 0
        %2172 = vmatprep.subr.bf16.mxu0 0
        %2173 = vmatpush1.bf16.msra.mxu0 0
        %2174 = vmatprep.subr.bf16.mxu0 0
        %2175 = vmatpush1.bf16.msra.mxu0 0
        %2176 = vmatprep.mubr.bf16.mxu0 0
        %2177 = vmatmul.mubr.bf16.gmra.mrb[0].mxu0 %v1291
        %v2178 = vpop.f32.mrb[0].mxu0
        %v2179 = vadd.f32 0.0, %v2178
        %v2180 = vpop.f32.mrb[0].mxu0
        %v2181 = vadd.f32 0.0, %v2180
        %v2182 = vpop.f32.mrb[0].mxu0
        %v2183 = vadd.f32 0.0, %v2182
        %v2184 = vpop.f32.mrb[0].mxu0
        %v2185 = vadd.f32 0.0, %v2184
        %2186 = vmatprep.mubr.bf16.mxu0 0
        %2187 = vmatmul.mubr.bf16.gmra.mrb[0].mxu0 %v1294
        %v2188 = vpop.f32.mrb[0].mxu0
        %v2189 = vadd.f32 0.0, %v2188
        %v2190 = vpop.f32.mrb[0].mxu0
        %v2191 = vadd.f32 0.0, %v2190
        %v2192 = vpop.f32.mrb[0].mxu0
        %v2193 = vadd.f32 0.0, %v2192
        %v2194 = vpop.f32.mrb[0].mxu0
        %v2195 = vadd.f32 0.0, %v2194
        %2196 = vdwg.mxu0
        %v2198 = vsel %vm1296, %v2129, 0
        %v2201 = vsel %vm1296, %v2130, 0
        %2203 = vmatprep.subr.bf16.mxu0 %v2201
        %2204 = vmatpush1.bf16.msra.mxu0 %v2198
        %2205 = vmatprep.subr.bf16.mxu0 0
        %2206 = vmatpush1.bf16.msra.mxu0 0
        %2207 = vmatprep.subr.bf16.mxu0 0
        %2208 = vmatpush1.bf16.msra.mxu0 0
        %2209 = vmatprep.subr.bf16.mxu0 0
        %2210 = vmatpush1.bf16.msra.mxu0 0
        %2211 = vmatprep.subr.bf16.mxu0 0
        %2212 = vmatpush1.bf16.msra.mxu0 0
        %2213 = vmatprep.subr.bf16.mxu0 0
        %2214 = vmatpush1.bf16.msra.mxu0 0
        %2215 = vmatprep.subr.bf16.mxu0 0
        %2216 = vmatpush1.bf16.msra.mxu0 0
        %2217 = vmatprep.subr.bf16.mxu0 0
        %2218 = vmatpush1.bf16.msra.mxu0 0
        %2219 = vmatprep.subr.bf16.mxu0 0
        %2220 = vmatpush1.bf16.msra.mxu0 0
        %2221 = vmatprep.subr.bf16.mxu0 0
        %2222 = vmatpush1.bf16.msra.mxu0 0
        %2223 = vmatprep.subr.bf16.mxu0 0
        %2224 = vmatpush1.bf16.msra.mxu0 0
        %2225 = vmatprep.subr.bf16.mxu0 0
        %2226 = vmatpush1.bf16.msra.mxu0 0
        %2227 = vmatprep.subr.bf16.mxu0 0
        %2228 = vmatpush1.bf16.msra.mxu0 0
        %2229 = vmatprep.subr.bf16.mxu0 0
        %2230 = vmatpush1.bf16.msra.mxu0 0
        %2231 = vmatprep.subr.bf16.mxu0 0
        %2232 = vmatpush1.bf16.msra.mxu0 0
        %2233 = vmatprep.subr.bf16.mxu0 0
        %2234 = vmatpush1.bf16.msra.mxu0 0
        %2235 = vmatprep.mubr.bf16.mxu0 0
        %2236 = vmatmul.mubr.bf16.gmra.mrb[0].mxu0 %v1357
        %v2237 = vpop.f32.mrb[0].mxu0
        %v2238 = vadd.f32 %v2179, %v2237
        %v2239 = vpop.f32.mrb[0].mxu0
        %v2240 = vadd.f32 %v2181, %v2239
        %v2241 = vpop.f32.mrb[0].mxu0
        %v2242 = vadd.f32 %v2183, %v2241
        %v2243 = vpop.f32.mrb[0].mxu0
        %v2244 = vadd.f32 %v2185, %v2243
        %2245 = vmatprep.mubr.bf16.mxu0 0
        %2246 = vmatmul.mubr.bf16.gmra.mrb[0].mxu0 %v1360
        %v2247 = vpop.f32.mrb[0].mxu0
        %v2248 = vadd.f32 %v2189, %v2247
        %v2249 = vpop.f32.mrb[0].mxu0
        %v2250 = vadd.f32 %v2191, %v2249
        %v2251 = vpop.f32.mrb[0].mxu0
        %v2252 = vadd.f32 %v2193, %v2251
        %v2253 = vpop.f32.mrb[0].mxu0
        %v2254 = vadd.f32 %v2195, %v2253
        %2255 = vdwg.mxu0
        %2256 = vrot.lane.b32.xlu0 %v2129, 64
        %v2257 = vpop.permute.xlu0 %2256
        %2258 = vrot.lane.b32.xlu0 %v2130, 64
        %v2259 = vpop.permute.xlu0 %2258
        %v2260 = vsel %vm1429, %v2257, %v2259
        %v2262 = vsel %vm1296, %v2260, 0
        %v2265 = vsel %vm1296, %v2259, 0
        %2267 = vmatprep.subr.bf16.mxu0 %v2265
        %2268 = vmatpush1.bf16.msra.mxu0 %v2262
        %2269 = vmatprep.subr.bf16.mxu0 0
        %2270 = vmatpush1.bf16.msra.mxu0 0
        %2271 = vmatprep.subr.bf16.mxu0 0
        %2272 = vmatpush1.bf16.msra.mxu0 0
        %2273 = vmatprep.subr.bf16.mxu0 0
        %2274 = vmatpush1.bf16.msra.mxu0 0
        %2275 = vmatprep.subr.bf16.mxu0 0
        %2276 = vmatpush1.bf16.msra.mxu0 0
        %2277 = vmatprep.subr.bf16.mxu0 0
        %2278 = vmatpush1.bf16.msra.mxu0 0
        %2279 = vmatprep.subr.bf16.mxu0 0
        %2280 = vmatpush1.bf16.msra.mxu0 0
        %2281 = vmatprep.subr.bf16.mxu0 0
        %2282 = vmatpush1.bf16.msra.mxu0 0
        %2283 = vmatprep.subr.bf16.mxu0 0
        %2284 = vmatpush1.bf16.msra.mxu0 0
        %2285 = vmatprep.subr.bf16.mxu0 0
        %2286 = vmatpush1.bf16.msra.mxu0 0
        %2287 = vmatprep.subr.bf16.mxu0 0
        %2288 = vmatpush1.bf16.msra.mxu0 0
        %2289 = vmatprep.subr.bf16.mxu0 0
        %2290 = vmatpush1.bf16.msra.mxu0 0
        %2291 = vmatprep.subr.bf16.mxu0 0
        %2292 = vmatpush1.bf16.msra.mxu0 0
        %2293 = vmatprep.subr.bf16.mxu0 0
        %2294 = vmatpush1.bf16.msra.mxu0 0
        %2295 = vmatprep.subr.bf16.mxu0 0
        %2296 = vmatpush1.bf16.msra.mxu0 0
        %2297 = vmatprep.subr.bf16.mxu0 0
        %2298 = vmatpush1.bf16.msra.mxu0 0
        %2299 = vmatprep.mubr.bf16.mxu0 0
        %2300 = vmatmul.mubr.bf16.gmra.mrb[0].mxu0 %v1432
        %v2301 = vpop.f32.mrb[0].mxu0
        %v2302 = vadd.f32 0.0, %v2301
        %v2303 = vpop.f32.mrb[0].mxu0
        %v2304 = vadd.f32 0.0, %v2303
        %v2305 = vpop.f32.mrb[0].mxu0
        %v2306 = vadd.f32 0.0, %v2305
        %v2307 = vpop.f32.mrb[0].mxu0
        %v2308 = vadd.f32 0.0, %v2307
        %2309 = vmatprep.mubr.bf16.mxu0 0
        %2310 = vmatmul.mubr.bf16.gmra.mrb[0].mxu0 %v1435
        %v2311 = vpop.f32.mrb[0].mxu0
        %v2312 = vadd.f32 0.0, %v2311
        %v2313 = vpop.f32.mrb[0].mxu0
        %v2314 = vadd.f32 0.0, %v2313
        %v2315 = vpop.f32.mrb[0].mxu0
        %v2316 = vadd.f32 0.0, %v2315
        %v2317 = vpop.f32.mrb[0].mxu0
        %v2318 = vadd.f32 0.0, %v2317
        %2319 = vdwg.mxu0
        %v2320 = vadd.f32 %v2238, %v2302
        %v2321 = vadd.f32 %v2240, %v2304
        %v2322 = vadd.f32 %v2242, %v2306
        %v2323 = vadd.f32 %v2244, %v2308
        %v2324 = vadd.f32 %v2248, %v2312
        %v2325 = vadd.f32 %v2250, %v2314
        %v2326 = vadd.f32 %v2252, %v2316
        %v2327 = vadd.f32 %v2254, %v2318
        %2328 = vrot.lane.b32.xlu0 %v2129, 32
        %v2329 = vpop.permute.xlu0 %2328
        %2330 = vrot.lane.b32.xlu0 %v2130, 32
        %v2331 = vpop.permute.xlu0 %2330
        %v2332 = vsel %vm1512, %v2329, %v2331
        %v2334 = vsel %vm1296, %v2332, 0
        %v2337 = vsel %vm1296, %v2331, 0
        %2339 = vmatprep.subr.bf16.mxu0 %v2337
        %2340 = vmatpush1.bf16.msra.mxu0 %v2334
        %2341 = vmatprep.subr.bf16.mxu0 0
        %2342 = vmatpush1.bf16.msra.mxu0 0
        %2343 = vmatprep.subr.bf16.mxu0 0
        %2344 = vmatpush1.bf16.msra.mxu0 0
        %2345 = vmatprep.subr.bf16.mxu0 0
        %2346 = vmatpush1.bf16.msra.mxu0 0
        %2347 = vmatprep.subr.bf16.mxu0 0
        %2348 = vmatpush1.bf16.msra.mxu0 0
        %2349 = vmatprep.subr.bf16.mxu0 0
        %2350 = vmatpush1.bf16.msra.mxu0 0
        %2351 = vmatprep.subr.bf16.mxu0 0
        %2352 = vmatpush1.bf16.msra.mxu0 0
        %2353 = vmatprep.subr.bf16.mxu0 0
        %2354 = vmatpush1.bf16.msra.mxu0 0
        %2355 = vmatprep.subr.bf16.mxu0 0
        %2356 = vmatpush1.bf16.msra.mxu0 0
        %2357 = vmatprep.subr.bf16.mxu0 0
        %2358 = vmatpush1.bf16.msra.mxu0 0
        %2359 = vmatprep.subr.bf16.mxu0 0
        %2360 = vmatpush1.bf16.msra.mxu0 0
        %2361 = vmatprep.subr.bf16.mxu0 0
        %2362 = vmatpush1.bf16.msra.mxu0 0
        %2363 = vmatprep.subr.bf16.mxu0 0
        %2364 = vmatpush1.bf16.msra.mxu0 0
        %2365 = vmatprep.subr.bf16.mxu0 0
        %2366 = vmatpush1.bf16.msra.mxu0 0
        %2367 = vmatprep.subr.bf16.mxu0 0
        %2368 = vmatpush1.bf16.msra.mxu0 0
        %2369 = vmatprep.subr.bf16.mxu0 0
        %2370 = vmatpush1.bf16.msra.mxu0 0
        %2371 = vmatprep.mubr.bf16.mxu0 0
        %2372 = vmatmul.mubr.bf16.gmra.mrb[0].mxu0 %v1515
        %v2373 = vpop.f32.mrb[0].mxu0
        %v2374 = vadd.f32 0.0, %v2373
        %v2375 = vpop.f32.mrb[0].mxu0
        %v2376 = vadd.f32 0.0, %v2375
        %v2377 = vpop.f32.mrb[0].mxu0
        %v2378 = vadd.f32 0.0, %v2377
        %v2379 = vpop.f32.mrb[0].mxu0
        %v2380 = vadd.f32 0.0, %v2379
        %2381 = vmatprep.mubr.bf16.mxu0 0
        %2382 = vmatmul.mubr.bf16.gmra.mrb[0].mxu0 %v1518
        %v2383 = vpop.f32.mrb[0].mxu0
        %v2384 = vadd.f32 0.0, %v2383
        %v2385 = vpop.f32.mrb[0].mxu0
        %v2386 = vadd.f32 0.0, %v2385
        %v2387 = vpop.f32.mrb[0].mxu0
        %v2388 = vadd.f32 0.0, %v2387
        %v2389 = vpop.f32.mrb[0].mxu0
        %v2390 = vadd.f32 0.0, %v2389
        %2391 = vdwg.mxu0
        %v2392 = vadd.f32 %v2320, %v2374
        %v2393 = vadd.f32 %v2321, %v2376
        %v2394 = vadd.f32 %v2322, %v2378
        %v2395 = vadd.f32 %v2323, %v2380
        %v2396 = vadd.f32 %v2324, %v2384
        %v2397 = vadd.f32 %v2325, %v2386
        %v2398 = vadd.f32 %v2326, %v2388
        %v2399 = vadd.f32 %v2327, %v2390
        %v2400 = vpack.c.bf16 %v1581, %v1579
        %v2401 = vpack.c.bf16 %v1582, %v1580
        %v2402 = vpack.c.bf16 %v1585, %v1583
        %v2403 = vpack.c.bf16 %v1586, %v1584
        %v2404 = vpack.c.bf16 %v1852, %v1850
        %v2405 = vpack.c.bf16 %v1853, %v1851
        %v2406 = vpack.c.bf16 %v1856, %v1854
        %v2407 = vpack.c.bf16 %v1857, %v1855
        %v2408 = vpack.c.bf16 %v2123, %v2121
        %v2409 = vpack.c.bf16 %v2124, %v2122
        %v2410 = vpack.c.bf16 %v2127, %v2125
        %v2411 = vpack.c.bf16 %v2128, %v2126
        %v2412 = vpack.c.bf16 %v2394, %v2392
        %v2413 = vpack.c.bf16 %v2395, %v2393
        %v2414 = vpack.c.bf16 %v2398, %v2396
        %v2415 = vpack.c.bf16 %v2399, %v2397
        %v2417 = vlaneseq
        %v2418 = vshrl.u32 %v2417, 7
        %v2419 = vsub.s32 0, %v2418
        %v2420 = vrot.slane %v1264, %v2419
        %v2421 = vlaneseq
        %v2422 = vshrl.u32 %v2421, 7
        %v2423 = vsub.s32 1, %v2422
        %v2424 = vrot.slane %v1264, %v2423
        %v2425 = vlaneseq
        %v2426 = vshrl.u32 %v2425, 7
        %v2427 = vsub.s32 2, %v2426
        %v2428 = vrot.slane %v1264, %v2427
        %v2472 = vunpack.c.l.b16 %v1224
        %v2473 = vunpack.c.h.b16 %v1224
        %v2474 = vunpack.c.l.b16 %v1225
        %v2475 = vunpack.c.l.b16 %v1226
        %v2476 = vunpack.c.h.b16 %v1226
        %v2477 = vunpack.c.l.b16 %v1227
        %v2478 = vunpack.c.l.b16 %v1228
        %v2479 = vunpack.c.h.b16 %v1228
        %v2480 = vunpack.c.l.b16 %v1229
        %v2481 = vunpack.c.l.b16 %v1230
        %v2482 = vunpack.c.h.b16 %v1230
        %v2483 = vunpack.c.l.b16 %v1231
        %v2484 = vunpack.c.l.b16 %v1232
        %v2485 = vunpack.c.h.b16 %v1232
        %v2486 = vunpack.c.l.b16 %v1233
        %v2487 = vunpack.c.l.b16 %v1234
        %v2488 = vunpack.c.h.b16 %v1234
        %v2489 = vunpack.c.l.b16 %v1235
        %v2490 = vunpack.c.l.b16 %v1236
        %v2491 = vunpack.c.h.b16 %v1236
        %v2492 = vunpack.c.l.b16 %v1237
        %v2493 = vunpack.c.l.b16 %v1238
        %v2494 = vunpack.c.h.b16 %v1238
        %v2495 = vunpack.c.l.b16 %v1239
        %v2496 = vunpack.c.l.b16 %v1240
        %v2497 = vunpack.c.h.b16 %v1240
        %v2498 = vunpack.c.l.b16 %v1241
        %v2499 = vunpack.c.l.b16 %v1242
        %v2500 = vunpack.c.h.b16 %v1242
        %v2501 = vunpack.c.l.b16 %v1243
        %v2502 = vunpack.c.l.b16 %v1244
        %v2503 = vunpack.c.h.b16 %v1244
        %v2504 = vunpack.c.l.b16 %v1245
        %v2505 = vunpack.c.l.b16 %v1246
        %v2506 = vunpack.c.h.b16 %v1246
        %v2507 = vunpack.c.l.b16 %v1247
        %v2508 = vunpack.c.l.b16 %v1248
        %v2509 = vunpack.c.h.b16 %v1248
        %v2510 = vunpack.c.l.b16 %v1249
        %v2511 = vunpack.c.l.b16 %v1250
        %v2512 = vunpack.c.h.b16 %v1250
        %v2513 = vunpack.c.l.b16 %v1251
        %v2514 = vunpack.c.l.b16 %v1252
        %v2515 = vunpack.c.h.b16 %v1252
        %v2516 = vunpack.c.l.b16 %v1253
        %v2517 = vunpack.c.l.b16 %v1254
        %v2518 = vunpack.c.h.b16 %v1254
        %v2519 = vunpack.c.l.b16 %v1255
        %v2520 = vunpack.c.l.b16 %v1256
        %v2521 = vunpack.c.h.b16 %v1256
        %v2522 = vunpack.c.l.b16 %v1257
        %v2523 = vunpack.c.l.b16 %v1258
        %v2524 = vunpack.c.h.b16 %v1258
        %v2525 = vunpack.c.l.b16 %v1259
        %v2526 = vunpack.c.l.b16 %v1260
        %v2527 = vunpack.c.h.b16 %v1260
        %v2528 = vunpack.c.l.b16 %v1261
        %v2529 = vunpack.c.l.b16 %v1262
        %v2530 = vunpack.c.h.b16 %v1262
        %v2531 = vunpack.c.l.b16 %v1263
        %v2532 = vpack.c.b16 %v2475, %v2472
        %v2533 = vpack.c.b16 %v2476, %v2473
        %v2534 = vpack.c.b16 %v2477, %v2474
        %v2535 = vpack.c.b16 %v2481, %v2478
        %v2536 = vpack.c.b16 %v2482, %v2479
        %v2537 = vpack.c.b16 %v2483, %v2480
        %v2538 = vpack.c.b16 %v2487, %v2484
        %v2539 = vpack.c.b16 %v2488, %v2485
        %v2540 = vpack.c.b16 %v2489, %v2486
        %v2541 = vpack.c.b16 %v2493, %v2490
        %v2542 = vpack.c.b16 %v2494, %v2491
        %v2543 = vpack.c.b16 %v2495, %v2492
        %v2544 = vpack.c.b16 %v2499, %v2496
        %v2545 = vpack.c.b16 %v2500, %v2497
        %v2546 = vpack.c.b16 %v2501, %v2498
        %v2547 = vpack.c.b16 %v2505, %v2502
        %v2548 = vpack.c.b16 %v2506, %v2503
        %v2549 = vpack.c.b16 %v2507, %v2504
        %v2550 = vpack.c.b16 %v2511, %v2508
        %v2551 = vpack.c.b16 %v2512, %v2509
        %v2552 = vpack.c.b16 %v2513, %v2510
        %v2553 = vpack.c.b16 %v2517, %v2514
        %v2554 = vpack.c.b16 %v2518, %v2515
        %v2555 = vpack.c.b16 %v2519, %v2516
        %v2556 = vpack.c.b16 %v2523, %v2520
        %v2557 = vpack.c.b16 %v2524, %v2521
        %v2558 = vpack.c.b16 %v2525, %v2522
        %v2559 = vpack.c.b16 %v2529, %v2526
        %v2560 = vpack.c.b16 %v2530, %v2527
        %v2561 = vpack.c.b16 %v2531, %v2528
        %v2593 = vsel %vm481, %v2401, 0
        %v2596 = vsel %vm481, %v2403, 0
        %v2599 = vsel %vm481, %v2405, 0
        %v2602 = vsel %vm481, %v2407, 0
        %v2605 = vsel %vm481, %v2409, 0
        %v2608 = vsel %vm481, %v2411, 0
        %v2611 = vsel %vm481, %v2413, 0
        %v2614 = vsel %vm481, %v2415, 0
        %2616 = vmatprep.subr.bf16.mxu0 %v2533
        %2617 = vmatpush1.bf16.msra.mxu0 %v2532
        %2618 = vmatprep.subr.bf16.mxu0 %v2536
        %2619 = vmatpush1.bf16.msra.mxu0 %v2535
        %2620 = vmatprep.subr.bf16.mxu0 %v2539
        %2621 = vmatpush1.bf16.msra.mxu0 %v2538
        %2622 = vmatprep.subr.bf16.mxu0 %v2542
        %2623 = vmatpush1.bf16.msra.mxu0 %v2541
        %2624 = vmatprep.subr.bf16.mxu0 %v2545
        %2625 = vmatpush1.bf16.msra.mxu0 %v2544
        %2626 = vmatprep.subr.bf16.mxu0 %v2548
        %2627 = vmatpush1.bf16.msra.mxu0 %v2547
        %2628 = vmatprep.subr.bf16.mxu0 %v2551
        %2629 = vmatpush1.bf16.msra.mxu0 %v2550
        %2630 = vmatprep.subr.bf16.mxu0 %v2554
        %2631 = vmatpush1.bf16.msra.mxu0 %v2553
        %2632 = vmatprep.subr.bf16.mxu0 %v2557
        %2633 = vmatpush1.bf16.msra.mxu0 %v2556
        %2634 = vmatprep.subr.bf16.mxu0 %v2560
        %2635 = vmatpush1.bf16.msra.mxu0 %v2559
        %2636 = vmatprep.subr.bf16.mxu0 0
        %2637 = vmatpush1.bf16.msra.mxu0 0
        %2638 = vmatprep.subr.bf16.mxu0 0
        %2639 = vmatpush1.bf16.msra.mxu0 0
        %2640 = vmatprep.subr.bf16.mxu0 0
        %2641 = vmatpush1.bf16.msra.mxu0 0
        %2642 = vmatprep.subr.bf16.mxu0 0
        %2643 = vmatpush1.bf16.msra.mxu0 0
        %2644 = vmatprep.subr.bf16.mxu0 0
        %2645 = vmatpush1.bf16.msra.mxu0 0
        %2646 = vmatprep.subr.bf16.mxu0 0
        %2647 = vmatpush1.bf16.msra.mxu0 0
        %2648 = vmatprep.mubr.bf16.mxu0 %v2593
        %2649 = vmatmul.mubr.bf16.gmra.mrb[0].mxu0 %v2400
        %v2650 = vpop.f32.mrb[0].mxu0
        %v2651 = vadd.f32 %v2420, %v2650
        %v2652 = vpop.f32.mrb[0].mxu0
        %v2653 = vadd.f32 %v2424, %v2652
        %v2654 = vpop.f32.mrb[0].mxu0
        %v2655 = vadd.f32 %v2420, %v2654
        %v2656 = vpop.f32.mrb[0].mxu0
        %v2657 = vadd.f32 %v2424, %v2656
        %2658 = vmatprep.mubr.bf16.mxu0 %v2596
        %2659 = vmatmul.mubr.bf16.gmra.mrb[0].mxu0 %v2402
        %v2660 = vpop.f32.mrb[0].mxu0
        %v2661 = vadd.f32 %v2420, %v2660
        %v2662 = vpop.f32.mrb[0].mxu0
        %v2663 = vadd.f32 %v2424, %v2662
        %v2664 = vpop.f32.mrb[0].mxu0
        %v2665 = vadd.f32 %v2420, %v2664
        %v2666 = vpop.f32.mrb[0].mxu0
        %v2667 = vadd.f32 %v2424, %v2666
        %2668 = vmatprep.mubr.bf16.mxu0 %v2599
        %2669 = vmatmul.mubr.bf16.gmra.mrb[0].mxu0 %v2404
        %v2670 = vpop.f32.mrb[0].mxu0
        %v2671 = vadd.f32 %v2420, %v2670
        %v2672 = vpop.f32.mrb[0].mxu0
        %v2673 = vadd.f32 %v2424, %v2672
        %v2674 = vpop.f32.mrb[0].mxu0
        %v2675 = vadd.f32 %v2420, %v2674
        %v2676 = vpop.f32.mrb[0].mxu0
        %v2677 = vadd.f32 %v2424, %v2676
        %2678 = vmatprep.mubr.bf16.mxu0 %v2602
        %2679 = vmatmul.mubr.bf16.gmra.mrb[0].mxu0 %v2406
        %v2680 = vpop.f32.mrb[0].mxu0
        %v2681 = vadd.f32 %v2420, %v2680
        %v2682 = vpop.f32.mrb[0].mxu0
        %v2683 = vadd.f32 %v2424, %v2682
        %v2684 = vpop.f32.mrb[0].mxu0
        %v2685 = vadd.f32 %v2420, %v2684
        %v2686 = vpop.f32.mrb[0].mxu0
        %v2687 = vadd.f32 %v2424, %v2686
        %2688 = vmatprep.mubr.bf16.mxu0 %v2605
        %2689 = vmatmul.mubr.bf16.gmra.mrb[0].mxu0 %v2408
        %v2690 = vpop.f32.mrb[0].mxu0
        %v2691 = vadd.f32 %v2420, %v2690
        %v2692 = vpop.f32.mrb[0].mxu0
        %v2693 = vadd.f32 %v2424, %v2692
        %v2694 = vpop.f32.mrb[0].mxu0
        %v2695 = vadd.f32 %v2420, %v2694
        %v2696 = vpop.f32.mrb[0].mxu0
        %v2697 = vadd.f32 %v2424, %v2696
        %2698 = vmatprep.mubr.bf16.mxu0 %v2608
        %2699 = vmatmul.mubr.bf16.gmra.mrb[0].mxu0 %v2410
        %v2700 = vpop.f32.mrb[0].mxu0
        %v2701 = vadd.f32 %v2420, %v2700
        %v2702 = vpop.f32.mrb[0].mxu0
        %v2703 = vadd.f32 %v2424, %v2702
        %v2704 = vpop.f32.mrb[0].mxu0
        %v2705 = vadd.f32 %v2420, %v2704
        %v2706 = vpop.f32.mrb[0].mxu0
        %v2707 = vadd.f32 %v2424, %v2706
        %2708 = vmatprep.mubr.bf16.mxu0 %v2611
        %2709 = vmatmul.mubr.bf16.gmra.mrb[0].mxu0 %v2412
        %v2710 = vpop.f32.mrb[0].mxu0
        %v2711 = vadd.f32 %v2420, %v2710
        %v2712 = vpop.f32.mrb[0].mxu0
        %v2713 = vadd.f32 %v2424, %v2712
        %v2714 = vpop.f32.mrb[0].mxu0
        %v2715 = vadd.f32 %v2420, %v2714
        %v2716 = vpop.f32.mrb[0].mxu0
        %v2717 = vadd.f32 %v2424, %v2716
        %2718 = vmatprep.mubr.bf16.mxu0 %v2614
        %2719 = vmatmul.mubr.bf16.gmra.mrb[0].mxu0 %v2414
        %v2720 = vpop.f32.mrb[0].mxu0
        %v2721 = vadd.f32 %v2420, %v2720
        %v2722 = vpop.f32.mrb[0].mxu0
        %v2723 = vadd.f32 %v2424, %v2722
        %v2724 = vpop.f32.mrb[0].mxu0
        %v2725 = vadd.f32 %v2420, %v2724
        %v2726 = vpop.f32.mrb[0].mxu0
        %v2727 = vadd.f32 %v2424, %v2726
        %2728 = vdwg.mxu0
        %2729 = vmatprep.subr.bf16.mxu0 0
        %2730 = vmatpush1.bf16.msra.mxu0 %v2534
        %2731 = vmatprep.subr.bf16.mxu0 0
        %2732 = vmatpush1.bf16.msra.mxu0 %v2537
        %2733 = vmatprep.subr.bf16.mxu0 0
        %2734 = vmatpush1.bf16.msra.mxu0 %v2540
        %2735 = vmatprep.subr.bf16.mxu0 0
        %2736 = vmatpush1.bf16.msra.mxu0 %v2543
        %2737 = vmatprep.subr.bf16.mxu0 0
        %2738 = vmatpush1.bf16.msra.mxu0 %v2546
        %2739 = vmatprep.subr.bf16.mxu0 0
        %2740 = vmatpush1.bf16.msra.mxu0 %v2549
        %2741 = vmatprep.subr.bf16.mxu0 0
        %2742 = vmatpush1.bf16.msra.mxu0 %v2552
        %2743 = vmatprep.subr.bf16.mxu0 0
        %2744 = vmatpush1.bf16.msra.mxu0 %v2555
        %2745 = vmatprep.subr.bf16.mxu0 0
        %2746 = vmatpush1.bf16.msra.mxu0 %v2558
        %2747 = vmatprep.subr.bf16.mxu0 0
        %2748 = vmatpush1.bf16.msra.mxu0 %v2561
        %2749 = vmatprep.subr.bf16.mxu0 0
        %2750 = vmatpush1.bf16.msra.mxu0 0
        %2751 = vmatprep.subr.bf16.mxu0 0
        %2752 = vmatpush1.bf16.msra.mxu0 0
        %2753 = vmatprep.subr.bf16.mxu0 0
        %2754 = vmatpush1.bf16.msra.mxu0 0
        %2755 = vmatprep.subr.bf16.mxu0 0
        %2756 = vmatpush1.bf16.msra.mxu0 0
        %2757 = vmatprep.subr.bf16.mxu0 0
        %2758 = vmatpush1.bf16.msra.mxu0 0
        %2759 = vmatprep.subr.bf16.mxu0 0
        %2760 = vmatpush1.bf16.msra.mxu0 0
        %2761 = vmatprep.mubr.bf16.mxu0 %v2593
        %2762 = vmatmul.mubr.bf16.gmra.mrb[0].mxu0 %v2400
        %v2763 = vpop.f32.mrb[0].mxu0
        %v2764 = vadd.f32 %v2428, %v2763
        %v2765 = vpop.f32.mrb[0].mxu0
        %v2766 = vpop.f32.mrb[0].mxu0
        %v2767 = vadd.f32 %v2428, %v2766
        %v2768 = vpop.f32.mrb[0].mxu0
        %2769 = vmatprep.mubr.bf16.mxu0 %v2596
        %2770 = vmatmul.mubr.bf16.gmra.mrb[0].mxu0 %v2402
        %v2771 = vpop.f32.mrb[0].mxu0
        %v2772 = vadd.f32 %v2428, %v2771
        %v2773 = vpop.f32.mrb[0].mxu0
        %v2774 = vpop.f32.mrb[0].mxu0
        %v2775 = vadd.f32 %v2428, %v2774
        %v2776 = vpop.f32.mrb[0].mxu0
        %2777 = vmatprep.mubr.bf16.mxu0 %v2599
        %2778 = vmatmul.mubr.bf16.gmra.mrb[0].mxu0 %v2404
        %v2779 = vpop.f32.mrb[0].mxu0
        %v2780 = vadd.f32 %v2428, %v2779
        %v2781 = vpop.f32.mrb[0].mxu0
        %v2782 = vpop.f32.mrb[0].mxu0
        %v2783 = vadd.f32 %v2428, %v2782
        %v2784 = vpop.f32.mrb[0].mxu0
        %2785 = vmatprep.mubr.bf16.mxu0 %v2602
        %2786 = vmatmul.mubr.bf16.gmra.mrb[0].mxu0 %v2406
        %v2787 = vpop.f32.mrb[0].mxu0
        %v2788 = vadd.f32 %v2428, %v2787
        %v2789 = vpop.f32.mrb[0].mxu0
        %v2790 = vpop.f32.mrb[0].mxu0
        %v2791 = vadd.f32 %v2428, %v2790
        %v2792 = vpop.f32.mrb[0].mxu0
        %2793 = vmatprep.mubr.bf16.mxu0 %v2605
        %2794 = vmatmul.mubr.bf16.gmra.mrb[0].mxu0 %v2408
        %v2795 = vpop.f32.mrb[0].mxu0
        %v2796 = vadd.f32 %v2428, %v2795
        %v2797 = vpop.f32.mrb[0].mxu0
        %v2798 = vpop.f32.mrb[0].mxu0
        %v2799 = vadd.f32 %v2428, %v2798
        %v2800 = vpop.f32.mrb[0].mxu0
        %2801 = vmatprep.mubr.bf16.mxu0 %v2608
        %2802 = vmatmul.mubr.bf16.gmra.mrb[0].mxu0 %v2410
        %v2803 = vpop.f32.mrb[0].mxu0
        %v2804 = vadd.f32 %v2428, %v2803
        %v2805 = vpop.f32.mrb[0].mxu0
        %v2806 = vpop.f32.mrb[0].mxu0
        %v2807 = vadd.f32 %v2428, %v2806
        %v2808 = vpop.f32.mrb[0].mxu0
        %2809 = vmatprep.mubr.bf16.mxu0 %v2611
        %2810 = vmatmul.mubr.bf16.gmra.mrb[0].mxu0 %v2412
        %v2811 = vpop.f32.mrb[0].mxu0
        %v2812 = vadd.f32 %v2428, %v2811
        %v2813 = vpop.f32.mrb[0].mxu0
        %v2814 = vpop.f32.mrb[0].mxu0
        %v2815 = vadd.f32 %v2428, %v2814
        %v2816 = vpop.f32.mrb[0].mxu0
        %2817 = vmatprep.mubr.bf16.mxu0 %v2614
        %2818 = vmatmul.mubr.bf16.gmra.mrb[0].mxu0 %v2414
        %v2819 = vpop.f32.mrb[0].mxu0
        %v2820 = vadd.f32 %v2428, %v2819
        %v2821 = vpop.f32.mrb[0].mxu0
        %v2822 = vpop.f32.mrb[0].mxu0
        %v2823 = vadd.f32 %v2428, %v2822
        %v2824 = vpop.f32.mrb[0].mxu0
        %2825 = vdwg.mxu0
        %v2826 = vxor.u32 %v2653, 2147483648
        %v2827 = vxor.u32 %v2764, 2147483648
        %v2828 = vxor.u32 %v2657, 2147483648
        %v2829 = vxor.u32 %v2767, 2147483648
        %v2830 = vxor.u32 %v2663, 2147483648
        %v2831 = vxor.u32 %v2772, 2147483648
        %v2832 = vxor.u32 %v2667, 2147483648
        %v2833 = vxor.u32 %v2775, 2147483648
        %v2834 = vxor.u32 %v2673, 2147483648
        %v2835 = vxor.u32 %v2780, 2147483648
        %v2836 = vxor.u32 %v2677, 2147483648
        %v2837 = vxor.u32 %v2783, 2147483648
        %v2838 = vxor.u32 %v2683, 2147483648
        %v2839 = vxor.u32 %v2788, 2147483648
        %v2840 = vxor.u32 %v2687, 2147483648
        %v2841 = vxor.u32 %v2791, 2147483648
        %v2842 = vxor.u32 %v2693, 2147483648
        %v2843 = vxor.u32 %v2796, 2147483648
        %v2844 = vxor.u32 %v2697, 2147483648
        %v2845 = vxor.u32 %v2799, 2147483648
        %v2846 = vxor.u32 %v2703, 2147483648
        %v2847 = vxor.u32 %v2804, 2147483648
        %v2848 = vxor.u32 %v2707, 2147483648
        %v2849 = vxor.u32 %v2807, 2147483648
        %v2850 = vxor.u32 %v2713, 2147483648
        %v2851 = vxor.u32 %v2812, 2147483648
        %v2852 = vxor.u32 %v2717, 2147483648
        %v2853 = vxor.u32 %v2815, 2147483648
        %v2854 = vxor.u32 %v2723, 2147483648
        %v2855 = vxor.u32 %v2820, 2147483648
        %v2856 = vxor.u32 %v2727, 2147483648
        %v2857 = vxor.u32 %v2823, 2147483648
        %v2858 = vmul.f32 %v2826, 1.442695
        %v2859 = vpow.pop %v2858
        %v2860 = vmul.f32 %v2827, 1.442695
        %v2861 = vpow.pop %v2860
        %v2862 = vmul.f32 %v2828, 1.442695
        %v2863 = vpow.pop %v2862
        %v2864 = vmul.f32 %v2829, 1.442695
        %v2865 = vpow.pop %v2864
        %v2866 = vmul.f32 %v2830, 1.442695
        %v2867 = vpow.pop %v2866
        %v2868 = vmul.f32 %v2831, 1.442695
        %v2869 = vpow.pop %v2868
        %v2870 = vmul.f32 %v2832, 1.442695
        %v2871 = vpow.pop %v2870
        %v2872 = vmul.f32 %v2833, 1.442695
        %v2873 = vpow.pop %v2872
        %v2874 = vmul.f32 %v2834, 1.442695
        %v2875 = vpow.pop %v2874
        %v2876 = vmul.f32 %v2835, 1.442695
        %v2877 = vpow.pop %v2876
        %v2878 = vmul.f32 %v2836, 1.442695
        %v2879 = vpow.pop %v2878
        %v2880 = vmul.f32 %v2837, 1.442695
        %v2881 = vpow.pop %v2880
        %v2882 = vmul.f32 %v2838, 1.442695
        %v2883 = vpow.pop %v2882
        %v2884 = vmul.f32 %v2839, 1.442695
        %v2885 = vpow.pop %v2884
        %v2886 = vmul.f32 %v2840, 1.442695
        %v2887 = vpow.pop %v2886
        %v2888 = vmul.f32 %v2841, 1.442695
        %v2889 = vpow.pop %v2888
        %v2890 = vmul.f32 %v2842, 1.442695
        %v2891 = vpow.pop %v2890
        %v2892 = vmul.f32 %v2843, 1.442695
        %v2893 = vpow.pop %v2892
        %v2894 = vmul.f32 %v2844, 1.442695
        %v2895 = vpow.pop %v2894
        %v2896 = vmul.f32 %v2845, 1.442695
        %v2897 = vpow.pop %v2896
        %v2898 = vmul.f32 %v2846, 1.442695
        %v2899 = vpow.pop %v2898
        %v2900 = vmul.f32 %v2847, 1.442695
        %v2901 = vpow.pop %v2900
        %v2902 = vmul.f32 %v2848, 1.442695
        %v2903 = vpow.pop %v2902
        %v2904 = vmul.f32 %v2849, 1.442695
        %v2905 = vpow.pop %v2904
        %v2906 = vmul.f32 %v2850, 1.442695
        %v2907 = vpow.pop %v2906
        %v2908 = vmul.f32 %v2851, 1.442695
        %v2909 = vpow.pop %v2908
        %v2910 = vmul.f32 %v2852, 1.442695
        %v2911 = vpow.pop %v2910
        %v2912 = vmul.f32 %v2853, 1.442695
        %v2913 = vpow.pop %v2912
        %v2914 = vmul.f32 %v2854, 1.442695
        %v2915 = vpow.pop %v2914
        %v2916 = vmul.f32 %v2855, 1.442695
        %v2917 = vpow.pop %v2916
        %v2918 = vmul.f32 %v2856, 1.442695
        %v2919 = vpow.pop %v2918
        %v2920 = vmul.f32 %v2857, 1.442695
        %v2921 = vpow.pop %v2920
        %v2922 = vadd.f32 %v2859, 1.0
        %v2923 = vadd.f32 %v2861, 1.0
        %v2924 = vadd.f32 %v2863, 1.0
        %v2925 = vadd.f32 %v2865, 1.0
        %v2926 = vadd.f32 %v2867, 1.0
        %v2927 = vadd.f32 %v2869, 1.0
        %v2928 = vadd.f32 %v2871, 1.0
        %v2929 = vadd.f32 %v2873, 1.0
        %v2930 = vadd.f32 %v2875, 1.0
        %v2931 = vadd.f32 %v2877, 1.0
        %v2932 = vadd.f32 %v2879, 1.0
        %v2933 = vadd.f32 %v2881, 1.0
        %v2934 = vadd.f32 %v2883, 1.0
        %v2935 = vadd.f32 %v2885, 1.0
        %v2936 = vadd.f32 %v2887, 1.0
        %v2937 = vadd.f32 %v2889, 1.0
        %v2938 = vadd.f32 %v2891, 1.0
        %v2939 = vadd.f32 %v2893, 1.0
        %v2940 = vadd.f32 %v2895, 1.0
        %v2941 = vadd.f32 %v2897, 1.0
        %v2942 = vadd.f32 %v2899, 1.0
        %v2943 = vadd.f32 %v2901, 1.0
        %v2944 = vadd.f32 %v2903, 1.0
        %v2945 = vadd.f32 %v2905, 1.0
        %v2946 = vadd.f32 %v2907, 1.0
        %v2947 = vadd.f32 %v2909, 1.0
        %v2948 = vadd.f32 %v2911, 1.0
        %v2949 = vadd.f32 %v2913, 1.0
        %v2950 = vadd.f32 %v2915, 1.0
        %v2951 = vadd.f32 %v2917, 1.0
        %v2952 = vadd.f32 %v2919, 1.0
        %v2953 = vadd.f32 %v2921, 1.0
        %v2954 = vrcp.pop %v2922
        %v2955 = vmul.f32 1.0, %v2954
        %v2956 = vrcp.pop %v2923
        %v2957 = vmul.f32 1.0, %v2956
        %v2958 = vrcp.pop %v2924
        %v2959 = vmul.f32 1.0, %v2958
        %v2960 = vrcp.pop %v2925
        %v2961 = vmul.f32 1.0, %v2960
        %v2962 = vrcp.pop %v2926
        %v2963 = vmul.f32 1.0, %v2962
        %v2964 = vrcp.pop %v2927
        %v2965 = vmul.f32 1.0, %v2964
        %v2966 = vrcp.pop %v2928
        %v2967 = vmul.f32 1.0, %v2966
        %v2968 = vrcp.pop %v2929
        %v2969 = vmul.f32 1.0, %v2968
        %v2970 = vrcp.pop %v2930
        %v2971 = vmul.f32 1.0, %v2970
        %v2972 = vrcp.pop %v2931
        %v2973 = vmul.f32 1.0, %v2972
        %v2974 = vrcp.pop %v2932
        %v2975 = vmul.f32 1.0, %v2974
        %v2976 = vrcp.pop %v2933
        %v2977 = vmul.f32 1.0, %v2976
        %v2978 = vrcp.pop %v2934
        %v2979 = vmul.f32 1.0, %v2978
        %v2980 = vrcp.pop %v2935
        %v2981 = vmul.f32 1.0, %v2980
        %v2982 = vrcp.pop %v2936
        %v2983 = vmul.f32 1.0, %v2982
        %v2984 = vrcp.pop %v2937
        %v2985 = vmul.f32 1.0, %v2984
        %v2986 = vrcp.pop %v2938
        %v2987 = vmul.f32 1.0, %v2986
        %v2988 = vrcp.pop %v2939
        %v2989 = vmul.f32 1.0, %v2988
        %v2990 = vrcp.pop %v2940
        %v2991 = vmul.f32 1.0, %v2990
        %v2992 = vrcp.pop %v2941
        %v2993 = vmul.f32 1.0, %v2992
        %v2994 = vrcp.pop %v2942
        %v2995 = vmul.f32 1.0, %v2994
        %v2996 = vrcp.pop %v2943
        %v2997 = vmul.f32 1.0, %v2996
        %v2998 = vrcp.pop %v2944
        %v2999 = vmul.f32 1.0, %v2998
        %v3000 = vrcp.pop %v2945
        %v3001 = vmul.f32 1.0, %v3000
        %v3002 = vrcp.pop %v2946
        %v3003 = vmul.f32 1.0, %v3002
        %v3004 = vrcp.pop %v2947
        %v3005 = vmul.f32 1.0, %v3004
        %v3006 = vrcp.pop %v2948
        %v3007 = vmul.f32 1.0, %v3006
        %v3008 = vrcp.pop %v2949
        %v3009 = vmul.f32 1.0, %v3008
        %v3010 = vrcp.pop %v2950
        %v3011 = vmul.f32 1.0, %v3010
        %v3012 = vrcp.pop %v2951
        %v3013 = vmul.f32 1.0, %v3012
        %v3014 = vrcp.pop %v2952
        %v3015 = vmul.f32 1.0, %v3014
        %v3016 = vrcp.pop %v2953
        %v3017 = vmul.f32 1.0, %v3016
        %3050 = vrot.lane.b32.xlu0 %v2955, 96
        %v3051 = vpop.permute.xlu0 %3050
        %3052 = vrot.lane.b32.xlu0 %v2957, 96
        %v3053 = vpop.permute.xlu0 %3052
        %3054 = vrot.lane.b32.xlu0 %v2959, 96
        %v3055 = vpop.permute.xlu0 %3054
        %3056 = vrot.lane.b32.xlu0 %v2961, 96
        %v3057 = vpop.permute.xlu0 %3056
        %3058 = vrot.lane.b32.xlu0 %v2963, 96
        %v3059 = vpop.permute.xlu0 %3058
        %3060 = vrot.lane.b32.xlu0 %v2965, 96
        %v3061 = vpop.permute.xlu0 %3060
        %3062 = vrot.lane.b32.xlu0 %v2967, 96
        %v3063 = vpop.permute.xlu0 %3062
        %3064 = vrot.lane.b32.xlu0 %v2969, 96
        %v3065 = vpop.permute.xlu0 %3064
        %3066 = vrot.lane.b32.xlu0 %v2971, 96
        %v3067 = vpop.permute.xlu0 %3066
        %3068 = vrot.lane.b32.xlu0 %v2973, 96
        %v3069 = vpop.permute.xlu0 %3068
        %3070 = vrot.lane.b32.xlu0 %v2975, 96
        %v3071 = vpop.permute.xlu0 %3070
        %3072 = vrot.lane.b32.xlu0 %v2977, 96
        %v3073 = vpop.permute.xlu0 %3072
        %3074 = vrot.lane.b32.xlu0 %v2979, 96
        %v3075 = vpop.permute.xlu0 %3074
        %3076 = vrot.lane.b32.xlu0 %v2981, 96
        %v3077 = vpop.permute.xlu0 %3076
        %3078 = vrot.lane.b32.xlu0 %v2983, 96
        %v3079 = vpop.permute.xlu0 %3078
        %3080 = vrot.lane.b32.xlu0 %v2985, 96
        %v3081 = vpop.permute.xlu0 %3080
        %3082 = vrot.lane.b32.xlu0 %v2987, 96
        %v3083 = vpop.permute.xlu0 %3082
        %3084 = vrot.lane.b32.xlu0 %v2989, 96
        %v3085 = vpop.permute.xlu0 %3084
        %3086 = vrot.lane.b32.xlu0 %v2991, 96
        %v3087 = vpop.permute.xlu0 %3086
        %3088 = vrot.lane.b32.xlu0 %v2993, 96
        %v3089 = vpop.permute.xlu0 %3088
        %3090 = vrot.lane.b32.xlu0 %v2995, 96
        %v3091 = vpop.permute.xlu0 %3090
        %3092 = vrot.lane.b32.xlu0 %v2997, 96
        %v3093 = vpop.permute.xlu0 %3092
        %3094 = vrot.lane.b32.xlu0 %v2999, 96
        %v3095 = vpop.permute.xlu0 %3094
        %3096 = vrot.lane.b32.xlu0 %v3001, 96
        %v3097 = vpop.permute.xlu0 %3096
        %3098 = vrot.lane.b32.xlu0 %v3003, 96
        %v3099 = vpop.permute.xlu0 %3098
        %3100 = vrot.lane.b32.xlu0 %v3005, 96
        %v3101 = vpop.permute.xlu0 %3100
        %3102 = vrot.lane.b32.xlu0 %v3007, 96
        %v3103 = vpop.permute.xlu0 %3102
        %3104 = vrot.lane.b32.xlu0 %v3009, 96
        %v3105 = vpop.permute.xlu0 %3104
        %3106 = vrot.lane.b32.xlu0 %v3011, 96
        %v3107 = vpop.permute.xlu0 %3106
        %3108 = vrot.lane.b32.xlu0 %v3013, 96
        %v3109 = vpop.permute.xlu0 %3108
        %3110 = vrot.lane.b32.xlu0 %v3015, 96
        %v3111 = vpop.permute.xlu0 %3110
        %3112 = vrot.lane.b32.xlu0 %v3017, 96
        %v3113 = vpop.permute.xlu0 %3112
        %v3114 = vsel %vm1199, %v3051, %v3053
        %v3115 = vsel %vm1199, %v3055, %v3057
        %v3116 = vsel %vm1199, %v3059, %v3061
        %v3117 = vsel %vm1199, %v3063, %v3065
        %v3118 = vsel %vm1199, %v3067, %v3069
        %v3119 = vsel %vm1199, %v3071, %v3073
        %v3120 = vsel %vm1199, %v3075, %v3077
        %v3121 = vsel %vm1199, %v3079, %v3081
        %v3122 = vsel %vm1199, %v3083, %v3085
        %v3123 = vsel %vm1199, %v3087, %v3089
        %v3124 = vsel %vm1199, %v3091, %v3093
        %v3125 = vsel %vm1199, %v3095, %v3097
        %v3126 = vsel %vm1199, %v3099, %v3101
        %v3127 = vsel %vm1199, %v3103, %v3105
        %v3128 = vsel %vm1199, %v3107, %v3109
        %v3129 = vsel %vm1199, %v3111, %v3113
        %v3162 = vmul.f32 %v2651, %v3114
        %v3163 = vmul.f32 %v2653, %v3053
        %v3164 = vmul.f32 %v2655, %v3115
        %v3165 = vmul.f32 %v2657, %v3057
        %v3166 = vmul.f32 %v2661, %v3116
        %v3167 = vmul.f32 %v2663, %v3061
        %v3168 = vmul.f32 %v2665, %v3117
        %v3169 = vmul.f32 %v2667, %v3065
        %v3170 = vmul.f32 %v2671, %v3118
        %v3171 = vmul.f32 %v2673, %v3069
        %v3172 = vmul.f32 %v2675, %v3119
        %v3173 = vmul.f32 %v2677, %v3073
        %v3174 = vmul.f32 %v2681, %v3120
        %v3175 = vmul.f32 %v2683, %v3077
        %v3176 = vmul.f32 %v2685, %v3121
        %v3177 = vmul.f32 %v2687, %v3081
        %v3178 = vmul.f32 %v2691, %v3122
        %v3179 = vmul.f32 %v2693, %v3085
        %v3180 = vmul.f32 %v2695, %v3123
        %v3181 = vmul.f32 %v2697, %v3089
        %v3182 = vmul.f32 %v2701, %v3124
        %v3183 = vmul.f32 %v2703, %v3093
        %v3184 = vmul.f32 %v2705, %v3125
        %v3185 = vmul.f32 %v2707, %v3097
        %v3186 = vmul.f32 %v2711, %v3126
        %v3187 = vmul.f32 %v2713, %v3101
        %v3188 = vmul.f32 %v2715, %v3127
        %v3189 = vmul.f32 %v2717, %v3105
        %v3190 = vmul.f32 %v2721, %v3128
        %v3191 = vmul.f32 %v2723, %v3109
        %v3192 = vmul.f32 %v2725, %v3129
        %v3193 = vmul.f32 %v2727, %v3113
        %v3194 = vpack.c.bf16 %v3164, %v3162
        %v3195 = vpack.c.bf16 %v3165, %v3163
        %v3196 = vpack.c.bf16 %v3168, %v3166
        %v3197 = vpack.c.bf16 %v3169, %v3167
        %v3198 = vpack.c.bf16 %v3172, %v3170
        %v3199 = vpack.c.bf16 %v3173, %v3171
        %v3200 = vpack.c.bf16 %v3176, %v3174
        %v3201 = vpack.c.bf16 %v3177, %v3175
        %v3202 = vpack.c.bf16 %v3180, %v3178
        %v3203 = vpack.c.bf16 %v3181, %v3179
        %v3204 = vpack.c.bf16 %v3184, %v3182
        %v3205 = vpack.c.bf16 %v3185, %v3183
        %v3206 = vpack.c.bf16 %v3188, %v3186
        %v3207 = vpack.c.bf16 %v3189, %v3187
        %v3208 = vpack.c.bf16 %v3192, %v3190
        %v3209 = vpack.c.bf16 %v3193, %v3191
        %v3210 = vld [vmem:[#allocation11] sm:$0xff]
        %v3211 = vld [vmem:[#allocation11 + $0x8] sm:$0xf]
        %v3212 = vld [vmem:[#allocation11 + $0xc] sm:$0xff]
        %v3213 = vld [vmem:[#allocation11 + $0x14] sm:$0xf]
        %v3214 = vld [vmem:[#allocation11 + $0x18] sm:$0xff]
        %v3215 = vld [vmem:[#allocation11 + $0x20] sm:$0xf]
        %v3216 = vld [vmem:[#allocation11 + $0x24] sm:$0xff]
        %v3217 = vld [vmem:[#allocation11 + $0x2c] sm:$0xf]
        %v3218 = vld [vmem:[#allocation11 + $0x30] sm:$0xff]
        %v3219 = vld [vmem:[#allocation11 + $0x38] sm:$0xf]
        %v3220 = vld [vmem:[#allocation11 + $0x3c] sm:$0xff]
        %v3221 = vld [vmem:[#allocation11 + $0x44] sm:$0xf]
        %v3222 = vld [vmem:[#allocation11 + $0x48] sm:$0xff]
        %v3223 = vld [vmem:[#allocation11 + $0x50] sm:$0xf]
        %v3224 = vld [vmem:[#allocation11 + $0x54] sm:$0xff]
        %v3225 = vld [vmem:[#allocation11 + $0x5c] sm:$0xf]
        %v3226 = vld [vmem:[#allocation11 + $0x60] sm:$0xff]
        %v3227 = vld [vmem:[#allocation11 + $0x68] sm:$0xf]
        %v3228 = vld [vmem:[#allocation11 + $0x6c] sm:$0xff]
        %v3229 = vld [vmem:[#allocation11 + $0x74] sm:$0xf]
        %v3230 = vld [vmem:[#allocation11 + $0x78] sm:$0xff]
        %v3231 = vld [vmem:[#allocation11 + $0x80] sm:$0xf]
        %v3232 = vld [vmem:[#allocation11 + $0x84] sm:$0xff]
        %v3233 = vld [vmem:[#allocation11 + $0x8c] sm:$0xf]
        %v3234 = vld [vmem:[#allocation11 + $0x90] sm:$0xff]
        %v3235 = vld [vmem:[#allocation11 + $0x98] sm:$0xf]
        %v3236 = vld [vmem:[#allocation11 + $0x9c] sm:$0xff]
        %v3237 = vld [vmem:[#allocation11 + $0xa4] sm:$0xf]
        %v3238 = vld [vmem:[#allocation11 + $0xa8] sm:$0xff]
        %v3239 = vld [vmem:[#allocation11 + $0xb0] sm:$0xf]
        %v3240 = vld [vmem:[#allocation11 + $0xb4] sm:$0xff]
        %v3241 = vld [vmem:[#allocation11 + $0xbc] sm:$0xf]
        %v3242 = vld [vmem:[#allocation11 + $0xc0] sm:$0xff]
        %v3243 = vld [vmem:[#allocation11 + $0xc8] sm:$0xf]
        %v3244 = vld [vmem:[#allocation11 + $0xcc] sm:$0xff]
        %v3245 = vld [vmem:[#allocation11 + $0xd4] sm:$0xf]
        %v3246 = vld [vmem:[#allocation11 + $0xd8] sm:$0xff]
        %v3247 = vld [vmem:[#allocation11 + $0xe0] sm:$0xf]
        %v3248 = vld [vmem:[#allocation11 + $0xe4] sm:$0xff]
        %v3249 = vld [vmem:[#allocation11 + $0xec] sm:$0xf]
        %v3250 = vld [vmem:[%s8] sm:$0x7]
        %v3251 = vsel %vm481, %v1275, 0
        %v3253 = vsel %vm481, %v1276, 0
        %3255 = vmatprep.subr.bf16.mxu0 %v3195
        %3256 = vmatpush1.bf16.msra.mxu0 %v3194
        %3257 = vmatprep.subr.bf16.mxu0 %v3197
        %3258 = vmatpush1.bf16.msra.mxu0 %v3196
        %3259 = vmatprep.subr.bf16.mxu0 0
        %3260 = vmatpush1.bf16.msra.mxu0 0
        %3261 = vmatprep.subr.bf16.mxu0 0
        %3262 = vmatpush1.bf16.msra.mxu0 0
        %3263 = vmatprep.subr.bf16.mxu0 0
        %3264 = vmatpush1.bf16.msra.mxu0 0
        %3265 = vmatprep.subr.bf16.mxu0 0
        %3266 = vmatpush1.bf16.msra.mxu0 0
        %3267 = vmatprep.subr.bf16.mxu0 0
        %3268 = vmatpush1.bf16.msra.mxu0 0
        %3269 = vmatprep.subr.bf16.mxu0 0
        %3270 = vmatpush1.bf16.msra.mxu0 0
        %3271 = vmatprep.subr.bf16.mxu0 0
        %3272 = vmatpush1.bf16.msra.mxu0 0
        %3273 = vmatprep.subr.bf16.mxu0 0
        %3274 = vmatpush1.bf16.msra.mxu0 0
        %3275 = vmatprep.subr.bf16.mxu0 0
        %3276 = vmatpush1.bf16.msra.mxu0 0
        %3277 = vmatprep.subr.bf16.mxu0 0
        %3278 = vmatpush1.bf16.msra.mxu0 0
        %3279 = vmatprep.subr.bf16.mxu0 0
        %3280 = vmatpush1.bf16.msra.mxu0 0
        %3281 = vmatprep.subr.bf16.mxu0 0
        %3282 = vmatpush1.bf16.msra.mxu0 0
        %3283 = vmatprep.subr.bf16.mxu0 0
        %3284 = vmatpush1.bf16.msra.mxu0 0
        %3285 = vmatprep.subr.bf16.mxu0 0
        %3286 = vmatpush1.bf16.msra.mxu0 0
        %3287 = vmatprep.mubr.bf16.mxu0 0
        %3288 = vmatmul.mubr.bf16.gmra.mrb[0].mxu0 %v3251
        %v3289 = vpop.f32.mrb[0].mxu0
        %v3290 = vadd.f32 0.0, %v3289
        %v3291 = vpop.f32.mrb[0].mxu0
        %v3292 = vadd.f32 0.0, %v3291
        %v3293 = vpop.f32.mrb[0].mxu0
        %v3294 = vadd.f32 0.0, %v3293
        %v3295 = vpop.f32.mrb[0].mxu0
        %v3296 = vadd.f32 0.0, %v3295
        %3297 = vmatprep.mubr.bf16.mxu0 0
        %3298 = vmatmul.mubr.bf16.gmra.mrb[0].mxu0 %v3253
        %v3299 = vpop.f32.mrb[0].mxu0
        %v3300 = vadd.f32 0.0, %v3299
        %v3301 = vpop.f32.mrb[0].mxu0
        %v3302 = vadd.f32 0.0, %v3301
        %v3303 = vpop.f32.mrb[0].mxu0
        %v3304 = vadd.f32 0.0, %v3303
        %v3305 = vpop.f32.mrb[0].mxu0
        %v3306 = vadd.f32 0.0, %v3305
        %3307 = vdwg.mxu0
        %3308 = vmatprep.subr.bf16.mxu0 %v3199
        %3309 = vmatpush1.bf16.msra.mxu0 %v3198
        %3310 = vmatprep.subr.bf16.mxu0 %v3201
        %3311 = vmatpush1.bf16.msra.mxu0 %v3200
        %3312 = vmatprep.subr.bf16.mxu0 0
        %3313 = vmatpush1.bf16.msra.mxu0 0
        %3314 = vmatprep.subr.bf16.mxu0 0
        %3315 = vmatpush1.bf16.msra.mxu0 0
        %3316 = vmatprep.subr.bf16.mxu0 0
        %3317 = vmatpush1.bf16.msra.mxu0 0
        %3318 = vmatprep.subr.bf16.mxu0 0
        %3319 = vmatpush1.bf16.msra.mxu0 0
        %3320 = vmatprep.subr.bf16.mxu0 0
        %3321 = vmatpush1.bf16.msra.mxu0 0
        %3322 = vmatprep.subr.bf16.mxu0 0
        %3323 = vmatpush1.bf16.msra.mxu0 0
        %3324 = vmatprep.subr.bf16.mxu0 0
        %3325 = vmatpush1.bf16.msra.mxu0 0
        %3326 = vmatprep.subr.bf16.mxu0 0
        %3327 = vmatpush1.bf16.msra.mxu0 0
        %3328 = vmatprep.subr.bf16.mxu0 0
        %3329 = vmatpush1.bf16.msra.mxu0 0
        %3330 = vmatprep.subr.bf16.mxu0 0
        %3331 = vmatpush1.bf16.msra.mxu0 0
        %3332 = vmatprep.subr.bf16.mxu0 0
        %3333 = vmatpush1.bf16.msra.mxu0 0
        %3334 = vmatprep.subr.bf16.mxu0 0
        %3335 = vmatpush1.bf16.msra.mxu0 0
        %3336 = vmatprep.subr.bf16.mxu0 0
        %3337 = vmatpush1.bf16.msra.mxu0 0
        %3338 = vmatprep.subr.bf16.mxu0 0
        %3339 = vmatpush1.bf16.msra.mxu0 0
        %3340 = vmatprep.mubr.bf16.mxu0 0
        %3341 = vmatmul.mubr.bf16.gmra.mrb[0].mxu0 %v3251
        %v3342 = vpop.f32.mrb[0].mxu0
        %v3343 = vadd.f32 0.0, %v3342
        %v3344 = vpop.f32.mrb[0].mxu0
        %v3345 = vadd.f32 0.0, %v3344
        %v3346 = vpop.f32.mrb[0].mxu0
        %v3347 = vadd.f32 0.0, %v3346
        %v3348 = vpop.f32.mrb[0].mxu0
        %v3349 = vadd.f32 0.0, %v3348
        %3350 = vmatprep.mubr.bf16.mxu0 0
        %3351 = vmatmul.mubr.bf16.gmra.mrb[0].mxu0 %v3253
        %v3352 = vpop.f32.mrb[0].mxu0
        %v3353 = vadd.f32 0.0, %v3352
        %v3354 = vpop.f32.mrb[0].mxu0
        %v3355 = vadd.f32 0.0, %v3354
        %v3356 = vpop.f32.mrb[0].mxu0
        %v3357 = vadd.f32 0.0, %v3356
        %v3358 = vpop.f32.mrb[0].mxu0
        %v3359 = vadd.f32 0.0, %v3358
        %3360 = vdwg.mxu0
        %3361 = vmatprep.subr.bf16.mxu0 %v3203
        %3362 = vmatpush1.bf16.msra.mxu0 %v3202
        %3363 = vmatprep.subr.bf16.mxu0 %v3205
        %3364 = vmatpush1.bf16.msra.mxu0 %v3204
        %3365 = vmatprep.subr.bf16.mxu0 0
        %3366 = vmatpush1.bf16.msra.mxu0 0
        %3367 = vmatprep.subr.bf16.mxu0 0
        %3368 = vmatpush1.bf16.msra.mxu0 0
        %3369 = vmatprep.subr.bf16.mxu0 0
        %3370 = vmatpush1.bf16.msra.mxu0 0
        %3371 = vmatprep.subr.bf16.mxu0 0
        %3372 = vmatpush1.bf16.msra.mxu0 0
        %3373 = vmatprep.subr.bf16.mxu0 0
        %3374 = vmatpush1.bf16.msra.mxu0 0
        %3375 = vmatprep.subr.bf16.mxu0 0
        %3376 = vmatpush1.bf16.msra.mxu0 0
        %3377 = vmatprep.subr.bf16.mxu0 0
        %3378 = vmatpush1.bf16.msra.mxu0 0
        %3379 = vmatprep.subr.bf16.mxu0 0
        %3380 = vmatpush1.bf16.msra.mxu0 0
        %3381 = vmatprep.subr.bf16.mxu0 0
        %3382 = vmatpush1.bf16.msra.mxu0 0
        %3383 = vmatprep.subr.bf16.mxu0 0
        %3384 = vmatpush1.bf16.msra.mxu0 0
        %3385 = vmatprep.subr.bf16.mxu0 0
        %3386 = vmatpush1.bf16.msra.mxu0 0
        %3387 = vmatprep.subr.bf16.mxu0 0
        %3388 = vmatpush1.bf16.msra.mxu0 0
        %3389 = vmatprep.subr.bf16.mxu0 0
        %3390 = vmatpush1.bf16.msra.mxu0 0
        %3391 = vmatprep.subr.bf16.mxu0 0
        %3392 = vmatpush1.bf16.msra.mxu0 0
        %3393 = vmatprep.mubr.bf16.mxu0 0
        %3394 = vmatmul.mubr.bf16.gmra.mrb[0].mxu0 %v3251
        %v3395 = vpop.f32.mrb[0].mxu0
        %v3396 = vadd.f32 0.0, %v3395
        %v3397 = vpop.f32.mrb[0].mxu0
        %v3398 = vadd.f32 0.0, %v3397
        %v3399 = vpop.f32.mrb[0].mxu0
        %v3400 = vadd.f32 0.0, %v3399
        %v3401 = vpop.f32.mrb[0].mxu0
        %v3402 = vadd.f32 0.0, %v3401
        %3403 = vmatprep.mubr.bf16.mxu0 0
        %3404 = vmatmul.mubr.bf16.gmra.mrb[0].mxu0 %v3253
        %v3405 = vpop.f32.mrb[0].mxu0
        %v3406 = vadd.f32 0.0, %v3405
        %v3407 = vpop.f32.mrb[0].mxu0
        %v3408 = vadd.f32 0.0, %v3407
        %v3409 = vpop.f32.mrb[0].mxu0
        %v3410 = vadd.f32 0.0, %v3409
        %v3411 = vpop.f32.mrb[0].mxu0
        %v3412 = vadd.f32 0.0, %v3411
        %3413 = vdwg.mxu0
        %3414 = vmatprep.subr.bf16.mxu0 %v3207
        %3415 = vmatpush1.bf16.msra.mxu0 %v3206
        %3416 = vmatprep.subr.bf16.mxu0 %v3209
        %3417 = vmatpush1.bf16.msra.mxu0 %v3208
        %3418 = vmatprep.subr.bf16.mxu0 0
        %3419 = vmatpush1.bf16.msra.mxu0 0
        %3420 = vmatprep.subr.bf16.mxu0 0
        %3421 = vmatpush1.bf16.msra.mxu0 0
        %3422 = vmatprep.subr.bf16.mxu0 0
        %3423 = vmatpush1.bf16.msra.mxu0 0
        %3424 = vmatprep.subr.bf16.mxu0 0
        %3425 = vmatpush1.bf16.msra.mxu0 0
        %3426 = vmatprep.subr.bf16.mxu0 0
        %3427 = vmatpush1.bf16.msra.mxu0 0
        %3428 = vmatprep.subr.bf16.mxu0 0
        %3429 = vmatpush1.bf16.msra.mxu0 0
        %3430 = vmatprep.subr.bf16.mxu0 0
        %3431 = vmatpush1.bf16.msra.mxu0 0
        %3432 = vmatprep.subr.bf16.mxu0 0
        %3433 = vmatpush1.bf16.msra.mxu0 0
        %3434 = vmatprep.subr.bf16.mxu0 0
        %3435 = vmatpush1.bf16.msra.mxu0 0
        %3436 = vmatprep.subr.bf16.mxu0 0
        %3437 = vmatpush1.bf16.msra.mxu0 0
        %3438 = vmatprep.subr.bf16.mxu0 0
        %3439 = vmatpush1.bf16.msra.mxu0 0
        %3440 = vmatprep.subr.bf16.mxu0 0
        %3441 = vmatpush1.bf16.msra.mxu0 0
        %3442 = vmatprep.subr.bf16.mxu0 0
        %3443 = vmatpush1.bf16.msra.mxu0 0
        %3444 = vmatprep.subr.bf16.mxu0 0
        %3445 = vmatpush1.bf16.msra.mxu0 0
        %3446 = vmatprep.mubr.bf16.mxu0 0
        %3447 = vmatmul.mubr.bf16.gmra.mrb[0].mxu0 %v3251
        %v3448 = vpop.f32.mrb[0].mxu0
        %v3449 = vadd.f32 0.0, %v3448
        %v3450 = vpop.f32.mrb[0].mxu0
        %v3451 = vadd.f32 0.0, %v3450
        %v3452 = vpop.f32.mrb[0].mxu0
        %v3453 = vadd.f32 0.0, %v3452
        %v3454 = vpop.f32.mrb[0].mxu0
        %v3455 = vadd.f32 0.0, %v3454
        %3456 = vmatprep.mubr.bf16.mxu0 0
        %3457 = vmatmul.mubr.bf16.gmra.mrb[0].mxu0 %v3253
        %v3458 = vpop.f32.mrb[0].mxu0
        %v3459 = vadd.f32 0.0, %v3458
        %v3460 = vpop.f32.mrb[0].mxu0
        %v3461 = vadd.f32 0.0, %v3460
        %v3462 = vpop.f32.mrb[0].mxu0
        %v3463 = vadd.f32 0.0, %v3462
        %v3464 = vpop.f32.mrb[0].mxu0
        %v3465 = vadd.f32 0.0, %v3464
        %3466 = vdwg.mxu0
        %v3467 = vpack.c.bf16 %v3294, %v3290
        %v3468 = vpack.c.bf16 %v3296, %v3292
        %v3469 = vpack.c.bf16 %v3304, %v3300
        %v3470 = vpack.c.bf16 %v3306, %v3302
        %v3471 = vpack.c.bf16 %v3347, %v3343
        %v3472 = vpack.c.bf16 %v3349, %v3345
        %v3473 = vpack.c.bf16 %v3357, %v3353
        %v3474 = vpack.c.bf16 %v3359, %v3355
        %v3475 = vpack.c.bf16 %v3400, %v3396
        %v3476 = vpack.c.bf16 %v3402, %v3398
        %v3477 = vpack.c.bf16 %v3410, %v3406
        %v3478 = vpack.c.bf16 %v3412, %v3408
        %v3479 = vpack.c.bf16 %v3453, %v3449
        %v3480 = vpack.c.bf16 %v3455, %v3451
        %v3481 = vpack.c.bf16 %v3463, %v3459
        %v3482 = vpack.c.bf16 %v3465, %v3461
        %v3484 = vlaneseq
        %v3485 = vshrl.u32 %v3484, 7
        %v3486 = vsub.s32 0, %v3485
        %v3487 = vrot.slane %v3250, %v3486
        %v3488 = vlaneseq
        %v3489 = vshrl.u32 %v3488, 7
        %v3490 = vsub.s32 1, %v3489
        %v3491 = vrot.slane %v3250, %v3490
        %v3492 = vlaneseq
        %v3493 = vshrl.u32 %v3492, 7
        %v3494 = vsub.s32 2, %v3493
        %v3495 = vrot.slane %v3250, %v3494
        %v3539 = vunpack.c.l.b16 %v3210
        %v3540 = vunpack.c.h.b16 %v3210
        %v3541 = vunpack.c.l.b16 %v3211
        %v3542 = vunpack.c.l.b16 %v3212
        %v3543 = vunpack.c.h.b16 %v3212
        %v3544 = vunpack.c.l.b16 %v3213
        %v3545 = vunpack.c.l.b16 %v3214
        %v3546 = vunpack.c.h.b16 %v3214
        %v3547 = vunpack.c.l.b16 %v3215
        %v3548 = vunpack.c.l.b16 %v3216
        %v3549 = vunpack.c.h.b16 %v3216
        %v3550 = vunpack.c.l.b16 %v3217
        %v3551 = vunpack.c.l.b16 %v3218
        %v3552 = vunpack.c.h.b16 %v3218
        %v3553 = vunpack.c.l.b16 %v3219
        %v3554 = vunpack.c.l.b16 %v3220
        %v3555 = vunpack.c.h.b16 %v3220
        %v3556 = vunpack.c.l.b16 %v3221
        %v3557 = vunpack.c.l.b16 %v3222
        %v3558 = vunpack.c.h.b16 %v3222
        %v3559 = vunpack.c.l.b16 %v3223
        %v3560 = vunpack.c.l.b16 %v3224
        %v3561 = vunpack.c.h.b16 %v3224
        %v3562 = vunpack.c.l.b16 %v3225
        %v3563 = vunpack.c.l.b16 %v3226
        %v3564 = vunpack.c.h.b16 %v3226
        %v3565 = vunpack.c.l.b16 %v3227
        %v3566 = vunpack.c.l.b16 %v3228
        %v3567 = vunpack.c.h.b16 %v3228
        %v3568 = vunpack.c.l.b16 %v3229
        %v3569 = vunpack.c.l.b16 %v3230
        %v3570 = vunpack.c.h.b16 %v3230
        %v3571 = vunpack.c.l.b16 %v3231
        %v3572 = vunpack.c.l.b16 %v3232
        %v3573 = vunpack.c.h.b16 %v3232
        %v3574 = vunpack.c.l.b16 %v3233
        %v3575 = vunpack.c.l.b16 %v3234
        %v3576 = vunpack.c.h.b16 %v3234
        %v3577 = vunpack.c.l.b16 %v3235
        %v3578 = vunpack.c.l.b16 %v3236
        %v3579 = vunpack.c.h.b16 %v3236
        %v3580 = vunpack.c.l.b16 %v3237
        %v3581 = vunpack.c.l.b16 %v3238
        %v3582 = vunpack.c.h.b16 %v3238
        %v3583 = vunpack.c.l.b16 %v3239
        %v3584 = vunpack.c.l.b16 %v3240
        %v3585 = vunpack.c.h.b16 %v3240
        %v3586 = vunpack.c.l.b16 %v3241
        %v3587 = vunpack.c.l.b16 %v3242
        %v3588 = vunpack.c.h.b16 %v3242
        %v3589 = vunpack.c.l.b16 %v3243
        %v3590 = vunpack.c.l.b16 %v3244
        %v3591 = vunpack.c.h.b16 %v3244
        %v3592 = vunpack.c.l.b16 %v3245
        %v3593 = vunpack.c.l.b16 %v3246
        %v3594 = vunpack.c.h.b16 %v3246
        %v3595 = vunpack.c.l.b16 %v3247
        %v3596 = vunpack.c.l.b16 %v3248
        %v3597 = vunpack.c.h.b16 %v3248
        %v3598 = vunpack.c.l.b16 %v3249
        %v3599 = vpack.c.b16 %v3542, %v3539
        %v3600 = vpack.c.b16 %v3543, %v3540
        %v3601 = vpack.c.b16 %v3544, %v3541
        %v3602 = vpack.c.b16 %v3548, %v3545
        %v3603 = vpack.c.b16 %v3549, %v3546
        %v3604 = vpack.c.b16 %v3550, %v3547
        %v3605 = vpack.c.b16 %v3554, %v3551
        %v3606 = vpack.c.b16 %v3555, %v3552
        %v3607 = vpack.c.b16 %v3556, %v3553
        %v3608 = vpack.c.b16 %v3560, %v3557
        %v3609 = vpack.c.b16 %v3561, %v3558
        %v3610 = vpack.c.b16 %v3562, %v3559
        %v3611 = vpack.c.b16 %v3566, %v3563
        %v3612 = vpack.c.b16 %v3567, %v3564
        %v3613 = vpack.c.b16 %v3568, %v3565
        %v3614 = vpack.c.b16 %v3572, %v3569
        %v3615 = vpack.c.b16 %v3573, %v3570
        %v3616 = vpack.c.b16 %v3574, %v3571
        %v3617 = vpack.c.b16 %v3578, %v3575
        %v3618 = vpack.c.b16 %v3579, %v3576
        %v3619 = vpack.c.b16 %v3580, %v3577
        %v3620 = vpack.c.b16 %v3584, %v3581
        %v3621 = vpack.c.b16 %v3585, %v3582
        %v3622 = vpack.c.b16 %v3586, %v3583
        %v3623 = vpack.c.b16 %v3590, %v3587
        %v3624 = vpack.c.b16 %v3591, %v3588
        %v3625 = vpack.c.b16 %v3592, %v3589
        %v3626 = vpack.c.b16 %v3596, %v3593
        %v3627 = vpack.c.b16 %v3597, %v3594
        %v3628 = vpack.c.b16 %v3598, %v3595
        %v3660 = vsel %vm481, %v3468, 0
        %v3663 = vsel %vm481, %v3470, 0
        %v3666 = vsel %vm481, %v3472, 0
        %v3669 = vsel %vm481, %v3474, 0
        %v3672 = vsel %vm481, %v3476, 0
        %v3675 = vsel %vm481, %v3478, 0
        %v3678 = vsel %vm481, %v3480, 0
        %v3681 = vsel %vm481, %v3482, 0
        %3683 = vmatprep.subr.bf16.mxu0 %v3600
        %3684 = vmatpush1.bf16.msra.mxu0 %v3599
        %3685 = vmatprep.subr.bf16.mxu0 %v3603
        %3686 = vmatpush1.bf16.msra.mxu0 %v3602
        %3687 = vmatprep.subr.bf16.mxu0 %v3606
        %3688 = vmatpush1.bf16.msra.mxu0 %v3605
        %3689 = vmatprep.subr.bf16.mxu0 %v3609
        %3690 = vmatpush1.bf16.msra.mxu0 %v3608
        %3691 = vmatprep.subr.bf16.mxu0 %v3612
        %3692 = vmatpush1.bf16.msra.mxu0 %v3611
        %3693 = vmatprep.subr.bf16.mxu0 %v3615
        %3694 = vmatpush1.bf16.msra.mxu0 %v3614
        %3695 = vmatprep.subr.bf16.mxu0 %v3618
        %3696 = vmatpush1.bf16.msra.mxu0 %v3617
        %3697 = vmatprep.subr.bf16.mxu0 %v3621
        %3698 = vmatpush1.bf16.msra.mxu0 %v3620
        %3699 = vmatprep.subr.bf16.mxu0 %v3624
        %3700 = vmatpush1.bf16.msra.mxu0 %v3623
        %3701 = vmatprep.subr.bf16.mxu0 %v3627
        %3702 = vmatpush1.bf16.msra.mxu0 %v3626
        %3703 = vmatprep.subr.bf16.mxu0 0
        %3704 = vmatpush1.bf16.msra.mxu0 0
        %3705 = vmatprep.subr.bf16.mxu0 0
        %3706 = vmatpush1.bf16.msra.mxu0 0
        %3707 = vmatprep.subr.bf16.mxu0 0
        %3708 = vmatpush1.bf16.msra.mxu0 0
        %3709 = vmatprep.subr.bf16.mxu0 0
        %3710 = vmatpush1.bf16.msra.mxu0 0
        %3711 = vmatprep.subr.bf16.mxu0 0
        %3712 = vmatpush1.bf16.msra.mxu0 0
        %3713 = vmatprep.subr.bf16.mxu0 0
        %3714 = vmatpush1.bf16.msra.mxu0 0
        %3715 = vmatprep.mubr.bf16.mxu0 %v3660
        %3716 = vmatmul.mubr.bf16.gmra.mrb[0].mxu0 %v3467
        %v3717 = vpop.f32.mrb[0].mxu0
        %v3718 = vpop.f32.mrb[0].mxu0
        %v3719 = vpop.f32.mrb[0].mxu0
        %v3720 = vadd.f32 %v3487, %v3719
        %v3721 = vpop.f32.mrb[0].mxu0
        %v3722 = vadd.f32 %v3491, %v3721
        %3723 = vmatprep.mubr.bf16.mxu0 %v3663
        %3724 = vmatmul.mubr.bf16.gmra.mrb[0].mxu0 %v3469
        %v3725 = vpop.f32.mrb[0].mxu0
        %v3726 = vpop.f32.mrb[0].mxu0
        %v3727 = vpop.f32.mrb[0].mxu0
        %v3728 = vpop.f32.mrb[0].mxu0
        %3729 = vmatprep.mubr.bf16.mxu0 %v3666
        %3730 = vmatmul.mubr.bf16.gmra.mrb[0].mxu0 %v3471
        %v3731 = vpop.f32.mrb[0].mxu0
        %v3732 = vpop.f32.mrb[0].mxu0
        %v3733 = vpop.f32.mrb[0].mxu0
        %v3734 = vadd.f32 %v3487, %v3733
        %v3735 = vpop.f32.mrb[0].mxu0
        %v3736 = vadd.f32 %v3491, %v3735
        %3737 = vmatprep.mubr.bf16.mxu0 %v3669
        %3738 = vmatmul.mubr.bf16.gmra.mrb[0].mxu0 %v3473
        %v3739 = vpop.f32.mrb[0].mxu0
        %v3740 = vpop.f32.mrb[0].mxu0
        %v3741 = vpop.f32.mrb[0].mxu0
        %v3742 = vpop.f32.mrb[0].mxu0
        %3743 = vmatprep.mubr.bf16.mxu0 %v3672
        %3744 = vmatmul.mubr.bf16.gmra.mrb[0].mxu0 %v3475
        %v3745 = vpop.f32.mrb[0].mxu0
        %v3746 = vpop.f32.mrb[0].mxu0
        %v3747 = vpop.f32.mrb[0].mxu0
        %v3748 = vadd.f32 %v3487, %v3747
        %v3749 = vpop.f32.mrb[0].mxu0
        %v3750 = vadd.f32 %v3491, %v3749
        %3751 = vmatprep.mubr.bf16.mxu0 %v3675
        %3752 = vmatmul.mubr.bf16.gmra.mrb[0].mxu0 %v3477
        %v3753 = vpop.f32.mrb[0].mxu0
        %v3754 = vpop.f32.mrb[0].mxu0
        %v3755 = vpop.f32.mrb[0].mxu0
        %v3756 = vpop.f32.mrb[0].mxu0
        %3757 = vmatprep.mubr.bf16.mxu0 %v3678
        %3758 = vmatmul.mubr.bf16.gmra.mrb[0].mxu0 %v3479
        %v3759 = vpop.f32.mrb[0].mxu0
        %v3760 = vpop.f32.mrb[0].mxu0
        %v3761 = vpop.f32.mrb[0].mxu0
        %v3762 = vadd.f32 %v3487, %v3761
        %v3763 = vpop.f32.mrb[0].mxu0
        %v3764 = vadd.f32 %v3491, %v3763
        %3765 = vmatprep.mubr.bf16.mxu0 %v3681
        %3766 = vmatmul.mubr.bf16.gmra.mrb[0].mxu0 %v3481
        %v3767 = vpop.f32.mrb[0].mxu0
        %v3768 = vpop.f32.mrb[0].mxu0
        %v3769 = vpop.f32.mrb[0].mxu0
        %v3770 = vpop.f32.mrb[0].mxu0
        %3771 = vdwg.mxu0
        %3772 = vmatprep.subr.bf16.mxu0 0
        %3773 = vmatpush1.bf16.msra.mxu0 %v3601
        %3774 = vmatprep.subr.bf16.mxu0 0
        %3775 = vmatpush1.bf16.msra.mxu0 %v3604
        %3776 = vmatprep.subr.bf16.mxu0 0
        %3777 = vmatpush1.bf16.msra.mxu0 %v3607
        %3778 = vmatprep.subr.bf16.mxu0 0
        %3779 = vmatpush1.bf16.msra.mxu0 %v3610
        %3780 = vmatprep.subr.bf16.mxu0 0
        %3781 = vmatpush1.bf16.msra.mxu0 %v3613
        %3782 = vmatprep.subr.bf16.mxu0 0
        %3783 = vmatpush1.bf16.msra.mxu0 %v3616
        %3784 = vmatprep.subr.bf16.mxu0 0
        %3785 = vmatpush1.bf16.msra.mxu0 %v3619
        %3786 = vmatprep.subr.bf16.mxu0 0
        %3787 = vmatpush1.bf16.msra.mxu0 %v3622
        %3788 = vmatprep.subr.bf16.mxu0 0
        %3789 = vmatpush1.bf16.msra.mxu0 %v3625
        %3790 = vmatprep.subr.bf16.mxu0 0
        %3791 = vmatpush1.bf16.msra.mxu0 %v3628
        %3792 = vmatprep.subr.bf16.mxu0 0
        %3793 = vmatpush1.bf16.msra.mxu0 0
        %3794 = vmatprep.subr.bf16.mxu0 0
        %3795 = vmatpush1.bf16.msra.mxu0 0
        %3796 = vmatprep.subr.bf16.mxu0 0
        %3797 = vmatpush1.bf16.msra.mxu0 0
        %3798 = vmatprep.subr.bf16.mxu0 0
        %3799 = vmatpush1.bf16.msra.mxu0 0
        %3800 = vmatprep.subr.bf16.mxu0 0
        %3801 = vmatpush1.bf16.msra.mxu0 0
        %3802 = vmatprep.subr.bf16.mxu0 0
        %3803 = vmatpush1.bf16.msra.mxu0 0
        %3804 = vmatprep.mubr.bf16.mxu0 %v3660
        %3805 = vmatmul.mubr.bf16.gmra.mrb[0].mxu0 %v3467
        %v3806 = vpop.f32.mrb[0].mxu0
        %v3807 = vpop.f32.mrb[0].mxu0
        %v3808 = vpop.f32.mrb[0].mxu0
        %v3809 = vadd.f32 %v3495, %v3808
        %v3810 = vpop.f32.mrb[0].mxu0
        %3811 = vmatprep.mubr.bf16.mxu0 %v3663
        %3812 = vmatmul.mubr.bf16.gmra.mrb[0].mxu0 %v3469
        %v3813 = vpop.f32.mrb[0].mxu0
        %v3814 = vpop.f32.mrb[0].mxu0
        %v3815 = vpop.f32.mrb[0].mxu0
        %v3816 = vpop.f32.mrb[0].mxu0
        %3817 = vmatprep.mubr.bf16.mxu0 %v3666
        %3818 = vmatmul.mubr.bf16.gmra.mrb[0].mxu0 %v3471
        %v3819 = vpop.f32.mrb[0].mxu0
        %v3820 = vpop.f32.mrb[0].mxu0
        %v3821 = vpop.f32.mrb[0].mxu0
        %v3822 = vadd.f32 %v3495, %v3821
        %v3823 = vpop.f32.mrb[0].mxu0
        %3824 = vmatprep.mubr.bf16.mxu0 %v3669
        %3825 = vmatmul.mubr.bf16.gmra.mrb[0].mxu0 %v3473
        %v3826 = vpop.f32.mrb[0].mxu0
        %v3827 = vpop.f32.mrb[0].mxu0
        %v3828 = vpop.f32.mrb[0].mxu0
        %v3829 = vpop.f32.mrb[0].mxu0
        %3830 = vmatprep.mubr.bf16.mxu0 %v3672
        %3831 = vmatmul.mubr.bf16.gmra.mrb[0].mxu0 %v3475
        %v3832 = vpop.f32.mrb[0].mxu0
        %v3833 = vpop.f32.mrb[0].mxu0
        %v3834 = vpop.f32.mrb[0].mxu0
        %v3835 = vadd.f32 %v3495, %v3834
        %v3836 = vpop.f32.mrb[0].mxu0
        %3837 = vmatprep.mubr.bf16.mxu0 %v3675
        %3838 = vmatmul.mubr.bf16.gmra.mrb[0].mxu0 %v3477
        %v3839 = vpop.f32.mrb[0].mxu0
        %v3840 = vpop.f32.mrb[0].mxu0
        %v3841 = vpop.f32.mrb[0].mxu0
        %v3842 = vpop.f32.mrb[0].mxu0
        %3843 = vmatprep.mubr.bf16.mxu0 %v3678
        %3844 = vmatmul.mubr.bf16.gmra.mrb[0].mxu0 %v3479
        %v3845 = vpop.f32.mrb[0].mxu0
        %v3846 = vpop.f32.mrb[0].mxu0
        %v3847 = vpop.f32.mrb[0].mxu0
        %v3848 = vadd.f32 %v3495, %v3847
        %v3849 = vpop.f32.mrb[0].mxu0
        %3850 = vmatprep.mubr.bf16.mxu0 %v3681
        %3851 = vmatmul.mubr.bf16.gmra.mrb[0].mxu0 %v3481
        %v3852 = vpop.f32.mrb[0].mxu0
        %v3853 = vpop.f32.mrb[0].mxu0
        %v3854 = vpop.f32.mrb[0].mxu0
        %v3855 = vpop.f32.mrb[0].mxu0
        %3856 = vdwg.mxu0
        %v3857 = vxor.u32 %v3722, 2147483648
        %v3858 = vxor.u32 %v3809, 2147483648
        %v3859 = vxor.u32 %v3736, 2147483648
        %v3860 = vxor.u32 %v3822, 2147483648
        %v3861 = vxor.u32 %v3750, 2147483648
        %v3862 = vxor.u32 %v3835, 2147483648
        %v3863 = vxor.u32 %v3764, 2147483648
        %v3864 = vxor.u32 %v3848, 2147483648
        %v3865 = vmul.f32 %v3857, 1.442695
        %v3866 = vpow.pop %v3865
        %v3867 = vmul.f32 %v3858, 1.442695
        %v3868 = vpow.pop %v3867
        %v3869 = vmul.f32 %v3859, 1.442695
        %v3870 = vpow.pop %v3869
        %v3871 = vmul.f32 %v3860, 1.442695
        %v3872 = vpow.pop %v3871
        %v3873 = vmul.f32 %v3861, 1.442695
        %v3874 = vpow.pop %v3873
        %v3875 = vmul.f32 %v3862, 1.442695
        %v3876 = vpow.pop %v3875
        %v3877 = vmul.f32 %v3863, 1.442695
        %v3878 = vpow.pop %v3877
        %v3879 = vmul.f32 %v3864, 1.442695
        %v3880 = vpow.pop %v3879
        %v3881 = vadd.f32 %v3866, 1.0
        %v3882 = vadd.f32 %v3868, 1.0
        %v3883 = vadd.f32 %v3870, 1.0
        %v3884 = vadd.f32 %v3872, 1.0
        %v3885 = vadd.f32 %v3874, 1.0
        %v3886 = vadd.f32 %v3876, 1.0
        %v3887 = vadd.f32 %v3878, 1.0
        %v3888 = vadd.f32 %v3880, 1.0
        %v3889 = vrcp.pop %v3881
        %v3890 = vmul.f32 1.0, %v3889
        %v3891 = vrcp.pop %v3882
        %v3892 = vmul.f32 1.0, %v3891
        %v3893 = vrcp.pop %v3883
        %v3894 = vmul.f32 1.0, %v3893
        %v3895 = vrcp.pop %v3884
        %v3896 = vmul.f32 1.0, %v3895
        %v3897 = vrcp.pop %v3885
        %v3898 = vmul.f32 1.0, %v3897
        %v3899 = vrcp.pop %v3886
        %v3900 = vmul.f32 1.0, %v3899
        %v3901 = vrcp.pop %v3887
        %v3902 = vmul.f32 1.0, %v3901
        %v3903 = vrcp.pop %v3888
        %v3904 = vmul.f32 1.0, %v3903
        %3913 = vrot.lane.b32.xlu0 %v3890, 96
        %v3914 = vpop.permute.xlu0 %3913
        %3915 = vrot.lane.b32.xlu0 %v3892, 96
        %v3916 = vpop.permute.xlu0 %3915
        %3917 = vrot.lane.b32.xlu0 %v3894, 96
        %v3918 = vpop.permute.xlu0 %3917
        %3919 = vrot.lane.b32.xlu0 %v3896, 96
        %v3920 = vpop.permute.xlu0 %3919
        %3921 = vrot.lane.b32.xlu0 %v3898, 96
        %v3922 = vpop.permute.xlu0 %3921
        %3923 = vrot.lane.b32.xlu0 %v3900, 96
        %v3924 = vpop.permute.xlu0 %3923
        %3925 = vrot.lane.b32.xlu0 %v3902, 96
        %v3926 = vpop.permute.xlu0 %3925
        %3927 = vrot.lane.b32.xlu0 %v3904, 96
        %v3928 = vpop.permute.xlu0 %3927
        %v3929 = vsel %vm1199, %v3914, %v3916
        %v3930 = vsel %vm1199, %v3918, %v3920
        %v3931 = vsel %vm1199, %v3922, %v3924
        %v3932 = vsel %vm1199, %v3926, %v3928
        %v3941 = vmul.f32 %v3720, %v3929
        %v3942 = vmul.f32 %v3722, %v3916
        %v3943 = vmul.f32 %v3734, %v3930
        %v3944 = vmul.f32 %v3736, %v3920
        %v3945 = vmul.f32 %v3748, %v3931
        %v3946 = vmul.f32 %v3750, %v3924
        %v3947 = vmul.f32 %v3762, %v3932
        %v3948 = vmul.f32 %v3764, %v3928
        %v3949 = vmax.f32 %v3164, %v3941
        %v3950 = vmax.f32 %v3165, %v3942
        %v3951 = vmax.f32 %v3172, %v3943
        %v3952 = vmax.f32 %v3173, %v3944
        %v3953 = vmax.f32 %v3180, %v3945
        %v3954 = vmax.f32 %v3181, %v3946
        %v3955 = vmax.f32 %v3188, %v3947
        %v3956 = vmax.f32 %v3189, %v3948
        %v3957 = vadd.f32 %v3949, %v1212
        %v3958 = vadd.f32 %v3950, %v1213
        %v3959 = vadd.f32 %v3951, %v1214
        %v3960 = vadd.f32 %v3952, %v1215
        %v3961 = vadd.f32 %v3953, %v1216
        %v3962 = vadd.f32 %v3954, %v1217
        %v3963 = vadd.f32 %v3955, %v1218
        %v3964 = vadd.f32 %v3956, %v1219
        %3965 = vst [vmem:[%s422] sm:$0xff] %v3957
        %3966 = vst.msk [vmem:[%s422 + $0x8] sm:$0xff] %vm481, %v3958
        %3967 = vst [vmem:[%s422 + $0x10] sm:$0xff] %v3959
        %3968 = vst.msk [vmem:[%s422 + $0x18] sm:$0xff] %vm481, %v3960
        %3969 = vst [vmem:[%s422 + $0x20] sm:$0xff] %v3961
        %3970 = vst.msk [vmem:[%s422 + $0x28] sm:$0xff] %vm481, %v3962
        %3971 = vst [vmem:[%s422 + $0x30] sm:$0xff] %v3963
        %3972 = vst.msk [vmem:[%s422 + $0x38] sm:$0xff] %vm481, %v3964
        %s3973 = sand.u32 %s231, 1
        %s3974 = scalar_lea.sflag [#allocation4], %s3973
        %s3975 = sand.u32 %s231, 1
        %s3976 = smul.addr %s3975, 64
        %s3977 = scalar_lea.vmem [#allocation13], %s3976
        // Predicated region
        $region81: #{tpu_custom_call.1} parent=55 // pred_check
          %p3978 = pneg %p241
        $region82: #{tpu_custom_call.1} parent=55 // pred_check_branch
          %3980 = sbr.rel (%p3978) target = $region84
        $region83: #{tpu_custom_call.1} parent=55 // pred_region
          %s3981 = smul.u32 4, %s29
          %s3983 = ssub.s32 1024, 1024
          %3984 = vsyncadd %s3974, %s3983
          %s3985 = smul.addr %s3981, 2
          %s3986 = smul.addr %s3985, 128
          %s3987 = scalar_lea.hbm %s9, %s3986
          %s3988 = sshll.u32 %s3977, 4
          %s3989 = int_to_ptr.vmem [resolvable:$true] %s3988
          %3994 = dma.vmem_to_hbm [thread:$0]  %s3989, 1024, %s3987, %s3974, 256, 256, 16
        $region84: #{tpu_custom_call.1} parent=55 // pred_fallthru
          _
      $region56: #{tpu_custom_call.1} parent=5 // pred_fallthru
        _
      %p3995 = scmp.le.s32.totalorder 2, %s24
      // Predicated region
      $region85: #{tpu_custom_call.1} parent=5 // pred_check
        %p3996 = pneg %p3995
      $region86: #{tpu_custom_call.1} parent=5 // pred_check_branch
        %3998 = sbr.rel (%p3996) target = $region88
      $region87: #{tpu_custom_call.1} parent=5 // pred_region
        %s3999 = ssub.s32 %s24, 2
        // Predicated region
        $region89: #{tpu_custom_call.1} parent=87 // pred_check
          %p4000 = pneg %p247
        $region90: #{tpu_custom_call.1} parent=87 // pred_check_branch
          %4002 = sbr.rel (%p4000) target = $region92
        $region91: #{tpu_custom_call.1} parent=87 // pred_region
          %s4003 = sand.u32 %s232, 1
          %s4004 = scalar_lea.sflag [#allocation4], %s4003
          %s4005 = sand.u32 %s232, 1
          %s4006 = smul.addr %s4005, 64
          %s4007 = scalar_lea.vmem [#allocation13], %s4006
          %4008 = dma.done %s4004, 1024
        $region92: #{tpu_custom_call.1} parent=87 // pred_fallthru
          _
      $region88: #{tpu_custom_call.1} parent=5 // pred_fallthru
        _
    $region6: #{tpu_custom_call.1} parent=1 // loop_footer
      %s28 = sadd.s32 1, %s24
    $region7: #{tpu_custom_call.1} parent=1 // loop_footer_branch
      %23 = sbr.rel target = $region3
    $region8: #{tpu_custom_call.1} parent=1 // loop_exit
      _
    %4009 = vsyncpa [#allocation3], 1
    %s4010 = scalar_lea.sflag [#allocation3], 1
    %4011 = vsyncpa %s4010, 1
    %4012 = vsyncpa [#allocation6], 1
    %4013 = vsyncpa [#allocation9], 1
    %4014 = vsyncpa [#allocation12], 1
    %4015 = vsyncpa [#allocation4], 1
    %s4016 = scalar_lea.sflag [#allocation4], 1
    %4017 = vsyncpa %s4016, 1

// kernel: tpu_custom_call.1
$region0: #{tpu_custom_call.1}
  #allocation0 [shape = 'u32[]', space=smem, size = 0x4, offset = 0x4, fixed_abs, tag = 'smem constant byte address 0x4 - core index']
  #allocation1 [shape = 'u32[144,128]{1,0:T(1,128)}', space=vmem, size = 0x12000, scoped, tag = 'internal scratch']
  %s0 = inlined_call_operand.hbm [shape: f32[64,256], index: 0, kind: input, shape index: {}]
  %s1 = inlined_call_operand.hbm [shape: f32[8,256], index: 1, kind: input, shape index: {}]
  %s2 = inlined_call_operand.hbm [shape: bf16[32,32], index: 2, kind: input, shape index: {}]
  %s3 = inlined_call_operand.hbm [shape: bf16[320,320], index: 3, kind: input, shape index: {}]
  %s4 = inlined_call_operand.vmem [shape: f32[1,320], index: 4, kind: input, shape index: {}]
  %s5 = inlined_call_operand.hbm [shape: bf16[160,320], index: 5, kind: input, shape index: {}]
  %s6 = inlined_call_operand.vmem [shape: f32[1,320], index: 6, kind: input, shape index: {}]
  %s7 = inlined_call_operand.hbm [shape: bf16[160,320], index: 7, kind: input, shape index: {}]
  %s8 = inlined_call_operand.vmem [shape: f32[1,320], index: 8, kind: input, shape index: {}]
  %s9 = inlined_call_operand.hbm [shape: f32[64,160], index: 9, kind: output, shape index: {}]
  %s10 = sld [smem:[#allocation0]]
  $region93: #{tpu_custom_call.1} parent=0
    _
  %s12 = ssub.s32 1, %s10
  %s13 = scalar_select 0, %s12, %s10
  $region1: #{tpu_custom_call.1} parent=0
    #allocation2 [shape = 'u8[65536]{0}', space=vmem, size = 0x10000, scoped, tag = 'input window, operand 0']
    #allocation3 [shape = 's32[2]{0}', space=sflag, size = 0x8, scoped, tag = 'scoped memory for tpu_custom_call.1']
    #allocation4 [shape = 's32[2]{0}', space=sflag, size = 0x8, scoped, tag = 'scoped memory for tpu_custom_call.1']
    #allocation5 [shape = 'u8[8192]{0}', space=vmem, size = 0x2000, scoped, tag = 'input window, operand 1, single buffered']
    #allocation6 [shape = 's32[1]{0}', space=sflag, size = 0x4, scoped, tag = 'scoped memory for tpu_custom_call.1']
    #allocation7 [shape = 'u8[8192]{0}', space=vmem, size = 0x2000, scoped, tag = 'input window, operand 2, single buffered']
    #allocation8 [shape = 'u8[245760]{0}', space=vmem, size = 0x3c000, scoped, tag = 'input window, operand 3, single buffered']
    #allocation9 [shape = 's32[1]{0}', space=sflag, size = 0x4, scoped, tag = 'scoped memory for tpu_custom_call.1']
    #allocation10 [shape = 'u8[122880]{0}', space=vmem, size = 0x1e000, scoped, tag = 'input window, operand 5, single buffered']
    #allocation11 [shape = 'u8[122880]{0}', space=vmem, size = 0x1e000, scoped, tag = 'input window, operand 7, single buffered']
    #allocation12 [shape = 's32[1]{0}', space=sflag, size = 0x4, scoped, tag = 'scoped memory for tpu_custom_call.1']
    #allocation13 [shape = 'u8[65536]{0}', space=vmem, size = 0x10000, scoped, tag = 'output window, operand 0']
    %14 = vsyncpa [#allocation3], 0
    %s15 = scalar_lea.sflag [#allocation3], 1
    %16 = vsyncpa %s15, 0
    %17 = vsyncpa [#allocation6], 0
    %18 = vsyncpa [#allocation9], 0
    %19 = vsyncpa [#allocation12], 0
    %20 = vsyncpa [#allocation4], 0
    %s21 = scalar_lea.sflag [#allocation4], 1
    %22 = vsyncpa %s21, 0
    loop: start=0, step=1, limit=4
    $region2: #{tpu_custom_call.1} parent=1 // loop_pre_header
      _
    $region3: #{tpu_custom_call.1} parent=1 // loop_header
      %s24 = sphi 0, %s28
      %p25 = scmp.ge.s32.totalorder %s24, 4
      %s34 = sphi 0, %s36
      %s37 = sphi 0, %s34
      %s38 = sphi 0, %s37
      %s54 = sphi 0, %s38
      %s58 = sphi 0, %s58
      %s60 = sphi 0, %s58
      %s61 = sphi 0, %s60
      %s75 = sphi 0, %s61
      %s79 = sphi 0, %s79
      %s81 = sphi 0, %s79
      %s82 = sphi 0, %s81
      %s96 = sphi 0, %s82
      %s100 = sphi 0, %s100
      %s102 = sphi 0, %s100
      %s103 = sphi 0, %s102
      %s117 = sphi 0, %s103
      %s121 = sphi 0, %s121
      %s123 = sphi 0, %s121
      %s124 = sphi 0, %s123
      %s138 = sphi 0, %s124
      %s142 = sphi 0, %s142
      %s144 = sphi 0, %s142
      %s145 = sphi 0, %s144
      %s159 = sphi 0, %s145
      %s163 = sphi 0, %s163
      %s165 = sphi 0, %s163
      %s166 = sphi 0, %s165
      %s180 = sphi 0, %s166
      %s184 = sphi 0, %s184
      %s186 = sphi 0, %s184
      %s187 = sphi 0, %s186
      %s201 = sphi 0, %s187
      %s205 = sphi 0, %s205
      %s207 = sphi 0, %s205
      %s208 = sphi 0, %s207
      %s222 = sphi 0, %s208
      %s228 = sphi 0, %s230
      %s231 = sphi 0, %s228
      %s232 = sphi 0, %s231
      %s248 = sphi 0, %s232
    $region4: #{tpu_custom_call.1} parent=1 // loop_header_branch
      %27 = sbr.rel (%p25) target = $region8
    $region5: #{tpu_custom_call.1} parent=1 // loop_body
      %s29 = ssub.s32 %s24, 1
      %s30 = ssub.s32 %s24, 2
      %s31 = sadd.s32 %s24, 1
      %s32 = ssub.s32 %s24, %s31
      %p33 = scmp.eq.s32.totalorder %s32, 0
      %s35 = sadd.s32 %s34, 1
      %s36 = scalar_select %p33, %s34, %s35
      %p39 = pneg %p33
      %p40 = scmp.eq.s32.totalorder %s24, 1
      %p41 = por %p39, %p40
      %p42 = scmp.ne.s32.totalorder %s34, %s37
      %p43 = scmp.eq.s32.totalorder %s24, 0
      %p44 = por %p42, %p43
      %p45 = scmp.ne.s32.totalorder %s34, %s37
      %p46 = scmp.eq.s32.totalorder %s29, 1
      %p47 = por %p45, %p46
      %p48 = scmp.ne.s32.totalorder %s37, %s38
      %p49 = scmp.eq.s32.totalorder %s29, 0
      %p50 = por %p48, %p49
      %p51 = scmp.ne.s32.totalorder %s37, %s38
      %p52 = scmp.eq.s32.totalorder %s30, 1
      %p53 = por %p51, %p52
      %p55 = scmp.ne.s32.totalorder %s38, %s54
      %p56 = scmp.eq.s32.totalorder %s30, 0
      %p57 = por %p55, %p56
      %s59 = sadd.s32 %s58, 1
      %p62 = scmp.eq.s32.totalorder %s24, 1
      %p63 = scmp.ne.s32.totalorder %s58, %s60
      %p64 = scmp.eq.s32.totalorder %s24, 0
      %p65 = por %p63, %p64
      %p66 = scmp.ne.s32.totalorder %s58, %s60
      %p67 = scmp.eq.s32.totalorder %s29, 1
      %p68 = por %p66, %p67
      %p69 = scmp.ne.s32.totalorder %s60, %s61
      %p70 = scmp.eq.s32.totalorder %s29, 0
      %p71 = por %p69, %p70
      %p72 = scmp.ne.s32.totalorder %s60, %s61
      %p73 = scmp.eq.s32.totalorder %s30, 1
      %p74 = por %p72, %p73
      %p76 = scmp.ne.s32.totalorder %s61, %s75
      %p77 = scmp.eq.s32.totalorder %s30, 0
      %p78 = por %p76, %p77
      %s80 = sadd.s32 %s79, 1
      %p83 = scmp.eq.s32.totalorder %s24, 1
      %p84 = scmp.ne.s32.totalorder %s79, %s81
      %p85 = scmp.eq.s32.totalorder %s24, 0
      %p86 = por %p84, %p85
      %p87 = scmp.ne.s32.totalorder %s79, %s81
      %p88 = scmp.eq.s32.totalorder %s29, 1
      %p89 = por %p87, %p88
      %p90 = scmp.ne.s32.totalorder %s81, %s82
      %p91 = scmp.eq.s32.totalorder %s29, 0
      %p92 = por %p90, %p91
      %p93 = scmp.ne.s32.totalorder %s81, %s82
      %p94 = scmp.eq.s32.totalorder %s30, 1
      %p95 = por %p93, %p94
      %p97 = scmp.ne.s32.totalorder %s82, %s96
      %p98 = scmp.eq.s32.totalorder %s30, 0
      %p99 = por %p97, %p98
      %s101 = sadd.s32 %s100, 1
      %p104 = scmp.eq.s32.totalorder %s24, 1
      %p105 = scmp.ne.s32.totalorder %s100, %s102
      %p106 = scmp.eq.s32.totalorder %s24, 0
      %p107 = por %p105, %p106
      %p108 = scmp.ne.s32.totalorder %s100, %s102
      %p109 = scmp.eq.s32.totalorder %s29, 1
      %p110 = por %p108, %p109
      %p111 = scmp.ne.s32.totalorder %s102, %s103
      %p112 = scmp.eq.s32.totalorder %s29, 0
      %p113 = por %p111, %p112
      %p114 = scmp.ne.s32.totalorder %s102, %s103
      %p115 = scmp.eq.s32.totalorder %s30, 1
      %p116 = por %p114, %p115
      %p118 = scmp.ne.s32.totalorder %s103, %s117
      %p119 = scmp.eq.s32.totalorder %s30, 0
      %p120 = por %p118, %p119
      %s122 = sadd.s32 %s121, 1
      %p125 = scmp.eq.s32.totalorder %s24, 1
      %p126 = scmp.ne.s32.totalorder %s121, %s123
      %p127 = scmp.eq.s32.totalorder %s24, 0
      %p128 = por %p126, %p127
      %p129 = scmp.ne.s32.totalorder %s121, %s123
      %p130 = scmp.eq.s32.totalorder %s29, 1
      %p131 = por %p129, %p130
      %p132 = scmp.ne.s32.totalorder %s123, %s124
      %p133 = scmp.eq.s32.totalorder %s29, 0
      %p134 = por %p132, %p133
      %p135 = scmp.ne.s32.totalorder %s123, %s124
      %p136 = scmp.eq.s32.totalorder %s30, 1
      %p137 = por %p135, %p136
      %p139 = scmp.ne.s32.totalorder %s124, %s138
      %p140 = scmp.eq.s32.totalorder %s30, 0
      %p141 = por %p139, %p140
      %s143 = sadd.s32 %s142, 1
      %p146 = scmp.eq.s32.totalorder %s24, 1
      %p147 = scmp.ne.s32.totalorder %s142, %s144
      %p148 = scmp.eq.s32.totalorder %s24, 0
      %p149 = por %p147, %p148
      %p150 = scmp.ne.s32.totalorder %s142, %s144
      %p151 = scmp.eq.s32.totalorder %s29, 1
      %p152 = por %p150, %p151
      %p153 = scmp.ne.s32.totalorder %s144, %s145
      %p154 = scmp.eq.s32.totalorder %s29, 0
      %p155 = por %p153, %p154
      %p156 = scmp.ne.s32.totalorder %s144, %s145
      %p157 = scmp.eq.s32.totalorder %s30, 1
      %p158 = por %p156, %p157
      %p160 = scmp.ne.s32.totalorder %s145, %s159
      %p161 = scmp.eq.s32.totalorder %s30, 0
      %p162 = por %p160, %p161
      %s164 = sadd.s32 %s163, 1
      %p167 = scmp.eq.s32.totalorder %s24, 1
      %p168 = scmp.ne.s32.totalorder %s163, %s165
      %p169 = scmp.eq.s32.totalorder %s24, 0
      %p170 = por %p168, %p169
      %p171 = scmp.ne.s32.totalorder %s163, %s165
      %p172 = scmp.eq.s32.totalorder %s29, 1
      %p173 = por %p171, %p172
      %p174 = scmp.ne.s32.totalorder %s165, %s166
      %p175 = scmp.eq.s32.totalorder %s29, 0
      %p176 = por %p174, %p175
      %p177 = scmp.ne.s32.totalorder %s165, %s166
      %p178 = scmp.eq.s32.totalorder %s30, 1
      %p179 = por %p177, %p178
      %p181 = scmp.ne.s32.totalorder %s166, %s180
      %p182 = scmp.eq.s32.totalorder %s30, 0
      %p183 = por %p181, %p182
      %s185 = sadd.s32 %s184, 1
      %p188 = scmp.eq.s32.totalorder %s24, 1
      %p189 = scmp.ne.s32.totalorder %s184, %s186
      %p190 = scmp.eq.s32.totalorder %s24, 0
      %p191 = por %p189, %p190
      %p192 = scmp.ne.s32.totalorder %s184, %s186
      %p193 = scmp.eq.s32.totalorder %s29, 1
      %p194 = por %p192, %p193
      %p195 = scmp.ne.s32.totalorder %s186, %s187
      %p196 = scmp.eq.s32.totalorder %s29, 0
      %p197 = por %p195, %p196
      %p198 = scmp.ne.s32.totalorder %s186, %s187
      %p199 = scmp.eq.s32.totalorder %s30, 1
      %p200 = por %p198, %p199
      %p202 = scmp.ne.s32.totalorder %s187, %s201
      %p203 = scmp.eq.s32.totalorder %s30, 0
      %p204 = por %p202, %p203
      %s206 = sadd.s32 %s205, 1
      %p209 = scmp.eq.s32.totalorder %s24, 1
      %p210 = scmp.ne.s32.totalorder %s205, %s207
      %p211 = scmp.eq.s32.totalorder %s24, 0
      %p212 = por %p210, %p211
      %p213 = scmp.ne.s32.totalorder %s205, %s207
      %p214 = scmp.eq.s32.totalorder %s29, 1
      %p215 = por %p213, %p214
      %p216 = scmp.ne.s32.totalorder %s207, %s208
      %p217 = scmp.eq.s32.totalorder %s29, 0
      %p218 = por %p216, %p217
      %p219 = scmp.ne.s32.totalorder %s207, %s208
      %p220 = scmp.eq.s32.totalorder %s30, 1
      %p221 = por %p219, %p220
      %p223 = scmp.ne.s32.totalorder %s208, %s222
      %p224 = scmp.eq.s32.totalorder %s30, 0
      %p225 = por %p223, %p224
      %s226 = ssub.s32 %s24, %s31
      %p227 = scmp.eq.s32.totalorder %s226, 0
      %s229 = sadd.s32 %s228, 1
      %s230 = scalar_select %p227, %s228, %s229
      %p233 = pneg %p227
      %p234 = scmp.eq.s32.totalorder %s24, 1
      %p235 = por %p233, %p234
      %p236 = scmp.ne.s32.totalorder %s228, %s231
      %p237 = scmp.eq.s32.totalorder %s24, 0
      %p238 = por %p236, %p237
      %p239 = scmp.ne.s32.totalorder %s228, %s231
      %p240 = scmp.eq.s32.totalorder %s29, 1
      %p241 = por %p239, %p240
      %p242 = scmp.ne.s32.totalorder %s231, %s232
      %p243 = scmp.eq.s32.totalorder %s29, 0
      %p244 = por %p242, %p243
      %p245 = scmp.ne.s32.totalorder %s231, %s232
      %p246 = scmp.eq.s32.totalorder %s30, 1
      %p247 = por %p245, %p246
      %p249 = scmp.ne.s32.totalorder %s232, %s248
      %p250 = scmp.eq.s32.totalorder %s30, 0
      %p251 = por %p249, %p250
      %p252 = scmp.le.s32.totalorder 1, %s24
      %p253 = scmp.lt.s32.totalorder %s24, 3
      %p254 = pnand %p252, %p253
      %p255 = pneg %p254
      // Predicated region
      $region9: #{tpu_custom_call.1} parent=5 // pred_check
        _
      $region10: #{tpu_custom_call.1} parent=5 // pred_check_branch
        %257 = sbr.rel (%p254) target = $region12
      $region11: #{tpu_custom_call.1} parent=5 // pred_region
        %s258 = ssub.s32 %s24, 1
        // Predicated region
        $region13: #{tpu_custom_call.1} parent=11 // pred_check
          %p259 = pneg %p71
        $region14: #{tpu_custom_call.1} parent=11 // pred_check_branch
          %261 = sbr.rel (%p259) target = $region16
        $region15: #{tpu_custom_call.1} parent=11 // pred_region
          %s263 = ssub.s32 256, 256
          %264 = vsyncadd [#allocation6], %s263
          %s266 = sshll.u32 [#allocation5], 4
          %s267 = int_to_ptr.vmem [resolvable:$true] %s266
          %269 = dma.hbm_to_vmem [thread:$0]  %s1, 256, %s267, [#allocation6]
        $region16: #{tpu_custom_call.1} parent=11 // pred_fallthru
          _
        // Predicated region
        $region17: #{tpu_custom_call.1} parent=11 // pred_check
          %p270 = pneg %p92
        $region18: #{tpu_custom_call.1} parent=11 // pred_check_branch
          %272 = sbr.rel (%p270) target = $region20
        $region19: #{tpu_custom_call.1} parent=11 // pred_region
          %s274 = ssub.s32 256, 256
          %275 = vsyncadd [#allocation6], %s274
          %s276 = sshll.u32 [#allocation7], 4
          %s277 = int_to_ptr.vmem [resolvable:$true] %s276
          %282 = dma.hbm_to_vmem [thread:$0]  %s2, 256, %s277, [#allocation6], 64, 64, 4
        $region20: #{tpu_custom_call.1} parent=11 // pred_fallthru
          _
        // Predicated region
        $region21: #{tpu_custom_call.1} parent=11 // pred_check
          %p283 = pneg %p113
        $region22: #{tpu_custom_call.1} parent=11 // pred_check_branch
          %285 = sbr.rel (%p283) target = $region24
        $region23: #{tpu_custom_call.1} parent=11 // pred_region
          %s287 = ssub.s32 7680, 7680
          %288 = vsyncadd [#allocation9], %s287
          %s289 = sshll.u32 [#allocation8], 4
          %s290 = int_to_ptr.vmem [resolvable:$true] %s289
          %295 = dma.hbm_to_vmem [thread:$0]  %s3, 7680, %s290, [#allocation9], 192, 192, 12
        $region24: #{tpu_custom_call.1} parent=11 // pred_fallthru
          _
        // Predicated region
        $region25: #{tpu_custom_call.1} parent=11 // pred_check
          %p296 = pneg %p134
        $region26: #{tpu_custom_call.1} parent=11 // pred_check_branch
          %298 = sbr.rel (%p296) target = $region28
        $region27: #{tpu_custom_call.1} parent=11 // pred_region
          _
        $region28: #{tpu_custom_call.1} parent=11 // pred_fallthru
          _
        // Predicated region
        $region29: #{tpu_custom_call.1} parent=11 // pred_check
          %p299 = pneg %p155
        $region30: #{tpu_custom_call.1} parent=11 // pred_check_branch
          %301 = sbr.rel (%p299) target = $region32
        $region31: #{tpu_custom_call.1} parent=11 // pred_region
          %s303 = ssub.s32 3840, 3840
          %304 = vsyncadd [#allocation9], %s303
          %s305 = sshll.u32 [#allocation10], 4
          %s306 = int_to_ptr.vmem [resolvable:$true] %s305
          %311 = dma.hbm_to_vmem [thread:$0]  %s5, 3840, %s306, [#allocation9], 192, 192, 12
        $region32: #{tpu_custom_call.1} parent=11 // pred_fallthru
          _
        // Predicated region
        $region33: #{tpu_custom_call.1} parent=11 // pred_check
          %p312 = pneg %p176
        $region34: #{tpu_custom_call.1} parent=11 // pred_check_branch
          %314 = sbr.rel (%p312) target = $region36
        $region35: #{tpu_custom_call.1} parent=11 // pred_region
          _
        $region36: #{tpu_custom_call.1} parent=11 // pred_fallthru
          _
        // Predicated region
        $region37: #{tpu_custom_call.1} parent=11 // pred_check
          %p315 = pneg %p197
        $region38: #{tpu_custom_call.1} parent=11 // pred_check_branch
          %317 = sbr.rel (%p315) target = $region40
        $region39: #{tpu_custom_call.1} parent=11 // pred_region
          %s319 = ssub.s32 3840, 3840
          %320 = vsyncadd [#allocation12], %s319
          %s321 = sshll.u32 [#allocation11], 4
          %s322 = int_to_ptr.vmem [resolvable:$true] %s321
          %327 = dma.hbm_to_vmem [thread:$0]  %s7, 3840, %s322, [#allocation12], 192, 192, 12
        $region40: #{tpu_custom_call.1} parent=11 // pred_fallthru
          _
        // Predicated region
        $region41: #{tpu_custom_call.1} parent=11 // pred_check
          %p328 = pneg %p218
        $region42: #{tpu_custom_call.1} parent=11 // pred_check_branch
          %330 = sbr.rel (%p328) target = $region44
        $region43: #{tpu_custom_call.1} parent=11 // pred_region
          _
        $region44: #{tpu_custom_call.1} parent=11 // pred_fallthru
          _
      $region12: #{tpu_custom_call.1} parent=5 // pred_fallthru
        _
      %p331 = scmp.lt.s32.totalorder %s24, 2
      // Predicated region
      $region45: #{tpu_custom_call.1} parent=5 // pred_check
        %p332 = pneg %p331
      $region46: #{tpu_custom_call.1} parent=5 // pred_check_branch
        %334 = sbr.rel (%p332) target = $region48
      $region47: #{tpu_custom_call.1} parent=5 // pred_region
        // Predicated region
        $region49: #{tpu_custom_call.1} parent=47 // pred_check
          %p335 = pneg %p44
        $region50: #{tpu_custom_call.1} parent=47 // pred_check_branch
          %337 = sbr.rel (%p335) target = $region52
        $region51: #{tpu_custom_call.1} parent=47 // pred_region
          %s338 = sand.u32 %s34, 1
          %s339 = scalar_lea.sflag [#allocation3], %s338
          %s340 = sand.u32 %s34, 1
          %s341 = smul.addr %s340, 64
          %s342 = scalar_lea.vmem [#allocation2], %s341
          %s343 = smul.u32 4, %s24
          %s345 = ssub.s32 1024, 1024
          %346 = vsyncadd %s339, %s345
          %s347 = smul.addr %s343, 2
          %s348 = smul.addr %s347, 128
          %s349 = scalar_lea.hbm %s0, %s348
          %s350 = sshll.u32 %s342, 4
          %s351 = int_to_ptr.vmem [resolvable:$true] %s350
          %356 = dma.hbm_to_vmem [thread:$0]  %s349, 1024, %s351, %s339, 256, 256, 16
        $region52: #{tpu_custom_call.1} parent=47 // pred_fallthru
          _
      $region48: #{tpu_custom_call.1} parent=5 // pred_fallthru
        _
      %p357 = scmp.le.s32.totalorder 1, %s24
      %p358 = scmp.lt.s32.totalorder %s24, 3
      %p359 = pnand %p357, %p358
      %p360 = pneg %p359
      // Predicated region
      $region53: #{tpu_custom_call.1} parent=5 // pred_check
        _
      $region54: #{tpu_custom_call.1} parent=5 // pred_check_branch
        %362 = sbr.rel (%p359) target = $region56
      $region55: #{tpu_custom_call.1} parent=5 // pred_region
        %s363 = ssub.s32 %s24, 1
        %s364 = sand.u32 %s37, 1
        %s365 = scalar_lea.sflag [#allocation3], %s364
        %s366 = sand.u32 %s37, 1
        %s367 = smul.addr %s366, 64
        %s368 = scalar_lea.vmem [#allocation2], %s367
        // Predicated region
        $region57: #{tpu_custom_call.1} parent=55 // pred_check
          %p369 = pneg %p50
        $region58: #{tpu_custom_call.1} parent=55 // pred_check_branch
          %371 = sbr.rel (%p369) target = $region60
        $region59: #{tpu_custom_call.1} parent=55 // pred_region
          %372 = dma.done %s365, 1024
        $region60: #{tpu_custom_call.1} parent=55 // pred_fallthru
          _
        // Predicated region
        $region61: #{tpu_custom_call.1} parent=55 // pred_check
          %p373 = pneg %p71
        $region62: #{tpu_custom_call.1} parent=55 // pred_check_branch
          %375 = sbr.rel (%p373) target = $region64
        $region63: #{tpu_custom_call.1} parent=55 // pred_region
          %376 = dma.done [#allocation6], 256
        $region64: #{tpu_custom_call.1} parent=55 // pred_fallthru
          _
        // Predicated region
        $region65: #{tpu_custom_call.1} parent=55 // pred_check
          %p377 = pneg %p92
        $region66: #{tpu_custom_call.1} parent=55 // pred_check_branch
          %379 = sbr.rel (%p377) target = $region68
        $region67: #{tpu_custom_call.1} parent=55 // pred_region
          %380 = dma.done [#allocation6], 256
        $region68: #{tpu_custom_call.1} parent=55 // pred_fallthru
          _
        // Predicated region
        $region69: #{tpu_custom_call.1} parent=55 // pred_check
          %p381 = pneg %p113
        $region70: #{tpu_custom_call.1} parent=55 // pred_check_branch
          %383 = sbr.rel (%p381) target = $region72
        $region71: #{tpu_custom_call.1} parent=55 // pred_region
          %384 = dma.done [#allocation9], 7680
        $region72: #{tpu_custom_call.1} parent=55 // pred_fallthru
          _
        // Predicated region
        $region73: #{tpu_custom_call.1} parent=55 // pred_check
          %p385 = pneg %p155
        $region74: #{tpu_custom_call.1} parent=55 // pred_check_branch
          %387 = sbr.rel (%p385) target = $region76
        $region75: #{tpu_custom_call.1} parent=55 // pred_region
          %388 = dma.done [#allocation9], 3840
        $region76: #{tpu_custom_call.1} parent=55 // pred_fallthru
          _
        // Predicated region
        $region77: #{tpu_custom_call.1} parent=55 // pred_check
          %p389 = pneg %p197
        $region78: #{tpu_custom_call.1} parent=55 // pred_check_branch
          %391 = sbr.rel (%p389) target = $region80
        $region79: #{tpu_custom_call.1} parent=55 // pred_region
          %392 = dma.done [#allocation12], 3840
        $region80: #{tpu_custom_call.1} parent=55 // pred_fallthru
          _
        %s393 = sand.u32 %s37, 1
        %s394 = scalar_lea.sflag [#allocation3], %s393
        %s395 = sand.u32 %s37, 1
        %s396 = smul.addr %s395, 64
        %s397 = scalar_lea.vmem [#allocation2], %s396
        %p398 = pneg %p50
        %p399 = pneg %p47
        %p400 = pneg %p71
        %p401 = pneg %p68
        %p402 = pneg %p92
        %p403 = pneg %p89
        %p404 = pneg %p113
        %p405 = pneg %p110
        %p406 = pneg %p134
        %p407 = pneg %p131
        %p408 = pneg %p155
        %p409 = pneg %p152
        %p410 = pneg %p176
        %p411 = pneg %p173
        %p412 = pneg %p197
        %p413 = pneg %p194
        %p414 = pneg %p218
        %p415 = pneg %p215
        %p416 = pneg %p244
        %p417 = pneg %p241
        %s418 = sand.u32 %s231, 1
        %s419 = scalar_lea.sflag [#allocation4], %s418
        %s420 = sand.u32 %s231, 1
        %s421 = smul.addr %s420, 64
        %s422 = scalar_lea.vmem [#allocation13], %s421
        %s423 = smul.u32 4, %s29
        %s424 = smul.u32 4, %s29
        %v426 = vld [vmem:[%s368] sm:$0xff]
        %v427 = vld [vmem:[%s368 + $0x8] sm:$0xff]
        %v428 = vld [vmem:[%s368 + $0x10] sm:$0xff]
        %v429 = vld [vmem:[%s368 + $0x18] sm:$0xff]
        %v430 = vld [vmem:[%s368 + $0x20] sm:$0xff]
        %v431 = vld [vmem:[%s368 + $0x28] sm:$0xff]
        %v432 = vld [vmem:[%s368 + $0x30] sm:$0xff]
        %v433 = vld [vmem:[%s368 + $0x38] sm:$0xff]
        %v434 = vld [vmem:[#allocation5] sm:$0xff]
        %v435 = vld [vmem:[#allocation5 + $0x8] sm:$0xff]
        %v436 = vadd.f32 %v426, %v434
        %v437 = vadd.f32 %v427, %v435
        %v438 = vadd.f32 %v428, %v434
        %v439 = vadd.f32 %v429, %v435
        %v440 = vadd.f32 %v430, %v434
        %v441 = vadd.f32 %v431, %v435
        %v442 = vadd.f32 %v432, %v434
        %v443 = vadd.f32 %v433, %v435
        %452 = vrot.lane.b32.xlu0 %v436, 64
        %v453 = vpop.permute.xlu0 %452
        %454 = vrot.lane.b32.xlu0 %v437, 64
        %v455 = vpop.permute.xlu0 %454
        %456 = vrot.lane.b32.xlu0 %v438, 64
        %v457 = vpop.permute.xlu0 %456
        %458 = vrot.lane.b32.xlu0 %v439, 64
        %v459 = vpop.permute.xlu0 %458
        %460 = vrot.lane.b32.xlu0 %v440, 64
        %v461 = vpop.permute.xlu0 %460
        %462 = vrot.lane.b32.xlu0 %v441, 64
        %v463 = vpop.permute.xlu0 %462
        %464 = vrot.lane.b32.xlu0 %v442, 64
        %v465 = vpop.permute.xlu0 %464
        %466 = vrot.lane.b32.xlu0 %v443, 64
        %v467 = vpop.permute.xlu0 %466
        %vm468 = vcmask 523264
        %v469 = vsel %vm468, %v453, %v455
        %v470 = vsel %vm468, %v457, %v459
        %v471 = vsel %vm468, %v461, %v463
        %v472 = vsel %vm468, %v465, %v467
        %vm481 = vcmask 261120
        %v482 = vsel %vm481, %v437, %v469
        %v483 = vsel %vm481, %v439, %v470
        %v484 = vsel %vm481, %v441, %v471
        %v485 = vsel %vm481, %v443, %v472
        %v486 = vpack.c.bf16 %v438, %v436
        %v487 = vpack.c.bf16 %v483, %v482
        %v488 = vpack.c.bf16 %v459, %v455
        %v489 = vpack.c.bf16 %v442, %v440
        %v490 = vpack.c.bf16 %v485, %v484
        %v491 = vpack.c.bf16 %v467, %v463
        %v492 = vld [vmem:[#allocation8] sm:$0xff]
        %v493 = vld [vmem:[#allocation8 + $0x8] sm:$0xf]
        %v494 = vld [vmem:[#allocation8 + $0xc] sm:$0xff]
        %v495 = vld [vmem:[#allocation8 + $0x14] sm:$0xf]
        %v496 = vld [vmem:[#allocation8 + $0x18] sm:$0xff]
        %v497 = vld [vmem:[#allocation8 + $0x20] sm:$0xf]
        %v498 = vld [vmem:[#allocation8 + $0x24] sm:$0xff]
        %v499 = vld [vmem:[#allocation8 + $0x2c] sm:$0xf]
        %v500 = vld [vmem:[#allocation8 + $0x30] sm:$0xff]
        %v501 = vld [vmem:[#allocation8 + $0x38] sm:$0xf]
        %v502 = vld [vmem:[#allocation8 + $0x3c] sm:$0xff]
        %v503 = vld [vmem:[#allocation8 + $0x44] sm:$0xf]
        %v504 = vld [vmem:[#allocation8 + $0x48] sm:$0xff]
        %v505 = vld [vmem:[#allocation8 + $0x50] sm:$0xf]
        %v506 = vld [vmem:[#allocation8 + $0x54] sm:$0xff]
        %v507 = vld [vmem:[#allocation8 + $0x5c] sm:$0xf]
        %v508 = vld [vmem:[#allocation8 + $0x60] sm:$0xff]
        %v509 = vld [vmem:[#allocation8 + $0x68] sm:$0xf]
        %v510 = vld [vmem:[#allocation8 + $0x6c] sm:$0xff]
        %v511 = vld [vmem:[#allocation8 + $0x74] sm:$0xf]
        %v512 = vld [vmem:[#allocation8 + $0x78] sm:$0xff]
        %v513 = vld [vmem:[#allocation8 + $0x80] sm:$0xf]
        %v514 = vld [vmem:[#allocation8 + $0x84] sm:$0xff]
        %v515 = vld [vmem:[#allocation8 + $0x8c] sm:$0xf]
        %v516 = vld [vmem:[#allocation8 + $0x90] sm:$0xff]
        %v517 = vld [vmem:[#allocation8 + $0x98] sm:$0xf]
        %v518 = vld [vmem:[#allocation8 + $0x9c] sm:$0xff]
        %v519 = vld [vmem:[#allocation8 + $0xa4] sm:$0xf]
        %v520 = vld [vmem:[#allocation8 + $0xa8] sm:$0xff]
        %v521 = vld [vmem:[#allocation8 + $0xb0] sm:$0xf]
        %v522 = vld [vmem:[#allocation8 + $0xb4] sm:$0xff]
        %v523 = vld [vmem:[#allocation8 + $0xbc] sm:$0xf]
        %v524 = vld [vmem:[#allocation8 + $0xc0] sm:$0xff]
        %v525 = vld [vmem:[#allocation8 + $0xc8] sm:$0xf]
        %v526 = vld [vmem:[#allocation8 + $0xcc] sm:$0xff]
        %v527 = vld [vmem:[#allocation8 + $0xd4] sm:$0xf]
        %v528 = vld [vmem:[#allocation8 + $0xd8] sm:$0xff]
        %v529 = vld [vmem:[#allocation8 + $0xe0] sm:$0xf]
        %v530 = vld [vmem:[#allocation8 + $0xe4] sm:$0xff]
        %v531 = vld [vmem:[#allocation8 + $0xec] sm:$0xf]
        %v532 = vld [vmem:[#allocation8 + $0xf0] sm:$0xff]
        %v533 = vld [vmem:[#allocation8 + $0xf8] sm:$0xf]
        %v534 = vld [vmem:[#allocation8 + $0xfc] sm:$0xff]
        %v535 = vld [vmem:[#allocation8 + $0x104] sm:$0xf]
        %v536 = vld [vmem:[#allocation8 + $0x108] sm:$0xff]
        %v537 = vld [vmem:[#allocation8 + $0x110] sm:$0xf]
        %v538 = vld [vmem:[#allocation8 + $0x114] sm:$0xff]
        %v539 = vld [vmem:[#allocation8 + $0x11c] sm:$0xf]
        %v540 = vld [vmem:[#allocation8 + $0x120] sm:$0xff]
        %v541 = vld [vmem:[#allocation8 + $0x128] sm:$0xf]
        %v542 = vld [vmem:[#allocation8 + $0x12c] sm:$0xff]
        %v543 = vld [vmem:[#allocation8 + $0x134] sm:$0xf]
        %v544 = vld [vmem:[#allocation8 + $0x138] sm:$0xff]
        %v545 = vld [vmem:[#allocation8 + $0x140] sm:$0xf]
        %v546 = vld [vmem:[#allocation8 + $0x144] sm:$0xff]
        %v547 = vld [vmem:[#allocation8 + $0x14c] sm:$0xf]
        %v548 = vld [vmem:[#allocation8 + $0x150] sm:$0xff]
        %v549 = vld [vmem:[#allocation8 + $0x158] sm:$0xf]
        %v550 = vld [vmem:[#allocation8 + $0x15c] sm:$0xff]
        %v551 = vld [vmem:[#allocation8 + $0x164] sm:$0xf]
        %v552 = vld [vmem:[#allocation8 + $0x168] sm:$0xff]
        %v553 = vld [vmem:[#allocation8 + $0x170] sm:$0xf]
        %v554 = vld [vmem:[#allocation8 + $0x174] sm:$0xff]
        %v555 = vld [vmem:[#allocation8 + $0x17c] sm:$0xf]
        %v556 = vld [vmem:[#allocation8 + $0x180] sm:$0xff]
        %v557 = vld [vmem:[#allocation8 + $0x188] sm:$0xf]
        %v558 = vld [vmem:[#allocation8 + $0x18c] sm:$0xff]
        %v559 = vld [vmem:[#allocation8 + $0x194] sm:$0xf]
        %v560 = vld [vmem:[#allocation8 + $0x198] sm:$0xff]
        %v561 = vld [vmem:[#allocation8 + $0x1a0] sm:$0xf]
        %v562 = vld [vmem:[#allocation8 + $0x1a4] sm:$0xff]
        %v563 = vld [vmem:[#allocation8 + $0x1ac] sm:$0xf]
        %v564 = vld [vmem:[#allocation8 + $0x1b0] sm:$0xff]
        %v565 = vld [vmem:[#allocation8 + $0x1b8] sm:$0xf]
        %v566 = vld [vmem:[#allocation8 + $0x1bc] sm:$0xff]
        %v567 = vld [vmem:[#allocation8 + $0x1c4] sm:$0xf]
        %v568 = vld [vmem:[#allocation8 + $0x1c8] sm:$0xff]
        %v569 = vld [vmem:[#allocation8 + $0x1d0] sm:$0xf]
        %v570 = vld [vmem:[#allocation8 + $0x1d4] sm:$0xff]
        %v571 = vld [vmem:[#allocation8 + $0x1dc] sm:$0xf]
        %v572 = vld [vmem:[%s4] sm:$0x7]
        %v574 = vlaneseq
        %v575 = vshrl.u32 %v574, 7
        %v576 = vsub.s32 0, %v575
        %v577 = vrot.slane %v572, %v576
        %v578 = vlaneseq
        %v579 = vshrl.u32 %v578, 7
        %v580 = vsub.s32 1, %v579
        %v581 = vrot.slane %v572, %v580
        %v582 = vlaneseq
        %v583 = vshrl.u32 %v582, 7
        %v584 = vsub.s32 2, %v583
        %v585 = vrot.slane %v572, %v584
        %v669 = vunpack.c.l.b16 %v492
        %v670 = vunpack.c.h.b16 %v492
        %v671 = vunpack.c.l.b16 %v493
        %v672 = vunpack.c.l.b16 %v494
        %v673 = vunpack.c.h.b16 %v494
        %v674 = vunpack.c.l.b16 %v495
        %v675 = vunpack.c.l.b16 %v496
        %v676 = vunpack.c.h.b16 %v496
        %v677 = vunpack.c.l.b16 %v497
        %v678 = vunpack.c.l.b16 %v498
        %v679 = vunpack.c.h.b16 %v498
        %v680 = vunpack.c.l.b16 %v499
        %v681 = vunpack.c.l.b16 %v500
        %v682 = vunpack.c.h.b16 %v500
        %v683 = vunpack.c.l.b16 %v501
        %v684 = vunpack.c.l.b16 %v502
        %v685 = vunpack.c.h.b16 %v502
        %v686 = vunpack.c.l.b16 %v503
        %v687 = vunpack.c.l.b16 %v504
        %v688 = vunpack.c.h.b16 %v504
        %v689 = vunpack.c.l.b16 %v505
        %v690 = vunpack.c.l.b16 %v506
        %v691 = vunpack.c.h.b16 %v506
        %v692 = vunpack.c.l.b16 %v507
        %v693 = vunpack.c.l.b16 %v508
        %v694 = vunpack.c.h.b16 %v508
        %v695 = vunpack.c.l.b16 %v509
        %v696 = vunpack.c.l.b16 %v510
        %v697 = vunpack.c.h.b16 %v510
        %v698 = vunpack.c.l.b16 %v511
        %v699 = vunpack.c.l.b16 %v512
        %v700 = vunpack.c.h.b16 %v512
        %v701 = vunpack.c.l.b16 %v513
        %v702 = vunpack.c.l.b16 %v514
        %v703 = vunpack.c.h.b16 %v514
        %v704 = vunpack.c.l.b16 %v515
        %v705 = vunpack.c.l.b16 %v516
        %v706 = vunpack.c.h.b16 %v516
        %v707 = vunpack.c.l.b16 %v517
        %v708 = vunpack.c.l.b16 %v518
        %v709 = vunpack.c.h.b16 %v518
        %v710 = vunpack.c.l.b16 %v519
        %v711 = vunpack.c.l.b16 %v520
        %v712 = vunpack.c.h.b16 %v520
        %v713 = vunpack.c.l.b16 %v521
        %v714 = vunpack.c.l.b16 %v522
        %v715 = vunpack.c.h.b16 %v522
        %v716 = vunpack.c.l.b16 %v523
        %v717 = vunpack.c.l.b16 %v524
        %v718 = vunpack.c.h.b16 %v524
        %v719 = vunpack.c.l.b16 %v525
        %v720 = vunpack.c.l.b16 %v526
        %v721 = vunpack.c.h.b16 %v526
        %v722 = vunpack.c.l.b16 %v527
        %v723 = vunpack.c.l.b16 %v528
        %v724 = vunpack.c.h.b16 %v528
        %v725 = vunpack.c.l.b16 %v529
        %v726 = vunpack.c.l.b16 %v530
        %v727 = vunpack.c.h.b16 %v530
        %v728 = vunpack.c.l.b16 %v531
        %v729 = vunpack.c.l.b16 %v532
        %v730 = vunpack.c.h.b16 %v532
        %v731 = vunpack.c.l.b16 %v533
        %v732 = vunpack.c.l.b16 %v534
        %v733 = vunpack.c.h.b16 %v534
        %v734 = vunpack.c.l.b16 %v535
        %v735 = vunpack.c.l.b16 %v536
        %v736 = vunpack.c.h.b16 %v536
        %v737 = vunpack.c.l.b16 %v537
        %v738 = vunpack.c.l.b16 %v538
        %v739 = vunpack.c.h.b16 %v538
        %v740 = vunpack.c.l.b16 %v539
        %v741 = vunpack.c.l.b16 %v540
        %v742 = vunpack.c.h.b16 %v540
        %v743 = vunpack.c.l.b16 %v541
        %v744 = vunpack.c.l.b16 %v542
        %v745 = vunpack.c.h.b16 %v542
        %v746 = vunpack.c.l.b16 %v543
        %v747 = vunpack.c.l.b16 %v544
        %v748 = vunpack.c.h.b16 %v544
        %v749 = vunpack.c.l.b16 %v545
        %v750 = vunpack.c.l.b16 %v546
        %v751 = vunpack.c.h.b16 %v546
        %v752 = vunpack.c.l.b16 %v547
        %v753 = vunpack.c.l.b16 %v548
        %v754 = vunpack.c.h.b16 %v548
        %v755 = vunpack.c.l.b16 %v549
        %v756 = vunpack.c.l.b16 %v550
        %v757 = vunpack.c.h.b16 %v550
        %v758 = vunpack.c.l.b16 %v551
        %v759 = vunpack.c.l.b16 %v552
        %v760 = vunpack.c.h.b16 %v552
        %v761 = vunpack.c.l.b16 %v553
        %v762 = vunpack.c.l.b16 %v554
        %v763 = vunpack.c.h.b16 %v554
        %v764 = vunpack.c.l.b16 %v555
        %v765 = vunpack.c.l.b16 %v556
        %v766 = vunpack.c.h.b16 %v556
        %v767 = vunpack.c.l.b16 %v557
        %v768 = vunpack.c.l.b16 %v558
        %v769 = vunpack.c.h.b16 %v558
        %v770 = vunpack.c.l.b16 %v559
        %v771 = vunpack.c.l.b16 %v560
        %v772 = vunpack.c.h.b16 %v560
        %v773 = vunpack.c.l.b16 %v561
        %v774 = vunpack.c.l.b16 %v562
        %v775 = vunpack.c.h.b16 %v562
        %v776 = vunpack.c.l.b16 %v563
        %v777 = vunpack.c.l.b16 %v564
        %v778 = vunpack.c.h.b16 %v564
        %v779 = vunpack.c.l.b16 %v565
        %v780 = vunpack.c.l.b16 %v566
        %v781 = vunpack.c.h.b16 %v566
        %v782 = vunpack.c.l.b16 %v567
        %v783 = vunpack.c.l.b16 %v568
        %v784 = vunpack.c.h.b16 %v568
        %v785 = vunpack.c.l.b16 %v569
        %v786 = vunpack.c.l.b16 %v570
        %v787 = vunpack.c.h.b16 %v570
        %v788 = vunpack.c.l.b16 %v571
        %v789 = vpack.c.b16 %v672, %v669
        %v790 = vpack.c.b16 %v673, %v670
        %v791 = vpack.c.b16 %v674, %v671
        %v792 = vpack.c.b16 %v678, %v675
        %v793 = vpack.c.b16 %v679, %v676
        %v794 = vpack.c.b16 %v680, %v677
        %v795 = vpack.c.b16 %v684, %v681
        %v796 = vpack.c.b16 %v685, %v682
        %v797 = vpack.c.b16 %v686, %v683
        %v798 = vpack.c.b16 %v690, %v687
        %v799 = vpack.c.b16 %v691, %v688
        %v800 = vpack.c.b16 %v692, %v689
        %v801 = vpack.c.b16 %v696, %v693
        %v802 = vpack.c.b16 %v697, %v694
        %v803 = vpack.c.b16 %v698, %v695
        %v804 = vpack.c.b16 %v702, %v699
        %v805 = vpack.c.b16 %v703, %v700
        %v806 = vpack.c.b16 %v704, %v701
        %v807 = vpack.c.b16 %v708, %v705
        %v808 = vpack.c.b16 %v709, %v706
        %v809 = vpack.c.b16 %v710, %v707
        %v810 = vpack.c.b16 %v714, %v711
        %v811 = vpack.c.b16 %v715, %v712
        %v812 = vpack.c.b16 %v716, %v713
        %v813 = vpack.c.b16 %v720, %v717
        %v814 = vpack.c.b16 %v721, %v718
        %v815 = vpack.c.b16 %v722, %v719
        %v816 = vpack.c.b16 %v726, %v723
        %v817 = vpack.c.b16 %v727, %v724
        %v818 = vpack.c.b16 %v728, %v725
        %v819 = vpack.c.b16 %v732, %v729
        %v820 = vpack.c.b16 %v733, %v730
        %v821 = vpack.c.b16 %v734, %v731
        %v822 = vpack.c.b16 %v738, %v735
        %v823 = vpack.c.b16 %v739, %v736
        %v824 = vpack.c.b16 %v740, %v737
        %v825 = vpack.c.b16 %v744, %v741
        %v826 = vpack.c.b16 %v745, %v742
        %v827 = vpack.c.b16 %v746, %v743
        %v828 = vpack.c.b16 %v750, %v747
        %v829 = vpack.c.b16 %v751, %v748
        %v830 = vpack.c.b16 %v752, %v749
        %v831 = vpack.c.b16 %v756, %v753
        %v832 = vpack.c.b16 %v757, %v754
        %v833 = vpack.c.b16 %v758, %v755
        %v834 = vpack.c.b16 %v762, %v759
        %v835 = vpack.c.b16 %v763, %v760
        %v836 = vpack.c.b16 %v764, %v761
        %v837 = vpack.c.b16 %v768, %v765
        %v838 = vpack.c.b16 %v769, %v766
        %v839 = vpack.c.b16 %v770, %v767
        %v840 = vpack.c.b16 %v774, %v771
        %v841 = vpack.c.b16 %v775, %v772
        %v842 = vpack.c.b16 %v776, %v773
        %v843 = vpack.c.b16 %v780, %v777
        %v844 = vpack.c.b16 %v781, %v778
        %v845 = vpack.c.b16 %v782, %v779
        %v846 = vpack.c.b16 %v786, %v783
        %v847 = vpack.c.b16 %v787, %v784
        %v848 = vpack.c.b16 %v788, %v785
        %v910 = vsel %vm468, %v488, 0
        %v913 = vsel %vm468, %v491, 0
        %915 = vmatprep.subr.bf16.mxu0 %v790
        %916 = vmatpush1.bf16.msra.mxu0 %v789
        %917 = vmatprep.subr.bf16.mxu0 %v793
        %918 = vmatpush1.bf16.msra.mxu0 %v792
        %919 = vmatprep.subr.bf16.mxu0 %v796
        %920 = vmatpush1.bf16.msra.mxu0 %v795
        %921 = vmatprep.subr.bf16.mxu0 %v799
        %922 = vmatpush1.bf16.msra.mxu0 %v798
        %923 = vmatprep.subr.bf16.mxu0 %v802
        %924 = vmatpush1.bf16.msra.mxu0 %v801
        %925 = vmatprep.subr.bf16.mxu0 %v805
        %926 = vmatpush1.bf16.msra.mxu0 %v804
        %927 = vmatprep.subr.bf16.mxu0 %v808
        %928 = vmatpush1.bf16.msra.mxu0 %v807
        %929 = vmatprep.subr.bf16.mxu0 %v811
        %930 = vmatpush1.bf16.msra.mxu0 %v810
        %931 = vmatprep.subr.bf16.mxu0 %v814
        %932 = vmatpush1.bf16.msra.mxu0 %v813
        %933 = vmatprep.subr.bf16.mxu0 %v817
        %934 = vmatpush1.bf16.msra.mxu0 %v816
        %935 = vmatprep.subr.bf16.mxu0 %v820
        %936 = vmatpush1.bf16.msra.mxu0 %v819
        %937 = vmatprep.subr.bf16.mxu0 %v823
        %938 = vmatpush1.bf16.msra.mxu0 %v822
        %939 = vmatprep.subr.bf16.mxu0 %v826
        %940 = vmatpush1.bf16.msra.mxu0 %v825
        %941 = vmatprep.subr.bf16.mxu0 %v829
        %942 = vmatpush1.bf16.msra.mxu0 %v828
        %943 = vmatprep.subr.bf16.mxu0 %v832
        %944 = vmatpush1.bf16.msra.mxu0 %v831
        %945 = vmatprep.subr.bf16.mxu0 %v835
        %946 = vmatpush1.bf16.msra.mxu0 %v834
        %947 = vmatprep.mubr.bf16.mxu0 %v487
        %948 = vmatmul.mubr.bf16.gmra.mrb[0].mxu0 %v486
        %v949 = vpop.f32.mrb[0].mxu0
        %v950 = vadd.f32 %v577, %v949
        %v951 = vpop.f32.mrb[0].mxu0
        %v952 = vadd.f32 %v581, %v951
        %v953 = vpop.f32.mrb[0].mxu0
        %v954 = vadd.f32 %v577, %v953
        %v955 = vpop.f32.mrb[0].mxu0
        %v956 = vadd.f32 %v581, %v955
        %957 = vmatprep.mubr.bf16.mxu0 %v490
        %958 = vmatmul.mubr.bf16.gmra.mrb[0].mxu0 %v489
        %v959 = vpop.f32.mrb[0].mxu0
        %v960 = vadd.f32 %v577, %v959
        %v961 = vpop.f32.mrb[0].mxu0
        %v962 = vadd.f32 %v581, %v961
        %v963 = vpop.f32.mrb[0].mxu0
        %v964 = vadd.f32 %v577, %v963
        %v965 = vpop.f32.mrb[0].mxu0
        %v966 = vadd.f32 %v581, %v965
        %967 = vdwg.mxu0
        %968 = vmatprep.subr.bf16.mxu0 %v838
        %969 = vmatpush1.bf16.msra.mxu0 %v837
        %970 = vmatprep.subr.bf16.mxu0 %v841
        %971 = vmatpush1.bf16.msra.mxu0 %v840
        %972 = vmatprep.subr.bf16.mxu0 %v844
        %973 = vmatpush1.bf16.msra.mxu0 %v843
        %974 = vmatprep.subr.bf16.mxu0 %v847
        %975 = vmatpush1.bf16.msra.mxu0 %v846
        %976 = vmatprep.subr.bf16.mxu0 0
        %977 = vmatpush1.bf16.msra.mxu0 0
        %978 = vmatprep.subr.bf16.mxu0 0
        %979 = vmatpush1.bf16.msra.mxu0 0
        %980 = vmatprep.subr.bf16.mxu0 0
        %981 = vmatpush1.bf16.msra.mxu0 0
        %982 = vmatprep.subr.bf16.mxu0 0
        %983 = vmatpush1.bf16.msra.mxu0 0
        %984 = vmatprep.subr.bf16.mxu0 0
        %985 = vmatpush1.bf16.msra.mxu0 0
        %986 = vmatprep.subr.bf16.mxu0 0
        %987 = vmatpush1.bf16.msra.mxu0 0
        %988 = vmatprep.subr.bf16.mxu0 0
        %989 = vmatpush1.bf16.msra.mxu0 0
        %990 = vmatprep.subr.bf16.mxu0 0
        %991 = vmatpush1.bf16.msra.mxu0 0
        %992 = vmatprep.subr.bf16.mxu0 0
        %993 = vmatpush1.bf16.msra.mxu0 0
        %994 = vmatprep.subr.bf16.mxu0 0
        %995 = vmatpush1.bf16.msra.mxu0 0
        %996 = vmatprep.subr.bf16.mxu0 0
        %997 = vmatpush1.bf16.msra.mxu0 0
        %998 = vmatprep.subr.bf16.mxu0 0
        %999 = vmatpush1.bf16.msra.mxu0 0
        %1000 = vmatprep.mubr.bf16.mxu0 0
        %1001 = vmatmul.mubr.bf16.gmra.mrb[0].mxu0 %v910
        %v1002 = vpop.f32.mrb[0].mxu0
        %v1003 = vadd.f32 %v950, %v1002
        %v1004 = vpop.f32.mrb[0].mxu0
        %v1005 = vadd.f32 %v952, %v1004
        %v1006 = vpop.f32.mrb[0].mxu0
        %v1007 = vadd.f32 %v954, %v1006
        %v1008 = vpop.f32.mrb[0].mxu0
        %v1009 = vadd.f32 %v956, %v1008
        %1010 = vmatprep.mubr.bf16.mxu0 0
        %1011 = vmatmul.mubr.bf16.gmra.mrb[0].mxu0 %v913
        %v1012 = vpop.f32.mrb[0].mxu0
        %v1013 = vadd.f32 %v960, %v1012
        %v1014 = vpop.f32.mrb[0].mxu0
        %v1015 = vadd.f32 %v962, %v1014
        %v1016 = vpop.f32.mrb[0].mxu0
        %v1017 = vadd.f32 %v964, %v1016
        %v1018 = vpop.f32.mrb[0].mxu0
        %v1019 = vadd.f32 %v966, %v1018
        %1020 = vdwg.mxu0
        %1021 = vmatprep.subr.bf16.mxu0 0
        %1022 = vmatpush1.bf16.msra.mxu0 %v791
        %1023 = vmatprep.subr.bf16.mxu0 0
        %1024 = vmatpush1.bf16.msra.mxu0 %v794
        %1025 = vmatprep.subr.bf16.mxu0 0
        %1026 = vmatpush1.bf16.msra.mxu0 %v797
        %1027 = vmatprep.subr.bf16.mxu0 0
        %1028 = vmatpush1.bf16.msra.mxu0 %v800
        %1029 = vmatprep.subr.bf16.mxu0 0
        %1030 = vmatpush1.bf16.msra.mxu0 %v803
        %1031 = vmatprep.subr.bf16.mxu0 0
        %1032 = vmatpush1.bf16.msra.mxu0 %v806
        %1033 = vmatprep.subr.bf16.mxu0 0
        %1034 = vmatpush1.bf16.msra.mxu0 %v809
        %1035 = vmatprep.subr.bf16.mxu0 0
        %1036 = vmatpush1.bf16.msra.mxu0 %v812
        %1037 = vmatprep.subr.bf16.mxu0 0
        %1038 = vmatpush1.bf16.msra.mxu0 %v815
        %1039 = vmatprep.subr.bf16.mxu0 0
        %1040 = vmatpush1.bf16.msra.mxu0 %v818
        %1041 = vmatprep.subr.bf16.mxu0 0
        %1042 = vmatpush1.bf16.msra.mxu0 %v821
        %1043 = vmatprep.subr.bf16.mxu0 0
        %1044 = vmatpush1.bf16.msra.mxu0 %v824
        %1045 = vmatprep.subr.bf16.mxu0 0
        %1046 = vmatpush1.bf16.msra.mxu0 %v827
        %1047 = vmatprep.subr.bf16.mxu0 0
        %1048 = vmatpush1.bf16.msra.mxu0 %v830
        %1049 = vmatprep.subr.bf16.mxu0 0
        %1050 = vmatpush1.bf16.msra.mxu0 %v833
        %1051 = vmatprep.subr.bf16.mxu0 0
        %1052 = vmatpush1.bf16.msra.mxu0 %v836
        %1053 = vmatprep.mubr.bf16.mxu0 %v487
        %1054 = vmatmul.mubr.bf16.gmra.mrb[0].mxu0 %v486
        %v1055 = vpop.f32.mrb[0].mxu0
        %v1056 = vadd.f32 %v585, %v1055
        %v1057 = vpop.f32.mrb[0].mxu0
        %v1058 = vpop.f32.mrb[0].mxu0
        %v1059 = vadd.f32 %v585, %v1058
        %v1060 = vpop.f32.mrb[0].mxu0
        %1061 = vmatprep.mubr.bf16.mxu0 %v490
        %1062 = vmatmul.mubr.bf16.gmra.mrb[0].mxu0 %v489
        %v1063 = vpop.f32.mrb[0].mxu0
        %v1064 = vadd.f32 %v585, %v1063
        %v1065 = vpop.f32.mrb[0].mxu0
        %v1066 = vpop.f32.mrb[0].mxu0
        %v1067 = vadd.f32 %v585, %v1066
        %v1068 = vpop.f32.mrb[0].mxu0
        %1069 = vdwg.mxu0
        %1070 = vmatprep.subr.bf16.mxu0 0
        %1071 = vmatpush1.bf16.msra.mxu0 %v839
        %1072 = vmatprep.subr.bf16.mxu0 0
        %1073 = vmatpush1.bf16.msra.mxu0 %v842
        %1074 = vmatprep.subr.bf16.mxu0 0
        %1075 = vmatpush1.bf16.msra.mxu0 %v845
        %1076 = vmatprep.subr.bf16.mxu0 0
        %1077 = vmatpush1.bf16.msra.mxu0 %v848
        %1078 = vmatprep.subr.bf16.mxu0 0
        %1079 = vmatpush1.bf16.msra.mxu0 0
        %1080 = vmatprep.subr.bf16.mxu0 0
        %1081 = vmatpush1.bf16.msra.mxu0 0
        %1082 = vmatprep.subr.bf16.mxu0 0
        %1083 = vmatpush1.bf16.msra.mxu0 0
        %1084 = vmatprep.subr.bf16.mxu0 0
        %1085 = vmatpush1.bf16.msra.mxu0 0
        %1086 = vmatprep.subr.bf16.mxu0 0
        %1087 = vmatpush1.bf16.msra.mxu0 0
        %1088 = vmatprep.subr.bf16.mxu0 0
        %1089 = vmatpush1.bf16.msra.mxu0 0
        %1090 = vmatprep.subr.bf16.mxu0 0
        %1091 = vmatpush1.bf16.msra.mxu0 0
        %1092 = vmatprep.subr.bf16.mxu0 0
        %1093 = vmatpush1.bf16.msra.mxu0 0
        %1094 = vmatprep.subr.bf16.mxu0 0
        %1095 = vmatpush1.bf16.msra.mxu0 0
        %1096 = vmatprep.subr.bf16.mxu0 0
        %1097 = vmatpush1.bf16.msra.mxu0 0
        %1098 = vmatprep.subr.bf16.mxu0 0
        %1099 = vmatpush1.bf16.msra.mxu0 0
        %1100 = vmatprep.subr.bf16.mxu0 0
        %1101 = vmatpush1.bf16.msra.mxu0 0
        %1102 = vmatprep.mubr.bf16.mxu0 0
        %1103 = vmatmul.mubr.bf16.gmra.mrb[0].mxu0 %v910
        %v1104 = vpop.f32.mrb[0].mxu0
        %v1105 = vadd.f32 %v1056, %v1104
        %v1106 = vpop.f32.mrb[0].mxu0
        %v1107 = vpop.f32.mrb[0].mxu0
        %v1108 = vadd.f32 %v1059, %v1107
        %v1109 = vpop.f32.mrb[0].mxu0
        %1110 = vmatprep.mubr.bf16.mxu0 0
        %1111 = vmatmul.mubr.bf16.gmra.mrb[0].mxu0 %v913
        %v1112 = vpop.f32.mrb[0].mxu0
        %v1113 = vadd.f32 %v1064, %v1112
        %v1114 = vpop.f32.mrb[0].mxu0
        %v1115 = vpop.f32.mrb[0].mxu0
        %v1116 = vadd.f32 %v1067, %v1115
        %v1117 = vpop.f32.mrb[0].mxu0
        %1118 = vdwg.mxu0
        %v1119 = vtanh.pop %v1003
        %v1120 = vtanh.pop %v1005
        %v1121 = vtanh.pop %v1007
        %v1122 = vtanh.pop %v1009
        %v1123 = vtanh.pop %v1013
        %v1124 = vtanh.pop %v1015
        %v1125 = vtanh.pop %v1017
        %v1126 = vtanh.pop %v1019
        %v1127 = vxor.u32 %v1005, 2147483648
        %v1128 = vxor.u32 %v1105, 2147483648
        %v1129 = vxor.u32 %v1009, 2147483648
        %v1130 = vxor.u32 %v1108, 2147483648
        %v1131 = vxor.u32 %v1015, 2147483648
        %v1132 = vxor.u32 %v1113, 2147483648
        %v1133 = vxor.u32 %v1019, 2147483648
        %v1134 = vxor.u32 %v1116, 2147483648
        %v1135 = vmul.f32 %v1127, 1.442695
        %v1136 = vpow.pop %v1135
        %v1137 = vmul.f32 %v1128, 1.442695
        %v1138 = vpow.pop %v1137
        %v1139 = vmul.f32 %v1129, 1.442695
        %v1140 = vpow.pop %v1139
        %v1141 = vmul.f32 %v1130, 1.442695
        %v1142 = vpow.pop %v1141
        %v1143 = vmul.f32 %v1131, 1.442695
        %v1144 = vpow.pop %v1143
        %v1145 = vmul.f32 %v1132, 1.442695
        %v1146 = vpow.pop %v1145
        %v1147 = vmul.f32 %v1133, 1.442695
        %v1148 = vpow.pop %v1147
        %v1149 = vmul.f32 %v1134, 1.442695
        %v1150 = vpow.pop %v1149
        %v1151 = vadd.f32 %v1136, 1.0
        %v1152 = vadd.f32 %v1138, 1.0
        %v1153 = vadd.f32 %v1140, 1.0
        %v1154 = vadd.f32 %v1142, 1.0
        %v1155 = vadd.f32 %v1144, 1.0
        %v1156 = vadd.f32 %v1146, 1.0
        %v1157 = vadd.f32 %v1148, 1.0
        %v1158 = vadd.f32 %v1150, 1.0
        %v1159 = vrcp.pop %v1151
        %v1160 = vmul.f32 1.0, %v1159
        %v1161 = vrcp.pop %v1152
        %v1162 = vmul.f32 1.0, %v1161
        %v1163 = vrcp.pop %v1153
        %v1164 = vmul.f32 1.0, %v1163
        %v1165 = vrcp.pop %v1154
        %v1166 = vmul.f32 1.0, %v1165
        %v1167 = vrcp.pop %v1155
        %v1168 = vmul.f32 1.0, %v1167
        %v1169 = vrcp.pop %v1156
        %v1170 = vmul.f32 1.0, %v1169
        %v1171 = vrcp.pop %v1157
        %v1172 = vmul.f32 1.0, %v1171
        %v1173 = vrcp.pop %v1158
        %v1174 = vmul.f32 1.0, %v1173
        %1183 = vrot.lane.b32.xlu0 %v1160, 96
        %v1184 = vpop.permute.xlu0 %1183
        %1185 = vrot.lane.b32.xlu0 %v1162, 96
        %v1186 = vpop.permute.xlu0 %1185
        %1187 = vrot.lane.b32.xlu0 %v1164, 96
        %v1188 = vpop.permute.xlu0 %1187
        %1189 = vrot.lane.b32.xlu0 %v1166, 96
        %v1190 = vpop.permute.xlu0 %1189
        %1191 = vrot.lane.b32.xlu0 %v1168, 96
        %v1192 = vpop.permute.xlu0 %1191
        %1193 = vrot.lane.b32.xlu0 %v1170, 96
        %v1194 = vpop.permute.xlu0 %1193
        %1195 = vrot.lane.b32.xlu0 %v1172, 96
        %v1196 = vpop.permute.xlu0 %1195
        %1197 = vrot.lane.b32.xlu0 %v1174, 96
        %v1198 = vpop.permute.xlu0 %1197
        %vm1199 = vcmask 785408
        %v1200 = vsel %vm1199, %v1184, %v1186
        %v1201 = vsel %vm1199, %v1188, %v1190
        %v1202 = vsel %vm1199, %v1192, %v1194
        %v1203 = vsel %vm1199, %v1196, %v1198
        %v1212 = vmul.f32 %v1119, %v1200
        %v1213 = vmul.f32 %v1120, %v1186
        %v1214 = vmul.f32 %v1121, %v1201
        %v1215 = vmul.f32 %v1122, %v1190
        %v1216 = vmul.f32 %v1123, %v1202
        %v1217 = vmul.f32 %v1124, %v1194
        %v1218 = vmul.f32 %v1125, %v1203
        %v1219 = vmul.f32 %v1126, %v1198
        %v1220 = vld [vmem:[#allocation7] sm:$0xf]
        %v1221 = vld [vmem:[#allocation7 + $0x4] sm:$0xf]
        %v1222 = vld [vmem:[#allocation7 + $0x8] sm:$0xf]
        %v1223 = vld [vmem:[#allocation7 + $0xc] sm:$0xf]
        %v1224 = vld [vmem:[#allocation10] sm:$0xff]
        %v1225 = vld [vmem:[#allocation10 + $0x8] sm:$0xf]
        %v1226 = vld [vmem:[#allocation10 + $0xc] sm:$0xff]
        %v1227 = vld [vmem:[#allocation10 + $0x14] sm:$0xf]
        %v1228 = vld [vmem:[#allocation10 + $0x18] sm:$0xff]
        %v1229 = vld [vmem:[#allocation10 + $0x20] sm:$0xf]
        %v1230 = vld [vmem:[#allocation10 + $0x24] sm:$0xff]
        %v1231 = vld [vmem:[#allocation10 + $0x2c] sm:$0xf]
        %v1232 = vld [vmem:[#allocation10 + $0x30] sm:$0xff]
        %v1233 = vld [vmem:[#allocation10 + $0x38] sm:$0xf]
        %v1234 = vld [vmem:[#allocation10 + $0x3c] sm:$0xff]
        %v1235 = vld [vmem:[#allocation10 + $0x44] sm:$0xf]
        %v1236 = vld [vmem:[#allocation10 + $0x48] sm:$0xff]
        %v1237 = vld [vmem:[#allocation10 + $0x50] sm:$0xf]
        %v1238 = vld [vmem:[#allocation10 + $0x54] sm:$0xff]
        %v1239 = vld [vmem:[#allocation10 + $0x5c] sm:$0xf]
        %v1240 = vld [vmem:[#allocation10 + $0x60] sm:$0xff]
        %v1241 = vld [vmem:[#allocation10 + $0x68] sm:$0xf]
        %v1242 = vld [vmem:[#allocation10 + $0x6c] sm:$0xff]
        %v1243 = vld [vmem:[#allocation10 + $0x74] sm:$0xf]
        %v1244 = vld [vmem:[#allocation10 + $0x78] sm:$0xff]
        %v1245 = vld [vmem:[#allocation10 + $0x80] sm:$0xf]
        %v1246 = vld [vmem:[#allocation10 + $0x84] sm:$0xff]
        %v1247 = vld [vmem:[#allocation10 + $0x8c] sm:$0xf]
        %v1248 = vld [vmem:[#allocation10 + $0x90] sm:$0xff]
        %v1249 = vld [vmem:[#allocation10 + $0x98] sm:$0xf]
        %v1250 = vld [vmem:[#allocation10 + $0x9c] sm:$0xff]
        %v1251 = vld [vmem:[#allocation10 + $0xa4] sm:$0xf]
        %v1252 = vld [vmem:[#allocation10 + $0xa8] sm:$0xff]
        %v1253 = vld [vmem:[#allocation10 + $0xb0] sm:$0xf]
        %v1254 = vld [vmem:[#allocation10 + $0xb4] sm:$0xff]
        %v1255 = vld [vmem:[#allocation10 + $0xbc] sm:$0xf]
        %v1256 = vld [vmem:[#allocation10 + $0xc0] sm:$0xff]
        %v1257 = vld [vmem:[#allocation10 + $0xc8] sm:$0xf]
        %v1258 = vld [vmem:[#allocation10 + $0xcc] sm:$0xff]
        %v1259 = vld [vmem:[#allocation10 + $0xd4] sm:$0xf]
        %v1260 = vld [vmem:[#allocation10 + $0xd8] sm:$0xff]
        %v1261 = vld [vmem:[#allocation10 + $0xe0] sm:$0xf]
        %v1262 = vld [vmem:[#allocation10 + $0xe4] sm:$0xff]
        %v1263 = vld [vmem:[#allocation10 + $0xec] sm:$0xf]
        %v1264 = vld [vmem:[%s6] sm:$0x7]
        %v1265 = vpack.c.bf16 %v436, %v436
        %v1266 = vpack.c.bf16 %v437, %v437
        %v1271 = vunpack.c.l.b16 %v1220
        %v1272 = vunpack.c.l.b16 %v1221
        %v1273 = vunpack.c.l.b16 %v1222
        %v1274 = vunpack.c.l.b16 %v1223
        %v1275 = vpack.c.b16 %v1272, %v1271
        %v1276 = vpack.c.b16 %v1274, %v1273
        %1277 = vrot.lane.b32.xlu0 %v1275, 120
        %v1278 = vpop.permute.xlu0 %1277
        %1279 = vrot.lane.b32.xlu0 %v1276, 120
        %v1280 = vpop.permute.xlu0 %1279
        %1283 = vrot.lane.b32.xlu0 %v1265, 96
        %v1284 = vpop.permute.xlu0 %1283
        %1285 = vrot.lane.b32.xlu0 %v1266, 96
        %v1286 = vpop.permute.xlu0 %1285
        %vm1287 = vcmask 785408
        %v1288 = vsel %vm1287, %v1284, %v1286
        %vm1289 = vcmask 64512
        %v1291 = vsel %vm1289, %v1278, 0
        %v1294 = vsel %vm1289, %v1280, 0
        %vm1296 = vcmask 1043456
        %v1298 = vsel %vm1296, %v1288, 0
        %v1301 = vsel %vm1296, %v1286, 0
        %1303 = vmatprep.subr.bf16.mxu0 %v1301
        %1304 = vmatpush1.bf16.msra.mxu0 %v1298
        %1305 = vmatprep.subr.bf16.mxu0 0
        %1306 = vmatpush1.bf16.msra.mxu0 0
        %1307 = vmatprep.subr.bf16.mxu0 0
        %1308 = vmatpush1.bf16.msra.mxu0 0
        %1309 = vmatprep.subr.bf16.mxu0 0
        %1310 = vmatpush1.bf16.msra.mxu0 0
        %1311 = vmatprep.subr.bf16.mxu0 0
        %1312 = vmatpush1.bf16.msra.mxu0 0
        %1313 = vmatprep.subr.bf16.mxu0 0
        %1314 = vmatpush1.bf16.msra.mxu0 0
        %1315 = vmatprep.subr.bf16.mxu0 0
        %1316 = vmatpush1.bf16.msra.mxu0 0
        %1317 = vmatprep.subr.bf16.mxu0 0
        %1318 = vmatpush1.bf16.msra.mxu0 0
        %1319 = vmatprep.subr.bf16.mxu0 0
        %1320 = vmatpush1.bf16.msra.mxu0 0
        %1321 = vmatprep.subr.bf16.mxu0 0
        %1322 = vmatpush1.bf16.msra.mxu0 0
        %1323 = vmatprep.subr.bf16.mxu0 0
        %1324 = vmatpush1.bf16.msra.mxu0 0
        %1325 = vmatprep.subr.bf16.mxu0 0
        %1326 = vmatpush1.bf16.msra.mxu0 0
        %1327 = vmatprep.subr.bf16.mxu0 0
        %1328 = vmatpush1.bf16.msra.mxu0 0
        %1329 = vmatprep.subr.bf16.mxu0 0
        %1330 = vmatpush1.bf16.msra.mxu0 0
        %1331 = vmatprep.subr.bf16.mxu0 0
        %1332 = vmatpush1.bf16.msra.mxu0 0
        %1333 = vmatprep.subr.bf16.mxu0 0
        %1334 = vmatpush1.bf16.msra.mxu0 0
        %1335 = vmatprep.mubr.bf16.mxu0 0
        %1336 = vmatmul.mubr.bf16.gmra.mrb[0].mxu0 %v1291
        %v1337 = vpop.f32.mrb[0].mxu0
        %v1338 = vadd.f32 0.0, %v1337
        %v1339 = vpop.f32.mrb[0].mxu0
        %v1340 = vadd.f32 0.0, %v1339
        %v1341 = vpop.f32.mrb[0].mxu0
        %v1342 = vadd.f32 0.0, %v1341
        %v1343 = vpop.f32.mrb[0].mxu0
        %v1344 = vadd.f32 0.0, %v1343
        %1345 = vmatprep.mubr.bf16.mxu0 0
        %1346 = vmatmul.mubr.bf16.gmra.mrb[0].mxu0 %v1294
        %v1347 = vpop.f32.mrb[0].mxu0
        %v1348 = vadd.f32 0.0, %v1347
        %v1349 = vpop.f32.mrb[0].mxu0
        %v1350 = vadd.f32 0.0, %v1349
        %v1351 = vpop.f32.mrb[0].mxu0
        %v1352 = vadd.f32 0.0, %v1351
        %v1353 = vpop.f32.mrb[0].mxu0
        %v1354 = vadd.f32 0.0, %v1353
        %1355 = vdwg.mxu0
        %v1357 = vsel %vm1289, %v1275, 0
        %v1360 = vsel %vm1289, %v1276, 0
        %v1363 = vsel %vm1296, %v1265, 0
        %v1366 = vsel %vm1296, %v1266, 0
        %1368 = vmatprep.subr.bf16.mxu0 %v1366
        %1369 = vmatpush1.bf16.msra.mxu0 %v1363
        %1370 = vmatprep.subr.bf16.mxu0 0
        %1371 = vmatpush1.bf16.msra.mxu0 0
        %1372 = vmatprep.subr.bf16.mxu0 0
        %1373 = vmatpush1.bf16.msra.mxu0 0
        %1374 = vmatprep.subr.bf16.mxu0 0
        %1375 = vmatpush1.bf16.msra.mxu0 0
        %1376 = vmatprep.subr.bf16.mxu0 0
        %1377 = vmatpush1.bf16.msra.mxu0 0
        %1378 = vmatprep.subr.bf16.mxu0 0
        %1379 = vmatpush1.bf16.msra.mxu0 0
        %1380 = vmatprep.subr.bf16.mxu0 0
        %1381 = vmatpush1.bf16.msra.mxu0 0
        %1382 = vmatprep.subr.bf16.mxu0 0
        %1383 = vmatpush1.bf16.msra.mxu0 0
        %1384 = vmatprep.subr.bf16.mxu0 0
        %1385 = vmatpush1.bf16.msra.mxu0 0
        %1386 = vmatprep.subr.bf16.mxu0 0
        %1387 = vmatpush1.bf16.msra.mxu0 0
        %1388 = vmatprep.subr.bf16.mxu0 0
        %1389 = vmatpush1.bf16.msra.mxu0 0
        %1390 = vmatprep.subr.bf16.mxu0 0
        %1391 = vmatpush1.bf16.msra.mxu0 0
        %1392 = vmatprep.subr.bf16.mxu0 0
        %1393 = vmatpush1.bf16.msra.mxu0 0
        %1394 = vmatprep.subr.bf16.mxu0 0
        %1395 = vmatpush1.bf16.msra.mxu0 0
        %1396 = vmatprep.subr.bf16.mxu0 0
        %1397 = vmatpush1.bf16.msra.mxu0 0
        %1398 = vmatprep.subr.bf16.mxu0 0
        %1399 = vmatpush1.bf16.msra.mxu0 0
        %1400 = vmatprep.mubr.bf16.mxu0 0
        %1401 = vmatmul.mubr.bf16.gmra.mrb[0].mxu0 %v1357
        %v1402 = vpop.f32.mrb[0].mxu0
        %v1403 = vadd.f32 %v1338, %v1402
        %v1404 = vpop.f32.mrb[0].mxu0
        %v1405 = vadd.f32 %v1340, %v1404
        %v1406 = vpop.f32.mrb[0].mxu0
        %v1407 = vadd.f32 %v1342, %v1406
        %v1408 = vpop.f32.mrb[0].mxu0
        %v1409 = vadd.f32 %v1344, %v1408
        %1410 = vmatprep.mubr.bf16.mxu0 0
        %1411 = vmatmul.mubr.bf16.gmra.mrb[0].mxu0 %v1360
        %v1412 = vpop.f32.mrb[0].mxu0
        %v1413 = vadd.f32 %v1348, %v1412
        %v1414 = vpop.f32.mrb[0].mxu0
        %v1415 = vadd.f32 %v1350, %v1414
        %v1416 = vpop.f32.mrb[0].mxu0
        %v1417 = vadd.f32 %v1352, %v1416
        %v1418 = vpop.f32.mrb[0].mxu0
        %v1419 = vadd.f32 %v1354, %v1418
        %1420 = vdwg.mxu0
        %1421 = vrot.lane.b32.xlu0 %v1275, 112
        %v1422 = vpop.permute.xlu0 %1421
        %1423 = vrot.lane.b32.xlu0 %v1276, 112
        %v1424 = vpop.permute.xlu0 %1423
        %1425 = vrot.lane.b32.xlu0 %v1265, 64
        %v1426 = vpop.permute.xlu0 %1425
        %1427 = vrot.lane.b32.xlu0 %v1266, 64
        %v1428 = vpop.permute.xlu0 %1427
        %vm1429 = vcmask 523264
        %v1430 = vsel %vm1429, %v1426, %v1428
        %v1432 = vsel %vm1289, %v1422, 0
        %v1435 = vsel %vm1289, %v1424, 0
        %v1438 = vsel %vm1296, %v1430, 0
        %v1441 = vsel %vm1296, %v1428, 0
        %1443 = vmatprep.subr.bf16.mxu0 %v1441
        %1444 = vmatpush1.bf16.msra.mxu0 %v1438
        %1445 = vmatprep.subr.bf16.mxu0 0
        %1446 = vmatpush1.bf16.msra.mxu0 0
        %1447 = vmatprep.subr.bf16.mxu0 0
        %1448 = vmatpush1.bf16.msra.mxu0 0
        %1449 = vmatprep.subr.bf16.mxu0 0
        %1450 = vmatpush1.bf16.msra.mxu0 0
        %1451 = vmatprep.subr.bf16.mxu0 0
        %1452 = vmatpush1.bf16.msra.mxu0 0
        %1453 = vmatprep.subr.bf16.mxu0 0
        %1454 = vmatpush1.bf16.msra.mxu0 0
        %1455 = vmatprep.subr.bf16.mxu0 0
        %1456 = vmatpush1.bf16.msra.mxu0 0
        %1457 = vmatprep.subr.bf16.mxu0 0
        %1458 = vmatpush1.bf16.msra.mxu0 0
        %1459 = vmatprep.subr.bf16.mxu0 0
        %1460 = vmatpush1.bf16.msra.mxu0 0
        %1461 = vmatprep.subr.bf16.mxu0 0
        %1462 = vmatpush1.bf16.msra.mxu0 0
        %1463 = vmatprep.subr.bf16.mxu0 0
        %1464 = vmatpush1.bf16.msra.mxu0 0
        %1465 = vmatprep.subr.bf16.mxu0 0
        %1466 = vmatpush1.bf16.msra.mxu0 0
        %1467 = vmatprep.subr.bf16.mxu0 0
        %1468 = vmatpush1.bf16.msra.mxu0 0
        %1469 = vmatprep.subr.bf16.mxu0 0
        %1470 = vmatpush1.bf16.msra.mxu0 0
        %1471 = vmatprep.subr.bf16.mxu0 0
        %1472 = vmatpush1.bf16.msra.mxu0 0
        %1473 = vmatprep.subr.bf16.mxu0 0
        %1474 = vmatpush1.bf16.msra.mxu0 0
        %1475 = vmatprep.mubr.bf16.mxu0 0
        %1476 = vmatmul.mubr.bf16.gmra.mrb[0].mxu0 %v1432
        %v1477 = vpop.f32.mrb[0].mxu0
        %v1478 = vadd.f32 0.0, %v1477
        %v1479 = vpop.f32.mrb[0].mxu0
        %v1480 = vadd.f32 0.0, %v1479
        %v1481 = vpop.f32.mrb[0].mxu0
        %v1482 = vadd.f32 0.0, %v1481
        %v1483 = vpop.f32.mrb[0].mxu0
        %v1484 = vadd.f32 0.0, %v1483
        %1485 = vmatprep.mubr.bf16.mxu0 0
        %1486 = vmatmul.mubr.bf16.gmra.mrb[0].mxu0 %v1435
        %v1487 = vpop.f32.mrb[0].mxu0
        %v1488 = vadd.f32 0.0, %v1487
        %v1489 = vpop.f32.mrb[0].mxu0
        %v1490 = vadd.f32 0.0, %v1489
        %v1491 = vpop.f32.mrb[0].mxu0
        %v1492 = vadd.f32 0.0, %v1491
        %v1493 = vpop.f32.mrb[0].mxu0
        %v1494 = vadd.f32 0.0, %v1493
        %1495 = vdwg.mxu0
        %v1496 = vadd.f32 %v1403, %v1478
        %v1497 = vadd.f32 %v1405, %v1480
        %v1498 = vadd.f32 %v1407, %v1482
        %v1499 = vadd.f32 %v1409, %v1484
        %v1500 = vadd.f32 %v1413, %v1488
        %v1501 = vadd.f32 %v1415, %v1490
        %v1502 = vadd.f32 %v1417, %v1492
        %v1503 = vadd.f32 %v1419, %v1494
        %1504 = vrot.lane.b32.xlu0 %v1275, 104
        %v1505 = vpop.permute.xlu0 %1504
        %1506 = vrot.lane.b32.xlu0 %v1276, 104
        %v1507 = vpop.permute.xlu0 %1506
        %1508 = vrot.lane.b32.xlu0 %v1265, 32
        %v1509 = vpop.permute.xlu0 %1508
        %1510 = vrot.lane.b32.xlu0 %v1266, 32
        %v1511 = vpop.permute.xlu0 %1510
        %vm1512 = vcmask 261120
        %v1513 = vsel %vm1512, %v1509, %v1511
        %v1515 = vsel %vm1289, %v1505, 0
        %v1518 = vsel %vm1289, %v1507, 0
        %v1521 = vsel %vm1296, %v1513, 0
        %v1524 = vsel %vm1296, %v1511, 0
        %1526 = vmatprep.subr.bf16.mxu0 %v1524
        %1527 = vmatpush1.bf16.msra.mxu0 %v1521
        %1528 = vmatprep.subr.bf16.mxu0 0
        %1529 = vmatpush1.bf16.msra.mxu0 0
        %1530 = vmatprep.subr.bf16.mxu0 0
        %1531 = vmatpush1.bf16.msra.mxu0 0
        %1532 = vmatprep.subr.bf16.mxu0 0
        %1533 = vmatpush1.bf16.msra.mxu0 0
        %1534 = vmatprep.subr.bf16.mxu0 0
        %1535 = vmatpush1.bf16.msra.mxu0 0
        %1536 = vmatprep.subr.bf16.mxu0 0
        %1537 = vmatpush1.bf16.msra.mxu0 0
        %1538 = vmatprep.subr.bf16.mxu0 0
        %1539 = vmatpush1.bf16.msra.mxu0 0
        %1540 = vmatprep.subr.bf16.mxu0 0
        %1541 = vmatpush1.bf16.msra.mxu0 0
        %1542 = vmatprep.subr.bf16.mxu0 0
        %1543 = vmatpush1.bf16.msra.mxu0 0
        %1544 = vmatprep.subr.bf16.mxu0 0
        %1545 = vmatpush1.bf16.msra.mxu0 0
        %1546 = vmatprep.subr.bf16.mxu0 0
        %1547 = vmatpush1.bf16.msra.mxu0 0
        %1548 = vmatprep.subr.bf16.mxu0 0
        %1549 = vmatpush1.bf16.msra.mxu0 0
        %1550 = vmatprep.subr.bf16.mxu0 0
        %1551 = vmatpush1.bf16.msra.mxu0 0
        %1552 = vmatprep.subr.bf16.mxu0 0
        %1553 = vmatpush1.bf16.msra.mxu0 0
        %1554 = vmatprep.subr.bf16.mxu0 0
        %1555 = vmatpush1.bf16.msra.mxu0 0
        %1556 = vmatprep.subr.bf16.mxu0 0
        %1557 = vmatpush1.bf16.msra.mxu0 0
        %1558 = vmatprep.mubr.bf16.mxu0 0
        %1559 = vmatmul.mubr.bf16.gmra.mrb[0].mxu0 %v1515
        %v1560 = vpop.f32.mrb[0].mxu0
        %v1561 = vadd.f32 0.0, %v1560
        %v1562 = vpop.f32.mrb[0].mxu0
        %v1563 = vadd.f32 0.0, %v1562
        %v1564 = vpop.f32.mrb[0].mxu0
        %v1565 = vadd.f32 0.0, %v1564
        %v1566 = vpop.f32.mrb[0].mxu0
        %v1567 = vadd.f32 0.0, %v1566
        %1568 = vmatprep.mubr.bf16.mxu0 0
        %1569 = vmatmul.mubr.bf16.gmra.mrb[0].mxu0 %v1518
        %v1570 = vpop.f32.mrb[0].mxu0
        %v1571 = vadd.f32 0.0, %v1570
        %v1572 = vpop.f32.mrb[0].mxu0
        %v1573 = vadd.f32 0.0, %v1572
        %v1574 = vpop.f32.mrb[0].mxu0
        %v1575 = vadd.f32 0.0, %v1574
        %v1576 = vpop.f32.mrb[0].mxu0
        %v1577 = vadd.f32 0.0, %v1576
        %1578 = vdwg.mxu0
        %v1579 = vadd.f32 %v1496, %v1561
        %v1580 = vadd.f32 %v1497, %v1563
        %v1581 = vadd.f32 %v1498, %v1565
        %v1582 = vadd.f32 %v1499, %v1567
        %v1583 = vadd.f32 %v1500, %v1571
        %v1584 = vadd.f32 %v1501, %v1573
        %v1585 = vadd.f32 %v1502, %v1575
        %v1586 = vadd.f32 %v1503, %v1577
        %v1587 = vpack.c.bf16 %v438, %v438
        %v1588 = vpack.c.bf16 %v439, %v439
        %1591 = vrot.lane.b32.xlu0 %v1587, 96
        %v1592 = vpop.permute.xlu0 %1591
        %1593 = vrot.lane.b32.xlu0 %v1588, 96
        %v1594 = vpop.permute.xlu0 %1593
        %v1595 = vsel %vm1287, %v1592, %v1594
        %v1597 = vsel %vm1296, %v1595, 0
        %v1600 = vsel %vm1296, %v1594, 0
        %1602 = vmatprep.subr.bf16.mxu0 %v1600
        %1603 = vmatpush1.bf16.msra.mxu0 %v1597
        %1604 = vmatprep.subr.bf16.mxu0 0
        %1605 = vmatpush1.bf16.msra.mxu0 0
        %1606 = vmatprep.subr.bf16.mxu0 0
        %1607 = vmatpush1.bf16.msra.mxu0 0
        %1608 = vmatprep.subr.bf16.mxu0 0
        %1609 = vmatpush1.bf16.msra.mxu0 0
        %1610 = vmatprep.subr.bf16.mxu0 0
        %1611 = vmatpush1.bf16.msra.mxu0 0
        %1612 = vmatprep.subr.bf16.mxu0 0
        %1613 = vmatpush1.bf16.msra.mxu0 0
        %1614 = vmatprep.subr.bf16.mxu0 0
        %1615 = vmatpush1.bf16.msra.mxu0 0
        %1616 = vmatprep.subr.bf16.mxu0 0
        %1617 = vmatpush1.bf16.msra.mxu0 0
        %1618 = vmatprep.subr.bf16.mxu0 0
        %1619 = vmatpush1.bf16.msra.mxu0 0
        %1620 = vmatprep.subr.bf16.mxu0 0
        %1621 = vmatpush1.bf16.msra.mxu0 0
        %1622 = vmatprep.subr.bf16.mxu0 0
        %1623 = vmatpush1.bf16.msra.mxu0 0
        %1624 = vmatprep.subr.bf16.mxu0 0
        %1625 = vmatpush1.bf16.msra.mxu0 0
        %1626 = vmatprep.subr.bf16.mxu0 0
        %1627 = vmatpush1.bf16.msra.mxu0 0
        %1628 = vmatprep.subr.bf16.mxu0 0
        %1629 = vmatpush1.bf16.msra.mxu0 0
        %1630 = vmatprep.subr.bf16.mxu0 0
        %1631 = vmatpush1.bf16.msra.mxu0 0
        %1632 = vmatprep.subr.bf16.mxu0 0
        %1633 = vmatpush1.bf16.msra.mxu0 0
        %1634 = vmatprep.mubr.bf16.mxu0 0
        %1635 = vmatmul.mubr.bf16.gmra.mrb[0].mxu0 %v1291
        %v1636 = vpop.f32.mrb[0].mxu0
        %v1637 = vadd.f32 0.0, %v1636
        %v1638 = vpop.f32.mrb[0].mxu0
        %v1639 = vadd.f32 0.0, %v1638
        %v1640 = vpop.f32.mrb[0].mxu0
        %v1641 = vadd.f32 0.0, %v1640
        %v1642 = vpop.f32.mrb[0].mxu0
        %v1643 = vadd.f32 0.0, %v1642
        %1644 = vmatprep.mubr.bf16.mxu0 0
        %1645 = vmatmul.mubr.bf16.gmra.mrb[0].mxu0 %v1294
        %v1646 = vpop.f32.mrb[0].mxu0
        %v1647 = vadd.f32 0.0, %v1646
        %v1648 = vpop.f32.mrb[0].mxu0
        %v1649 = vadd.f32 0.0, %v1648
        %v1650 = vpop.f32.mrb[0].mxu0
        %v1651 = vadd.f32 0.0, %v1650
        %v1652 = vpop.f32.mrb[0].mxu0
        %v1653 = vadd.f32 0.0, %v1652
        %1654 = vdwg.mxu0
        %v1656 = vsel %vm1296, %v1587, 0
        %v1659 = vsel %vm1296, %v1588, 0
        %1661 = vmatprep.subr.bf16.mxu0 %v1659
        %1662 = vmatpush1.bf16.msra.mxu0 %v1656
        %1663 = vmatprep.subr.bf16.mxu0 0
        %1664 = vmatpush1.bf16.msra.mxu0 0
        %1665 = vmatprep.subr.bf16.mxu0 0
        %1666 = vmatpush1.bf16.msra.mxu0 0
        %1667 = vmatprep.subr.bf16.mxu0 0
        %1668 = vmatpush1.bf16.msra.mxu0 0
        %1669 = vmatprep.subr.bf16.mxu0 0
        %1670 = vmatpush1.bf16.msra.mxu0 0
        %1671 = vmatprep.subr.bf16.mxu0 0
        %1672 = vmatpush1.bf16.msra.mxu0 0
        %1673 = vmatprep.subr.bf16.mxu0 0
        %1674 = vmatpush1.bf16.msra.mxu0 0
        %1675 = vmatprep.subr.bf16.mxu0 0
        %1676 = vmatpush1.bf16.msra.mxu0 0
        %1677 = vmatprep.subr.bf16.mxu0 0
        %1678 = vmatpush1.bf16.msra.mxu0 0
        %1679 = vmatprep.subr.bf16.mxu0 0
        %1680 = vmatpush1.bf16.msra.mxu0 0
        %1681 = vmatprep.subr.bf16.mxu0 0
        %1682 = vmatpush1.bf16.msra.mxu0 0
        %1683 = vmatprep.subr.bf16.mxu0 0
        %1684 = vmatpush1.bf16.msra.mxu0 0
        %1685 = vmatprep.subr.bf16.mxu0 0
        %1686 = vmatpush1.bf16.msra.mxu0 0
        %1687 = vmatprep.subr.bf16.mxu0 0
        %1688 = vmatpush1.bf16.msra.mxu0 0
        %1689 = vmatprep.subr.bf16.mxu0 0
        %1690 = vmatpush1.bf16.msra.mxu0 0
        %1691 = vmatprep.subr.bf16.mxu0 0
        %1692 = vmatpush1.bf16.msra.mxu0 0
        %1693 = vmatprep.mubr.bf16.mxu0 0
        %1694 = vmatmul.mubr.bf16.gmra.mrb[0].mxu0 %v1357
        %v1695 = vpop.f32.mrb[0].mxu0
        %v1696 = vadd.f32 %v1637, %v1695
        %v1697 = vpop.f32.mrb[0].mxu0
        %v1698 = vadd.f32 %v1639, %v1697
        %v1699 = vpop.f32.mrb[0].mxu0
        %v1700 = vadd.f32 %v1641, %v1699
        %v1701 = vpop.f32.mrb[0].mxu0
        %v1702 = vadd.f32 %v1643, %v1701
        %1703 = vmatprep.mubr.bf16.mxu0 0
        %1704 = vmatmul.mubr.bf16.gmra.mrb[0].mxu0 %v1360
        %v1705 = vpop.f32.mrb[0].mxu0
        %v1706 = vadd.f32 %v1647, %v1705
        %v1707 = vpop.f32.mrb[0].mxu0
        %v1708 = vadd.f32 %v1649, %v1707
        %v1709 = vpop.f32.mrb[0].mxu0
        %v1710 = vadd.f32 %v1651, %v1709
        %v1711 = vpop.f32.mrb[0].mxu0
        %v1712 = vadd.f32 %v1653, %v1711
        %1713 = vdwg.mxu0
        %1714 = vrot.lane.b32.xlu0 %v1587, 64
        %v1715 = vpop.permute.xlu0 %1714
        %1716 = vrot.lane.b32.xlu0 %v1588, 64
        %v1717 = vpop.permute.xlu0 %1716
        %v1718 = vsel %vm1429, %v1715, %v1717
        %v1720 = vsel %vm1296, %v1718, 0
        %v1723 = vsel %vm1296, %v1717, 0
        %1725 = vmatprep.subr.bf16.mxu0 %v1723
        %1726 = vmatpush1.bf16.msra.mxu0 %v1720
        %1727 = vmatprep.subr.bf16.mxu0 0
        %1728 = vmatpush1.bf16.msra.mxu0 0
        %1729 = vmatprep.subr.bf16.mxu0 0
        %1730 = vmatpush1.bf16.msra.mxu0 0
        %1731 = vmatprep.subr.bf16.mxu0 0
        %1732 = vmatpush1.bf16.msra.mxu0 0
        %1733 = vmatprep.subr.bf16.mxu0 0
        %1734 = vmatpush1.bf16.msra.mxu0 0
        %1735 = vmatprep.subr.bf16.mxu0 0
        %1736 = vmatpush1.bf16.msra.mxu0 0
        %1737 = vmatprep.subr.bf16.mxu0 0
        %1738 = vmatpush1.bf16.msra.mxu0 0
        %1739 = vmatprep.subr.bf16.mxu0 0
        %1740 = vmatpush1.bf16.msra.mxu0 0
        %1741 = vmatprep.subr.bf16.mxu0 0
        %1742 = vmatpush1.bf16.msra.mxu0 0
        %1743 = vmatprep.subr.bf16.mxu0 0
        %1744 = vmatpush1.bf16.msra.mxu0 0
        %1745 = vmatprep.subr.bf16.mxu0 0
        %1746 = vmatpush1.bf16.msra.mxu0 0
        %1747 = vmatprep.subr.bf16.mxu0 0
        %1748 = vmatpush1.bf16.msra.mxu0 0
        %1749 = vmatprep.subr.bf16.mxu0 0
        %1750 = vmatpush1.bf16.msra.mxu0 0
        %1751 = vmatprep.subr.bf16.mxu0 0
        %1752 = vmatpush1.bf16.msra.mxu0 0
        %1753 = vmatprep.subr.bf16.mxu0 0
        %1754 = vmatpush1.bf16.msra.mxu0 0
        %1755 = vmatprep.subr.bf16.mxu0 0
        %1756 = vmatpush1.bf16.msra.mxu0 0
        %1757 = vmatprep.mubr.bf16.mxu0 0
        %1758 = vmatmul.mubr.bf16.gmra.mrb[0].mxu0 %v1432
        %v1759 = vpop.f32.mrb[0].mxu0
        %v1760 = vadd.f32 0.0, %v1759
        %v1761 = vpop.f32.mrb[0].mxu0
        %v1762 = vadd.f32 0.0, %v1761
        %v1763 = vpop.f32.mrb[0].mxu0
        %v1764 = vadd.f32 0.0, %v1763
        %v1765 = vpop.f32.mrb[0].mxu0
        %v1766 = vadd.f32 0.0, %v1765
        %1767 = vmatprep.mubr.bf16.mxu0 0
        %1768 = vmatmul.mubr.bf16.gmra.mrb[0].mxu0 %v1435
        %v1769 = vpop.f32.mrb[0].mxu0
        %v1770 = vadd.f32 0.0, %v1769
        %v1771 = vpop.f32.mrb[0].mxu0
        %v1772 = vadd.f32 0.0, %v1771
        %v1773 = vpop.f32.mrb[0].mxu0
        %v1774 = vadd.f32 0.0, %v1773
        %v1775 = vpop.f32.mrb[0].mxu0
        %v1776 = vadd.f32 0.0, %v1775
        %1777 = vdwg.mxu0
        %v1778 = vadd.f32 %v1696, %v1760
        %v1779 = vadd.f32 %v1698, %v1762
        %v1780 = vadd.f32 %v1700, %v1764
        %v1781 = vadd.f32 %v1702, %v1766
        %v1782 = vadd.f32 %v1706, %v1770
        %v1783 = vadd.f32 %v1708, %v1772
        %v1784 = vadd.f32 %v1710, %v1774
        %v1785 = vadd.f32 %v1712, %v1776
        %1786 = vrot.lane.b32.xlu0 %v1587, 32
        %v1787 = vpop.permute.xlu0 %1786
        %1788 = vrot.lane.b32.xlu0 %v1588, 32
        %v1789 = vpop.permute.xlu0 %1788
        %v1790 = vsel %vm1512, %v1787, %v1789
        %v1792 = vsel %vm1296, %v1790, 0
        %v1795 = vsel %vm1296, %v1789, 0
        %1797 = vmatprep.subr.bf16.mxu0 %v1795
        %1798 = vmatpush1.bf16.msra.mxu0 %v1792
        %1799 = vmatprep.subr.bf16.mxu0 0
        %1800 = vmatpush1.bf16.msra.mxu0 0
        %1801 = vmatprep.subr.bf16.mxu0 0
        %1802 = vmatpush1.bf16.msra.mxu0 0
        %1803 = vmatprep.subr.bf16.mxu0 0
        %1804 = vmatpush1.bf16.msra.mxu0 0
        %1805 = vmatprep.subr.bf16.mxu0 0
        %1806 = vmatpush1.bf16.msra.mxu0 0
        %1807 = vmatprep.subr.bf16.mxu0 0
        %1808 = vmatpush1.bf16.msra.mxu0 0
        %1809 = vmatprep.subr.bf16.mxu0 0
        %1810 = vmatpush1.bf16.msra.mxu0 0
        %1811 = vmatprep.subr.bf16.mxu0 0
        %1812 = vmatpush1.bf16.msra.mxu0 0
        %1813 = vmatprep.subr.bf16.mxu0 0
        %1814 = vmatpush1.bf16.msra.mxu0 0
        %1815 = vmatprep.subr.bf16.mxu0 0
        %1816 = vmatpush1.bf16.msra.mxu0 0
        %1817 = vmatprep.subr.bf16.mxu0 0
        %1818 = vmatpush1.bf16.msra.mxu0 0
        %1819 = vmatprep.subr.bf16.mxu0 0
        %1820 = vmatpush1.bf16.msra.mxu0 0
        %1821 = vmatprep.subr.bf16.mxu0 0
        %1822 = vmatpush1.bf16.msra.mxu0 0
        %1823 = vmatprep.subr.bf16.mxu0 0
        %1824 = vmatpush1.bf16.msra.mxu0 0
        %1825 = vmatprep.subr.bf16.mxu0 0
        %1826 = vmatpush1.bf16.msra.mxu0 0
        %1827 = vmatprep.subr.bf16.mxu0 0
        %1828 = vmatpush1.bf16.msra.mxu0 0
        %1829 = vmatprep.mubr.bf16.mxu0 0
        %1830 = vmatmul.mubr.bf16.gmra.mrb[0].mxu0 %v1515
        %v1831 = vpop.f32.mrb[0].mxu0
        %v1832 = vadd.f32 0.0, %v1831
        %v1833 = vpop.f32.mrb[0].mxu0
        %v1834 = vadd.f32 0.0, %v1833
        %v1835 = vpop.f32.mrb[0].mxu0
        %v1836 = vadd.f32 0.0, %v1835
        %v1837 = vpop.f32.mrb[0].mxu0
        %v1838 = vadd.f32 0.0, %v1837
        %1839 = vmatprep.mubr.bf16.mxu0 0
        %1840 = vmatmul.mubr.bf16.gmra.mrb[0].mxu0 %v1518
        %v1841 = vpop.f32.mrb[0].mxu0
        %v1842 = vadd.f32 0.0, %v1841
        %v1843 = vpop.f32.mrb[0].mxu0
        %v1844 = vadd.f32 0.0, %v1843
        %v1845 = vpop.f32.mrb[0].mxu0
        %v1846 = vadd.f32 0.0, %v1845
        %v1847 = vpop.f32.mrb[0].mxu0
        %v1848 = vadd.f32 0.0, %v1847
        %1849 = vdwg.mxu0
        %v1850 = vadd.f32 %v1778, %v1832
        %v1851 = vadd.f32 %v1779, %v1834
        %v1852 = vadd.f32 %v1780, %v1836
        %v1853 = vadd.f32 %v1781, %v1838
        %v1854 = vadd.f32 %v1782, %v1842
        %v1855 = vadd.f32 %v1783, %v1844
        %v1856 = vadd.f32 %v1784, %v1846
        %v1857 = vadd.f32 %v1785, %v1848
        %v1858 = vpack.c.bf16 %v440, %v440
        %v1859 = vpack.c.bf16 %v441, %v441
        %1862 = vrot.lane.b32.xlu0 %v1858, 96
        %v1863 = vpop.permute.xlu0 %1862
        %1864 = vrot.lane.b32.xlu0 %v1859, 96
        %v1865 = vpop.permute.xlu0 %1864
        %v1866 = vsel %vm1287, %v1863, %v1865
        %v1868 = vsel %vm1296, %v1866, 0
        %v1871 = vsel %vm1296, %v1865, 0
        %1873 = vmatprep.subr.bf16.mxu0 %v1871
        %1874 = vmatpush1.bf16.msra.mxu0 %v1868
        %1875 = vmatprep.subr.bf16.mxu0 0
        %1876 = vmatpush1.bf16.msra.mxu0 0
        %1877 = vmatprep.subr.bf16.mxu0 0
        %1878 = vmatpush1.bf16.msra.mxu0 0
        %1879 = vmatprep.subr.bf16.mxu0 0
        %1880 = vmatpush1.bf16.msra.mxu0 0
        %1881 = vmatprep.subr.bf16.mxu0 0
        %1882 = vmatpush1.bf16.msra.mxu0 0
        %1883 = vmatprep.subr.bf16.mxu0 0
        %1884 = vmatpush1.bf16.msra.mxu0 0
        %1885 = vmatprep.subr.bf16.mxu0 0
        %1886 = vmatpush1.bf16.msra.mxu0 0
        %1887 = vmatprep.subr.bf16.mxu0 0
        %1888 = vmatpush1.bf16.msra.mxu0 0
        %1889 = vmatprep.subr.bf16.mxu0 0
        %1890 = vmatpush1.bf16.msra.mxu0 0
        %1891 = vmatprep.subr.bf16.mxu0 0
        %1892 = vmatpush1.bf16.msra.mxu0 0
        %1893 = vmatprep.subr.bf16.mxu0 0
        %1894 = vmatpush1.bf16.msra.mxu0 0
        %1895 = vmatprep.subr.bf16.mxu0 0
        %1896 = vmatpush1.bf16.msra.mxu0 0
        %1897 = vmatprep.subr.bf16.mxu0 0
        %1898 = vmatpush1.bf16.msra.mxu0 0
        %1899 = vmatprep.subr.bf16.mxu0 0
        %1900 = vmatpush1.bf16.msra.mxu0 0
        %1901 = vmatprep.subr.bf16.mxu0 0
        %1902 = vmatpush1.bf16.msra.mxu0 0
        %1903 = vmatprep.subr.bf16.mxu0 0
        %1904 = vmatpush1.bf16.msra.mxu0 0
        %1905 = vmatprep.mubr.bf16.mxu0 0
        %1906 = vmatmul.mubr.bf16.gmra.mrb[0].mxu0 %v1291
        %v1907 = vpop.f32.mrb[0].mxu0
        %v1908 = vadd.f32 0.0, %v1907
        %v1909 = vpop.f32.mrb[0].mxu0
        %v1910 = vadd.f32 0.0, %v1909
        %v1911 = vpop.f32.mrb[0].mxu0
        %v1912 = vadd.f32 0.0, %v1911
        %v1913 = vpop.f32.mrb[0].mxu0
        %v1914 = vadd.f32 0.0, %v1913
        %1915 = vmatprep.mubr.bf16.mxu0 0
        %1916 = vmatmul.mubr.bf16.gmra.mrb[0].mxu0 %v1294
        %v1917 = vpop.f32.mrb[0].mxu0
        %v1918 = vadd.f32 0.0, %v1917
        %v1919 = vpop.f32.mrb[0].mxu0
        %v1920 = vadd.f32 0.0, %v1919
        %v1921 = vpop.f32.mrb[0].mxu0
        %v1922 = vadd.f32 0.0, %v1921
        %v1923 = vpop.f32.mrb[0].mxu0
        %v1924 = vadd.f32 0.0, %v1923
        %1925 = vdwg.mxu0
        %v1927 = vsel %vm1296, %v1858, 0
        %v1930 = vsel %vm1296, %v1859, 0
        %1932 = vmatprep.subr.bf16.mxu0 %v1930
        %1933 = vmatpush1.bf16.msra.mxu0 %v1927
        %1934 = vmatprep.subr.bf16.mxu0 0
        %1935 = vmatpush1.bf16.msra.mxu0 0
        %1936 = vmatprep.subr.bf16.mxu0 0
        %1937 = vmatpush1.bf16.msra.mxu0 0
        %1938 = vmatprep.subr.bf16.mxu0 0
        %1939 = vmatpush1.bf16.msra.mxu0 0
        %1940 = vmatprep.subr.bf16.mxu0 0
        %1941 = vmatpush1.bf16.msra.mxu0 0
        %1942 = vmatprep.subr.bf16.mxu0 0
        %1943 = vmatpush1.bf16.msra.mxu0 0
        %1944 = vmatprep.subr.bf16.mxu0 0
        %1945 = vmatpush1.bf16.msra.mxu0 0
        %1946 = vmatprep.subr.bf16.mxu0 0
        %1947 = vmatpush1.bf16.msra.mxu0 0
        %1948 = vmatprep.subr.bf16.mxu0 0
        %1949 = vmatpush1.bf16.msra.mxu0 0
        %1950 = vmatprep.subr.bf16.mxu0 0
        %1951 = vmatpush1.bf16.msra.mxu0 0
        %1952 = vmatprep.subr.bf16.mxu0 0
        %1953 = vmatpush1.bf16.msra.mxu0 0
        %1954 = vmatprep.subr.bf16.mxu0 0
        %1955 = vmatpush1.bf16.msra.mxu0 0
        %1956 = vmatprep.subr.bf16.mxu0 0
        %1957 = vmatpush1.bf16.msra.mxu0 0
        %1958 = vmatprep.subr.bf16.mxu0 0
        %1959 = vmatpush1.bf16.msra.mxu0 0
        %1960 = vmatprep.subr.bf16.mxu0 0
        %1961 = vmatpush1.bf16.msra.mxu0 0
        %1962 = vmatprep.subr.bf16.mxu0 0
        %1963 = vmatpush1.bf16.msra.mxu0 0
        %1964 = vmatprep.mubr.bf16.mxu0 0
        %1965 = vmatmul.mubr.bf16.gmra.mrb[0].mxu0 %v1357
        %v1966 = vpop.f32.mrb[0].mxu0
        %v1967 = vadd.f32 %v1908, %v1966
        %v1968 = vpop.f32.mrb[0].mxu0
        %v1969 = vadd.f32 %v1910, %v1968
        %v1970 = vpop.f32.mrb[0].mxu0
        %v1971 = vadd.f32 %v1912, %v1970
        %v1972 = vpop.f32.mrb[0].mxu0
        %v1973 = vadd.f32 %v1914, %v1972
        %1974 = vmatprep.mubr.bf16.mxu0 0
        %1975 = vmatmul.mubr.bf16.gmra.mrb[0].mxu0 %v1360
        %v1976 = vpop.f32.mrb[0].mxu0
        %v1977 = vadd.f32 %v1918, %v1976
        %v1978 = vpop.f32.mrb[0].mxu0
        %v1979 = vadd.f32 %v1920, %v1978
        %v1980 = vpop.f32.mrb[0].mxu0
        %v1981 = vadd.f32 %v1922, %v1980
        %v1982 = vpop.f32.mrb[0].mxu0
        %v1983 = vadd.f32 %v1924, %v1982
        %1984 = vdwg.mxu0
        %1985 = vrot.lane.b32.xlu0 %v1858, 64
        %v1986 = vpop.permute.xlu0 %1985
        %1987 = vrot.lane.b32.xlu0 %v1859, 64
        %v1988 = vpop.permute.xlu0 %1987
        %v1989 = vsel %vm1429, %v1986, %v1988
        %v1991 = vsel %vm1296, %v1989, 0
        %v1994 = vsel %vm1296, %v1988, 0
        %1996 = vmatprep.subr.bf16.mxu0 %v1994
        %1997 = vmatpush1.bf16.msra.mxu0 %v1991
        %1998 = vmatprep.subr.bf16.mxu0 0
        %1999 = vmatpush1.bf16.msra.mxu0 0
        %2000 = vmatprep.subr.bf16.mxu0 0
        %2001 = vmatpush1.bf16.msra.mxu0 0
        %2002 = vmatprep.subr.bf16.mxu0 0
        %2003 = vmatpush1.bf16.msra.mxu0 0
        %2004 = vmatprep.subr.bf16.mxu0 0
        %2005 = vmatpush1.bf16.msra.mxu0 0
        %2006 = vmatprep.subr.bf16.mxu0 0
        %2007 = vmatpush1.bf16.msra.mxu0 0
        %2008 = vmatprep.subr.bf16.mxu0 0
        %2009 = vmatpush1.bf16.msra.mxu0 0
        %2010 = vmatprep.subr.bf16.mxu0 0
        %2011 = vmatpush1.bf16.msra.mxu0 0
        %2012 = vmatprep.subr.bf16.mxu0 0
        %2013 = vmatpush1.bf16.msra.mxu0 0
        %2014 = vmatprep.subr.bf16.mxu0 0
        %2015 = vmatpush1.bf16.msra.mxu0 0
        %2016 = vmatprep.subr.bf16.mxu0 0
        %2017 = vmatpush1.bf16.msra.mxu0 0
        %2018 = vmatprep.subr.bf16.mxu0 0
        %2019 = vmatpush1.bf16.msra.mxu0 0
        %2020 = vmatprep.subr.bf16.mxu0 0
        %2021 = vmatpush1.bf16.msra.mxu0 0
        %2022 = vmatprep.subr.bf16.mxu0 0
        %2023 = vmatpush1.bf16.msra.mxu0 0
        %2024 = vmatprep.subr.bf16.mxu0 0
        %2025 = vmatpush1.bf16.msra.mxu0 0
        %2026 = vmatprep.subr.bf16.mxu0 0
        %2027 = vmatpush1.bf16.msra.mxu0 0
        %2028 = vmatprep.mubr.bf16.mxu0 0
        %2029 = vmatmul.mubr.bf16.gmra.mrb[0].mxu0 %v1432
        %v2030 = vpop.f32.mrb[0].mxu0
        %v2031 = vadd.f32 0.0, %v2030
        %v2032 = vpop.f32.mrb[0].mxu0
        %v2033 = vadd.f32 0.0, %v2032
        %v2034 = vpop.f32.mrb[0].mxu0
        %v2035 = vadd.f32 0.0, %v2034
        %v2036 = vpop.f32.mrb[0].mxu0
        %v2037 = vadd.f32 0.0, %v2036
        %2038 = vmatprep.mubr.bf16.mxu0 0
        %2039 = vmatmul.mubr.bf16.gmra.mrb[0].mxu0 %v1435
        %v2040 = vpop.f32.mrb[0].mxu0
        %v2041 = vadd.f32 0.0, %v2040
        %v2042 = vpop.f32.mrb[0].mxu0
        %v2043 = vadd.f32 0.0, %v2042
        %v2044 = vpop.f32.mrb[0].mxu0
        %v2045 = vadd.f32 0.0, %v2044
        %v2046 = vpop.f32.mrb[0].mxu0
        %v2047 = vadd.f32 0.0, %v2046
        %2048 = vdwg.mxu0
        %v2049 = vadd.f32 %v1967, %v2031
        %v2050 = vadd.f32 %v1969, %v2033
        %v2051 = vadd.f32 %v1971, %v2035
        %v2052 = vadd.f32 %v1973, %v2037
        %v2053 = vadd.f32 %v1977, %v2041
        %v2054 = vadd.f32 %v1979, %v2043
        %v2055 = vadd.f32 %v1981, %v2045
        %v2056 = vadd.f32 %v1983, %v2047
        %2057 = vrot.lane.b32.xlu0 %v1858, 32
        %v2058 = vpop.permute.xlu0 %2057
        %2059 = vrot.lane.b32.xlu0 %v1859, 32
        %v2060 = vpop.permute.xlu0 %2059
        %v2061 = vsel %vm1512, %v2058, %v2060
        %v2063 = vsel %vm1296, %v2061, 0
        %v2066 = vsel %vm1296, %v2060, 0
        %2068 = vmatprep.subr.bf16.mxu0 %v2066
        %2069 = vmatpush1.bf16.msra.mxu0 %v2063
        %2070 = vmatprep.subr.bf16.mxu0 0
        %2071 = vmatpush1.bf16.msra.mxu0 0
        %2072 = vmatprep.subr.bf16.mxu0 0
        %2073 = vmatpush1.bf16.msra.mxu0 0
        %2074 = vmatprep.subr.bf16.mxu0 0
        %2075 = vmatpush1.bf16.msra.mxu0 0
        %2076 = vmatprep.subr.bf16.mxu0 0
        %2077 = vmatpush1.bf16.msra.mxu0 0
        %2078 = vmatprep.subr.bf16.mxu0 0
        %2079 = vmatpush1.bf16.msra.mxu0 0
        %2080 = vmatprep.subr.bf16.mxu0 0
        %2081 = vmatpush1.bf16.msra.mxu0 0
        %2082 = vmatprep.subr.bf16.mxu0 0
        %2083 = vmatpush1.bf16.msra.mxu0 0
        %2084 = vmatprep.subr.bf16.mxu0 0
        %2085 = vmatpush1.bf16.msra.mxu0 0
        %2086 = vmatprep.subr.bf16.mxu0 0
        %2087 = vmatpush1.bf16.msra.mxu0 0
        %2088 = vmatprep.subr.bf16.mxu0 0
        %2089 = vmatpush1.bf16.msra.mxu0 0
        %2090 = vmatprep.subr.bf16.mxu0 0
        %2091 = vmatpush1.bf16.msra.mxu0 0
        %2092 = vmatprep.subr.bf16.mxu0 0
        %2093 = vmatpush1.bf16.msra.mxu0 0
        %2094 = vmatprep.subr.bf16.mxu0 0
        %2095 = vmatpush1.bf16.msra.mxu0 0
        %2096 = vmatprep.subr.bf16.mxu0 0
        %2097 = vmatpush1.bf16.msra.mxu0 0
        %2098 = vmatprep.subr.bf16.mxu0 0
        %2099 = vmatpush1.bf16.msra.mxu0 0
        %2100 = vmatprep.mubr.bf16.mxu0 0
        %2101 = vmatmul.mubr.bf16.gmra.mrb[0].mxu0 %v1515
        %v2102 = vpop.f32.mrb[0].mxu0
        %v2103 = vadd.f32 0.0, %v2102
        %v2104 = vpop.f32.mrb[0].mxu0
        %v2105 = vadd.f32 0.0, %v2104
        %v2106 = vpop.f32.mrb[0].mxu0
        %v2107 = vadd.f32 0.0, %v2106
        %v2108 = vpop.f32.mrb[0].mxu0
        %v2109 = vadd.f32 0.0, %v2108
        %2110 = vmatprep.mubr.bf16.mxu0 0
        %2111 = vmatmul.mubr.bf16.gmra.mrb[0].mxu0 %v1518
        %v2112 = vpop.f32.mrb[0].mxu0
        %v2113 = vadd.f32 0.0, %v2112
        %v2114 = vpop.f32.mrb[0].mxu0
        %v2115 = vadd.f32 0.0, %v2114
        %v2116 = vpop.f32.mrb[0].mxu0
        %v2117 = vadd.f32 0.0, %v2116
        %v2118 = vpop.f32.mrb[0].mxu0
        %v2119 = vadd.f32 0.0, %v2118
        %2120 = vdwg.mxu0
        %v2121 = vadd.f32 %v2049, %v2103
        %v2122 = vadd.f32 %v2050, %v2105
        %v2123 = vadd.f32 %v2051, %v2107
        %v2124 = vadd.f32 %v2052, %v2109
        %v2125 = vadd.f32 %v2053, %v2113
        %v2126 = vadd.f32 %v2054, %v2115
        %v2127 = vadd.f32 %v2055, %v2117
        %v2128 = vadd.f32 %v2056, %v2119
        %v2129 = vpack.c.bf16 %v442, %v442
        %v2130 = vpack.c.bf16 %v443, %v443
        %2133 = vrot.lane.b32.xlu0 %v2129, 96
        %v2134 = vpop.permute.xlu0 %2133
        %2135 = vrot.lane.b32.xlu0 %v2130, 96
        %v2136 = vpop.permute.xlu0 %2135
        %v2137 = vsel %vm1287, %v2134, %v2136
        %v2139 = vsel %vm1296, %v2137, 0
        %v2142 = vsel %vm1296, %v2136, 0
        %2144 = vmatprep.subr.bf16.mxu0 %v2142
        %2145 = vmatpush1.bf16.msra.mxu0 %v2139
        %2146 = vmatprep.subr.bf16.mxu0 0
        %2147 = vmatpush1.bf16.msra.mxu0 0
        %2148 = vmatprep.subr.bf16.mxu0 0
        %2149 = vmatpush1.bf16.msra.mxu0 0
        %2150 = vmatprep.subr.bf16.mxu0 0
        %2151 = vmatpush1.bf16.msra.mxu0 0
        %2152 = vmatprep.subr.bf16.mxu0 0
        %2153 = vmatpush1.bf16.msra.mxu0 0
        %2154 = vmatprep.subr.bf16.mxu0 0
        %2155 = vmatpush1.bf16.msra.mxu0 0
        %2156 = vmatprep.subr.bf16.mxu0 0
        %2157 = vmatpush1.bf16.msra.mxu0 0
        %2158 = vmatprep.subr.bf16.mxu0 0
        %2159 = vmatpush1.bf16.msra.mxu0 0
        %2160 = vmatprep.subr.bf16.mxu0 0
        %2161 = vmatpush1.bf16.msra.mxu0 0
        %2162 = vmatprep.subr.bf16.mxu0 0
        %2163 = vmatpush1.bf16.msra.mxu0 0
        %2164 = vmatprep.subr.bf16.mxu0 0
        %2165 = vmatpush1.bf16.msra.mxu0 0
        %2166 = vmatprep.subr.bf16.mxu0 0
        %2167 = vmatpush1.bf16.msra.mxu0 0
        %2168 = vmatprep.subr.bf16.mxu0 0
        %2169 = vmatpush1.bf16.msra.mxu0 0
        %2170 = vmatprep.subr.bf16.mxu0 0
        %2171 = vmatpush1.bf16.msra.mxu0 0
        %2172 = vmatprep.subr.bf16.mxu0 0
        %2173 = vmatpush1.bf16.msra.mxu0 0
        %2174 = vmatprep.subr.bf16.mxu0 0
        %2175 = vmatpush1.bf16.msra.mxu0 0
        %2176 = vmatprep.mubr.bf16.mxu0 0
        %2177 = vmatmul.mubr.bf16.gmra.mrb[0].mxu0 %v1291
        %v2178 = vpop.f32.mrb[0].mxu0
        %v2179 = vadd.f32 0.0, %v2178
        %v2180 = vpop.f32.mrb[0].mxu0
        %v2181 = vadd.f32 0.0, %v2180
        %v2182 = vpop.f32.mrb[0].mxu0
        %v2183 = vadd.f32 0.0, %v2182
        %v2184 = vpop.f32.mrb[0].mxu0
        %v2185 = vadd.f32 0.0, %v2184
        %2186 = vmatprep.mubr.bf16.mxu0 0
        %2187 = vmatmul.mubr.bf16.gmra.mrb[0].mxu0 %v1294
        %v2188 = vpop.f32.mrb[0].mxu0
        %v2189 = vadd.f32 0.0, %v2188
        %v2190 = vpop.f32.mrb[0].mxu0
        %v2191 = vadd.f32 0.0, %v2190
        %v2192 = vpop.f32.mrb[0].mxu0
        %v2193 = vadd.f32 0.0, %v2192
        %v2194 = vpop.f32.mrb[0].mxu0
        %v2195 = vadd.f32 0.0, %v2194
        %2196 = vdwg.mxu0
        %v2198 = vsel %vm1296, %v2129, 0
        %v2201 = vsel %vm1296, %v2130, 0
        %2203 = vmatprep.subr.bf16.mxu0 %v2201
        %2204 = vmatpush1.bf16.msra.mxu0 %v2198
        %2205 = vmatprep.subr.bf16.mxu0 0
        %2206 = vmatpush1.bf16.msra.mxu0 0
        %2207 = vmatprep.subr.bf16.mxu0 0
        %2208 = vmatpush1.bf16.msra.mxu0 0
        %2209 = vmatprep.subr.bf16.mxu0 0
        %2210 = vmatpush1.bf16.msra.mxu0 0
        %2211 = vmatprep.subr.bf16.mxu0 0
        %2212 = vmatpush1.bf16.msra.mxu0 0
        %2213 = vmatprep.subr.bf16.mxu0 0
        %2214 = vmatpush1.bf16.msra.mxu0 0
        %2215 = vmatprep.subr.bf16.mxu0 0
        %2216 = vmatpush1.bf16.msra.mxu0 0
        %2217 = vmatprep.subr.bf16.mxu0 0
        %2218 = vmatpush1.bf16.msra.mxu0 0
        %2219 = vmatprep.subr.bf16.mxu0 0
        %2220 = vmatpush1.bf16.msra.mxu0 0
        %2221 = vmatprep.subr.bf16.mxu0 0
        %2222 = vmatpush1.bf16.msra.mxu0 0
        %2223 = vmatprep.subr.bf16.mxu0 0
        %2224 = vmatpush1.bf16.msra.mxu0 0
        %2225 = vmatprep.subr.bf16.mxu0 0
        %2226 = vmatpush1.bf16.msra.mxu0 0
        %2227 = vmatprep.subr.bf16.mxu0 0
        %2228 = vmatpush1.bf16.msra.mxu0 0
        %2229 = vmatprep.subr.bf16.mxu0 0
        %2230 = vmatpush1.bf16.msra.mxu0 0
        %2231 = vmatprep.subr.bf16.mxu0 0
        %2232 = vmatpush1.bf16.msra.mxu0 0
        %2233 = vmatprep.subr.bf16.mxu0 0
        %2234 = vmatpush1.bf16.msra.mxu0 0
        %2235 = vmatprep.mubr.bf16.mxu0 0
        %2236 = vmatmul.mubr.bf16.gmra.mrb[0].mxu0 %v1357
        %v2237 = vpop.f32.mrb[0].mxu0
        %v2238 = vadd.f32 %v2179, %v2237
        %v2239 = vpop.f32.mrb[0].mxu0
        %v2240 = vadd.f32 %v2181, %v2239
        %v2241 = vpop.f32.mrb[0].mxu0
        %v2242 = vadd.f32 %v2183, %v2241
        %v2243 = vpop.f32.mrb[0].mxu0
        %v2244 = vadd.f32 %v2185, %v2243
        %2245 = vmatprep.mubr.bf16.mxu0 0
        %2246 = vmatmul.mubr.bf16.gmra.mrb[0].mxu0 %v1360
        %v2247 = vpop.f32.mrb[0].mxu0
        %v2248 = vadd.f32 %v2189, %v2247
        %v2249 = vpop.f32.mrb[0].mxu0
        %v2250 = vadd.f32 %v2191, %v2249
        %v2251 = vpop.f32.mrb[0].mxu0
        %v2252 = vadd.f32 %v2193, %v2251
        %v2253 = vpop.f32.mrb[0].mxu0
        %v2254 = vadd.f32 %v2195, %v2253
        %2255 = vdwg.mxu0
        %2256 = vrot.lane.b32.xlu0 %v2129, 64
        %v2257 = vpop.permute.xlu0 %2256
        %2258 = vrot.lane.b32.xlu0 %v2130, 64
        %v2259 = vpop.permute.xlu0 %2258
        %v2260 = vsel %vm1429, %v2257, %v2259
        %v2262 = vsel %vm1296, %v2260, 0
        %v2265 = vsel %vm1296, %v2259, 0
        %2267 = vmatprep.subr.bf16.mxu0 %v2265
        %2268 = vmatpush1.bf16.msra.mxu0 %v2262
        %2269 = vmatprep.subr.bf16.mxu0 0
        %2270 = vmatpush1.bf16.msra.mxu0 0
        %2271 = vmatprep.subr.bf16.mxu0 0
        %2272 = vmatpush1.bf16.msra.mxu0 0
        %2273 = vmatprep.subr.bf16.mxu0 0
        %2274 = vmatpush1.bf16.msra.mxu0 0
        %2275 = vmatprep.subr.bf16.mxu0 0
        %2276 = vmatpush1.bf16.msra.mxu0 0
        %2277 = vmatprep.subr.bf16.mxu0 0
        %2278 = vmatpush1.bf16.msra.mxu0 0
        %2279 = vmatprep.subr.bf16.mxu0 0
        %2280 = vmatpush1.bf16.msra.mxu0 0
        %2281 = vmatprep.subr.bf16.mxu0 0
        %2282 = vmatpush1.bf16.msra.mxu0 0
        %2283 = vmatprep.subr.bf16.mxu0 0
        %2284 = vmatpush1.bf16.msra.mxu0 0
        %2285 = vmatprep.subr.bf16.mxu0 0
        %2286 = vmatpush1.bf16.msra.mxu0 0
        %2287 = vmatprep.subr.bf16.mxu0 0
        %2288 = vmatpush1.bf16.msra.mxu0 0
        %2289 = vmatprep.subr.bf16.mxu0 0
        %2290 = vmatpush1.bf16.msra.mxu0 0
        %2291 = vmatprep.subr.bf16.mxu0 0
        %2292 = vmatpush1.bf16.msra.mxu0 0
        %2293 = vmatprep.subr.bf16.mxu0 0
        %2294 = vmatpush1.bf16.msra.mxu0 0
        %2295 = vmatprep.subr.bf16.mxu0 0
        %2296 = vmatpush1.bf16.msra.mxu0 0
        %2297 = vmatprep.subr.bf16.mxu0 0
        %2298 = vmatpush1.bf16.msra.mxu0 0
        %2299 = vmatprep.mubr.bf16.mxu0 0
        %2300 = vmatmul.mubr.bf16.gmra.mrb[0].mxu0 %v1432
        %v2301 = vpop.f32.mrb[0].mxu0
        %v2302 = vadd.f32 0.0, %v2301
        %v2303 = vpop.f32.mrb[0].mxu0
        %v2304 = vadd.f32 0.0, %v2303
        %v2305 = vpop.f32.mrb[0].mxu0
        %v2306 = vadd.f32 0.0, %v2305
        %v2307 = vpop.f32.mrb[0].mxu0
        %v2308 = vadd.f32 0.0, %v2307
        %2309 = vmatprep.mubr.bf16.mxu0 0
        %2310 = vmatmul.mubr.bf16.gmra.mrb[0].mxu0 %v1435
        %v2311 = vpop.f32.mrb[0].mxu0
        %v2312 = vadd.f32 0.0, %v2311
        %v2313 = vpop.f32.mrb[0].mxu0
        %v2314 = vadd.f32 0.0, %v2313
        %v2315 = vpop.f32.mrb[0].mxu0
        %v2316 = vadd.f32 0.0, %v2315
        %v2317 = vpop.f32.mrb[0].mxu0
        %v2318 = vadd.f32 0.0, %v2317
        %2319 = vdwg.mxu0
        %v2320 = vadd.f32 %v2238, %v2302
        %v2321 = vadd.f32 %v2240, %v2304
        %v2322 = vadd.f32 %v2242, %v2306
        %v2323 = vadd.f32 %v2244, %v2308
        %v2324 = vadd.f32 %v2248, %v2312
        %v2325 = vadd.f32 %v2250, %v2314
        %v2326 = vadd.f32 %v2252, %v2316
        %v2327 = vadd.f32 %v2254, %v2318
        %2328 = vrot.lane.b32.xlu0 %v2129, 32
        %v2329 = vpop.permute.xlu0 %2328
        %2330 = vrot.lane.b32.xlu0 %v2130, 32
        %v2331 = vpop.permute.xlu0 %2330
        %v2332 = vsel %vm1512, %v2329, %v2331
        %v2334 = vsel %vm1296, %v2332, 0
        %v2337 = vsel %vm1296, %v2331, 0
        %2339 = vmatprep.subr.bf16.mxu0 %v2337
        %2340 = vmatpush1.bf16.msra.mxu0 %v2334
        %2341 = vmatprep.subr.bf16.mxu0 0
        %2342 = vmatpush1.bf16.msra.mxu0 0
        %2343 = vmatprep.subr.bf16.mxu0 0
        %2344 = vmatpush1.bf16.msra.mxu0 0
        %2345 = vmatprep.subr.bf16.mxu0 0
        %2346 = vmatpush1.bf16.msra.mxu0 0
        %2347 = vmatprep.subr.bf16.mxu0 0
        %2348 = vmatpush1.bf16.msra.mxu0 0
        %2349 = vmatprep.subr.bf16.mxu0 0
        %2350 = vmatpush1.bf16.msra.mxu0 0
        %2351 = vmatprep.subr.bf16.mxu0 0
        %2352 = vmatpush1.bf16.msra.mxu0 0
        %2353 = vmatprep.subr.bf16.mxu0 0
        %2354 = vmatpush1.bf16.msra.mxu0 0
        %2355 = vmatprep.subr.bf16.mxu0 0
        %2356 = vmatpush1.bf16.msra.mxu0 0
        %2357 = vmatprep.subr.bf16.mxu0 0
        %2358 = vmatpush1.bf16.msra.mxu0 0
        %2359 = vmatprep.subr.bf16.mxu0 0
        %2360 = vmatpush1.bf16.msra.mxu0 0
        %2361 = vmatprep.subr.bf16.mxu0 0
        %2362 = vmatpush1.bf16.msra.mxu0 0
        %2363 = vmatprep.subr.bf16.mxu0 0
        %2364 = vmatpush1.bf16.msra.mxu0 0
        %2365 = vmatprep.subr.bf16.mxu0 0
        %2366 = vmatpush1.bf16.msra.mxu0 0
        %2367 = vmatprep.subr.bf16.mxu0 0
        %2368 = vmatpush1.bf16.msra.mxu0 0
        %2369 = vmatprep.subr.bf16.mxu0 0
        %2370 = vmatpush1.bf16.msra.mxu0 0
        %2371 = vmatprep.mubr.bf16.mxu0 0
        %2372 = vmatmul.mubr.bf16.gmra.mrb[0].mxu0 %v1515
        %v2373 = vpop.f32.mrb[0].mxu0
        %v2374 = vadd.f32 0.0, %v2373
        %v2375 = vpop.f32.mrb[0].mxu0
        %v2376 = vadd.f32 0.0, %v2375
        %v2377 = vpop.f32.mrb[0].mxu0
        %v2378 = vadd.f32 0.0, %v2377
        %v2379 = vpop.f32.mrb[0].mxu0
        %v2380 = vadd.f32 0.0, %v2379
        %2381 = vmatprep.mubr.bf16.mxu0 0
        %2382 = vmatmul.mubr.bf16.gmra.mrb[0].mxu0 %v1518
        %v2383 = vpop.f32.mrb[0].mxu0
        %v2384 = vadd.f32 0.0, %v2383
        %v2385 = vpop.f32.mrb[0].mxu0
        %v2386 = vadd.f32 0.0, %v2385
        %v2387 = vpop.f32.mrb[0].mxu0
        %v2388 = vadd.f32 0.0, %v2387
        %v2389 = vpop.f32.mrb[0].mxu0
        %v2390 = vadd.f32 0.0, %v2389
        %2391 = vdwg.mxu0
        %v2392 = vadd.f32 %v2320, %v2374
        %v2393 = vadd.f32 %v2321, %v2376
        %v2394 = vadd.f32 %v2322, %v2378
        %v2395 = vadd.f32 %v2323, %v2380
        %v2396 = vadd.f32 %v2324, %v2384
        %v2397 = vadd.f32 %v2325, %v2386
        %v2398 = vadd.f32 %v2326, %v2388
        %v2399 = vadd.f32 %v2327, %v2390
        %v2400 = vpack.c.bf16 %v1581, %v1579
        %v2401 = vpack.c.bf16 %v1582, %v1580
        %v2402 = vpack.c.bf16 %v1585, %v1583
        %v2403 = vpack.c.bf16 %v1586, %v1584
        %v2404 = vpack.c.bf16 %v1852, %v1850
        %v2405 = vpack.c.bf16 %v1853, %v1851
        %v2406 = vpack.c.bf16 %v1856, %v1854
        %v2407 = vpack.c.bf16 %v1857, %v1855
        %v2408 = vpack.c.bf16 %v2123, %v2121
        %v2409 = vpack.c.bf16 %v2124, %v2122
        %v2410 = vpack.c.bf16 %v2127, %v2125
        %v2411 = vpack.c.bf16 %v2128, %v2126
        %v2412 = vpack.c.bf16 %v2394, %v2392
        %v2413 = vpack.c.bf16 %v2395, %v2393
        %v2414 = vpack.c.bf16 %v2398, %v2396
        %v2415 = vpack.c.bf16 %v2399, %v2397
        %v2417 = vlaneseq
        %v2418 = vshrl.u32 %v2417, 7
        %v2419 = vsub.s32 0, %v2418
        %v2420 = vrot.slane %v1264, %v2419
        %v2421 = vlaneseq
        %v2422 = vshrl.u32 %v2421, 7
        %v2423 = vsub.s32 1, %v2422
        %v2424 = vrot.slane %v1264, %v2423
        %v2425 = vlaneseq
        %v2426 = vshrl.u32 %v2425, 7
        %v2427 = vsub.s32 2, %v2426
        %v2428 = vrot.slane %v1264, %v2427
        %v2472 = vunpack.c.l.b16 %v1224
        %v2473 = vunpack.c.h.b16 %v1224
        %v2474 = vunpack.c.l.b16 %v1225
        %v2475 = vunpack.c.l.b16 %v1226
        %v2476 = vunpack.c.h.b16 %v1226
        %v2477 = vunpack.c.l.b16 %v1227
        %v2478 = vunpack.c.l.b16 %v1228
        %v2479 = vunpack.c.h.b16 %v1228
        %v2480 = vunpack.c.l.b16 %v1229
        %v2481 = vunpack.c.l.b16 %v1230
        %v2482 = vunpack.c.h.b16 %v1230
        %v2483 = vunpack.c.l.b16 %v1231
        %v2484 = vunpack.c.l.b16 %v1232
        %v2485 = vunpack.c.h.b16 %v1232
        %v2486 = vunpack.c.l.b16 %v1233
        %v2487 = vunpack.c.l.b16 %v1234
        %v2488 = vunpack.c.h.b16 %v1234
        %v2489 = vunpack.c.l.b16 %v1235
        %v2490 = vunpack.c.l.b16 %v1236
        %v2491 = vunpack.c.h.b16 %v1236
        %v2492 = vunpack.c.l.b16 %v1237
        %v2493 = vunpack.c.l.b16 %v1238
        %v2494 = vunpack.c.h.b16 %v1238
        %v2495 = vunpack.c.l.b16 %v1239
        %v2496 = vunpack.c.l.b16 %v1240
        %v2497 = vunpack.c.h.b16 %v1240
        %v2498 = vunpack.c.l.b16 %v1241
        %v2499 = vunpack.c.l.b16 %v1242
        %v2500 = vunpack.c.h.b16 %v1242
        %v2501 = vunpack.c.l.b16 %v1243
        %v2502 = vunpack.c.l.b16 %v1244
        %v2503 = vunpack.c.h.b16 %v1244
        %v2504 = vunpack.c.l.b16 %v1245
        %v2505 = vunpack.c.l.b16 %v1246
        %v2506 = vunpack.c.h.b16 %v1246
        %v2507 = vunpack.c.l.b16 %v1247
        %v2508 = vunpack.c.l.b16 %v1248
        %v2509 = vunpack.c.h.b16 %v1248
        %v2510 = vunpack.c.l.b16 %v1249
        %v2511 = vunpack.c.l.b16 %v1250
        %v2512 = vunpack.c.h.b16 %v1250
        %v2513 = vunpack.c.l.b16 %v1251
        %v2514 = vunpack.c.l.b16 %v1252
        %v2515 = vunpack.c.h.b16 %v1252
        %v2516 = vunpack.c.l.b16 %v1253
        %v2517 = vunpack.c.l.b16 %v1254
        %v2518 = vunpack.c.h.b16 %v1254
        %v2519 = vunpack.c.l.b16 %v1255
        %v2520 = vunpack.c.l.b16 %v1256
        %v2521 = vunpack.c.h.b16 %v1256
        %v2522 = vunpack.c.l.b16 %v1257
        %v2523 = vunpack.c.l.b16 %v1258
        %v2524 = vunpack.c.h.b16 %v1258
        %v2525 = vunpack.c.l.b16 %v1259
        %v2526 = vunpack.c.l.b16 %v1260
        %v2527 = vunpack.c.h.b16 %v1260
        %v2528 = vunpack.c.l.b16 %v1261
        %v2529 = vunpack.c.l.b16 %v1262
        %v2530 = vunpack.c.h.b16 %v1262
        %v2531 = vunpack.c.l.b16 %v1263
        %v2532 = vpack.c.b16 %v2475, %v2472
        %v2533 = vpack.c.b16 %v2476, %v2473
        %v2534 = vpack.c.b16 %v2477, %v2474
        %v2535 = vpack.c.b16 %v2481, %v2478
        %v2536 = vpack.c.b16 %v2482, %v2479
        %v2537 = vpack.c.b16 %v2483, %v2480
        %v2538 = vpack.c.b16 %v2487, %v2484
        %v2539 = vpack.c.b16 %v2488, %v2485
        %v2540 = vpack.c.b16 %v2489, %v2486
        %v2541 = vpack.c.b16 %v2493, %v2490
        %v2542 = vpack.c.b16 %v2494, %v2491
        %v2543 = vpack.c.b16 %v2495, %v2492
        %v2544 = vpack.c.b16 %v2499, %v2496
        %v2545 = vpack.c.b16 %v2500, %v2497
        %v2546 = vpack.c.b16 %v2501, %v2498
        %v2547 = vpack.c.b16 %v2505, %v2502
        %v2548 = vpack.c.b16 %v2506, %v2503
        %v2549 = vpack.c.b16 %v2507, %v2504
        %v2550 = vpack.c.b16 %v2511, %v2508
        %v2551 = vpack.c.b16 %v2512, %v2509
        %v2552 = vpack.c.b16 %v2513, %v2510
        %v2553 = vpack.c.b16 %v2517, %v2514
        %v2554 = vpack.c.b16 %v2518, %v2515
        %v2555 = vpack.c.b16 %v2519, %v2516
        %v2556 = vpack.c.b16 %v2523, %v2520
        %v2557 = vpack.c.b16 %v2524, %v2521
        %v2558 = vpack.c.b16 %v2525, %v2522
        %v2559 = vpack.c.b16 %v2529, %v2526
        %v2560 = vpack.c.b16 %v2530, %v2527
        %v2561 = vpack.c.b16 %v2531, %v2528
        %v2593 = vsel %vm481, %v2401, 0
        %v2596 = vsel %vm481, %v2403, 0
        %v2599 = vsel %vm481, %v2405, 0
        %v2602 = vsel %vm481, %v2407, 0
        %v2605 = vsel %vm481, %v2409, 0
        %v2608 = vsel %vm481, %v2411, 0
        %v2611 = vsel %vm481, %v2413, 0
        %v2614 = vsel %vm481, %v2415, 0
        %2616 = vmatprep.subr.bf16.mxu0 %v2533
        %2617 = vmatpush1.bf16.msra.mxu0 %v2532
        %2618 = vmatprep.subr.bf16.mxu0 %v2536
        %2619 = vmatpush1.bf16.msra.mxu0 %v2535
        %2620 = vmatprep.subr.bf16.mxu0 %v2539
        %2621 = vmatpush1.bf16.msra.mxu0 %v2538
        %2622 = vmatprep.subr.bf16.mxu0 %v2542
        %2623 = vmatpush1.bf16.msra.mxu0 %v2541
        %2624 = vmatprep.subr.bf16.mxu0 %v2545
        %2625 = vmatpush1.bf16.msra.mxu0 %v2544
        %2626 = vmatprep.subr.bf16.mxu0 %v2548
        %2627 = vmatpush1.bf16.msra.mxu0 %v2547
        %2628 = vmatprep.subr.bf16.mxu0 %v2551
        %2629 = vmatpush1.bf16.msra.mxu0 %v2550
        %2630 = vmatprep.subr.bf16.mxu0 %v2554
        %2631 = vmatpush1.bf16.msra.mxu0 %v2553
        %2632 = vmatprep.subr.bf16.mxu0 %v2557
        %2633 = vmatpush1.bf16.msra.mxu0 %v2556
        %2634 = vmatprep.subr.bf16.mxu0 %v2560
        %2635 = vmatpush1.bf16.msra.mxu0 %v2559
        %2636 = vmatprep.subr.bf16.mxu0 0
        %2637 = vmatpush1.bf16.msra.mxu0 0
        %2638 = vmatprep.subr.bf16.mxu0 0
        %2639 = vmatpush1.bf16.msra.mxu0 0
        %2640 = vmatprep.subr.bf16.mxu0 0
        %2641 = vmatpush1.bf16.msra.mxu0 0
        %2642 = vmatprep.subr.bf16.mxu0 0
        %2643 = vmatpush1.bf16.msra.mxu0 0
        %2644 = vmatprep.subr.bf16.mxu0 0
        %2645 = vmatpush1.bf16.msra.mxu0 0
        %2646 = vmatprep.subr.bf16.mxu0 0
        %2647 = vmatpush1.bf16.msra.mxu0 0
        %2648 = vmatprep.mubr.bf16.mxu0 %v2593
        %2649 = vmatmul.mubr.bf16.gmra.mrb[0].mxu0 %v2400
        %v2650 = vpop.f32.mrb[0].mxu0
        %v2651 = vadd.f32 %v2420, %v2650
        %v2652 = vpop.f32.mrb[0].mxu0
        %v2653 = vadd.f32 %v2424, %v2652
        %v2654 = vpop.f32.mrb[0].mxu0
        %v2655 = vadd.f32 %v2420, %v2654
        %v2656 = vpop.f32.mrb[0].mxu0
        %v2657 = vadd.f32 %v2424, %v2656
        %2658 = vmatprep.mubr.bf16.mxu0 %v2596
        %2659 = vmatmul.mubr.bf16.gmra.mrb[0].mxu0 %v2402
        %v2660 = vpop.f32.mrb[0].mxu0
        %v2661 = vadd.f32 %v2420, %v2660
        %v2662 = vpop.f32.mrb[0].mxu0
        %v2663 = vadd.f32 %v2424, %v2662
        %v2664 = vpop.f32.mrb[0].mxu0
        %v2665 = vadd.f32 %v2420, %v2664
        %v2666 = vpop.f32.mrb[0].mxu0
        %v2667 = vadd.f32 %v2424, %v2666
        %2668 = vmatprep.mubr.bf16.mxu0 %v2599
        %2669 = vmatmul.mubr.bf16.gmra.mrb[0].mxu0 %v2404
        %v2670 = vpop.f32.mrb[0].mxu0
        %v2671 = vadd.f32 %v2420, %v2670
        %v2672 = vpop.f32.mrb[0].mxu0
        %v2673 = vadd.f32 %v2424, %v2672
        %v2674 = vpop.f32.mrb[0].mxu0
        %v2675 = vadd.f32 %v2420, %v2674
        %v2676 = vpop.f32.mrb[0].mxu0
        %v2677 = vadd.f32 %v2424, %v2676
        %2678 = vmatprep.mubr.bf16.mxu0 %v2602
        %2679 = vmatmul.mubr.bf16.gmra.mrb[0].mxu0 %v2406
        %v2680 = vpop.f32.mrb[0].mxu0
        %v2681 = vadd.f32 %v2420, %v2680
        %v2682 = vpop.f32.mrb[0].mxu0
        %v2683 = vadd.f32 %v2424, %v2682
        %v2684 = vpop.f32.mrb[0].mxu0
        %v2685 = vadd.f32 %v2420, %v2684
        %v2686 = vpop.f32.mrb[0].mxu0
        %v2687 = vadd.f32 %v2424, %v2686
        %2688 = vmatprep.mubr.bf16.mxu0 %v2605
        %2689 = vmatmul.mubr.bf16.gmra.mrb[0].mxu0 %v2408
        %v2690 = vpop.f32.mrb[0].mxu0
        %v2691 = vadd.f32 %v2420, %v2690
        %v2692 = vpop.f32.mrb[0].mxu0
        %v2693 = vadd.f32 %v2424, %v2692
        %v2694 = vpop.f32.mrb[0].mxu0
        %v2695 = vadd.f32 %v2420, %v2694
        %v2696 = vpop.f32.mrb[0].mxu0
        %v2697 = vadd.f32 %v2424, %v2696
        %2698 = vmatprep.mubr.bf16.mxu0 %v2608
        %2699 = vmatmul.mubr.bf16.gmra.mrb[0].mxu0 %v2410
        %v2700 = vpop.f32.mrb[0].mxu0
        %v2701 = vadd.f32 %v2420, %v2700
        %v2702 = vpop.f32.mrb[0].mxu0
        %v2703 = vadd.f32 %v2424, %v2702
        %v2704 = vpop.f32.mrb[0].mxu0
        %v2705 = vadd.f32 %v2420, %v2704
        %v2706 = vpop.f32.mrb[0].mxu0
        %v2707 = vadd.f32 %v2424, %v2706
        %2708 = vmatprep.mubr.bf16.mxu0 %v2611
        %2709 = vmatmul.mubr.bf16.gmra.mrb[0].mxu0 %v2412
        %v2710 = vpop.f32.mrb[0].mxu0
        %v2711 = vadd.f32 %v2420, %v2710
        %v2712 = vpop.f32.mrb[0].mxu0
        %v2713 = vadd.f32 %v2424, %v2712
        %v2714 = vpop.f32.mrb[0].mxu0
        %v2715 = vadd.f32 %v2420, %v2714
        %v2716 = vpop.f32.mrb[0].mxu0
        %v2717 = vadd.f32 %v2424, %v2716
        %2718 = vmatprep.mubr.bf16.mxu0 %v2614
        %2719 = vmatmul.mubr.bf16.gmra.mrb[0].mxu0 %v2414
        %v2720 = vpop.f32.mrb[0].mxu0
        %v2721 = vadd.f32 %v2420, %v2720
        %v2722 = vpop.f32.mrb[0].mxu0
        %v2723 = vadd.f32 %v2424, %v2722
        %v2724 = vpop.f32.mrb[0].mxu0
        %v2725 = vadd.f32 %v2420, %v2724
        %v2726 = vpop.f32.mrb[0].mxu0
        %v2727 = vadd.f32 %v2424, %v2726
        %2728 = vdwg.mxu0
        %2729 = vmatprep.subr.bf16.mxu0 0
        %2730 = vmatpush1.bf16.msra.mxu0 %v2534
        %2731 = vmatprep.subr.bf16.mxu0 0
        %2732 = vmatpush1.bf16.msra.mxu0 %v2537
        %2733 = vmatprep.subr.bf16.mxu0 0
        %2734 = vmatpush1.bf16.msra.mxu0 %v2540
        %2735 = vmatprep.subr.bf16.mxu0 0
        %2736 = vmatpush1.bf16.msra.mxu0 %v2543
        %2737 = vmatprep.subr.bf16.mxu0 0
        %2738 = vmatpush1.bf16.msra.mxu0 %v2546
        %2739 = vmatprep.subr.bf16.mxu0 0
        %2740 = vmatpush1.bf16.msra.mxu0 %v2549
        %2741 = vmatprep.subr.bf16.mxu0 0
        %2742 = vmatpush1.bf16.msra.mxu0 %v2552
        %2743 = vmatprep.subr.bf16.mxu0 0
        %2744 = vmatpush1.bf16.msra.mxu0 %v2555
        %2745 = vmatprep.subr.bf16.mxu0 0
        %2746 = vmatpush1.bf16.msra.mxu0 %v2558
        %2747 = vmatprep.subr.bf16.mxu0 0
        %2748 = vmatpush1.bf16.msra.mxu0 %v2561
        %2749 = vmatprep.subr.bf16.mxu0 0
        %2750 = vmatpush1.bf16.msra.mxu0 0
        %2751 = vmatprep.subr.bf16.mxu0 0
        %2752 = vmatpush1.bf16.msra.mxu0 0
        %2753 = vmatprep.subr.bf16.mxu0 0
        %2754 = vmatpush1.bf16.msra.mxu0 0
        %2755 = vmatprep.subr.bf16.mxu0 0
        %2756 = vmatpush1.bf16.msra.mxu0 0
        %2757 = vmatprep.subr.bf16.mxu0 0
        %2758 = vmatpush1.bf16.msra.mxu0 0
        %2759 = vmatprep.subr.bf16.mxu0 0
        %2760 = vmatpush1.bf16.msra.mxu0 0
        %2761 = vmatprep.mubr.bf16.mxu0 %v2593
        %2762 = vmatmul.mubr.bf16.gmra.mrb[0].mxu0 %v2400
        %v2763 = vpop.f32.mrb[0].mxu0
        %v2764 = vadd.f32 %v2428, %v2763
        %v2765 = vpop.f32.mrb[0].mxu0
        %v2766 = vpop.f32.mrb[0].mxu0
        %v2767 = vadd.f32 %v2428, %v2766
        %v2768 = vpop.f32.mrb[0].mxu0
        %2769 = vmatprep.mubr.bf16.mxu0 %v2596
        %2770 = vmatmul.mubr.bf16.gmra.mrb[0].mxu0 %v2402
        %v2771 = vpop.f32.mrb[0].mxu0
        %v2772 = vadd.f32 %v2428, %v2771
        %v2773 = vpop.f32.mrb[0].mxu0
        %v2774 = vpop.f32.mrb[0].mxu0
        %v2775 = vadd.f32 %v2428, %v2774
        %v2776 = vpop.f32.mrb[0].mxu0
        %2777 = vmatprep.mubr.bf16.mxu0 %v2599
        %2778 = vmatmul.mubr.bf16.gmra.mrb[0].mxu0 %v2404
        %v2779 = vpop.f32.mrb[0].mxu0
        %v2780 = vadd.f32 %v2428, %v2779
        %v2781 = vpop.f32.mrb[0].mxu0
        %v2782 = vpop.f32.mrb[0].mxu0
        %v2783 = vadd.f32 %v2428, %v2782
        %v2784 = vpop.f32.mrb[0].mxu0
        %2785 = vmatprep.mubr.bf16.mxu0 %v2602
        %2786 = vmatmul.mubr.bf16.gmra.mrb[0].mxu0 %v2406
        %v2787 = vpop.f32.mrb[0].mxu0
        %v2788 = vadd.f32 %v2428, %v2787
        %v2789 = vpop.f32.mrb[0].mxu0
        %v2790 = vpop.f32.mrb[0].mxu0
        %v2791 = vadd.f32 %v2428, %v2790
        %v2792 = vpop.f32.mrb[0].mxu0
        %2793 = vmatprep.mubr.bf16.mxu0 %v2605
        %2794 = vmatmul.mubr.bf16.gmra.mrb[0].mxu0 %v2408
        %v2795 = vpop.f32.mrb[0].mxu0
        %v2796 = vadd.f32 %v2428, %v2795
        %v2797 = vpop.f32.mrb[0].mxu0
        %v2798 = vpop.f32.mrb[0].mxu0
        %v2799 = vadd.f32 %v2428, %v2798
        %v2800 = vpop.f32.mrb[0].mxu0
        %2801 = vmatprep.mubr.bf16.mxu0 %v2608
        %2802 = vmatmul.mubr.bf16.gmra.mrb[0].mxu0 %v2410
        %v2803 = vpop.f32.mrb[0].mxu0
        %v2804 = vadd.f32 %v2428, %v2803
        %v2805 = vpop.f32.mrb[0].mxu0
        %v2806 = vpop.f32.mrb[0].mxu0
        %v2807 = vadd.f32 %v2428, %v2806
        %v2808 = vpop.f32.mrb[0].mxu0
        %2809 = vmatprep.mubr.bf16.mxu0 %v2611
        %2810 = vmatmul.mubr.bf16.gmra.mrb[0].mxu0 %v2412
        %v2811 = vpop.f32.mrb[0].mxu0
        %v2812 = vadd.f32 %v2428, %v2811
        %v2813 = vpop.f32.mrb[0].mxu0
        %v2814 = vpop.f32.mrb[0].mxu0
        %v2815 = vadd.f32 %v2428, %v2814
        %v2816 = vpop.f32.mrb[0].mxu0
        %2817 = vmatprep.mubr.bf16.mxu0 %v2614
        %2818 = vmatmul.mubr.bf16.gmra.mrb[0].mxu0 %v2414
        %v2819 = vpop.f32.mrb[0].mxu0
        %v2820 = vadd.f32 %v2428, %v2819
        %v2821 = vpop.f32.mrb[0].mxu0
        %v2822 = vpop.f32.mrb[0].mxu0
        %v2823 = vadd.f32 %v2428, %v2822
        %v2824 = vpop.f32.mrb[0].mxu0
        %2825 = vdwg.mxu0
        %v2826 = vxor.u32 %v2653, 2147483648
        %v2827 = vxor.u32 %v2764, 2147483648
        %v2828 = vxor.u32 %v2657, 2147483648
        %v2829 = vxor.u32 %v2767, 2147483648
        %v2830 = vxor.u32 %v2663, 2147483648
        %v2831 = vxor.u32 %v2772, 2147483648
        %v2832 = vxor.u32 %v2667, 2147483648
        %v2833 = vxor.u32 %v2775, 2147483648
        %v2834 = vxor.u32 %v2673, 2147483648
        %v2835 = vxor.u32 %v2780, 2147483648
        %v2836 = vxor.u32 %v2677, 2147483648
        %v2837 = vxor.u32 %v2783, 2147483648
        %v2838 = vxor.u32 %v2683, 2147483648
        %v2839 = vxor.u32 %v2788, 2147483648
        %v2840 = vxor.u32 %v2687, 2147483648
        %v2841 = vxor.u32 %v2791, 2147483648
        %v2842 = vxor.u32 %v2693, 2147483648
        %v2843 = vxor.u32 %v2796, 2147483648
        %v2844 = vxor.u32 %v2697, 2147483648
        %v2845 = vxor.u32 %v2799, 2147483648
        %v2846 = vxor.u32 %v2703, 2147483648
        %v2847 = vxor.u32 %v2804, 2147483648
        %v2848 = vxor.u32 %v2707, 2147483648
        %v2849 = vxor.u32 %v2807, 2147483648
        %v2850 = vxor.u32 %v2713, 2147483648
        %v2851 = vxor.u32 %v2812, 2147483648
        %v2852 = vxor.u32 %v2717, 2147483648
        %v2853 = vxor.u32 %v2815, 2147483648
        %v2854 = vxor.u32 %v2723, 2147483648
        %v2855 = vxor.u32 %v2820, 2147483648
        %v2856 = vxor.u32 %v2727, 2147483648
        %v2857 = vxor.u32 %v2823, 2147483648
        %v2858 = vmul.f32 %v2826, 1.442695
        %v2859 = vpow.pop %v2858
        %v2860 = vmul.f32 %v2827, 1.442695
        %v2861 = vpow.pop %v2860
        %v2862 = vmul.f32 %v2828, 1.442695
        %v2863 = vpow.pop %v2862
        %v2864 = vmul.f32 %v2829, 1.442695
        %v2865 = vpow.pop %v2864
        %v2866 = vmul.f32 %v2830, 1.442695
        %v2867 = vpow.pop %v2866
        %v2868 = vmul.f32 %v2831, 1.442695
        %v2869 = vpow.pop %v2868
        %v2870 = vmul.f32 %v2832, 1.442695
        %v2871 = vpow.pop %v2870
        %v2872 = vmul.f32 %v2833, 1.442695
        %v2873 = vpow.pop %v2872
        %v2874 = vmul.f32 %v2834, 1.442695
        %v2875 = vpow.pop %v2874
        %v2876 = vmul.f32 %v2835, 1.442695
        %v2877 = vpow.pop %v2876
        %v2878 = vmul.f32 %v2836, 1.442695
        %v2879 = vpow.pop %v2878
        %v2880 = vmul.f32 %v2837, 1.442695
        %v2881 = vpow.pop %v2880
        %v2882 = vmul.f32 %v2838, 1.442695
        %v2883 = vpow.pop %v2882
        %v2884 = vmul.f32 %v2839, 1.442695
        %v2885 = vpow.pop %v2884
        %v2886 = vmul.f32 %v2840, 1.442695
        %v2887 = vpow.pop %v2886
        %v2888 = vmul.f32 %v2841, 1.442695
        %v2889 = vpow.pop %v2888
        %v2890 = vmul.f32 %v2842, 1.442695
        %v2891 = vpow.pop %v2890
        %v2892 = vmul.f32 %v2843, 1.442695
        %v2893 = vpow.pop %v2892
        %v2894 = vmul.f32 %v2844, 1.442695
        %v2895 = vpow.pop %v2894
        %v2896 = vmul.f32 %v2845, 1.442695
        %v2897 = vpow.pop %v2896
        %v2898 = vmul.f32 %v2846, 1.442695
        %v2899 = vpow.pop %v2898
        %v2900 = vmul.f32 %v2847, 1.442695
        %v2901 = vpow.pop %v2900
        %v2902 = vmul.f32 %v2848, 1.442695
        %v2903 = vpow.pop %v2902
        %v2904 = vmul.f32 %v2849, 1.442695
        %v2905 = vpow.pop %v2904
        %v2906 = vmul.f32 %v2850, 1.442695
        %v2907 = vpow.pop %v2906
        %v2908 = vmul.f32 %v2851, 1.442695
        %v2909 = vpow.pop %v2908
        %v2910 = vmul.f32 %v2852, 1.442695
        %v2911 = vpow.pop %v2910
        %v2912 = vmul.f32 %v2853, 1.442695
        %v2913 = vpow.pop %v2912
        %v2914 = vmul.f32 %v2854, 1.442695
        %v2915 = vpow.pop %v2914
        %v2916 = vmul.f32 %v2855, 1.442695
        %v2917 = vpow.pop %v2916
        %v2918 = vmul.f32 %v2856, 1.442695
        %v2919 = vpow.pop %v2918
        %v2920 = vmul.f32 %v2857, 1.442695
        %v2921 = vpow.pop %v2920
        %v2922 = vadd.f32 %v2859, 1.0
        %v2923 = vadd.f32 %v2861, 1.0
        %v2924 = vadd.f32 %v2863, 1.0
        %v2925 = vadd.f32 %v2865, 1.0
        %v2926 = vadd.f32 %v2867, 1.0
        %v2927 = vadd.f32 %v2869, 1.0
        %v2928 = vadd.f32 %v2871, 1.0
        %v2929 = vadd.f32 %v2873, 1.0
        %v2930 = vadd.f32 %v2875, 1.0
        %v2931 = vadd.f32 %v2877, 1.0
        %v2932 = vadd.f32 %v2879, 1.0
        %v2933 = vadd.f32 %v2881, 1.0
        %v2934 = vadd.f32 %v2883, 1.0
        %v2935 = vadd.f32 %v2885, 1.0
        %v2936 = vadd.f32 %v2887, 1.0
        %v2937 = vadd.f32 %v2889, 1.0
        %v2938 = vadd.f32 %v2891, 1.0
        %v2939 = vadd.f32 %v2893, 1.0
        %v2940 = vadd.f32 %v2895, 1.0
        %v2941 = vadd.f32 %v2897, 1.0
        %v2942 = vadd.f32 %v2899, 1.0
        %v2943 = vadd.f32 %v2901, 1.0
        %v2944 = vadd.f32 %v2903, 1.0
        %v2945 = vadd.f32 %v2905, 1.0
        %v2946 = vadd.f32 %v2907, 1.0
        %v2947 = vadd.f32 %v2909, 1.0
        %v2948 = vadd.f32 %v2911, 1.0
        %v2949 = vadd.f32 %v2913, 1.0
        %v2950 = vadd.f32 %v2915, 1.0
        %v2951 = vadd.f32 %v2917, 1.0
        %v2952 = vadd.f32 %v2919, 1.0
        %v2953 = vadd.f32 %v2921, 1.0
        %v2954 = vrcp.pop %v2922
        %v2955 = vmul.f32 1.0, %v2954
        %v2956 = vrcp.pop %v2923
        %v2957 = vmul.f32 1.0, %v2956
        %v2958 = vrcp.pop %v2924
        %v2959 = vmul.f32 1.0, %v2958
        %v2960 = vrcp.pop %v2925
        %v2961 = vmul.f32 1.0, %v2960
        %v2962 = vrcp.pop %v2926
        %v2963 = vmul.f32 1.0, %v2962
        %v2964 = vrcp.pop %v2927
        %v2965 = vmul.f32 1.0, %v2964
        %v2966 = vrcp.pop %v2928
        %v2967 = vmul.f32 1.0, %v2966
        %v2968 = vrcp.pop %v2929
        %v2969 = vmul.f32 1.0, %v2968
        %v2970 = vrcp.pop %v2930
        %v2971 = vmul.f32 1.0, %v2970
        %v2972 = vrcp.pop %v2931
        %v2973 = vmul.f32 1.0, %v2972
        %v2974 = vrcp.pop %v2932
        %v2975 = vmul.f32 1.0, %v2974
        %v2976 = vrcp.pop %v2933
        %v2977 = vmul.f32 1.0, %v2976
        %v2978 = vrcp.pop %v2934
        %v2979 = vmul.f32 1.0, %v2978
        %v2980 = vrcp.pop %v2935
        %v2981 = vmul.f32 1.0, %v2980
        %v2982 = vrcp.pop %v2936
        %v2983 = vmul.f32 1.0, %v2982
        %v2984 = vrcp.pop %v2937
        %v2985 = vmul.f32 1.0, %v2984
        %v2986 = vrcp.pop %v2938
        %v2987 = vmul.f32 1.0, %v2986
        %v2988 = vrcp.pop %v2939
        %v2989 = vmul.f32 1.0, %v2988
        %v2990 = vrcp.pop %v2940
        %v2991 = vmul.f32 1.0, %v2990
        %v2992 = vrcp.pop %v2941
        %v2993 = vmul.f32 1.0, %v2992
        %v2994 = vrcp.pop %v2942
        %v2995 = vmul.f32 1.0, %v2994
        %v2996 = vrcp.pop %v2943
        %v2997 = vmul.f32 1.0, %v2996
        %v2998 = vrcp.pop %v2944
        %v2999 = vmul.f32 1.0, %v2998
        %v3000 = vrcp.pop %v2945
        %v3001 = vmul.f32 1.0, %v3000
        %v3002 = vrcp.pop %v2946
        %v3003 = vmul.f32 1.0, %v3002
        %v3004 = vrcp.pop %v2947
        %v3005 = vmul.f32 1.0, %v3004
        %v3006 = vrcp.pop %v2948
        %v3007 = vmul.f32 1.0, %v3006
        %v3008 = vrcp.pop %v2949
        %v3009 = vmul.f32 1.0, %v3008
        %v3010 = vrcp.pop %v2950
        %v3011 = vmul.f32 1.0, %v3010
        %v3012 = vrcp.pop %v2951
        %v3013 = vmul.f32 1.0, %v3012
        %v3014 = vrcp.pop %v2952
        %v3015 = vmul.f32 1.0, %v3014
        %v3016 = vrcp.pop %v2953
        %v3017 = vmul.f32 1.0, %v3016
        %3050 = vrot.lane.b32.xlu0 %v2955, 96
        %v3051 = vpop.permute.xlu0 %3050
        %3052 = vrot.lane.b32.xlu0 %v2957, 96
        %v3053 = vpop.permute.xlu0 %3052
        %3054 = vrot.lane.b32.xlu0 %v2959, 96
        %v3055 = vpop.permute.xlu0 %3054
        %3056 = vrot.lane.b32.xlu0 %v2961, 96
        %v3057 = vpop.permute.xlu0 %3056
        %3058 = vrot.lane.b32.xlu0 %v2963, 96
        %v3059 = vpop.permute.xlu0 %3058
        %3060 = vrot.lane.b32.xlu0 %v2965, 96
        %v3061 = vpop.permute.xlu0 %3060
        %3062 = vrot.lane.b32.xlu0 %v2967, 96
        %v3063 = vpop.permute.xlu0 %3062
        %3064 = vrot.lane.b32.xlu0 %v2969, 96
        %v3065 = vpop.permute.xlu0 %3064
        %3066 = vrot.lane.b32.xlu0 %v2971, 96
        %v3067 = vpop.permute.xlu0 %3066
        %3068 = vrot.lane.b32.xlu0 %v2973, 96
        %v3069 = vpop.permute.xlu0 %3068
        %3070 = vrot.lane.b32.xlu0 %v2975, 96
        %v3071 = vpop.permute.xlu0 %3070
        %3072 = vrot.lane.b32.xlu0 %v2977, 96
        %v3073 = vpop.permute.xlu0 %3072
        %3074 = vrot.lane.b32.xlu0 %v2979, 96
        %v3075 = vpop.permute.xlu0 %3074
        %3076 = vrot.lane.b32.xlu0 %v2981, 96
        %v3077 = vpop.permute.xlu0 %3076
        %3078 = vrot.lane.b32.xlu0 %v2983, 96
        %v3079 = vpop.permute.xlu0 %3078
        %3080 = vrot.lane.b32.xlu0 %v2985, 96
        %v3081 = vpop.permute.xlu0 %3080
        %3082 = vrot.lane.b32.xlu0 %v2987, 96
        %v3083 = vpop.permute.xlu0 %3082
        %3084 = vrot.lane.b32.xlu0 %v2989, 96
        %v3085 = vpop.permute.xlu0 %3084
        %3086 = vrot.lane.b32.xlu0 %v2991, 96
        %v3087 = vpop.permute.xlu0 %3086
        %3088 = vrot.lane.b32.xlu0 %v2993, 96
        %v3089 = vpop.permute.xlu0 %3088
        %3090 = vrot.lane.b32.xlu0 %v2995, 96
        %v3091 = vpop.permute.xlu0 %3090
        %3092 = vrot.lane.b32.xlu0 %v2997, 96
        %v3093 = vpop.permute.xlu0 %3092
        %3094 = vrot.lane.b32.xlu0 %v2999, 96
        %v3095 = vpop.permute.xlu0 %3094
        %3096 = vrot.lane.b32.xlu0 %v3001, 96
        %v3097 = vpop.permute.xlu0 %3096
        %3098 = vrot.lane.b32.xlu0 %v3003, 96
        %v3099 = vpop.permute.xlu0 %3098
        %3100 = vrot.lane.b32.xlu0 %v3005, 96
        %v3101 = vpop.permute.xlu0 %3100
        %3102 = vrot.lane.b32.xlu0 %v3007, 96
        %v3103 = vpop.permute.xlu0 %3102
        %3104 = vrot.lane.b32.xlu0 %v3009, 96
        %v3105 = vpop.permute.xlu0 %3104
        %3106 = vrot.lane.b32.xlu0 %v3011, 96
        %v3107 = vpop.permute.xlu0 %3106
        %3108 = vrot.lane.b32.xlu0 %v3013, 96
        %v3109 = vpop.permute.xlu0 %3108
        %3110 = vrot.lane.b32.xlu0 %v3015, 96
        %v3111 = vpop.permute.xlu0 %3110
        %3112 = vrot.lane.b32.xlu0 %v3017, 96
        %v3113 = vpop.permute.xlu0 %3112
        %v3114 = vsel %vm1199, %v3051, %v3053
        %v3115 = vsel %vm1199, %v3055, %v3057
        %v3116 = vsel %vm1199, %v3059, %v3061
        %v3117 = vsel %vm1199, %v3063, %v3065
        %v3118 = vsel %vm1199, %v3067, %v3069
        %v3119 = vsel %vm1199, %v3071, %v3073
        %v3120 = vsel %vm1199, %v3075, %v3077
        %v3121 = vsel %vm1199, %v3079, %v3081
        %v3122 = vsel %vm1199, %v3083, %v3085
        %v3123 = vsel %vm1199, %v3087, %v3089
        %v3124 = vsel %vm1199, %v3091, %v3093
        %v3125 = vsel %vm1199, %v3095, %v3097
        %v3126 = vsel %vm1199, %v3099, %v3101
        %v3127 = vsel %vm1199, %v3103, %v3105
        %v3128 = vsel %vm1199, %v3107, %v3109
        %v3129 = vsel %vm1199, %v3111, %v3113
        %v3162 = vmul.f32 %v2651, %v3114
        %v3163 = vmul.f32 %v2653, %v3053
        %v3164 = vmul.f32 %v2655, %v3115
        %v3165 = vmul.f32 %v2657, %v3057
        %v3166 = vmul.f32 %v2661, %v3116
        %v3167 = vmul.f32 %v2663, %v3061
        %v3168 = vmul.f32 %v2665, %v3117
        %v3169 = vmul.f32 %v2667, %v3065
        %v3170 = vmul.f32 %v2671, %v3118
        %v3171 = vmul.f32 %v2673, %v3069
        %v3172 = vmul.f32 %v2675, %v3119
        %v3173 = vmul.f32 %v2677, %v3073
        %v3174 = vmul.f32 %v2681, %v3120
        %v3175 = vmul.f32 %v2683, %v3077
        %v3176 = vmul.f32 %v2685, %v3121
        %v3177 = vmul.f32 %v2687, %v3081
        %v3178 = vmul.f32 %v2691, %v3122
        %v3179 = vmul.f32 %v2693, %v3085
        %v3180 = vmul.f32 %v2695, %v3123
        %v3181 = vmul.f32 %v2697, %v3089
        %v3182 = vmul.f32 %v2701, %v3124
        %v3183 = vmul.f32 %v2703, %v3093
        %v3184 = vmul.f32 %v2705, %v3125
        %v3185 = vmul.f32 %v2707, %v3097
        %v3186 = vmul.f32 %v2711, %v3126
        %v3187 = vmul.f32 %v2713, %v3101
        %v3188 = vmul.f32 %v2715, %v3127
        %v3189 = vmul.f32 %v2717, %v3105
        %v3190 = vmul.f32 %v2721, %v3128
        %v3191 = vmul.f32 %v2723, %v3109
        %v3192 = vmul.f32 %v2725, %v3129
        %v3193 = vmul.f32 %v2727, %v3113
        %v3194 = vpack.c.bf16 %v3164, %v3162
        %v3195 = vpack.c.bf16 %v3165, %v3163
        %v3196 = vpack.c.bf16 %v3168, %v3166
        %v3197 = vpack.c.bf16 %v3169, %v3167
        %v3198 = vpack.c.bf16 %v3172, %v3170
        %v3199 = vpack.c.bf16 %v3173, %v3171
        %v3200 = vpack.c.bf16 %v3176, %v3174
        %v3201 = vpack.c.bf16 %v3177, %v3175
        %v3202 = vpack.c.bf16 %v3180, %v3178
        %v3203 = vpack.c.bf16 %v3181, %v3179
        %v3204 = vpack.c.bf16 %v3184, %v3182
        %v3205 = vpack.c.bf16 %v3185, %v3183
        %v3206 = vpack.c.bf16 %v3188, %v3186
        %v3207 = vpack.c.bf16 %v3189, %v3187
        %v3208 = vpack.c.bf16 %v3192, %v3190
        %v3209 = vpack.c.bf16 %v3193, %v3191
        %v3210 = vld [vmem:[#allocation11] sm:$0xff]
        %v3211 = vld [vmem:[#allocation11 + $0x8] sm:$0xf]
        %v3212 = vld [vmem:[#allocation11 + $0xc] sm:$0xff]
        %v3213 = vld [vmem:[#allocation11 + $0x14] sm:$0xf]
        %v3214 = vld [vmem:[#allocation11 + $0x18] sm:$0xff]
        %v3215 = vld [vmem:[#allocation11 + $0x20] sm:$0xf]
        %v3216 = vld [vmem:[#allocation11 + $0x24] sm:$0xff]
        %v3217 = vld [vmem:[#allocation11 + $0x2c] sm:$0xf]
        %v3218 = vld [vmem:[#allocation11 + $0x30] sm:$0xff]
        %v3219 = vld [vmem:[#allocation11 + $0x38] sm:$0xf]
        %v3220 = vld [vmem:[#allocation11 + $0x3c] sm:$0xff]
        %v3221 = vld [vmem:[#allocation11 + $0x44] sm:$0xf]
        %v3222 = vld [vmem:[#allocation11 + $0x48] sm:$0xff]
        %v3223 = vld [vmem:[#allocation11 + $0x50] sm:$0xf]
        %v3224 = vld [vmem:[#allocation11 + $0x54] sm:$0xff]
        %v3225 = vld [vmem:[#allocation11 + $0x5c] sm:$0xf]
        %v3226 = vld [vmem:[#allocation11 + $0x60] sm:$0xff]
        %v3227 = vld [vmem:[#allocation11 + $0x68] sm:$0xf]
        %v3228 = vld [vmem:[#allocation11 + $0x6c] sm:$0xff]
        %v3229 = vld [vmem:[#allocation11 + $0x74] sm:$0xf]
        %v3230 = vld [vmem:[#allocation11 + $0x78] sm:$0xff]
        %v3231 = vld [vmem:[#allocation11 + $0x80] sm:$0xf]
        %v3232 = vld [vmem:[#allocation11 + $0x84] sm:$0xff]
        %v3233 = vld [vmem:[#allocation11 + $0x8c] sm:$0xf]
        %v3234 = vld [vmem:[#allocation11 + $0x90] sm:$0xff]
        %v3235 = vld [vmem:[#allocation11 + $0x98] sm:$0xf]
        %v3236 = vld [vmem:[#allocation11 + $0x9c] sm:$0xff]
        %v3237 = vld [vmem:[#allocation11 + $0xa4] sm:$0xf]
        %v3238 = vld [vmem:[#allocation11 + $0xa8] sm:$0xff]
        %v3239 = vld [vmem:[#allocation11 + $0xb0] sm:$0xf]
        %v3240 = vld [vmem:[#allocation11 + $0xb4] sm:$0xff]
        %v3241 = vld [vmem:[#allocation11 + $0xbc] sm:$0xf]
        %v3242 = vld [vmem:[#allocation11 + $0xc0] sm:$0xff]
        %v3243 = vld [vmem:[#allocation11 + $0xc8] sm:$0xf]
        %v3244 = vld [vmem:[#allocation11 + $0xcc] sm:$0xff]
        %v3245 = vld [vmem:[#allocation11 + $0xd4] sm:$0xf]
        %v3246 = vld [vmem:[#allocation11 + $0xd8] sm:$0xff]
        %v3247 = vld [vmem:[#allocation11 + $0xe0] sm:$0xf]
        %v3248 = vld [vmem:[#allocation11 + $0xe4] sm:$0xff]
        %v3249 = vld [vmem:[#allocation11 + $0xec] sm:$0xf]
        %v3250 = vld [vmem:[%s8] sm:$0x7]
        %v3251 = vsel %vm481, %v1275, 0
        %v3253 = vsel %vm481, %v1276, 0
        %3255 = vmatprep.subr.bf16.mxu0 %v3195
        %3256 = vmatpush1.bf16.msra.mxu0 %v3194
        %3257 = vmatprep.subr.bf16.mxu0 %v3197
        %3258 = vmatpush1.bf16.msra.mxu0 %v3196
        %3259 = vmatprep.subr.bf16.mxu0 0
        %3260 = vmatpush1.bf16.msra.mxu0 0
        %3261 = vmatprep.subr.bf16.mxu0 0
        %3262 = vmatpush1.bf16.msra.mxu0 0
        %3263 = vmatprep.subr.bf16.mxu0 0
        %3264 = vmatpush1.bf16.msra.mxu0 0
        %3265 = vmatprep.subr.bf16.mxu0 0
        %3266 = vmatpush1.bf16.msra.mxu0 0
        %3267 = vmatprep.subr.bf16.mxu0 0
        %3268 = vmatpush1.bf16.msra.mxu0 0
        %3269 = vmatprep.subr.bf16.mxu0 0
        %3270 = vmatpush1.bf16.msra.mxu0 0
        %3271 = vmatprep.subr.bf16.mxu0 0
        %3272 = vmatpush1.bf16.msra.mxu0 0
        %3273 = vmatprep.subr.bf16.mxu0 0
        %3274 = vmatpush1.bf16.msra.mxu0 0
        %3275 = vmatprep.subr.bf16.mxu0 0
        %3276 = vmatpush1.bf16.msra.mxu0 0
        %3277 = vmatprep.subr.bf16.mxu0 0
        %3278 = vmatpush1.bf16.msra.mxu0 0
        %3279 = vmatprep.subr.bf16.mxu0 0
        %3280 = vmatpush1.bf16.msra.mxu0 0
        %3281 = vmatprep.subr.bf16.mxu0 0
        %3282 = vmatpush1.bf16.msra.mxu0 0
        %3283 = vmatprep.subr.bf16.mxu0 0
        %3284 = vmatpush1.bf16.msra.mxu0 0
        %3285 = vmatprep.subr.bf16.mxu0 0
        %3286 = vmatpush1.bf16.msra.mxu0 0
        %3287 = vmatprep.mubr.bf16.mxu0 0
        %3288 = vmatmul.mubr.bf16.gmra.mrb[0].mxu0 %v3251
        %v3289 = vpop.f32.mrb[0].mxu0
        %v3290 = vadd.f32 0.0, %v3289
        %v3291 = vpop.f32.mrb[0].mxu0
        %v3292 = vadd.f32 0.0, %v3291
        %v3293 = vpop.f32.mrb[0].mxu0
        %v3294 = vadd.f32 0.0, %v3293
        %v3295 = vpop.f32.mrb[0].mxu0
        %v3296 = vadd.f32 0.0, %v3295
        %3297 = vmatprep.mubr.bf16.mxu0 0
        %3298 = vmatmul.mubr.bf16.gmra.mrb[0].mxu0 %v3253
        %v3299 = vpop.f32.mrb[0].mxu0
        %v3300 = vadd.f32 0.0, %v3299
        %v3301 = vpop.f32.mrb[0].mxu0
        %v3302 = vadd.f32 0.0, %v3301
        %v3303 = vpop.f32.mrb[0].mxu0
        %v3304 = vadd.f32 0.0, %v3303
        %v3305 = vpop.f32.mrb[0].mxu0
        %v3306 = vadd.f32 0.0, %v3305
        %3307 = vdwg.mxu0
        %3308 = vmatprep.subr.bf16.mxu0 %v3199
        %3309 = vmatpush1.bf16.msra.mxu0 %v3198
        %3310 = vmatprep.subr.bf16.mxu0 %v3201
        %3311 = vmatpush1.bf16.msra.mxu0 %v3200
        %3312 = vmatprep.subr.bf16.mxu0 0
        %3313 = vmatpush1.bf16.msra.mxu0 0
        %3314 = vmatprep.subr.bf16.mxu0 0
        %3315 = vmatpush1.bf16.msra.mxu0 0
        %3316 = vmatprep.subr.bf16.mxu0 0
        %3317 = vmatpush1.bf16.msra.mxu0 0
        %3318 = vmatprep.subr.bf16.mxu0 0
        %3319 = vmatpush1.bf16.msra.mxu0 0
        %3320 = vmatprep.subr.bf16.mxu0 0
        %3321 = vmatpush1.bf16.msra.mxu0 0
        %3322 = vmatprep.subr.bf16.mxu0 0
        %3323 = vmatpush1.bf16.msra.mxu0 0
        %3324 = vmatprep.subr.bf16.mxu0 0
        %3325 = vmatpush1.bf16.msra.mxu0 0
        %3326 = vmatprep.subr.bf16.mxu0 0
        %3327 = vmatpush1.bf16.msra.mxu0 0
        %3328 = vmatprep.subr.bf16.mxu0 0
        %3329 = vmatpush1.bf16.msra.mxu0 0
        %3330 = vmatprep.subr.bf16.mxu0 0
        %3331 = vmatpush1.bf16.msra.mxu0 0
        %3332 = vmatprep.subr.bf16.mxu0 0
        %3333 = vmatpush1.bf16.msra.mxu0 0
        %3334 = vmatprep.subr.bf16.mxu0 0
        %3335 = vmatpush1.bf16.msra.mxu0 0
        %3336 = vmatprep.subr.bf16.mxu0 0
        %3337 = vmatpush1.bf16.msra.mxu0 0
        %3338 = vmatprep.subr.bf16.mxu0 0
        %3339 = vmatpush1.bf16.msra.mxu0 0
        %3340 = vmatprep.mubr.bf16.mxu0 0
        %3341 = vmatmul.mubr.bf16.gmra.mrb[0].mxu0 %v3251
        %v3342 = vpop.f32.mrb[0].mxu0
        %v3343 = vadd.f32 0.0, %v3342
        %v3344 = vpop.f32.mrb[0].mxu0
        %v3345 = vadd.f32 0.0, %v3344
        %v3346 = vpop.f32.mrb[0].mxu0
        %v3347 = vadd.f32 0.0, %v3346
        %v3348 = vpop.f32.mrb[0].mxu0
        %v3349 = vadd.f32 0.0, %v3348
        %3350 = vmatprep.mubr.bf16.mxu0 0
        %3351 = vmatmul.mubr.bf16.gmra.mrb[0].mxu0 %v3253
        %v3352 = vpop.f32.mrb[0].mxu0
        %v3353 = vadd.f32 0.0, %v3352
        %v3354 = vpop.f32.mrb[0].mxu0
        %v3355 = vadd.f32 0.0, %v3354
        %v3356 = vpop.f32.mrb[0].mxu0
        %v3357 = vadd.f32 0.0, %v3356
        %v3358 = vpop.f32.mrb[0].mxu0
        %v3359 = vadd.f32 0.0, %v3358
        %3360 = vdwg.mxu0
        %3361 = vmatprep.subr.bf16.mxu0 %v3203
        %3362 = vmatpush1.bf16.msra.mxu0 %v3202
        %3363 = vmatprep.subr.bf16.mxu0 %v3205
        %3364 = vmatpush1.bf16.msra.mxu0 %v3204
        %3365 = vmatprep.subr.bf16.mxu0 0
        %3366 = vmatpush1.bf16.msra.mxu0 0
        %3367 = vmatprep.subr.bf16.mxu0 0
        %3368 = vmatpush1.bf16.msra.mxu0 0
        %3369 = vmatprep.subr.bf16.mxu0 0
        %3370 = vmatpush1.bf16.msra.mxu0 0
        %3371 = vmatprep.subr.bf16.mxu0 0
        %3372 = vmatpush1.bf16.msra.mxu0 0
        %3373 = vmatprep.subr.bf16.mxu0 0
        %3374 = vmatpush1.bf16.msra.mxu0 0
        %3375 = vmatprep.subr.bf16.mxu0 0
        %3376 = vmatpush1.bf16.msra.mxu0 0
        %3377 = vmatprep.subr.bf16.mxu0 0
        %3378 = vmatpush1.bf16.msra.mxu0 0
        %3379 = vmatprep.subr.bf16.mxu0 0
        %3380 = vmatpush1.bf16.msra.mxu0 0
        %3381 = vmatprep.subr.bf16.mxu0 0
        %3382 = vmatpush1.bf16.msra.mxu0 0
        %3383 = vmatprep.subr.bf16.mxu0 0
        %3384 = vmatpush1.bf16.msra.mxu0 0
        %3385 = vmatprep.subr.bf16.mxu0 0
        %3386 = vmatpush1.bf16.msra.mxu0 0
        %3387 = vmatprep.subr.bf16.mxu0 0
        %3388 = vmatpush1.bf16.msra.mxu0 0
        %3389 = vmatprep.subr.bf16.mxu0 0
        %3390 = vmatpush1.bf16.msra.mxu0 0
        %3391 = vmatprep.subr.bf16.mxu0 0
        %3392 = vmatpush1.bf16.msra.mxu0 0
        %3393 = vmatprep.mubr.bf16.mxu0 0
        %3394 = vmatmul.mubr.bf16.gmra.mrb[0].mxu0 %v3251
        %v3395 = vpop.f32.mrb[0].mxu0
        %v3396 = vadd.f32 0.0, %v3395
        %v3397 = vpop.f32.mrb[0].mxu0
        %v3398 = vadd.f32 0.0, %v3397
        %v3399 = vpop.f32.mrb[0].mxu0
        %v3400 = vadd.f32 0.0, %v3399
        %v3401 = vpop.f32.mrb[0].mxu0
        %v3402 = vadd.f32 0.0, %v3401
        %3403 = vmatprep.mubr.bf16.mxu0 0
        %3404 = vmatmul.mubr.bf16.gmra.mrb[0].mxu0 %v3253
        %v3405 = vpop.f32.mrb[0].mxu0
        %v3406 = vadd.f32 0.0, %v3405
        %v3407 = vpop.f32.mrb[0].mxu0
        %v3408 = vadd.f32 0.0, %v3407
        %v3409 = vpop.f32.mrb[0].mxu0
        %v3410 = vadd.f32 0.0, %v3409
        %v3411 = vpop.f32.mrb[0].mxu0
        %v3412 = vadd.f32 0.0, %v3411
        %3413 = vdwg.mxu0
        %3414 = vmatprep.subr.bf16.mxu0 %v3207
        %3415 = vmatpush1.bf16.msra.mxu0 %v3206
        %3416 = vmatprep.subr.bf16.mxu0 %v3209
        %3417 = vmatpush1.bf16.msra.mxu0 %v3208
        %3418 = vmatprep.subr.bf16.mxu0 0
        %3419 = vmatpush1.bf16.msra.mxu0 0
        %3420 = vmatprep.subr.bf16.mxu0 0
        %3421 = vmatpush1.bf16.msra.mxu0 0
        %3422 = vmatprep.subr.bf16.mxu0 0
        %3423 = vmatpush1.bf16.msra.mxu0 0
        %3424 = vmatprep.subr.bf16.mxu0 0
        %3425 = vmatpush1.bf16.msra.mxu0 0
        %3426 = vmatprep.subr.bf16.mxu0 0
        %3427 = vmatpush1.bf16.msra.mxu0 0
        %3428 = vmatprep.subr.bf16.mxu0 0
        %3429 = vmatpush1.bf16.msra.mxu0 0
        %3430 = vmatprep.subr.bf16.mxu0 0
        %3431 = vmatpush1.bf16.msra.mxu0 0
        %3432 = vmatprep.subr.bf16.mxu0 0
        %3433 = vmatpush1.bf16.msra.mxu0 0
        %3434 = vmatprep.subr.bf16.mxu0 0
        %3435 = vmatpush1.bf16.msra.mxu0 0
        %3436 = vmatprep.subr.bf16.mxu0 0
        %3437 = vmatpush1.bf16.msra.mxu0 0
        %3438 = vmatprep.subr.bf16.mxu0 0
        %3439 = vmatpush1.bf16.msra.mxu0 0
        %3440 = vmatprep.subr.bf16.mxu0 0
        %3441 = vmatpush1.bf16.msra.mxu0 0
        %3442 = vmatprep.subr.bf16.mxu0 0
        %3443 = vmatpush1.bf16.msra.mxu0 0
        %3444 = vmatprep.subr.bf16.mxu0 0
        %3445 = vmatpush1.bf16.msra.mxu0 0
        %3446 = vmatprep.mubr.bf16.mxu0 0
        %3447 = vmatmul.mubr.bf16.gmra.mrb[0].mxu0 %v3251
        %v3448 = vpop.f32.mrb[0].mxu0
        %v3449 = vadd.f32 0.0, %v3448
        %v3450 = vpop.f32.mrb[0].mxu0
        %v3451 = vadd.f32 0.0, %v3450
        %v3452 = vpop.f32.mrb[0].mxu0
        %v3453 = vadd.f32 0.0, %v3452
        %v3454 = vpop.f32.mrb[0].mxu0
        %v3455 = vadd.f32 0.0, %v3454
        %3456 = vmatprep.mubr.bf16.mxu0 0
        %3457 = vmatmul.mubr.bf16.gmra.mrb[0].mxu0 %v3253
        %v3458 = vpop.f32.mrb[0].mxu0
        %v3459 = vadd.f32 0.0, %v3458
        %v3460 = vpop.f32.mrb[0].mxu0
        %v3461 = vadd.f32 0.0, %v3460
        %v3462 = vpop.f32.mrb[0].mxu0
        %v3463 = vadd.f32 0.0, %v3462
        %v3464 = vpop.f32.mrb[0].mxu0
        %v3465 = vadd.f32 0.0, %v3464
        %3466 = vdwg.mxu0
        %v3467 = vpack.c.bf16 %v3294, %v3290
        %v3468 = vpack.c.bf16 %v3296, %v3292
        %v3469 = vpack.c.bf16 %v3304, %v3300
        %v3470 = vpack.c.bf16 %v3306, %v3302
        %v3471 = vpack.c.bf16 %v3347, %v3343
        %v3472 = vpack.c.bf16 %v3349, %v3345
        %v3473 = vpack.c.bf16 %v3357, %v3353
        %v3474 = vpack.c.bf16 %v3359, %v3355
        %v3475 = vpack.c.bf16 %v3400, %v3396
        %v3476 = vpack.c.bf16 %v3402, %v3398
        %v3477 = vpack.c.bf16 %v3410, %v3406
        %v3478 = vpack.c.bf16 %v3412, %v3408
        %v3479 = vpack.c.bf16 %v3453, %v3449
        %v3480 = vpack.c.bf16 %v3455, %v3451
        %v3481 = vpack.c.bf16 %v3463, %v3459
        %v3482 = vpack.c.bf16 %v3465, %v3461
        %v3484 = vlaneseq
        %v3485 = vshrl.u32 %v3484, 7
        %v3486 = vsub.s32 0, %v3485
        %v3487 = vrot.slane %v3250, %v3486
        %v3488 = vlaneseq
        %v3489 = vshrl.u32 %v3488, 7
        %v3490 = vsub.s32 1, %v3489
        %v3491 = vrot.slane %v3250, %v3490
        %v3492 = vlaneseq
        %v3493 = vshrl.u32 %v3492, 7
        %v3494 = vsub.s32 2, %v3493
        %v3495 = vrot.slane %v3250, %v3494
        %v3539 = vunpack.c.l.b16 %v3210
        %v3540 = vunpack.c.h.b16 %v3210
        %v3541 = vunpack.c.l.b16 %v3211
        %v3542 = vunpack.c.l.b16 %v3212
        %v3543 = vunpack.c.h.b16 %v3212
        %v3544 = vunpack.c.l.b16 %v3213
        %v3545 = vunpack.c.l.b16 %v3214
        %v3546 = vunpack.c.h.b16 %v3214
        %v3547 = vunpack.c.l.b16 %v3215
        %v3548 = vunpack.c.l.b16 %v3216
        %v3549 = vunpack.c.h.b16 %v3216
        %v3550 = vunpack.c.l.b16 %v3217
        %v3551 = vunpack.c.l.b16 %v3218
        %v3552 = vunpack.c.h.b16 %v3218
        %v3553 = vunpack.c.l.b16 %v3219
        %v3554 = vunpack.c.l.b16 %v3220
        %v3555 = vunpack.c.h.b16 %v3220
        %v3556 = vunpack.c.l.b16 %v3221
        %v3557 = vunpack.c.l.b16 %v3222
        %v3558 = vunpack.c.h.b16 %v3222
        %v3559 = vunpack.c.l.b16 %v3223
        %v3560 = vunpack.c.l.b16 %v3224
        %v3561 = vunpack.c.h.b16 %v3224
        %v3562 = vunpack.c.l.b16 %v3225
        %v3563 = vunpack.c.l.b16 %v3226
        %v3564 = vunpack.c.h.b16 %v3226
        %v3565 = vunpack.c.l.b16 %v3227
        %v3566 = vunpack.c.l.b16 %v3228
        %v3567 = vunpack.c.h.b16 %v3228
        %v3568 = vunpack.c.l.b16 %v3229
        %v3569 = vunpack.c.l.b16 %v3230
        %v3570 = vunpack.c.h.b16 %v3230
        %v3571 = vunpack.c.l.b16 %v3231
        %v3572 = vunpack.c.l.b16 %v3232
        %v3573 = vunpack.c.h.b16 %v3232
        %v3574 = vunpack.c.l.b16 %v3233
        %v3575 = vunpack.c.l.b16 %v3234
        %v3576 = vunpack.c.h.b16 %v3234
        %v3577 = vunpack.c.l.b16 %v3235
        %v3578 = vunpack.c.l.b16 %v3236
        %v3579 = vunpack.c.h.b16 %v3236
        %v3580 = vunpack.c.l.b16 %v3237
        %v3581 = vunpack.c.l.b16 %v3238
        %v3582 = vunpack.c.h.b16 %v3238
        %v3583 = vunpack.c.l.b16 %v3239
        %v3584 = vunpack.c.l.b16 %v3240
        %v3585 = vunpack.c.h.b16 %v3240
        %v3586 = vunpack.c.l.b16 %v3241
        %v3587 = vunpack.c.l.b16 %v3242
        %v3588 = vunpack.c.h.b16 %v3242
        %v3589 = vunpack.c.l.b16 %v3243
        %v3590 = vunpack.c.l.b16 %v3244
        %v3591 = vunpack.c.h.b16 %v3244
        %v3592 = vunpack.c.l.b16 %v3245
        %v3593 = vunpack.c.l.b16 %v3246
        %v3594 = vunpack.c.h.b16 %v3246
        %v3595 = vunpack.c.l.b16 %v3247
        %v3596 = vunpack.c.l.b16 %v3248
        %v3597 = vunpack.c.h.b16 %v3248
        %v3598 = vunpack.c.l.b16 %v3249
        %v3599 = vpack.c.b16 %v3542, %v3539
        %v3600 = vpack.c.b16 %v3543, %v3540
        %v3601 = vpack.c.b16 %v3544, %v3541
        %v3602 = vpack.c.b16 %v3548, %v3545
        %v3603 = vpack.c.b16 %v3549, %v3546
        %v3604 = vpack.c.b16 %v3550, %v3547
        %v3605 = vpack.c.b16 %v3554, %v3551
        %v3606 = vpack.c.b16 %v3555, %v3552
        %v3607 = vpack.c.b16 %v3556, %v3553
        %v3608 = vpack.c.b16 %v3560, %v3557
        %v3609 = vpack.c.b16 %v3561, %v3558
        %v3610 = vpack.c.b16 %v3562, %v3559
        %v3611 = vpack.c.b16 %v3566, %v3563
        %v3612 = vpack.c.b16 %v3567, %v3564
        %v3613 = vpack.c.b16 %v3568, %v3565
        %v3614 = vpack.c.b16 %v3572, %v3569
        %v3615 = vpack.c.b16 %v3573, %v3570
        %v3616 = vpack.c.b16 %v3574, %v3571
        %v3617 = vpack.c.b16 %v3578, %v3575
        %v3618 = vpack.c.b16 %v3579, %v3576
        %v3619 = vpack.c.b16 %v3580, %v3577
        %v3620 = vpack.c.b16 %v3584, %v3581
        %v3621 = vpack.c.b16 %v3585, %v3582
        %v3622 = vpack.c.b16 %v3586, %v3583
        %v3623 = vpack.c.b16 %v3590, %v3587
        %v3624 = vpack.c.b16 %v3591, %v3588
        %v3625 = vpack.c.b16 %v3592, %v3589
        %v3626 = vpack.c.b16 %v3596, %v3593
        %v3627 = vpack.c.b16 %v3597, %v3594
        %v3628 = vpack.c.b16 %v3598, %v3595
        %v3660 = vsel %vm481, %v3468, 0
        %v3663 = vsel %vm481, %v3470, 0
        %v3666 = vsel %vm481, %v3472, 0
        %v3669 = vsel %vm481, %v3474, 0
        %v3672 = vsel %vm481, %v3476, 0
        %v3675 = vsel %vm481, %v3478, 0
        %v3678 = vsel %vm481, %v3480, 0
        %v3681 = vsel %vm481, %v3482, 0
        %3683 = vmatprep.subr.bf16.mxu0 %v3600
        %3684 = vmatpush1.bf16.msra.mxu0 %v3599
        %3685 = vmatprep.subr.bf16.mxu0 %v3603
        %3686 = vmatpush1.bf16.msra.mxu0 %v3602
        %3687 = vmatprep.subr.bf16.mxu0 %v3606
        %3688 = vmatpush1.bf16.msra.mxu0 %v3605
        %3689 = vmatprep.subr.bf16.mxu0 %v3609
        %3690 = vmatpush1.bf16.msra.mxu0 %v3608
        %3691 = vmatprep.subr.bf16.mxu0 %v3612
        %3692 = vmatpush1.bf16.msra.mxu0 %v3611
        %3693 = vmatprep.subr.bf16.mxu0 %v3615
        %3694 = vmatpush1.bf16.msra.mxu0 %v3614
        %3695 = vmatprep.subr.bf16.mxu0 %v3618
        %3696 = vmatpush1.bf16.msra.mxu0 %v3617
        %3697 = vmatprep.subr.bf16.mxu0 %v3621
        %3698 = vmatpush1.bf16.msra.mxu0 %v3620
        %3699 = vmatprep.subr.bf16.mxu0 %v3624
        %3700 = vmatpush1.bf16.msra.mxu0 %v3623
        %3701 = vmatprep.subr.bf16.mxu0 %v3627
        %3702 = vmatpush1.bf16.msra.mxu0 %v3626
        %3703 = vmatprep.subr.bf16.mxu0 0
        %3704 = vmatpush1.bf16.msra.mxu0 0
        %3705 = vmatprep.subr.bf16.mxu0 0
        %3706 = vmatpush1.bf16.msra.mxu0 0
        %3707 = vmatprep.subr.bf16.mxu0 0
        %3708 = vmatpush1.bf16.msra.mxu0 0
        %3709 = vmatprep.subr.bf16.mxu0 0
        %3710 = vmatpush1.bf16.msra.mxu0 0
        %3711 = vmatprep.subr.bf16.mxu0 0
        %3712 = vmatpush1.bf16.msra.mxu0 0
        %3713 = vmatprep.subr.bf16.mxu0 0
        %3714 = vmatpush1.bf16.msra.mxu0 0
        %3715 = vmatprep.mubr.bf16.mxu0 %v3660
        %3716 = vmatmul.mubr.bf16.gmra.mrb[0].mxu0 %v3467
        %v3717 = vpop.f32.mrb[0].mxu0
        %v3718 = vpop.f32.mrb[0].mxu0
        %v3719 = vpop.f32.mrb[0].mxu0
        %v3720 = vadd.f32 %v3487, %v3719
        %v3721 = vpop.f32.mrb[0].mxu0
        %v3722 = vadd.f32 %v3491, %v3721
        %3723 = vmatprep.mubr.bf16.mxu0 %v3663
        %3724 = vmatmul.mubr.bf16.gmra.mrb[0].mxu0 %v3469
        %v3725 = vpop.f32.mrb[0].mxu0
        %v3726 = vpop.f32.mrb[0].mxu0
        %v3727 = vpop.f32.mrb[0].mxu0
        %v3728 = vpop.f32.mrb[0].mxu0
        %3729 = vmatprep.mubr.bf16.mxu0 %v3666
        %3730 = vmatmul.mubr.bf16.gmra.mrb[0].mxu0 %v3471
        %v3731 = vpop.f32.mrb[0].mxu0
        %v3732 = vpop.f32.mrb[0].mxu0
        %v3733 = vpop.f32.mrb[0].mxu0
        %v3734 = vadd.f32 %v3487, %v3733
        %v3735 = vpop.f32.mrb[0].mxu0
        %v3736 = vadd.f32 %v3491, %v3735
        %3737 = vmatprep.mubr.bf16.mxu0 %v3669
        %3738 = vmatmul.mubr.bf16.gmra.mrb[0].mxu0 %v3473
        %v3739 = vpop.f32.mrb[0].mxu0
        %v3740 = vpop.f32.mrb[0].mxu0
        %v3741 = vpop.f32.mrb[0].mxu0
        %v3742 = vpop.f32.mrb[0].mxu0
        %3743 = vmatprep.mubr.bf16.mxu0 %v3672
        %3744 = vmatmul.mubr.bf16.gmra.mrb[0].mxu0 %v3475
        %v3745 = vpop.f32.mrb[0].mxu0
        %v3746 = vpop.f32.mrb[0].mxu0
        %v3747 = vpop.f32.mrb[0].mxu0
        %v3748 = vadd.f32 %v3487, %v3747
        %v3749 = vpop.f32.mrb[0].mxu0
        %v3750 = vadd.f32 %v3491, %v3749
        %3751 = vmatprep.mubr.bf16.mxu0 %v3675
        %3752 = vmatmul.mubr.bf16.gmra.mrb[0].mxu0 %v3477
        %v3753 = vpop.f32.mrb[0].mxu0
        %v3754 = vpop.f32.mrb[0].mxu0
        %v3755 = vpop.f32.mrb[0].mxu0
        %v3756 = vpop.f32.mrb[0].mxu0
        %3757 = vmatprep.mubr.bf16.mxu0 %v3678
        %3758 = vmatmul.mubr.bf16.gmra.mrb[0].mxu0 %v3479
        %v3759 = vpop.f32.mrb[0].mxu0
        %v3760 = vpop.f32.mrb[0].mxu0
        %v3761 = vpop.f32.mrb[0].mxu0
        %v3762 = vadd.f32 %v3487, %v3761
        %v3763 = vpop.f32.mrb[0].mxu0
        %v3764 = vadd.f32 %v3491, %v3763
        %3765 = vmatprep.mubr.bf16.mxu0 %v3681
        %3766 = vmatmul.mubr.bf16.gmra.mrb[0].mxu0 %v3481
        %v3767 = vpop.f32.mrb[0].mxu0
        %v3768 = vpop.f32.mrb[0].mxu0
        %v3769 = vpop.f32.mrb[0].mxu0
        %v3770 = vpop.f32.mrb[0].mxu0
        %3771 = vdwg.mxu0
        %3772 = vmatprep.subr.bf16.mxu0 0
        %3773 = vmatpush1.bf16.msra.mxu0 %v3601
        %3774 = vmatprep.subr.bf16.mxu0 0
        %3775 = vmatpush1.bf16.msra.mxu0 %v3604
        %3776 = vmatprep.subr.bf16.mxu0 0
        %3777 = vmatpush1.bf16.msra.mxu0 %v3607
        %3778 = vmatprep.subr.bf16.mxu0 0
        %3779 = vmatpush1.bf16.msra.mxu0 %v3610
        %3780 = vmatprep.subr.bf16.mxu0 0
        %3781 = vmatpush1.bf16.msra.mxu0 %v3613
        %3782 = vmatprep.subr.bf16.mxu0 0
        %3783 = vmatpush1.bf16.msra.mxu0 %v3616
        %3784 = vmatprep.subr.bf16.mxu0 0
        %3785 = vmatpush1.bf16.msra.mxu0 %v3619
        %3786 = vmatprep.subr.bf16.mxu0 0
        %3787 = vmatpush1.bf16.msra.mxu0 %v3622
        %3788 = vmatprep.subr.bf16.mxu0 0
        %3789 = vmatpush1.bf16.msra.mxu0 %v3625
        %3790 = vmatprep.subr.bf16.mxu0 0
        %3791 = vmatpush1.bf16.msra.mxu0 %v3628
        %3792 = vmatprep.subr.bf16.mxu0 0
        %3793 = vmatpush1.bf16.msra.mxu0 0
        %3794 = vmatprep.subr.bf16.mxu0 0
        %3795 = vmatpush1.bf16.msra.mxu0 0
        %3796 = vmatprep.subr.bf16.mxu0 0
        %3797 = vmatpush1.bf16.msra.mxu0 0
        %3798 = vmatprep.subr.bf16.mxu0 0
        %3799 = vmatpush1.bf16.msra.mxu0 0
        %3800 = vmatprep.subr.bf16.mxu0 0
        %3801 = vmatpush1.bf16.msra.mxu0 0
        %3802 = vmatprep.subr.bf16.mxu0 0
        %3803 = vmatpush1.bf16.msra.mxu0 0
        %3804 = vmatprep.mubr.bf16.mxu0 %v3660
        %3805 = vmatmul.mubr.bf16.gmra.mrb[0].mxu0 %v3467
        %v3806 = vpop.f32.mrb[0].mxu0
        %v3807 = vpop.f32.mrb[0].mxu0
        %v3808 = vpop.f32.mrb[0].mxu0
        %v3809 = vadd.f32 %v3495, %v3808
        %v3810 = vpop.f32.mrb[0].mxu0
        %3811 = vmatprep.mubr.bf16.mxu0 %v3663
        %3812 = vmatmul.mubr.bf16.gmra.mrb[0].mxu0 %v3469
        %v3813 = vpop.f32.mrb[0].mxu0
        %v3814 = vpop.f32.mrb[0].mxu0
        %v3815 = vpop.f32.mrb[0].mxu0
        %v3816 = vpop.f32.mrb[0].mxu0
        %3817 = vmatprep.mubr.bf16.mxu0 %v3666
        %3818 = vmatmul.mubr.bf16.gmra.mrb[0].mxu0 %v3471
        %v3819 = vpop.f32.mrb[0].mxu0
        %v3820 = vpop.f32.mrb[0].mxu0
        %v3821 = vpop.f32.mrb[0].mxu0
        %v3822 = vadd.f32 %v3495, %v3821
        %v3823 = vpop.f32.mrb[0].mxu0
        %3824 = vmatprep.mubr.bf16.mxu0 %v3669
        %3825 = vmatmul.mubr.bf16.gmra.mrb[0].mxu0 %v3473
        %v3826 = vpop.f32.mrb[0].mxu0
        %v3827 = vpop.f32.mrb[0].mxu0
        %v3828 = vpop.f32.mrb[0].mxu0
        %v3829 = vpop.f32.mrb[0].mxu0
        %3830 = vmatprep.mubr.bf16.mxu0 %v3672
        %3831 = vmatmul.mubr.bf16.gmra.mrb[0].mxu0 %v3475
        %v3832 = vpop.f32.mrb[0].mxu0
        %v3833 = vpop.f32.mrb[0].mxu0
        %v3834 = vpop.f32.mrb[0].mxu0
        %v3835 = vadd.f32 %v3495, %v3834
        %v3836 = vpop.f32.mrb[0].mxu0
        %3837 = vmatprep.mubr.bf16.mxu0 %v3675
        %3838 = vmatmul.mubr.bf16.gmra.mrb[0].mxu0 %v3477
        %v3839 = vpop.f32.mrb[0].mxu0
        %v3840 = vpop.f32.mrb[0].mxu0
        %v3841 = vpop.f32.mrb[0].mxu0
        %v3842 = vpop.f32.mrb[0].mxu0
        %3843 = vmatprep.mubr.bf16.mxu0 %v3678
        %3844 = vmatmul.mubr.bf16.gmra.mrb[0].mxu0 %v3479
        %v3845 = vpop.f32.mrb[0].mxu0
        %v3846 = vpop.f32.mrb[0].mxu0
        %v3847 = vpop.f32.mrb[0].mxu0
        %v3848 = vadd.f32 %v3495, %v3847
        %v3849 = vpop.f32.mrb[0].mxu0
        %3850 = vmatprep.mubr.bf16.mxu0 %v3681
        %3851 = vmatmul.mubr.bf16.gmra.mrb[0].mxu0 %v3481
        %v3852 = vpop.f32.mrb[0].mxu0
        %v3853 = vpop.f32.mrb[0].mxu0
        %v3854 = vpop.f32.mrb[0].mxu0
        %v3855 = vpop.f32.mrb[0].mxu0
        %3856 = vdwg.mxu0
        %v3857 = vxor.u32 %v3722, 2147483648
        %v3858 = vxor.u32 %v3809, 2147483648
        %v3859 = vxor.u32 %v3736, 2147483648
        %v3860 = vxor.u32 %v3822, 2147483648
        %v3861 = vxor.u32 %v3750, 2147483648
        %v3862 = vxor.u32 %v3835, 2147483648
        %v3863 = vxor.u32 %v3764, 2147483648
        %v3864 = vxor.u32 %v3848, 2147483648
        %v3865 = vmul.f32 %v3857, 1.442695
        %v3866 = vpow.pop %v3865
        %v3867 = vmul.f32 %v3858, 1.442695
        %v3868 = vpow.pop %v3867
        %v3869 = vmul.f32 %v3859, 1.442695
        %v3870 = vpow.pop %v3869
        %v3871 = vmul.f32 %v3860, 1.442695
        %v3872 = vpow.pop %v3871
        %v3873 = vmul.f32 %v3861, 1.442695
        %v3874 = vpow.pop %v3873
        %v3875 = vmul.f32 %v3862, 1.442695
        %v3876 = vpow.pop %v3875
        %v3877 = vmul.f32 %v3863, 1.442695
        %v3878 = vpow.pop %v3877
        %v3879 = vmul.f32 %v3864, 1.442695
        %v3880 = vpow.pop %v3879
        %v3881 = vadd.f32 %v3866, 1.0
        %v3882 = vadd.f32 %v3868, 1.0
        %v3883 = vadd.f32 %v3870, 1.0
        %v3884 = vadd.f32 %v3872, 1.0
        %v3885 = vadd.f32 %v3874, 1.0
        %v3886 = vadd.f32 %v3876, 1.0
        %v3887 = vadd.f32 %v3878, 1.0
        %v3888 = vadd.f32 %v3880, 1.0
        %v3889 = vrcp.pop %v3881
        %v3890 = vmul.f32 1.0, %v3889
        %v3891 = vrcp.pop %v3882
        %v3892 = vmul.f32 1.0, %v3891
        %v3893 = vrcp.pop %v3883
        %v3894 = vmul.f32 1.0, %v3893
        %v3895 = vrcp.pop %v3884
        %v3896 = vmul.f32 1.0, %v3895
        %v3897 = vrcp.pop %v3885
        %v3898 = vmul.f32 1.0, %v3897
        %v3899 = vrcp.pop %v3886
        %v3900 = vmul.f32 1.0, %v3899
        %v3901 = vrcp.pop %v3887
        %v3902 = vmul.f32 1.0, %v3901
        %v3903 = vrcp.pop %v3888
        %v3904 = vmul.f32 1.0, %v3903
        %3913 = vrot.lane.b32.xlu0 %v3890, 96
        %v3914 = vpop.permute.xlu0 %3913
        %3915 = vrot.lane.b32.xlu0 %v3892, 96
        %v3916 = vpop.permute.xlu0 %3915
        %3917 = vrot.lane.b32.xlu0 %v3894, 96
        %v3918 = vpop.permute.xlu0 %3917
        %3919 = vrot.lane.b32.xlu0 %v3896, 96
        %v3920 = vpop.permute.xlu0 %3919
        %3921 = vrot.lane.b32.xlu0 %v3898, 96
        %v3922 = vpop.permute.xlu0 %3921
        %3923 = vrot.lane.b32.xlu0 %v3900, 96
        %v3924 = vpop.permute.xlu0 %3923
        %3925 = vrot.lane.b32.xlu0 %v3902, 96
        %v3926 = vpop.permute.xlu0 %3925
        %3927 = vrot.lane.b32.xlu0 %v3904, 96
        %v3928 = vpop.permute.xlu0 %3927
        %v3929 = vsel %vm1199, %v3914, %v3916
        %v3930 = vsel %vm1199, %v3918, %v3920
        %v3931 = vsel %vm1199, %v3922, %v3924
        %v3932 = vsel %vm1199, %v3926, %v3928
        %v3941 = vmul.f32 %v3720, %v3929
        %v3942 = vmul.f32 %v3722, %v3916
        %v3943 = vmul.f32 %v3734, %v3930
        %v3944 = vmul.f32 %v3736, %v3920
        %v3945 = vmul.f32 %v3748, %v3931
        %v3946 = vmul.f32 %v3750, %v3924
        %v3947 = vmul.f32 %v3762, %v3932
        %v3948 = vmul.f32 %v3764, %v3928
        %v3949 = vmax.f32 %v3164, %v3941
        %v3950 = vmax.f32 %v3165, %v3942
        %v3951 = vmax.f32 %v3172, %v3943
        %v3952 = vmax.f32 %v3173, %v3944
        %v3953 = vmax.f32 %v3180, %v3945
        %v3954 = vmax.f32 %v3181, %v3946
        %v3955 = vmax.f32 %v3188, %v3947
        %v3956 = vmax.f32 %v3189, %v3948
        %v3957 = vadd.f32 %v3949, %v1212
        %v3958 = vadd.f32 %v3950, %v1213
        %v3959 = vadd.f32 %v3951, %v1214
        %v3960 = vadd.f32 %v3952, %v1215
        %v3961 = vadd.f32 %v3953, %v1216
        %v3962 = vadd.f32 %v3954, %v1217
        %v3963 = vadd.f32 %v3955, %v1218
        %v3964 = vadd.f32 %v3956, %v1219
        %3965 = vst [vmem:[%s422] sm:$0xff] %v3957
        %3966 = vst.msk [vmem:[%s422 + $0x8] sm:$0xff] %vm481, %v3958
        %3967 = vst [vmem:[%s422 + $0x10] sm:$0xff] %v3959
        %3968 = vst.msk [vmem:[%s422 + $0x18] sm:$0xff] %vm481, %v3960
        %3969 = vst [vmem:[%s422 + $0x20] sm:$0xff] %v3961
        %3970 = vst.msk [vmem:[%s422 + $0x28] sm:$0xff] %vm481, %v3962
        %3971 = vst [vmem:[%s422 + $0x30] sm:$0xff] %v3963
        %3972 = vst.msk [vmem:[%s422 + $0x38] sm:$0xff] %vm481, %v3964
        %s3973 = sand.u32 %s231, 1
        %s3974 = scalar_lea.sflag [#allocation4], %s3973
        %s3975 = sand.u32 %s231, 1
        %s3976 = smul.addr %s3975, 64
        %s3977 = scalar_lea.vmem [#allocation13], %s3976
        // Predicated region
        $region81: #{tpu_custom_call.1} parent=55 // pred_check
          %p3978 = pneg %p241
        $region82: #{tpu_custom_call.1} parent=55 // pred_check_branch
          %3980 = sbr.rel (%p3978) target = $region84
        $region83: #{tpu_custom_call.1} parent=55 // pred_region
          %s3981 = smul.u32 4, %s29
          %s3983 = ssub.s32 1024, 1024
          %3984 = vsyncadd %s3974, %s3983
          %s3985 = smul.addr %s3981, 2
          %s3986 = smul.addr %s3985, 128
          %s3987 = scalar_lea.hbm %s9, %s3986
          %s3988 = sshll.u32 %s3977, 4
          %s3989 = int_to_ptr.vmem [resolvable:$true] %s3988
          %3994 = dma.vmem_to_hbm [thread:$0]  %s3989, 1024, %s3987, %s3974, 256, 256, 16
        $region84: #{tpu_custom_call.1} parent=55 // pred_fallthru
          _
      $region56: #{tpu_custom_call.1} parent=5 // pred_fallthru
        _
      %p3995 = scmp.le.s32.totalorder 2, %s24
      // Predicated region
      $region85: #{tpu_custom_call.1} parent=5 // pred_check
        %p3996 = pneg %p3995
      $region86: #{tpu_custom_call.1} parent=5 // pred_check_branch
        %3998 = sbr.rel (%p3996) target = $region88
      $region87: #{tpu_custom_call.1} parent=5 // pred_region
        %s3999 = ssub.s32 %s24, 2
        // Predicated region
        $region89: #{tpu_custom_call.1} parent=87 // pred_check
          %p4000 = pneg %p247
        $region90: #{tpu_custom_call.1} parent=87 // pred_check_branch
          %4002 = sbr.rel (%p4000) target = $region92
        $region91: #{tpu_custom_call.1} parent=87 // pred_region
          %s4003 = sand.u32 %s232, 1
          %s4004 = scalar_lea.sflag [#allocation4], %s4003
          %s4005 = sand.u32 %s232, 1
          %s4006 = smul.addr %s4005, 64
          %s4007 = scalar_lea.vmem [#allocation13], %s4006
          %4008 = dma.done %s4004, 1024
        $region92: #{tpu_custom_call.1} parent=87 // pred_fallthru
          _
      $region88: #{tpu_custom_call.1} parent=5 // pred_fallthru
        _
    $region6: #{tpu_custom_call.1} parent=1 // loop_footer
      %s28 = sadd.s32 1, %s24
    $region7: #{tpu_custom_call.1} parent=1 // loop_footer_branch
      %23 = sbr.rel target = $region3
    $region8: #{tpu_custom_call.1} parent=1 // loop_exit
      _
    %4009 = vsyncpa [#allocation3], 1
    %s4010 = scalar_lea.sflag [#allocation3], 1
    %4011 = vsyncpa %s4010, 1
    %4012 = vsyncpa [#allocation6], 1
    %4013 = vsyncpa [#allocation9], 1
    %4014 = vsyncpa [#allocation12], 1
    %4015 = vsyncpa [#allocation4], 1
    %s4016 = scalar_lea.sflag [#allocation4], 1
    %4017 = vsyncpa %s4016, 1

</llo_original>
